<compile_context>
chip_gen: v6e
topology: v6e:2x2x1
jax: 0.10.0
libtpu: 0.0.40
codegen_flags: <defaults>
</compile_context>

<pallas_src>
import jax
import jax.numpy as jnp
from jax import lax
from jax.experimental import pallas as pl
from jax.experimental.pallas import tpu as pltpu


_VMEM_LIMIT = 48 * 1024 * 1024    # scoped limit (v7x physical is 64 MiB)
_VMEM_BUDGET = 24 * 1024 * 1024   # target per-grid-step footprint


def _round_up(x, m):
    return (x + m - 1) // m * m


def _cdiv(a, b):
    return -(-a // b)


# ------------------------------- kernel --------------------------------------


def _make_c1_kernel(*, nw, wp, tr, halo, margin, n_blocks):
    """Fused cv1 + n*(3x3 conv) + residual kernel for one (batch, row-tile)."""
    c_lo = halo * wp          # first central flat row of the window
    c_sz = tr * wp            # number of central flat rows (output rows)

    def kernel(xw_ref, mask_ref, w1_ref, b1_ref, w3_ref, b3_ref,
               o_ref, act_ref, resid_ref):
        mask = mask_ref[0]                                     # (nw, 1) f32

        # ---- cv1: 1x1 conv + folded BN + SiLU over the whole halo window ----
        x = xw_ref[0, 0]                                       # (nw, cin) bf16
        y = jnp.dot(x, w1_ref[...], preferred_element_type=jnp.float32)
        y = y + b1_ref[...]
        y = y * jax.nn.sigmoid(y)                              # SiLU (EUP)
        y = y * mask                                           # zero outside image

        # Residual = cv1 output on the central rows (full padded width).
        resid_ref[...] = y[c_lo:c_lo + c_sz, :]

        if n_blocks == 0:
            # self.m is empty -> m(y) + y == 2 * y
            o_ref[0] = (2.0 * resid_ref[...]).astype(o_ref.dtype)
            return

        # Margins absorb the flat-index wrap of the 9 shifted tap loads.
        zeros_m = jnp.zeros((margin, act_ref.shape[1]), act_ref.dtype)
        act_ref[pl.ds(0, margin), :] = zeros_m
        act_ref[pl.ds(margin + nw, margin), :] = zeros_m
        act_ref[pl.ds(margin, nw), :] = y.astype(act_ref.dtype)

        # ---- chained 3x3 conv + BN + SiLU blocks, all resident in VMEM ------
        for i in range(n_blocks):
            acc = jnp.zeros((nw, act_ref.shape[1]), jnp.float32)
            for dy in range(3):
                for dx in range(3):
                    off = margin - (wp + 1) + dy * wp + dx     # static offset
                    tap = act_ref[pl.ds(off, nw), :]           # (nw, c2) bf16
                    acc = acc + jnp.dot(tap, w3_ref[i, dy * 3 + dx],
                                        preferred_element_type=jnp.float32)
            z = acc + b3_ref[i]
            z = z * jax.nn.sigmoid(z)                          # SiLU (EUP)
            if i < n_blocks - 1:
                # Re-zero the out-of-image border so the next block sees the
                # same zero padding the PyTorch Conv would.
                z = z * mask
                act_ref[pl.ds(margin, nw), :] = z.astype(act_ref.dtype)
            else:
                # Last block: fuse the residual add, store only central rows.
                o_ref[0] = (z[c_lo:c_lo + c_sz, :]
                            + resid_ref[...]).astype(o_ref.dtype)

    return kernel


# ------------------------------ tiling ----------------------------------------


def _vmem_estimate(tr, *, W, cin, c2, halo, n_blocks):
    wp = _round_up(W + 2 * halo, 8)
    nw = (tr + 2 * halo) * wp
    margin = _round_up(wp + 1, 16)
    m_rows = nw + 2 * margin
    est = 0
    est += 2 * nw * cin * 2                       # x window block (bf16, 2 bufs)
    est += 2 * nw * 4                             # mask block (f32, 2 bufs)
    est += 2 * tr * wp * c2 * 4                   # output block (f32, 2 bufs)
    est += m_rows * c2 * 2                        # activation scratch (bf16)
    est += tr * wp * c2 * 4                       # residual scratch (f32)
    est += 3 * nw * c2 * 4                        # live f32 values (acc, y/z)
    est += 2 * (cin * c2 + max(n_blocks, 1) * 9 * c2 * c2 + 2 * c2) * 2  # weights
    return est


def _pick_row_tile(B, H, W, cin, c2, halo, n_blocks):
    tr = min(H, 32)
    while tr > 1 and _vmem_estimate(tr, W=W, cin=cin, c2=c2, halo=halo,
                                    n_blocks=n_blocks) > _VMEM_BUDGET:
        tr = max(1, tr // 2)
    # Keep both TensorCores busy (v7x megacore) even at batch 1.
    if B * _cdiv(H, tr) < 2 and tr > 1:
        tr = _cdiv(H, 2)
    return tr


# --------------------------- pallas wrapper -----------------------------------


def c1_forward(x, params):
    """C1 forward. x: (B, Cin, H, W) NCHW; params holds BN-folded weights."""
    B, cin, H, W = x.shape
    w1 = params["cv1_w"].astype(jnp.bfloat16)                  # (Cin, C2)
    b1 = params["cv1_b"].astype(jnp.float32)                   # (1, C2)
    w3 = params.get("m_w")                                     # (n, 9, C2, C2) | None
    n_blocks = 0 if w3 is None else int(w3.shape[0])
    c2 = w1.shape[1]
    halo = n_blocks                                            # 1 ring per 3x3 block

    tr = _pick_row_tile(B, H, W, cin, c2, halo, n_blocks)
    T = _cdiv(H, tr)
    wp = _round_up(W + 2 * halo, 8)                            # sublane-aligned width
    trh = tr + 2 * halo
    nw = trh * wp
    margin = _round_up(wp + 1, 16)
    m_rows = nw + 2 * margin

    # NCHW -> NHWC (bf16), zero-pad rows/cols for the 3x3 chain + alignment.
    x_nhwc = jnp.transpose(x, (0, 2, 3, 1)).astype(jnp.bfloat16)
    x_pad = jnp.pad(x_nhwc, ((0, 0),
                             (halo, T * tr + halo - H),
                             (halo, wp - W - halo),
                             (0, 0)))                          # (B, T*tr+2h, wp, Cin)

    # Overlapping row windows (halo duplication), flattened spatial.
    xw = jnp.concatenate(
        [x_pad[:, t * tr:t * tr + trh].reshape(B, 1, nw, cin) for t in range(T)],
        axis=1)                                                # (B, T, nw, Cin)

    # Per-tile validity mask of the window w.r.t. the true image.
    g_rows = jnp.arange(T)[:, None] * tr + jnp.arange(trh)[None, :] - halo
    row_ok = (g_rows >= 0) & (g_rows < H)                      # (T, trh)
    cols = jnp.arange(wp)
    col_ok = (cols >= halo) & (cols < halo + W)                # (wp,)
    mask = (row_ok[:, :, None] & col_ok[None, None, :]).astype(jnp.float32)
    mask = mask.reshape(T, nw, 1)

    if n_blocks == 0:
        w3k = jnp.zeros((1, 9, c2, c2), jnp.bfloat16)
        b3k = jnp.zeros((1, 1, c2), jnp.float32)
    else:
        w3k = w3.astype(jnp.bfloat16)
        b3k = params["m_b"].astype(jnp.float32).reshape(n_blocks, 1, c2)
    nk = max(n_blocks, 1)

    kernel = _make_c1_kernel(nw=nw, wp=wp, tr=tr, halo=halo, margin=margin,
                             n_blocks=n_blocks)

    out = pl.pallas_call(
        kernel,
        out_shape=jax.ShapeDtypeStruct((B, T * tr * wp, c2), jnp.float32),
        grid_spec=pltpu.PrefetchScalarGridSpec(
            num_scalar_prefetch=0,
            grid=(B, T),
            in_specs=[
                pl.BlockSpec((1, 1, nw, cin), lambda b, t: (b, t, 0, 0)),
                pl.BlockSpec((1, nw, 1), lambda b, t: (t, 0, 0)),
                pl.BlockSpec((cin, c2), lambda b, t: (0, 0)),
                pl.BlockSpec((1, c2), lambda b, t: (0, 0)),
                pl.BlockSpec((nk, 9, c2, c2), lambda b, t: (0, 0, 0, 0)),
                pl.BlockSpec((nk, 1, c2), lambda b, t: (0, 0, 0)),
            ],
            out_specs=pl.BlockSpec((1, tr * wp, c2), lambda b, t: (b, t, 0)),
            scratch_shapes=[
                pltpu.VMEM((m_rows, c2), jnp.bfloat16),        # activation window
                pltpu.VMEM((tr * wp, c2), jnp.float32),        # residual (cv1 out)
            ],
        ),
        compiler_params=pltpu.CompilerParams(
            dimension_semantics=("parallel", "parallel"),
            vmem_limit_bytes=_VMEM_LIMIT),
    )(xw, mask, w1, b1, w3k, b3k)

    out = out.reshape(B, T * tr, wp, c2)[:, :H, halo:halo + W, :]
    return jnp.transpose(out, (0, 3, 1, 2))                    # back to NCHW


# ------------------------------ reference -------------------------------------


def _fold_bn(conv_w_oihw, gamma, beta, mean, var, eps=1e-5):
    scale = gamma / jnp.sqrt(var + eps)
    w = conv_w_oihw * scale[:, None, None, None]
    b = beta - mean * scale
    return w, b


def _reference(x, w1f, b1f, m_list):
    """Pure-JAX f32 reference using lax.conv on the same BN-folded weights."""
    dn = ("NCHW", "OIHW", "NCHW")
    y = lax.conv_general_dilated(x, w1f, (1, 1), "VALID", dimension_numbers=dn,
                                 precision=lax.Precision.HIGHEST)
    y = y + b1f.reshape(1, -1, 1, 1)
    y = y * jax.nn.sigmoid(y)
    z = y
    for wf, bf in m_list:
        z = lax.conv_general_dilated(z, wf, (1, 1), ((1, 1), (1, 1)),
                                     dimension_numbers=dn,
                                     precision=lax.Precision.HIGHEST)
        z = z + bf.reshape(1, -1, 1, 1)
        z = z * jax.nn.sigmoid(z)
    return z + y


# -------------------------------- demo ----------------------------------------


def _run_case(key, *, B, cin, c2, H, W, n, tol):
    keys = iter(jax.random.split(key, 64))

    def rand(shape, scale=1.0):
        return scale * jax.random.normal(next(keys), shape, dtype=jnp.float32)

    def conv_bn(ci, co, k):
        w = rand((co, ci, k, k), 0.2)
        gamma = 1.0 + 0.1 * rand((co,))
        beta = 0.1 * rand((co,))
        mean = 0.1 * rand((co,))
        var = jnp.abs(rand((co,))) + 0.5
        return _fold_bn(w, gamma, beta, mean, var)

    w1f, b1f = conv_bn(cin, c2, 1)
    m_folded = [conv_bn(c2, c2, 3) for _ in range(n)]

    params = {
        "cv1_w": jnp.transpose(w1f[:, :, 0, 0], (1, 0)),            # (Cin, C2)
        "cv1_b": b1f.reshape(1, c2),
        "m_w": (jnp.stack([jnp.transpose(wf, (2, 3, 1, 0)).reshape(9, c2, c2)
                           for wf, _ in m_folded]) if n else None),  # (n,9,C2,C2)
        "m_b": (jnp.stack([bf.reshape(1, c2) for _, bf in m_folded]) if n else None),
    }

    x = rand((B, cin, H, W))
    out = jax.block_until_ready(jax.jit(c1_forward)(x, params))
    ref = _reference(x, w1f, b1f, m_folded)

    assert out.shape == (B, c2, H, W), out.shape
    err = jnp.abs(out - ref)
    max_err = float(jnp.max(err))
    mean_err = float(jnp.mean(err))
    assert max_err < tol, f"mismatch: max err {max_err}"
    assert mean_err < 1.5e-2, f"mismatch: mean err {mean_err}"
    return max_err


if __name__ == "__main__":
    key = jax.random.PRNGKey(0)
    k1, k2 = jax.random.split(key)

    # Case 1: module defaults (n=1), small shapes.
    _run_case(k1, B=2, cin=8, c2=16, H=16, W=16, n=1, tol=8e-2)
    # Case 2: deeper fused chain (n=2), multiple row tiles, uneven H
    # (exercises the between-block border re-zeroing and the halo tiling).
    _run_case(k2, B=1, cin=8, c2=16, H=40, W=20, n=2, tol=1e-1)

    print("KERNEL_OK")
</pallas_src>

<mosaic_0001>
module attributes {stable_mosaic.version = 11 : i64} {
  func.func @kernel(%arg0: i32, %arg1: i32, %arg2: memref<1x1x432x8xbf16, #tpu.memory_space<vmem>>, %arg3: memref<1x432x1xf32, #tpu.memory_space<vmem>>, %arg4: memref<8x16xbf16, #tpu.memory_space<vmem>>, %arg5: memref<1x16xf32, #tpu.memory_space<vmem>>, %arg6: memref<1x9x16x16xbf16, #tpu.memory_space<vmem>>, %arg7: memref<1x1x16xf32, #tpu.memory_space<vmem>>, %arg8: memref<1x384x16xf32, #tpu.memory_space<vmem>>, %arg9: memref<496x16xbf16, #tpu.memory_space<vmem>>, %arg10: memref<384x16xf32, #tpu.memory_space<vmem>>) attributes {dimension_semantics = [#tpu.dimension_semantics<parallel>, #tpu.dimension_semantics<parallel>], iteration_bounds = array<i64: 2, 1>, scalar_prefetch = 0 : i64, scratch_operands = 2 : i64, tpu.core_type = #tpu.core_type<tc>, window_params = [{transform_indices = @transform_0, window_bounds = array<i64: 1, 1, 432, 8>}, {transform_indices = @transform_1, window_bounds = array<i64: 1, 432, 1>}, {pipeline_mode = #tpu.pipeline_mode<synchronous>, transform_indices = @transform_2, window_bounds = array<i64: 8, 16>}, {pipeline_mode = #tpu.pipeline_mode<synchronous>, transform_indices = @transform_3, window_bounds = array<i64: 1, 16>}, {pipeline_mode = #tpu.pipeline_mode<synchronous>, transform_indices = @transform_4, window_bounds = array<i64: 1, 9, 16, 16>}, {pipeline_mode = #tpu.pipeline_mode<synchronous>, transform_indices = @transform_5, window_bounds = array<i64: 1, 1, 16>}, {transform_indices = @transform_6, window_bounds = array<i64: 1, 384, 16>}]} {
    %c0 = arith.constant 0 : index
    %c0_0 = arith.constant 0 : index
    %c0_1 = arith.constant 0 : index
    %0 = vector.load %arg3[%c0, %c0_0, %c0_1] : memref<1x432x1xf32, #tpu.memory_space<vmem>>, vector<1x432x1xf32>
    %1 = vector.shape_cast %0 : vector<1x432x1xf32> to vector<432x1xf32>
    %c0_2 = arith.constant 0 : index
    %c0_3 = arith.constant 0 : index
    %c0_4 = arith.constant 0 : index
    %c0_5 = arith.constant 0 : index
    %2 = vector.load %arg2[%c0_2, %c0_3, %c0_4, %c0_5] : memref<1x1x432x8xbf16, #tpu.memory_space<vmem>>, vector<1x1x432x8xbf16>
    %3 = vector.shape_cast %2 : vector<1x1x432x8xbf16> to vector<432x8xbf16>
    %c0_6 = arith.constant 0 : index
    %c0_7 = arith.constant 0 : index
    %4 = vector.load %arg4[%c0_6, %c0_7] : memref<8x16xbf16, #tpu.memory_space<vmem>>, vector<8x16xbf16>
    %cst = arith.constant dense<0.000000e+00> : vector<432x16xf32>
    %5 = tpu.matmul %3, %4, %cst {dimension_numbers = #tpu.dot_dimension_numbers<[1], [0], [0], [1], [0, 0, 1, 1], [], []>} : vector<432x8xbf16>, vector<8x16xbf16>, vector<432x16xf32> -> vector<432x16xf32>
    %c0_8 = arith.constant 0 : index
    %c0_9 = arith.constant 0 : index
    %6 = vector.load %arg5[%c0_8, %c0_9] : memref<1x16xf32, #tpu.memory_space<vmem>>, vector<1x16xf32>
    %7 = vector.broadcast %6 : vector<1x16xf32> to vector<432x16xf32>
    %8 = arith.addf %5, %7 : vector<432x16xf32>
    %9 = arith.negf %8 : vector<432x16xf32>
    %10 = math.exp %9 : vector<432x16xf32>
    %cst_10 = arith.constant 1.000000e+00 : f32
    %11 = vector.broadcast %cst_10 : f32 to vector<432x16xf32>
    %12 = arith.addf %11, %10 : vector<432x16xf32>
    %13 = arith.divf %11, %12 : vector<432x16xf32>
    %14 = arith.mulf %8, %13 : vector<432x16xf32>
    %15 = vector.broadcast %1 : vector<432x1xf32> to vector<432x16xf32>
    %16 = arith.mulf %14, %15 : vector<432x16xf32>
    %17 = vector.extract_strided_slice %16 {offsets = [24, 0], sizes = [384, 16], strides = [1, 1]} : vector<432x16xf32> to vector<384x16xf32>
    %c0_11 = arith.constant 0 : index
    %c0_12 = arith.constant 0 : index
    %18 = vector.load %arg10[%c0_11, %c0_12] : memref<384x16xf32, #tpu.memory_space<vmem>>, vector<384x16xf32>
    tpu.vector_store %arg10[%c0_11, %c0_12], %17 {strides = array<i32>} : memref<384x16xf32, #tpu.memory_space<vmem>>, vector<384x16xf32>,
    %cst_13 = arith.constant 0.000000e+00 : bf16
    %19 = vector.broadcast %cst_13 : bf16 to vector<32x16xbf16>
    %c0_14 = arith.constant 0 : index
    %c0_15 = arith.constant 0 : index
    %20 = vector.load %arg9[%c0_14, %c0_15] : memref<496x16xbf16, #tpu.memory_space<vmem>>, vector<32x16xbf16>
    tpu.vector_store %arg9[%c0_14, %c0_15], %19 {strides = array<i32>} : memref<496x16xbf16, #tpu.memory_space<vmem>>, vector<32x16xbf16>,
    %c464 = arith.constant 464 : index
    %c0_16 = arith.constant 0 : index
    %21 = vector.load %arg9[%c464, %c0_16] : memref<496x16xbf16, #tpu.memory_space<vmem>>, vector<32x16xbf16>
    tpu.vector_store %arg9[%c464, %c0_16], %19 {strides = array<i32>} : memref<496x16xbf16, #tpu.memory_space<vmem>>, vector<32x16xbf16>,
    %22 = arith.truncf %16 : vector<432x16xf32> to vector<432x16xbf16>
    %c32 = arith.constant 32 : index
    %c0_17 = arith.constant 0 : index
    %23 = vector.load %arg9[%c32, %c0_17] : memref<496x16xbf16, #tpu.memory_space<vmem>>, vector<432x16xbf16>
    tpu.vector_store %arg9[%c32, %c0_17], %22 {strides = array<i32>} : memref<496x16xbf16, #tpu.memory_space<vmem>>, vector<432x16xbf16>,
    %cst_18 = arith.constant 0.000000e+00 : f32
    %24 = vector.broadcast %cst_18 : f32 to vector<432x16xf32>
    %c7 = arith.constant 7 : index
    %c0_19 = arith.constant 0 : index
    %25 = vector.load %arg9[%c7, %c0_19] : memref<496x16xbf16, #tpu.memory_space<vmem>>, vector<432x16xbf16>
    %c0_20 = arith.constant 0 : index
    %c0_21 = arith.constant 0 : index
    %c0_22 = arith.constant 0 : index
    %c0_23 = arith.constant 0 : index
    %26 = vector.load %arg6[%c0_20, %c0_21, %c0_22, %c0_23] : memref<1x9x16x16xbf16, #tpu.memory_space<vmem>>, vector<1x1x16x16xbf16>
    %27 = vector.shape_cast %26 : vector<1x1x16x16xbf16> to vector<16x16xbf16>
    %cst_24 = arith.constant dense<0.000000e+00> : vector<432x16xf32>
    %28 = tpu.matmul %25, %27, %cst_24 {dimension_numbers = #tpu.dot_dimension_numbers<[1], [0], [0], [1], [0, 0, 1, 1], [], []>} : vector<432x16xbf16>, vector<16x16xbf16>, vector<432x16xf32> -> vector<432x16xf32>
    %29 = arith.addf %24, %28 : vector<432x16xf32>
    %c8 = arith.constant 8 : index
    %c0_25 = arith.constant 0 : index
    %30 = vector.load %arg9[%c8, %c0_25] : memref<496x16xbf16, #tpu.memory_space<vmem>>, vector<432x16xbf16>
    %c0_26 = arith.constant 0 : index
    %c1 = arith.constant 1 : index
    %c0_27 = arith.constant 0 : index
    %c0_28 = arith.constant 0 : index
    %31 = vector.load %arg6[%c0_26, %c1, %c0_27, %c0_28] : memref<1x9x16x16xbf16, #tpu.memory_space<vmem>>, vector<1x1x16x16xbf16>
    %32 = vector.shape_cast %31 : vector<1x1x16x16xbf16> to vector<16x16xbf16>
    %cst_29 = arith.constant dense<0.000000e+00> : vector<432x16xf32>
    %33 = tpu.matmul %30, %32, %cst_29 {dimension_numbers = #tpu.dot_dimension_numbers<[1], [0], [0], [1], [0, 0, 1, 1], [], []>} : vector<432x16xbf16>, vector<16x16xbf16>, vector<432x16xf32> -> vector<432x16xf32>
    %34 = arith.addf %29, %33 : vector<432x16xf32>
    %c9 = arith.constant 9 : index
    %c0_30 = arith.constant 0 : index
    %35 = vector.load %arg9[%c9, %c0_30] : memref<496x16xbf16, #tpu.memory_space<vmem>>, vector<432x16xbf16>
    %c0_31 = arith.constant 0 : index
    %c2 = arith.constant 2 : index
    %c0_32 = arith.constant 0 : index
    %c0_33 = arith.constant 0 : index
    %36 = vector.load %arg6[%c0_31, %c2, %c0_32, %c0_33] : memref<1x9x16x16xbf16, #tpu.memory_space<vmem>>, vector<1x1x16x16xbf16>
    %37 = vector.shape_cast %36 : vector<1x1x16x16xbf16> to vector<16x16xbf16>
    %cst_34 = arith.constant dense<0.000000e+00> : vector<432x16xf32>
    %38 = tpu.matmul %35, %37, %cst_34 {dimension_numbers = #tpu.dot_dimension_numbers<[1], [0], [0], [1], [0, 0, 1, 1], [], []>} : vector<432x16xbf16>, vector<16x16xbf16>, vector<432x16xf32> -> vector<432x16xf32>
    %39 = arith.addf %34, %38 : vector<432x16xf32>
    %c31 = arith.constant 31 : index
    %c0_35 = arith.constant 0 : index
    %40 = vector.load %arg9[%c31, %c0_35] : memref<496x16xbf16, #tpu.memory_space<vmem>>, vector<432x16xbf16>
    %c0_36 = arith.constant 0 : index
    %c3 = arith.constant 3 : index
    %c0_37 = arith.constant 0 : index
    %c0_38 = arith.constant 0 : index
    %41 = vector.load %arg6[%c0_36, %c3, %c0_37, %c0_38] : memref<1x9x16x16xbf16, #tpu.memory_space<vmem>>, vector<1x1x16x16xbf16>
    %42 = vector.shape_cast %41 : vector<1x1x16x16xbf16> to vector<16x16xbf16>
    %cst_39 = arith.constant dense<0.000000e+00> : vector<432x16xf32>
    %43 = tpu.matmul %40, %42, %cst_39 {dimension_numbers = #tpu.dot_dimension_numbers<[1], [0], [0], [1], [0, 0, 1, 1], [], []>} : vector<432x16xbf16>, vector<16x16xbf16>, vector<432x16xf32> -> vector<432x16xf32>
    %44 = arith.addf %39, %43 : vector<432x16xf32>
    %c32_40 = arith.constant 32 : index
    %c0_41 = arith.constant 0 : index
    %45 = vector.load %arg9[%c32_40, %c0_41] : memref<496x16xbf16, #tpu.memory_space<vmem>>, vector<432x16xbf16>
    %c0_42 = arith.constant 0 : index
    %c4 = arith.constant 4 : index
    %c0_43 = arith.constant 0 : index
    %c0_44 = arith.constant 0 : index
    %46 = vector.load %arg6[%c0_42, %c4, %c0_43, %c0_44] : memref<1x9x16x16xbf16, #tpu.memory_space<vmem>>, vector<1x1x16x16xbf16>
    %47 = vector.shape_cast %46 : vector<1x1x16x16xbf16> to vector<16x16xbf16>
    %cst_45 = arith.constant dense<0.000000e+00> : vector<432x16xf32>
    %48 = tpu.matmul %45, %47, %cst_45 {dimension_numbers = #tpu.dot_dimension_numbers<[1], [0], [0], [1], [0, 0, 1, 1], [], []>} : vector<432x16xbf16>, vector<16x16xbf16>, vector<432x16xf32> -> vector<432x16xf32>
    %49 = arith.addf %44, %48 : vector<432x16xf32>
    %c33 = arith.constant 33 : index
    %c0_46 = arith.constant 0 : index
    %50 = vector.load %arg9[%c33, %c0_46] : memref<496x16xbf16, #tpu.memory_space<vmem>>, vector<432x16xbf16>
    %c0_47 = arith.constant 0 : index
    %c5 = arith.constant 5 : index
    %c0_48 = arith.constant 0 : index
    %c0_49 = arith.constant 0 : index
    %51 = vector.load %arg6[%c0_47, %c5, %c0_48, %c0_49] : memref<1x9x16x16xbf16, #tpu.memory_space<vmem>>, vector<1x1x16x16xbf16>
    %52 = vector.shape_cast %51 : vector<1x1x16x16xbf16> to vector<16x16xbf16>
    %cst_50 = arith.constant dense<0.000000e+00> : vector<432x16xf32>
    %53 = tpu.matmul %50, %52, %cst_50 {dimension_numbers = #tpu.dot_dimension_numbers<[1], [0], [0], [1], [0, 0, 1, 1], [], []>} : vector<432x16xbf16>, vector<16x16xbf16>, vector<432x16xf32> -> vector<432x16xf32>
    %54 = arith.addf %49, %53 : vector<432x16xf32>
    %c55 = arith.constant 55 : index
    %c0_51 = arith.constant 0 : index
    %55 = vector.load %arg9[%c55, %c0_51] : memref<496x16xbf16, #tpu.memory_space<vmem>>, vector<432x16xbf16>
    %c0_52 = arith.constant 0 : index
    %c6 = arith.constant 6 : index
    %c0_53 = arith.constant 0 : index
    %c0_54 = arith.constant 0 : index
    %56 = vector.load %arg6[%c0_52, %c6, %c0_53, %c0_54] : memref<1x9x16x16xbf16, #tpu.memory_space<vmem>>, vector<1x1x16x16xbf16>
    %57 = vector.shape_cast %56 : vector<1x1x16x16xbf16> to vector<16x16xbf16>
    %cst_55 = arith.constant dense<0.000000e+00> : vector<432x16xf32>
    %58 = tpu.matmul %55, %57, %cst_55 {dimension_numbers = #tpu.dot_dimension_numbers<[1], [0], [0], [1], [0, 0, 1, 1], [], []>} : vector<432x16xbf16>, vector<16x16xbf16>, vector<432x16xf32> -> vector<432x16xf32>
    %59 = arith.addf %54, %58 : vector<432x16xf32>
    %c56 = arith.constant 56 : index
    %c0_56 = arith.constant 0 : index
    %60 = vector.load %arg9[%c56, %c0_56] : memref<496x16xbf16, #tpu.memory_space<vmem>>, vector<432x16xbf16>
    %c0_57 = arith.constant 0 : index
    %c7_58 = arith.constant 7 : index
    %c0_59 = arith.constant 0 : index
    %c0_60 = arith.constant 0 : index
    %61 = vector.load %arg6[%c0_57, %c7_58, %c0_59, %c0_60] : memref<1x9x16x16xbf16, #tpu.memory_space<vmem>>, vector<1x1x16x16xbf16>
    %62 = vector.shape_cast %61 : vector<1x1x16x16xbf16> to vector<16x16xbf16>
    %cst_61 = arith.constant dense<0.000000e+00> : vector<432x16xf32>
    %63 = tpu.matmul %60, %62, %cst_61 {dimension_numbers = #tpu.dot_dimension_numbers<[1], [0], [0], [1], [0, 0, 1, 1], [], []>} : vector<432x16xbf16>, vector<16x16xbf16>, vector<432x16xf32> -> vector<432x16xf32>
    %64 = arith.addf %59, %63 : vector<432x16xf32>
    %c57 = arith.constant 57 : index
    %c0_62 = arith.constant 0 : index
    %65 = vector.load %arg9[%c57, %c0_62] : memref<496x16xbf16, #tpu.memory_space<vmem>>, vector<432x16xbf16>
    %c0_63 = arith.constant 0 : index
    %c8_64 = arith.constant 8 : index
    %c0_65 = arith.constant 0 : index
    %c0_66 = arith.constant 0 : index
    %66 = vector.load %arg6[%c0_63, %c8_64, %c0_65, %c0_66] : memref<1x9x16x16xbf16, #tpu.memory_space<vmem>>, vector<1x1x16x16xbf16>
    %67 = vector.shape_cast %66 : vector<1x1x16x16xbf16> to vector<16x16xbf16>
    %cst_67 = arith.constant dense<0.000000e+00> : vector<432x16xf32>
    %68 = tpu.matmul %65, %67, %cst_67 {dimension_numbers = #tpu.dot_dimension_numbers<[1], [0], [0], [1], [0, 0, 1, 1], [], []>} : vector<432x16xbf16>, vector<16x16xbf16>, vector<432x16xf32> -> vector<432x16xf32>
    %69 = arith.addf %64, %68 : vector<432x16xf32>
    %c0_68 = arith.constant 0 : index
    %c0_69 = arith.constant 0 : index
    %c0_70 = arith.constant 0 : index
    %70 = vector.load %arg7[%c0_68, %c0_69, %c0_70] : memref<1x1x16xf32, #tpu.memory_space<vmem>>, vector<1x1x16xf32>
    %71 = vector.shape_cast %70 : vector<1x1x16xf32> to vector<1x16xf32>
    %72 = vector.broadcast %71 : vector<1x16xf32> to vector<432x16xf32>
    %73 = arith.addf %69, %72 : vector<432x16xf32>
    %74 = arith.negf %73 : vector<432x16xf32>
    %75 = math.exp %74 : vector<432x16xf32>
    %cst_71 = arith.constant 1.000000e+00 : f32
    %76 = vector.broadcast %cst_71 : f32 to vector<432x16xf32>
    %77 = arith.addf %76, %75 : vector<432x16xf32>
    %78 = arith.divf %76, %77 : vector<432x16xf32>
    %79 = arith.mulf %73, %78 : vector<432x16xf32>
    %80 = vector.extract_strided_slice %79 {offsets = [24, 0], sizes = [384, 16], strides = [1, 1]} : vector<432x16xf32> to vector<384x16xf32>
    %c0_72 = arith.constant 0 : index
    %c0_73 = arith.constant 0 : index
    %81 = vector.load %arg10[%c0_72, %c0_73] : memref<384x16xf32, #tpu.memory_space<vmem>>, vector<384x16xf32>
    %82 = arith.addf %80, %81 : vector<384x16xf32>
    %c0_74 = arith.constant 0 : index
    %c0_75 = arith.constant 0 : index
    %c0_76 = arith.constant 0 : index
    %83 = vector.load %arg8[%c0_74, %c0_75, %c0_76] : memref<1x384x16xf32, #tpu.memory_space<vmem>>, vector<1x384x16xf32>
    %84 = vector.shape_cast %83 : vector<1x384x16xf32> to vector<384x16xf32>
    %85 = vector.shape_cast %82 : vector<384x16xf32> to vector<1x384x16xf32>
    tpu.vector_store %arg8[%c0_74, %c0_75, %c0_76], %85 {strides = array<i32>} : memref<1x384x16xf32, #tpu.memory_space<vmem>>, vector<1x384x16xf32>,
    return
  }
  func.func @transform_0(%arg0: i32, %arg1: i32) -> (i32, i32, i32, i32) {
    %c0_i32 = arith.constant 0 : i32
    %c0_i32_0 = arith.constant 0 : i32
    %c0_i32_1 = arith.constant 0 : i32
    return %arg0, %arg1, %c0_i32, %c0_i32_0 : i32, i32, i32, i32
  }
  func.func @transform_1(%arg0: i32, %arg1: i32) -> (i32, i32, i32) {
    %c0_i32 = arith.constant 0 : i32
    %c0_i32_0 = arith.constant 0 : i32
    %c0_i32_1 = arith.constant 0 : i32
    return %arg1, %c0_i32, %c0_i32_0 : i32, i32, i32
  }
  func.func @transform_2(%arg0: i32, %arg1: i32) -> (i32, i32) {
    %c0_i32 = arith.constant 0 : i32
    %c0_i32_0 = arith.constant 0 : i32
    %c0_i32_1 = arith.constant 0 : i32
    return %c0_i32, %c0_i32_0 : i32, i32
  }
  func.func @transform_3(%arg0: i32, %arg1: i32) -> (i32, i32) {
    %c0_i32 = arith.constant 0 : i32
    %c0_i32_0 = arith.constant 0 : i32
    %c0_i32_1 = arith.constant 0 : i32
    return %c0_i32, %c0_i32_0 : i32, i32
  }
  func.func @transform_4(%arg0: i32, %arg1: i32) -> (i32, i32, i32, i32) {
    %c0_i32 = arith.constant 0 : i32
    %c0_i32_0 = arith.constant 0 : i32
    %c0_i32_1 = arith.constant 0 : i32
    %c0_i32_2 = arith.constant 0 : i32
    %c0_i32_3 = arith.constant 0 : i32
    return %c0_i32, %c0_i32_0, %c0_i32_1, %c0_i32_2 : i32, i32, i32, i32
  }
  func.func @transform_5(%arg0: i32, %arg1: i32) -> (i32, i32, i32) {
    %c0_i32 = arith.constant 0 : i32
    %c0_i32_0 = arith.constant 0 : i32
    %c0_i32_1 = arith.constant 0 : i32
    %c0_i32_2 = arith.constant 0 : i32
    return %c0_i32, %c0_i32_0, %c0_i32_1 : i32, i32, i32
  }
  func.func @transform_6(%arg0: i32, %arg1: i32) -> (i32, i32, i32) {
    %c0_i32 = arith.constant 0 : i32
    %c0_i32_0 = arith.constant 0 : i32
    return %arg0, %arg1, %c0_i32 : i32, i32, i32
  }
}

</mosaic_0001>

<llo_original>
// kernel: c1_forward.1
$region0: #{c1_forward.1}
  #allocation0 [shape = 'u32[]', space=smem, size = 0x4, offset = 0x4, fixed_abs, tag = 'smem constant byte address 0x4 - core index']
  #allocation1 [shape = 'u32[144,128]{1,0:T(1,128)}', space=vmem, size = 0x12000, scoped, tag = 'internal scratch']
  #allocation2 [shape = 'bf16[496,16]{1,0:T(8,128)(2,1)}', space=vmem, size = 0x1f000, scoped, tag = 'scratch operand']
  #allocation3 [shape = 'f32[384,16]{1,0:T(8,128)}', space=vmem, size = 0x30000, scoped, tag = 'scratch operand']
  %s0 = inlined_call_operand.vmem [shape: bf16[2,1,432,8], index: 0, kind: input, shape index: {}]
  %s1 = inlined_call_operand.vmem [shape: f32[1,432,1], index: 1, kind: input, shape index: {}]
  %s2 = inlined_call_operand.vmem [shape: bf16[8,16], index: 2, kind: input, shape index: {}]
  %s3 = inlined_call_operand.vmem [shape: f32[1,16], index: 3, kind: input, shape index: {}]
  %s4 = inlined_call_operand.vmem [shape: bf16[1,9,16,16], index: 4, kind: input, shape index: {}]
  %s5 = inlined_call_operand.vmem [shape: f32[1,1,16], index: 5, kind: input, shape index: {}]
  %s6 = inlined_call_operand.vmem [shape: f32[2,384,16], index: 6, kind: output, shape index: {}]
  %s7 = sld [smem:[#allocation0]]
  $region57: #{c1_forward.1} parent=0
    _
  %s9 = ssub.s32 1, %s7
  %s10 = scalar_select 0, %s9, %s7
  loop: start=0, step=1, limit=4
  $region2: #{c1_forward.1} parent=0 // loop_pre_header
    _
  $region3: #{c1_forward.1} parent=0 // loop_header
    %s12 = sphi 0, %s16
    %p13 = scmp.ge.s32.totalorder %s12, 4
    %s19 = sphi 0, %s31
    %s20 = sphi 0, %s27
    %s21 = sphi 0, %s19
    %s22 = sphi 0, %s20
    %s23 = sphi 0, %s21
    %s24 = sphi 0, %s22
    %s36 = sphi 0, %s38
    %s39 = sphi 0, %s36
    %s40 = sphi 0, %s39
    %s56 = sphi 0, %s40
    %s62 = sphi 0, %s64
    %s65 = sphi 0, %s62
    %s66 = sphi 0, %s65
    %s82 = sphi 0, %s66
    %s86 = sphi 0, %s86
    %s88 = sphi 0, %s86
    %s89 = sphi 0, %s88
    %s103 = sphi 0, %s89
    %s107 = sphi 0, %s107
    %s109 = sphi 0, %s107
    %s110 = sphi 0, %s109
    %s124 = sphi 0, %s110
    %s128 = sphi 0, %s128
    %s130 = sphi 0, %s128
    %s131 = sphi 0, %s130
    %s145 = sphi 0, %s131
    %s149 = sphi 0, %s149
    %s151 = sphi 0, %s149
    %s152 = sphi 0, %s151
    %s166 = sphi 0, %s152
    %s174 = sphi 0, %s176
    %s177 = sphi 0, %s174
    %s178 = sphi 0, %s177
    %s194 = sphi 0, %s178
  $region4: #{c1_forward.1} parent=0 // loop_header_branch
    %15 = sbr.rel (%p13) target = $region8
  $region5: #{c1_forward.1} parent=0 // loop_body
    %s17 = ssub.s32 %s12, 1
    %s18 = ssub.s32 %s12, 2
    %s25 = sadd.s32 1, %s20
    %p26 = scmp.ge.s32.totalorder %s25, 1
    %s27 = scalar_select %p26, 0, %s25
    %s28 = sadd.s32 1, %s19
    %s29 = scalar_select %p26, %s28, %s19
    %p30 = scmp.ge.s32.totalorder %s29, 2
    %s31 = scalar_select %p30, 0, %s29
    %s32 = ssub.s32 %s19, %s31
    %s33 = ssub.s32 %s20, %s27
    %s34 = sor.u32 %s32, %s33
    %p35 = scmp.eq.s32.totalorder %s34, 0
    %s37 = sadd.s32 %s36, 1
    %s38 = scalar_select %p35, %s36, %s37
    %p41 = pneg %p35
    %p42 = scmp.eq.s32.totalorder %s12, 1
    %p43 = por %p41, %p42
    %p44 = scmp.ne.s32.totalorder %s36, %s39
    %p45 = scmp.eq.s32.totalorder %s12, 0
    %p46 = por %p44, %p45
    %p47 = scmp.ne.s32.totalorder %s36, %s39
    %p48 = scmp.eq.s32.totalorder %s17, 1
    %p49 = por %p47, %p48
    %p50 = scmp.ne.s32.totalorder %s39, %s40
    %p51 = scmp.eq.s32.totalorder %s17, 0
    %p52 = por %p50, %p51
    %p53 = scmp.ne.s32.totalorder %s39, %s40
    %p54 = scmp.eq.s32.totalorder %s18, 1
    %p55 = por %p53, %p54
    %p57 = scmp.ne.s32.totalorder %s40, %s56
    %p58 = scmp.eq.s32.totalorder %s18, 0
    %p59 = por %p57, %p58
    %s60 = ssub.s32 %s20, %s27
    %p61 = scmp.eq.s32.totalorder %s60, 0
    %s63 = sadd.s32 %s62, 1
    %s64 = scalar_select %p61, %s62, %s63
    %p67 = pneg %p61
    %p68 = scmp.eq.s32.totalorder %s12, 1
    %p69 = por %p67, %p68
    %p70 = scmp.ne.s32.totalorder %s62, %s65
    %p71 = scmp.eq.s32.totalorder %s12, 0
    %p72 = por %p70, %p71
    %p73 = scmp.ne.s32.totalorder %s62, %s65
    %p74 = scmp.eq.s32.totalorder %s17, 1
    %p75 = por %p73, %p74
    %p76 = scmp.ne.s32.totalorder %s65, %s66
    %p77 = scmp.eq.s32.totalorder %s17, 0
    %p78 = por %p76, %p77
    %p79 = scmp.ne.s32.totalorder %s65, %s66
    %p80 = scmp.eq.s32.totalorder %s18, 1
    %p81 = por %p79, %p80
    %p83 = scmp.ne.s32.totalorder %s66, %s82
    %p84 = scmp.eq.s32.totalorder %s18, 0
    %p85 = por %p83, %p84
    %s87 = sadd.s32 %s86, 1
    %p90 = scmp.eq.s32.totalorder %s12, 1
    %p91 = scmp.ne.s32.totalorder %s86, %s88
    %p92 = scmp.eq.s32.totalorder %s12, 0
    %p93 = por %p91, %p92
    %p94 = scmp.ne.s32.totalorder %s86, %s88
    %p95 = scmp.eq.s32.totalorder %s17, 1
    %p96 = por %p94, %p95
    %p97 = scmp.ne.s32.totalorder %s88, %s89
    %p98 = scmp.eq.s32.totalorder %s17, 0
    %p99 = por %p97, %p98
    %p100 = scmp.ne.s32.totalorder %s88, %s89
    %p101 = scmp.eq.s32.totalorder %s18, 1
    %p102 = por %p100, %p101
    %p104 = scmp.ne.s32.totalorder %s89, %s103
    %p105 = scmp.eq.s32.totalorder %s18, 0
    %p106 = por %p104, %p105
    %s108 = sadd.s32 %s107, 1
    %p111 = scmp.eq.s32.totalorder %s12, 1
    %p112 = scmp.ne.s32.totalorder %s107, %s109
    %p113 = scmp.eq.s32.totalorder %s12, 0
    %p114 = por %p112, %p113
    %p115 = scmp.ne.s32.totalorder %s107, %s109
    %p116 = scmp.eq.s32.totalorder %s17, 1
    %p117 = por %p115, %p116
    %p118 = scmp.ne.s32.totalorder %s109, %s110
    %p119 = scmp.eq.s32.totalorder %s17, 0
    %p120 = por %p118, %p119
    %p121 = scmp.ne.s32.totalorder %s109, %s110
    %p122 = scmp.eq.s32.totalorder %s18, 1
    %p123 = por %p121, %p122
    %p125 = scmp.ne.s32.totalorder %s110, %s124
    %p126 = scmp.eq.s32.totalorder %s18, 0
    %p127 = por %p125, %p126
    %s129 = sadd.s32 %s128, 1
    %p132 = scmp.eq.s32.totalorder %s12, 1
    %p133 = scmp.ne.s32.totalorder %s128, %s130
    %p134 = scmp.eq.s32.totalorder %s12, 0
    %p135 = por %p133, %p134
    %p136 = scmp.ne.s32.totalorder %s128, %s130
    %p137 = scmp.eq.s32.totalorder %s17, 1
    %p138 = por %p136, %p137
    %p139 = scmp.ne.s32.totalorder %s130, %s131
    %p140 = scmp.eq.s32.totalorder %s17, 0
    %p141 = por %p139, %p140
    %p142 = scmp.ne.s32.totalorder %s130, %s131
    %p143 = scmp.eq.s32.totalorder %s18, 1
    %p144 = por %p142, %p143
    %p146 = scmp.ne.s32.totalorder %s131, %s145
    %p147 = scmp.eq.s32.totalorder %s18, 0
    %p148 = por %p146, %p147
    %s150 = sadd.s32 %s149, 1
    %p153 = scmp.eq.s32.totalorder %s12, 1
    %p154 = scmp.ne.s32.totalorder %s149, %s151
    %p155 = scmp.eq.s32.totalorder %s12, 0
    %p156 = por %p154, %p155
    %p157 = scmp.ne.s32.totalorder %s149, %s151
    %p158 = scmp.eq.s32.totalorder %s17, 1
    %p159 = por %p157, %p158
    %p160 = scmp.ne.s32.totalorder %s151, %s152
    %p161 = scmp.eq.s32.totalorder %s17, 0
    %p162 = por %p160, %p161
    %p163 = scmp.ne.s32.totalorder %s151, %s152
    %p164 = scmp.eq.s32.totalorder %s18, 1
    %p165 = por %p163, %p164
    %p167 = scmp.ne.s32.totalorder %s152, %s166
    %p168 = scmp.eq.s32.totalorder %s18, 0
    %p169 = por %p167, %p168
    %s170 = ssub.s32 %s19, %s31
    %s171 = ssub.s32 %s20, %s27
    %s172 = sor.u32 %s170, %s171
    %p173 = scmp.eq.s32.totalorder %s172, 0
    %s175 = sadd.s32 %s174, 1
    %s176 = scalar_select %p173, %s174, %s175
    %p179 = pneg %p173
    %p180 = scmp.eq.s32.totalorder %s12, 1
    %p181 = por %p179, %p180
    %p182 = scmp.ne.s32.totalorder %s174, %s177
    %p183 = scmp.eq.s32.totalorder %s12, 0
    %p184 = por %p182, %p183
    %p185 = scmp.ne.s32.totalorder %s174, %s177
    %p186 = scmp.eq.s32.totalorder %s17, 1
    %p187 = por %p185, %p186
    %p188 = scmp.ne.s32.totalorder %s177, %s178
    %p189 = scmp.eq.s32.totalorder %s17, 0
    %p190 = por %p188, %p189
    %p191 = scmp.ne.s32.totalorder %s177, %s178
    %p192 = scmp.eq.s32.totalorder %s18, 1
    %p193 = por %p191, %p192
    %p195 = scmp.ne.s32.totalorder %s178, %s194
    %p196 = scmp.eq.s32.totalorder %s18, 0
    %p197 = por %p195, %p196
    %p198 = scmp.le.s32.totalorder 1, %s12
    %p199 = scmp.lt.s32.totalorder %s12, 3
    %p200 = pnand %p198, %p199
    %p201 = pneg %p200
    // Predicated region
    $region9: #{c1_forward.1} parent=5 // pred_check
      _
    $region10: #{c1_forward.1} parent=5 // pred_check_branch
      %203 = sbr.rel (%p200) target = $region12
    $region11: #{c1_forward.1} parent=5 // pred_region
      %s204 = ssub.s32 %s12, 1
      // Predicated region
      $region13: #{c1_forward.1} parent=11 // pred_check
        %p205 = pneg %p78
      $region14: #{c1_forward.1} parent=11 // pred_check_branch
        %207 = sbr.rel (%p205) target = $region16
      $region15: #{c1_forward.1} parent=11 // pred_region
        %p208 = scmp.lt.s32.totalorder %s22, 0
        %s209 = scalar_select %p208, %s22, 0
        %s210 = smul.addr %s209, 54
        %s211 = smul.addr %s210, 8
        %s212 = scalar_lea.vmem %s1, %s211
      $region16: #{c1_forward.1} parent=11 // pred_fallthru
        _
      // Predicated region
      $region17: #{c1_forward.1} parent=11 // pred_check
        %p213 = pneg %p99
      $region18: #{c1_forward.1} parent=11 // pred_check_branch
        %215 = sbr.rel (%p213) target = $region20
      $region19: #{c1_forward.1} parent=11 // pred_region
        _
      $region20: #{c1_forward.1} parent=11 // pred_fallthru
        _
      // Predicated region
      $region21: #{c1_forward.1} parent=11 // pred_check
        %p216 = pneg %p120
      $region22: #{c1_forward.1} parent=11 // pred_check_branch
        %218 = sbr.rel (%p216) target = $region24
      $region23: #{c1_forward.1} parent=11 // pred_region
        _
      $region24: #{c1_forward.1} parent=11 // pred_fallthru
        _
      // Predicated region
      $region25: #{c1_forward.1} parent=11 // pred_check
        %p219 = pneg %p141
      $region26: #{c1_forward.1} parent=11 // pred_check_branch
        %221 = sbr.rel (%p219) target = $region28
      $region27: #{c1_forward.1} parent=11 // pred_region
        _
      $region28: #{c1_forward.1} parent=11 // pred_fallthru
        _
      // Predicated region
      $region29: #{c1_forward.1} parent=11 // pred_check
        %p222 = pneg %p162
      $region30: #{c1_forward.1} parent=11 // pred_check_branch
        %224 = sbr.rel (%p222) target = $region32
      $region31: #{c1_forward.1} parent=11 // pred_region
        _
      $region32: #{c1_forward.1} parent=11 // pred_fallthru
        _
    $region12: #{c1_forward.1} parent=5 // pred_fallthru
      _
    %p225 = scmp.lt.s32.totalorder %s12, 2
    // Predicated region
    $region33: #{c1_forward.1} parent=5 // pred_check
      %p226 = pneg %p225
    $region34: #{c1_forward.1} parent=5 // pred_check_branch
      %228 = sbr.rel (%p226) target = $region36
    $region35: #{c1_forward.1} parent=5 // pred_region
      // Predicated region
      $region37: #{c1_forward.1} parent=35 // pred_check
        %p229 = pneg %p46
      $region38: #{c1_forward.1} parent=35 // pred_check_branch
        %231 = sbr.rel (%p229) target = $region40
      $region39: #{c1_forward.1} parent=35 // pred_region
        %p232 = scmp.lt.s32.totalorder %s19, 1
        %s233 = scalar_select %p232, %s19, 1
        %p234 = scmp.lt.s32.totalorder %s20, 0
        %s235 = scalar_select %p234, %s20, 0
        %s236 = smul.addr %s235, 54
        %s237 = smul.addr %s233, 54
        %s238 = sadd.s32 %s236, %s237
        %s239 = smul.addr %s238, 4
        %s240 = scalar_lea.vmem %s0, %s239
      $region40: #{c1_forward.1} parent=35 // pred_fallthru
        _
    $region36: #{c1_forward.1} parent=5 // pred_fallthru
      _
    %p241 = scmp.le.s32.totalorder 1, %s12
    %p242 = scmp.lt.s32.totalorder %s12, 3
    %p243 = pnand %p241, %p242
    %p244 = pneg %p243
    // Predicated region
    $region41: #{c1_forward.1} parent=5 // pred_check
      _
    $region42: #{c1_forward.1} parent=5 // pred_check_branch
      %246 = sbr.rel (%p243) target = $region44
    $region43: #{c1_forward.1} parent=5 // pred_region
      %s247 = ssub.s32 %s12, 1
      %p248 = scmp.lt.s32.totalorder %s21, 1
      %s249 = scalar_select %p248, %s21, 1
      %p250 = scmp.lt.s32.totalorder %s22, 0
      %s251 = scalar_select %p250, %s22, 0
      %s252 = smul.addr %s251, 54
      %s253 = smul.addr %s249, 54
      %s254 = sadd.s32 %s252, %s253
      %s255 = smul.addr %s254, 4
      %s256 = scalar_lea.vmem %s0, %s255
      %p257 = pneg %p52
      %p258 = pneg %p49
      %p259 = scmp.lt.s32.totalorder %s22, 0
      %s260 = scalar_select %p259, %s22, 0
      %s261 = smul.addr %s260, 54
      %s262 = smul.addr %s261, 8
      %s263 = scalar_lea.vmem %s1, %s262
      %p264 = pneg %p78
      %p265 = pneg %p75
      %p266 = pneg %p99
      %p267 = pneg %p96
      %p268 = pneg %p120
      %p269 = pneg %p117
      %p270 = pneg %p141
      %p271 = pneg %p138
      %p272 = pneg %p162
      %p273 = pneg %p159
      %p274 = pneg %p190
      %p275 = pneg %p187
      %s276 = smul.u32 48, %s22
      %p277 = scmp.lt.s32.totalorder %s21, 1
      %s278 = scalar_select %p277, %s21, 1
      %p279 = scmp.lt.s32.totalorder %s276, 47
      %s280 = scalar_select %p279, %s276, 47
      %s281 = smul.addr %s278, 48
      %s282 = sadd.s32 %s280, %s281
      %s283 = smul.addr %s282, 8
      %s284 = scalar_lea.vmem %s6, %s283
      %p285 = scmp.lt.s32.totalorder %s21, 1
      %s286 = scalar_select %p285, %s21, 1
      %p287 = scmp.lt.s32.totalorder %s22, 0
      %s288 = scalar_select %p287, %s22, 0
      %s289 = smul.addr %s288, 54
      %s290 = smul.addr %s286, 54
      %s291 = sadd.s32 %s289, %s290
      %s292 = smul.addr %s291, 4
      %s293 = scalar_lea.vmem %s0, %s292
      %p294 = scmp.lt.s32.totalorder %s22, 0
      %s295 = scalar_select %p294, %s22, 0
      %s296 = smul.addr %s295, 54
      %s297 = smul.addr %s296, 8
      %s298 = scalar_lea.vmem %s1, %s297
      %s299 = smul.u32 48, %s22
      %p300 = scmp.lt.s32.totalorder %s21, 1
      %s301 = scalar_select %p300, %s21, 1
      %p302 = scmp.lt.s32.totalorder %s299, 47
      %s303 = scalar_select %p302, %s299, 47
      %s304 = smul.addr %s301, 48
      %s305 = sadd.s32 %s303, %s304
      %s306 = smul.addr %s305, 8
      %s307 = scalar_lea.vmem %s6, %s306
      %s308 = smul.u32 48, %s22
      %v310 = vld [vmem:[%s298] sm:$0xff]
      %v311 = vld [vmem:[%s298 + $0x8] sm:$0xff]
      %v312 = vld [vmem:[%s298 + $0x10] sm:$0xff]
      %v313 = vld [vmem:[%s298 + $0x18] sm:$0xff]
      %v314 = vld [vmem:[%s298 + $0x20] sm:$0xff]
      %v315 = vld [vmem:[%s298 + $0x28] sm:$0xff]
      %v316 = vld [vmem:[%s298 + $0x30] sm:$0xff]
      %v317 = vld [vmem:[%s298 + $0x38] sm:$0xff]
      %v318 = vld [vmem:[%s298 + $0x40] sm:$0xff]
      %v319 = vld [vmem:[%s298 + $0x48] sm:$0xff]
      %v320 = vld [vmem:[%s298 + $0x50] sm:$0xff]
      %v321 = vld [vmem:[%s298 + $0x58] sm:$0xff]
      %v322 = vld [vmem:[%s298 + $0x60] sm:$0xff]
      %v323 = vld [vmem:[%s298 + $0x68] sm:$0xff]
      %v324 = vld [vmem:[%s298 + $0x70] sm:$0xff]
      %v325 = vld [vmem:[%s298 + $0x78] sm:$0xff]
      %v326 = vld [vmem:[%s298 + $0x80] sm:$0xff]
      %v327 = vld [vmem:[%s298 + $0x88] sm:$0xff]
      %v328 = vld [vmem:[%s298 + $0x90] sm:$0xff]
      %v329 = vld [vmem:[%s298 + $0x98] sm:$0xff]
      %v330 = vld [vmem:[%s298 + $0xa0] sm:$0xff]
      %v331 = vld [vmem:[%s298 + $0xa8] sm:$0xff]
      %v332 = vld [vmem:[%s298 + $0xb0] sm:$0xff]
      %v333 = vld [vmem:[%s298 + $0xb8] sm:$0xff]
      %v334 = vld [vmem:[%s298 + $0xc0] sm:$0xff]
      %v335 = vld [vmem:[%s298 + $0xc8] sm:$0xff]
      %v336 = vld [vmem:[%s298 + $0xd0] sm:$0xff]
      %v337 = vld [vmem:[%s298 + $0xd8] sm:$0xff]
      %v338 = vld [vmem:[%s298 + $0xe0] sm:$0xff]
      %v339 = vld [vmem:[%s298 + $0xe8] sm:$0xff]
      %v340 = vld [vmem:[%s298 + $0xf0] sm:$0xff]
      %v341 = vld [vmem:[%s298 + $0xf8] sm:$0xff]
      %v342 = vld [vmem:[%s298 + $0x100] sm:$0xff]
      %v343 = vld [vmem:[%s298 + $0x108] sm:$0xff]
      %v344 = vld [vmem:[%s298 + $0x110] sm:$0xff]
      %v345 = vld [vmem:[%s298 + $0x118] sm:$0xff]
      %v346 = vld [vmem:[%s298 + $0x120] sm:$0xff]
      %v347 = vld [vmem:[%s298 + $0x128] sm:$0xff]
      %v348 = vld [vmem:[%s298 + $0x130] sm:$0xff]
      %v349 = vld [vmem:[%s298 + $0x138] sm:$0xff]
      %v350 = vld [vmem:[%s298 + $0x140] sm:$0xff]
      %v351 = vld [vmem:[%s298 + $0x148] sm:$0xff]
      %v352 = vld [vmem:[%s298 + $0x150] sm:$0xff]
      %v353 = vld [vmem:[%s298 + $0x158] sm:$0xff]
      %v354 = vld [vmem:[%s298 + $0x160] sm:$0xff]
      %v355 = vld [vmem:[%s298 + $0x168] sm:$0xff]
      %v356 = vld [vmem:[%s298 + $0x170] sm:$0xff]
      %v357 = vld [vmem:[%s298 + $0x178] sm:$0xff]
      %v358 = vld [vmem:[%s298 + $0x180] sm:$0xff]
      %v359 = vld [vmem:[%s298 + $0x188] sm:$0xff]
      %v360 = vld [vmem:[%s298 + $0x190] sm:$0xff]
      %v361 = vld [vmem:[%s298 + $0x198] sm:$0xff]
      %v362 = vld [vmem:[%s298 + $0x1a0] sm:$0xff]
      %v363 = vld [vmem:[%s298 + $0x1a8] sm:$0xff]
      %v364 = vld [vmem:[%s293] sm:$0xf]
      %v365 = vld [vmem:[%s293 + $0x4] sm:$0xf]
      %v366 = vld [vmem:[%s293 + $0x8] sm:$0xf]
      %v367 = vld [vmem:[%s293 + $0xc] sm:$0xf]
      %v368 = vld [vmem:[%s293 + $0x10] sm:$0xf]
      %v369 = vld [vmem:[%s293 + $0x14] sm:$0xf]
      %v370 = vld [vmem:[%s293 + $0x18] sm:$0xf]
      %v371 = vld [vmem:[%s293 + $0x1c] sm:$0xf]
      %v372 = vld [vmem:[%s293 + $0x20] sm:$0xf]
      %v373 = vld [vmem:[%s293 + $0x24] sm:$0xf]
      %v374 = vld [vmem:[%s293 + $0x28] sm:$0xf]
      %v375 = vld [vmem:[%s293 + $0x2c] sm:$0xf]
      %v376 = vld [vmem:[%s293 + $0x30] sm:$0xf]
      %v377 = vld [vmem:[%s293 + $0x34] sm:$0xf]
      %v378 = vld [vmem:[%s293 + $0x38] sm:$0xf]
      %v379 = vld [vmem:[%s293 + $0x3c] sm:$0xf]
      %v380 = vld [vmem:[%s293 + $0x40] sm:$0xf]
      %v381 = vld [vmem:[%s293 + $0x44] sm:$0xf]
      %v382 = vld [vmem:[%s293 + $0x48] sm:$0xf]
      %v383 = vld [vmem:[%s293 + $0x4c] sm:$0xf]
      %v384 = vld [vmem:[%s293 + $0x50] sm:$0xf]
      %v385 = vld [vmem:[%s293 + $0x54] sm:$0xf]
      %v386 = vld [vmem:[%s293 + $0x58] sm:$0xf]
      %v387 = vld [vmem:[%s293 + $0x5c] sm:$0xf]
      %v388 = vld [vmem:[%s293 + $0x60] sm:$0xf]
      %v389 = vld [vmem:[%s293 + $0x64] sm:$0xf]
      %v390 = vld [vmem:[%s293 + $0x68] sm:$0xf]
      %v391 = vld [vmem:[%s293 + $0x6c] sm:$0xf]
      %v392 = vld [vmem:[%s293 + $0x70] sm:$0xf]
      %v393 = vld [vmem:[%s293 + $0x74] sm:$0xf]
      %v394 = vld [vmem:[%s293 + $0x78] sm:$0xf]
      %v395 = vld [vmem:[%s293 + $0x7c] sm:$0xf]
      %v396 = vld [vmem:[%s293 + $0x80] sm:$0xf]
      %v397 = vld [vmem:[%s293 + $0x84] sm:$0xf]
      %v398 = vld [vmem:[%s293 + $0x88] sm:$0xf]
      %v399 = vld [vmem:[%s293 + $0x8c] sm:$0xf]
      %v400 = vld [vmem:[%s293 + $0x90] sm:$0xf]
      %v401 = vld [vmem:[%s293 + $0x94] sm:$0xf]
      %v402 = vld [vmem:[%s293 + $0x98] sm:$0xf]
      %v403 = vld [vmem:[%s293 + $0x9c] sm:$0xf]
      %v404 = vld [vmem:[%s293 + $0xa0] sm:$0xf]
      %v405 = vld [vmem:[%s293 + $0xa4] sm:$0xf]
      %v406 = vld [vmem:[%s293 + $0xa8] sm:$0xf]
      %v407 = vld [vmem:[%s293 + $0xac] sm:$0xf]
      %v408 = vld [vmem:[%s293 + $0xb0] sm:$0xf]
      %v409 = vld [vmem:[%s293 + $0xb4] sm:$0xf]
      %v410 = vld [vmem:[%s293 + $0xb8] sm:$0xf]
      %v411 = vld [vmem:[%s293 + $0xbc] sm:$0xf]
      %v412 = vld [vmem:[%s293 + $0xc0] sm:$0xf]
      %v413 = vld [vmem:[%s293 + $0xc4] sm:$0xf]
      %v414 = vld [vmem:[%s293 + $0xc8] sm:$0xf]
      %v415 = vld [vmem:[%s293 + $0xcc] sm:$0xf]
      %v416 = vld [vmem:[%s293 + $0xd0] sm:$0xf]
      %v417 = vld [vmem:[%s293 + $0xd4] sm:$0xf]
      %v418 = vld [vmem:[%s2] sm:$0xf]
      %v419 = vld [vmem:[%s3] sm:$0x1]
      %v421 = vlaneseq
      %v422 = vshrl.u32 %v421, 7
      %v423 = vsub.s32 0, %v422
      %v424 = vrot.slane %v419, %v423
      %v480 = vunpack.c.l.b16 %v364
      %v481 = vunpack.c.l.b16 %v365
      %v482 = vunpack.c.l.b16 %v366
      %v483 = vunpack.c.l.b16 %v367
      %v484 = vunpack.c.l.b16 %v368
      %v485 = vunpack.c.l.b16 %v369
      %v486 = vunpack.c.l.b16 %v370
      %v487 = vunpack.c.l.b16 %v371
      %v488 = vunpack.c.l.b16 %v372
      %v489 = vunpack.c.l.b16 %v373
      %v490 = vunpack.c.l.b16 %v374
      %v491 = vunpack.c.l.b16 %v375
      %v492 = vunpack.c.l.b16 %v376
      %v493 = vunpack.c.l.b16 %v377
      %v494 = vunpack.c.l.b16 %v378
      %v495 = vunpack.c.l.b16 %v379
      %v496 = vunpack.c.l.b16 %v380
      %v497 = vunpack.c.l.b16 %v381
      %v498 = vunpack.c.l.b16 %v382
      %v499 = vunpack.c.l.b16 %v383
      %v500 = vunpack.c.l.b16 %v384
      %v501 = vunpack.c.l.b16 %v385
      %v502 = vunpack.c.l.b16 %v386
      %v503 = vunpack.c.l.b16 %v387
      %v504 = vunpack.c.l.b16 %v388
      %v505 = vunpack.c.l.b16 %v389
      %v506 = vunpack.c.l.b16 %v390
      %v507 = vunpack.c.l.b16 %v391
      %v508 = vunpack.c.l.b16 %v392
      %v509 = vunpack.c.l.b16 %v393
      %v510 = vunpack.c.l.b16 %v394
      %v511 = vunpack.c.l.b16 %v395
      %v512 = vunpack.c.l.b16 %v396
      %v513 = vunpack.c.l.b16 %v397
      %v514 = vunpack.c.l.b16 %v398
      %v515 = vunpack.c.l.b16 %v399
      %v516 = vunpack.c.l.b16 %v400
      %v517 = vunpack.c.l.b16 %v401
      %v518 = vunpack.c.l.b16 %v402
      %v519 = vunpack.c.l.b16 %v403
      %v520 = vunpack.c.l.b16 %v404
      %v521 = vunpack.c.l.b16 %v405
      %v522 = vunpack.c.l.b16 %v406
      %v523 = vunpack.c.l.b16 %v407
      %v524 = vunpack.c.l.b16 %v408
      %v525 = vunpack.c.l.b16 %v409
      %v526 = vunpack.c.l.b16 %v410
      %v527 = vunpack.c.l.b16 %v411
      %v528 = vunpack.c.l.b16 %v412
      %v529 = vunpack.c.l.b16 %v413
      %v530 = vunpack.c.l.b16 %v414
      %v531 = vunpack.c.l.b16 %v415
      %v532 = vunpack.c.l.b16 %v416
      %v533 = vunpack.c.l.b16 %v417
      %v534 = vpack.c.b16 %v481, %v480
      %v535 = vpack.c.b16 %v483, %v482
      %v536 = vpack.c.b16 %v485, %v484
      %v537 = vpack.c.b16 %v487, %v486
      %v538 = vpack.c.b16 %v489, %v488
      %v539 = vpack.c.b16 %v491, %v490
      %v540 = vpack.c.b16 %v493, %v492
      %v541 = vpack.c.b16 %v495, %v494
      %v542 = vpack.c.b16 %v497, %v496
      %v543 = vpack.c.b16 %v499, %v498
      %v544 = vpack.c.b16 %v501, %v500
      %v545 = vpack.c.b16 %v503, %v502
      %v546 = vpack.c.b16 %v505, %v504
      %v547 = vpack.c.b16 %v507, %v506
      %v548 = vpack.c.b16 %v509, %v508
      %v549 = vpack.c.b16 %v511, %v510
      %v550 = vpack.c.b16 %v513, %v512
      %v551 = vpack.c.b16 %v515, %v514
      %v552 = vpack.c.b16 %v517, %v516
      %v553 = vpack.c.b16 %v519, %v518
      %v554 = vpack.c.b16 %v521, %v520
      %v555 = vpack.c.b16 %v523, %v522
      %v556 = vpack.c.b16 %v525, %v524
      %v557 = vpack.c.b16 %v527, %v526
      %v558 = vpack.c.b16 %v529, %v528
      %v559 = vpack.c.b16 %v531, %v530
      %v560 = vpack.c.b16 %v533, %v532
      %vm561 = vcmask 64512
      %v563 = vsel %vm561, %v534, 0
      %v566 = vsel %vm561, %v535, 0
      %v569 = vsel %vm561, %v536, 0
      %v572 = vsel %vm561, %v537, 0
      %v575 = vsel %vm561, %v538, 0
      %v578 = vsel %vm561, %v539, 0
      %v581 = vsel %vm561, %v540, 0
      %v584 = vsel %vm561, %v541, 0
      %v587 = vsel %vm561, %v542, 0
      %v590 = vsel %vm561, %v543, 0
      %v593 = vsel %vm561, %v544, 0
      %v596 = vsel %vm561, %v545, 0
      %v599 = vsel %vm561, %v546, 0
      %v602 = vsel %vm561, %v547, 0
      %v605 = vsel %vm561, %v548, 0
      %v608 = vsel %vm561, %v549, 0
      %v611 = vsel %vm561, %v550, 0
      %v614 = vsel %vm561, %v551, 0
      %v617 = vsel %vm561, %v552, 0
      %v620 = vsel %vm561, %v553, 0
      %v623 = vsel %vm561, %v554, 0
      %v626 = vsel %vm561, %v555, 0
      %v629 = vsel %vm561, %v556, 0
      %v632 = vsel %vm561, %v557, 0
      %v635 = vsel %vm561, %v558, 0
      %v638 = vsel %vm561, %v559, 0
      %v641 = vsel %vm561, %v560, 0
      %vm643 = vcmask 1043456
      %v645 = vsel %vm643, %v418, 0
      %647 = vmatprep.subr.bf16.mxu0 0
      %648 = vmatpush1.bf16.msra.mxu0 0
      %649 = vmatprep.subr.bf16.mxu0 0
      %650 = vmatpush1.bf16.msra.mxu0 0
      %651 = vmatprep.subr.bf16.mxu0 0
      %652 = vmatpush1.bf16.msra.mxu0 0
      %653 = vmatprep.subr.bf16.mxu0 0
      %654 = vmatpush1.bf16.msra.mxu0 0
      %655 = vmatprep.subr.bf16.mxu0 0
      %656 = vmatpush1.bf16.msra.mxu0 0
      %657 = vmatprep.subr.bf16.mxu0 0
      %658 = vmatpush1.bf16.msra.mxu0 0
      %659 = vmatprep.subr.bf16.mxu0 0
      %660 = vmatpush1.bf16.msra.mxu0 0
      %661 = vmatprep.subr.bf16.mxu0 0
      %662 = vmatpush1.bf16.msra.mxu0 %v645
      %663 = vmatprep.subr.bf16.mxu0 0
      %664 = vmatpush2.bf16.msra.mxu0 0
      %665 = vmatprep.subr.bf16.mxu0 0
      %666 = vmatpush2.bf16.msra.mxu0 0
      %667 = vmatprep.subr.bf16.mxu0 0
      %668 = vmatpush2.bf16.msra.mxu0 0
      %669 = vmatprep.subr.bf16.mxu0 0
      %670 = vmatpush2.bf16.msra.mxu0 0
      %671 = vmatprep.subr.bf16.mxu0 0
      %672 = vmatpush2.bf16.msra.mxu0 0
      %673 = vmatprep.subr.bf16.mxu0 0
      %674 = vmatpush2.bf16.msra.mxu0 0
      %675 = vmatprep.subr.bf16.mxu0 0
      %676 = vmatpush2.bf16.msra.mxu0 0
      %677 = vmatprep.subr.bf16.mxu0 0
      %678 = vmatpush2.bf16.msra.mxu0 0
      %679 = vmatprep.mubr.bf16.mxu0 0
      %680 = vmatmul.mubr.bf16.gmra.mxu0 %v563
      %v681 = vpop.f32.mrf.mxu0
      %v682 = vadd.f32 %v424, %v681
      %v683 = vpop.f32.mrf.mxu0
      %v684 = vpop.f32.mrf.mxu0
      %v685 = vadd.f32 %v424, %v684
      %v686 = vpop.f32.mrf.mxu0
      %687 = vmatprep.mubr.bf16.mxu0 0
      %688 = vmatmul.mubr.bf16.gmra.mxu0 %v566
      %v689 = vpop.f32.mrf.mxu0
      %v690 = vadd.f32 %v424, %v689
      %v691 = vpop.f32.mrf.mxu0
      %v692 = vpop.f32.mrf.mxu0
      %v693 = vadd.f32 %v424, %v692
      %v694 = vpop.f32.mrf.mxu0
      %695 = vmatprep.mubr.bf16.mxu0 0
      %696 = vmatmul.mubr.bf16.gmra.mxu0 %v569
      %v697 = vpop.f32.mrf.mxu0
      %v698 = vadd.f32 %v424, %v697
      %v699 = vpop.f32.mrf.mxu0
      %v700 = vpop.f32.mrf.mxu0
      %v701 = vadd.f32 %v424, %v700
      %v702 = vpop.f32.mrf.mxu0
      %703 = vmatprep.mubr.bf16.mxu0 0
      %704 = vmatmul.mubr.bf16.gmra.mxu0 %v572
      %v705 = vpop.f32.mrf.mxu0
      %v706 = vadd.f32 %v424, %v705
      %v707 = vpop.f32.mrf.mxu0
      %v708 = vpop.f32.mrf.mxu0
      %v709 = vadd.f32 %v424, %v708
      %v710 = vpop.f32.mrf.mxu0
      %711 = vmatprep.mubr.bf16.mxu0 0
      %712 = vmatmul.mubr.bf16.gmra.mxu0 %v575
      %v713 = vpop.f32.mrf.mxu0
      %v714 = vadd.f32 %v424, %v713
      %v715 = vpop.f32.mrf.mxu0
      %v716 = vpop.f32.mrf.mxu0
      %v717 = vadd.f32 %v424, %v716
      %v718 = vpop.f32.mrf.mxu0
      %719 = vmatprep.mubr.bf16.mxu0 0
      %720 = vmatmul.mubr.bf16.gmra.mxu0 %v578
      %v721 = vpop.f32.mrf.mxu0
      %v722 = vadd.f32 %v424, %v721
      %v723 = vpop.f32.mrf.mxu0
      %v724 = vpop.f32.mrf.mxu0
      %v725 = vadd.f32 %v424, %v724
      %v726 = vpop.f32.mrf.mxu0
      %727 = vmatprep.mubr.bf16.mxu0 0
      %728 = vmatmul.mubr.bf16.gmra.mxu0 %v581
      %v729 = vpop.f32.mrf.mxu0
      %v730 = vadd.f32 %v424, %v729
      %v731 = vpop.f32.mrf.mxu0
      %v732 = vpop.f32.mrf.mxu0
      %v733 = vadd.f32 %v424, %v732
      %v734 = vpop.f32.mrf.mxu0
      %735 = vmatprep.mubr.bf16.mxu0 0
      %736 = vmatmul.mubr.bf16.gmra.mxu0 %v584
      %v737 = vpop.f32.mrf.mxu0
      %v738 = vadd.f32 %v424, %v737
      %v739 = vpop.f32.mrf.mxu0
      %v740 = vpop.f32.mrf.mxu0
      %v741 = vadd.f32 %v424, %v740
      %v742 = vpop.f32.mrf.mxu0
      %743 = vmatprep.mubr.bf16.mxu0 0
      %744 = vmatmul.mubr.bf16.gmra.mxu0 %v587
      %v745 = vpop.f32.mrf.mxu0
      %v746 = vadd.f32 %v424, %v745
      %v747 = vpop.f32.mrf.mxu0
      %v748 = vpop.f32.mrf.mxu0
      %v749 = vadd.f32 %v424, %v748
      %v750 = vpop.f32.mrf.mxu0
      %751 = vmatprep.mubr.bf16.mxu0 0
      %752 = vmatmul.mubr.bf16.gmra.mxu0 %v590
      %v753 = vpop.f32.mrf.mxu0
      %v754 = vadd.f32 %v424, %v753
      %v755 = vpop.f32.mrf.mxu0
      %v756 = vpop.f32.mrf.mxu0
      %v757 = vadd.f32 %v424, %v756
      %v758 = vpop.f32.mrf.mxu0
      %759 = vmatprep.mubr.bf16.mxu0 0
      %760 = vmatmul.mubr.bf16.gmra.mxu0 %v593
      %v761 = vpop.f32.mrf.mxu0
      %v762 = vadd.f32 %v424, %v761
      %v763 = vpop.f32.mrf.mxu0
      %v764 = vpop.f32.mrf.mxu0
      %v765 = vadd.f32 %v424, %v764
      %v766 = vpop.f32.mrf.mxu0
      %767 = vmatprep.mubr.bf16.mxu0 0
      %768 = vmatmul.mubr.bf16.gmra.mxu0 %v596
      %v769 = vpop.f32.mrf.mxu0
      %v770 = vadd.f32 %v424, %v769
      %v771 = vpop.f32.mrf.mxu0
      %v772 = vpop.f32.mrf.mxu0
      %v773 = vadd.f32 %v424, %v772
      %v774 = vpop.f32.mrf.mxu0
      %775 = vmatprep.mubr.bf16.mxu0 0
      %776 = vmatmul.mubr.bf16.gmra.mxu0 %v599
      %v777 = vpop.f32.mrf.mxu0
      %v778 = vadd.f32 %v424, %v777
      %v779 = vpop.f32.mrf.mxu0
      %v780 = vpop.f32.mrf.mxu0
      %v781 = vadd.f32 %v424, %v780
      %v782 = vpop.f32.mrf.mxu0
      %783 = vmatprep.mubr.bf16.mxu0 0
      %784 = vmatmul.mubr.bf16.gmra.mxu0 %v602
      %v785 = vpop.f32.mrf.mxu0
      %v786 = vadd.f32 %v424, %v785
      %v787 = vpop.f32.mrf.mxu0
      %v788 = vpop.f32.mrf.mxu0
      %v789 = vadd.f32 %v424, %v788
      %v790 = vpop.f32.mrf.mxu0
      %791 = vmatprep.mubr.bf16.mxu0 0
      %792 = vmatmul.mubr.bf16.gmra.mxu0 %v605
      %v793 = vpop.f32.mrf.mxu0
      %v794 = vadd.f32 %v424, %v793
      %v795 = vpop.f32.mrf.mxu0
      %v796 = vpop.f32.mrf.mxu0
      %v797 = vadd.f32 %v424, %v796
      %v798 = vpop.f32.mrf.mxu0
      %799 = vmatprep.mubr.bf16.mxu0 0
      %800 = vmatmul.mubr.bf16.gmra.mxu0 %v608
      %v801 = vpop.f32.mrf.mxu0
      %v802 = vadd.f32 %v424, %v801
      %v803 = vpop.f32.mrf.mxu0
      %v804 = vpop.f32.mrf.mxu0
      %v805 = vadd.f32 %v424, %v804
      %v806 = vpop.f32.mrf.mxu0
      %807 = vmatprep.mubr.bf16.mxu0 0
      %808 = vmatmul.mubr.bf16.gmra.mxu0 %v611
      %v809 = vpop.f32.mrf.mxu0
      %v810 = vadd.f32 %v424, %v809
      %v811 = vpop.f32.mrf.mxu0
      %v812 = vpop.f32.mrf.mxu0
      %v813 = vadd.f32 %v424, %v812
      %v814 = vpop.f32.mrf.mxu0
      %815 = vmatprep.mubr.bf16.mxu0 0
      %816 = vmatmul.mubr.bf16.gmra.mxu0 %v614
      %v817 = vpop.f32.mrf.mxu0
      %v818 = vadd.f32 %v424, %v817
      %v819 = vpop.f32.mrf.mxu0
      %v820 = vpop.f32.mrf.mxu0
      %v821 = vadd.f32 %v424, %v820
      %v822 = vpop.f32.mrf.mxu0
      %823 = vmatprep.mubr.bf16.mxu0 0
      %824 = vmatmul.mubr.bf16.gmra.mxu0 %v617
      %v825 = vpop.f32.mrf.mxu0
      %v826 = vadd.f32 %v424, %v825
      %v827 = vpop.f32.mrf.mxu0
      %v828 = vpop.f32.mrf.mxu0
      %v829 = vadd.f32 %v424, %v828
      %v830 = vpop.f32.mrf.mxu0
      %831 = vmatprep.mubr.bf16.mxu0 0
      %832 = vmatmul.mubr.bf16.gmra.mxu0 %v620
      %v833 = vpop.f32.mrf.mxu0
      %v834 = vadd.f32 %v424, %v833
      %v835 = vpop.f32.mrf.mxu0
      %v836 = vpop.f32.mrf.mxu0
      %v837 = vadd.f32 %v424, %v836
      %v838 = vpop.f32.mrf.mxu0
      %839 = vmatprep.mubr.bf16.mxu0 0
      %840 = vmatmul.mubr.bf16.gmra.mxu0 %v623
      %v841 = vpop.f32.mrf.mxu0
      %v842 = vadd.f32 %v424, %v841
      %v843 = vpop.f32.mrf.mxu0
      %v844 = vpop.f32.mrf.mxu0
      %v845 = vadd.f32 %v424, %v844
      %v846 = vpop.f32.mrf.mxu0
      %847 = vmatprep.mubr.bf16.mxu0 0
      %848 = vmatmul.mubr.bf16.gmra.mxu0 %v626
      %v849 = vpop.f32.mrf.mxu0
      %v850 = vadd.f32 %v424, %v849
      %v851 = vpop.f32.mrf.mxu0
      %v852 = vpop.f32.mrf.mxu0
      %v853 = vadd.f32 %v424, %v852
      %v854 = vpop.f32.mrf.mxu0
      %855 = vmatprep.mubr.bf16.mxu0 0
      %856 = vmatmul.mubr.bf16.gmra.mxu0 %v629
      %v857 = vpop.f32.mrf.mxu0
      %v858 = vadd.f32 %v424, %v857
      %v859 = vpop.f32.mrf.mxu0
      %v860 = vpop.f32.mrf.mxu0
      %v861 = vadd.f32 %v424, %v860
      %v862 = vpop.f32.mrf.mxu0
      %863 = vmatprep.mubr.bf16.mxu0 0
      %864 = vmatmul.mubr.bf16.gmra.mxu0 %v632
      %v865 = vpop.f32.mrf.mxu0
      %v866 = vadd.f32 %v424, %v865
      %v867 = vpop.f32.mrf.mxu0
      %v868 = vpop.f32.mrf.mxu0
      %v869 = vadd.f32 %v424, %v868
      %v870 = vpop.f32.mrf.mxu0
      %871 = vmatprep.mubr.bf16.mxu0 0
      %872 = vmatmul.mubr.bf16.gmra.mxu0 %v635
      %v873 = vpop.f32.mrf.mxu0
      %v874 = vadd.f32 %v424, %v873
      %v875 = vpop.f32.mrf.mxu0
      %v876 = vpop.f32.mrf.mxu0
      %v877 = vadd.f32 %v424, %v876
      %v878 = vpop.f32.mrf.mxu0
      %879 = vmatprep.mubr.bf16.mxu0 0
      %880 = vmatmul.mubr.bf16.gmra.mxu0 %v638
      %v881 = vpop.f32.mrf.mxu0
      %v882 = vadd.f32 %v424, %v881
      %v883 = vpop.f32.mrf.mxu0
      %v884 = vpop.f32.mrf.mxu0
      %v885 = vadd.f32 %v424, %v884
      %v886 = vpop.f32.mrf.mxu0
      %887 = vmatprep.mubr.bf16.mxu0 0
      %888 = vmatmul.mubr.bf16.gmra.mxu0 %v641
      %v889 = vpop.f32.mrf.mxu0
      %v890 = vadd.f32 %v424, %v889
      %v891 = vpop.f32.mrf.mxu0
      %v892 = vpop.f32.mrf.mxu0
      %v893 = vadd.f32 %v424, %v892
      %v894 = vpop.f32.mrf.mxu0
      %895 = vdwg.mxu0
      %v896 = vxor.u32 %v682, 2147483648
      %v897 = vxor.u32 %v685, 2147483648
      %v898 = vxor.u32 %v690, 2147483648
      %v899 = vxor.u32 %v693, 2147483648
      %v900 = vxor.u32 %v698, 2147483648
      %v901 = vxor.u32 %v701, 2147483648
      %v902 = vxor.u32 %v706, 2147483648
      %v903 = vxor.u32 %v709, 2147483648
      %v904 = vxor.u32 %v714, 2147483648
      %v905 = vxor.u32 %v717, 2147483648
      %v906 = vxor.u32 %v722, 2147483648
      %v907 = vxor.u32 %v725, 2147483648
      %v908 = vxor.u32 %v730, 2147483648
      %v909 = vxor.u32 %v733, 2147483648
      %v910 = vxor.u32 %v738, 2147483648
      %v911 = vxor.u32 %v741, 2147483648
      %v912 = vxor.u32 %v746, 2147483648
      %v913 = vxor.u32 %v749, 2147483648
      %v914 = vxor.u32 %v754, 2147483648
      %v915 = vxor.u32 %v757, 2147483648
      %v916 = vxor.u32 %v762, 2147483648
      %v917 = vxor.u32 %v765, 2147483648
      %v918 = vxor.u32 %v770, 2147483648
      %v919 = vxor.u32 %v773, 2147483648
      %v920 = vxor.u32 %v778, 2147483648
      %v921 = vxor.u32 %v781, 2147483648
      %v922 = vxor.u32 %v786, 2147483648
      %v923 = vxor.u32 %v789, 2147483648
      %v924 = vxor.u32 %v794, 2147483648
      %v925 = vxor.u32 %v797, 2147483648
      %v926 = vxor.u32 %v802, 2147483648
      %v927 = vxor.u32 %v805, 2147483648
      %v928 = vxor.u32 %v810, 2147483648
      %v929 = vxor.u32 %v813, 2147483648
      %v930 = vxor.u32 %v818, 2147483648
      %v931 = vxor.u32 %v821, 2147483648
      %v932 = vxor.u32 %v826, 2147483648
      %v933 = vxor.u32 %v829, 2147483648
      %v934 = vxor.u32 %v834, 2147483648
      %v935 = vxor.u32 %v837, 2147483648
      %v936 = vxor.u32 %v842, 2147483648
      %v937 = vxor.u32 %v845, 2147483648
      %v938 = vxor.u32 %v850, 2147483648
      %v939 = vxor.u32 %v853, 2147483648
      %v940 = vxor.u32 %v858, 2147483648
      %v941 = vxor.u32 %v861, 2147483648
      %v942 = vxor.u32 %v866, 2147483648
      %v943 = vxor.u32 %v869, 2147483648
      %v944 = vxor.u32 %v874, 2147483648
      %v945 = vxor.u32 %v877, 2147483648
      %v946 = vxor.u32 %v882, 2147483648
      %v947 = vxor.u32 %v885, 2147483648
      %v948 = vxor.u32 %v890, 2147483648
      %v949 = vxor.u32 %v893, 2147483648
      %v950 = vmul.f32 %v896, 1.442695
      %v951 = vpow.pop %v950
      %v952 = vmul.f32 %v897, 1.442695
      %v953 = vpow.pop %v952
      %v954 = vmul.f32 %v898, 1.442695
      %v955 = vpow.pop %v954
      %v956 = vmul.f32 %v899, 1.442695
      %v957 = vpow.pop %v956
      %v958 = vmul.f32 %v900, 1.442695
      %v959 = vpow.pop %v958
      %v960 = vmul.f32 %v901, 1.442695
      %v961 = vpow.pop %v960
      %v962 = vmul.f32 %v902, 1.442695
      %v963 = vpow.pop %v962
      %v964 = vmul.f32 %v903, 1.442695
      %v965 = vpow.pop %v964
      %v966 = vmul.f32 %v904, 1.442695
      %v967 = vpow.pop %v966
      %v968 = vmul.f32 %v905, 1.442695
      %v969 = vpow.pop %v968
      %v970 = vmul.f32 %v906, 1.442695
      %v971 = vpow.pop %v970
      %v972 = vmul.f32 %v907, 1.442695
      %v973 = vpow.pop %v972
      %v974 = vmul.f32 %v908, 1.442695
      %v975 = vpow.pop %v974
      %v976 = vmul.f32 %v909, 1.442695
      %v977 = vpow.pop %v976
      %v978 = vmul.f32 %v910, 1.442695
      %v979 = vpow.pop %v978
      %v980 = vmul.f32 %v911, 1.442695
      %v981 = vpow.pop %v980
      %v982 = vmul.f32 %v912, 1.442695
      %v983 = vpow.pop %v982
      %v984 = vmul.f32 %v913, 1.442695
      %v985 = vpow.pop %v984
      %v986 = vmul.f32 %v914, 1.442695
      %v987 = vpow.pop %v986
      %v988 = vmul.f32 %v915, 1.442695
      %v989 = vpow.pop %v988
      %v990 = vmul.f32 %v916, 1.442695
      %v991 = vpow.pop %v990
      %v992 = vmul.f32 %v917, 1.442695
      %v993 = vpow.pop %v992
      %v994 = vmul.f32 %v918, 1.442695
      %v995 = vpow.pop %v994
      %v996 = vmul.f32 %v919, 1.442695
      %v997 = vpow.pop %v996
      %v998 = vmul.f32 %v920, 1.442695
      %v999 = vpow.pop %v998
      %v1000 = vmul.f32 %v921, 1.442695
      %v1001 = vpow.pop %v1000
      %v1002 = vmul.f32 %v922, 1.442695
      %v1003 = vpow.pop %v1002
      %v1004 = vmul.f32 %v923, 1.442695
      %v1005 = vpow.pop %v1004
      %v1006 = vmul.f32 %v924, 1.442695
      %v1007 = vpow.pop %v1006
      %v1008 = vmul.f32 %v925, 1.442695
      %v1009 = vpow.pop %v1008
      %v1010 = vmul.f32 %v926, 1.442695
      %v1011 = vpow.pop %v1010
      %v1012 = vmul.f32 %v927, 1.442695
      %v1013 = vpow.pop %v1012
      %v1014 = vmul.f32 %v928, 1.442695
      %v1015 = vpow.pop %v1014
      %v1016 = vmul.f32 %v929, 1.442695
      %v1017 = vpow.pop %v1016
      %v1018 = vmul.f32 %v930, 1.442695
      %v1019 = vpow.pop %v1018
      %v1020 = vmul.f32 %v931, 1.442695
      %v1021 = vpow.pop %v1020
      %v1022 = vmul.f32 %v932, 1.442695
      %v1023 = vpow.pop %v1022
      %v1024 = vmul.f32 %v933, 1.442695
      %v1025 = vpow.pop %v1024
      %v1026 = vmul.f32 %v934, 1.442695
      %v1027 = vpow.pop %v1026
      %v1028 = vmul.f32 %v935, 1.442695
      %v1029 = vpow.pop %v1028
      %v1030 = vmul.f32 %v936, 1.442695
      %v1031 = vpow.pop %v1030
      %v1032 = vmul.f32 %v937, 1.442695
      %v1033 = vpow.pop %v1032
      %v1034 = vmul.f32 %v938, 1.442695
      %v1035 = vpow.pop %v1034
      %v1036 = vmul.f32 %v939, 1.442695
      %v1037 = vpow.pop %v1036
      %v1038 = vmul.f32 %v940, 1.442695
      %v1039 = vpow.pop %v1038
      %v1040 = vmul.f32 %v941, 1.442695
      %v1041 = vpow.pop %v1040
      %v1042 = vmul.f32 %v942, 1.442695
      %v1043 = vpow.pop %v1042
      %v1044 = vmul.f32 %v943, 1.442695
      %v1045 = vpow.pop %v1044
      %v1046 = vmul.f32 %v944, 1.442695
      %v1047 = vpow.pop %v1046
      %v1048 = vmul.f32 %v945, 1.442695
      %v1049 = vpow.pop %v1048
      %v1050 = vmul.f32 %v946, 1.442695
      %v1051 = vpow.pop %v1050
      %v1052 = vmul.f32 %v947, 1.442695
      %v1053 = vpow.pop %v1052
      %v1054 = vmul.f32 %v948, 1.442695
      %v1055 = vpow.pop %v1054
      %v1056 = vmul.f32 %v949, 1.442695
      %v1057 = vpow.pop %v1056
      %v1058 = vadd.f32 %v951, 1.0
      %v1059 = vadd.f32 %v953, 1.0
      %v1060 = vadd.f32 %v955, 1.0
      %v1061 = vadd.f32 %v957, 1.0
      %v1062 = vadd.f32 %v959, 1.0
      %v1063 = vadd.f32 %v961, 1.0
      %v1064 = vadd.f32 %v963, 1.0
      %v1065 = vadd.f32 %v965, 1.0
      %v1066 = vadd.f32 %v967, 1.0
      %v1067 = vadd.f32 %v969, 1.0
      %v1068 = vadd.f32 %v971, 1.0
      %v1069 = vadd.f32 %v973, 1.0
      %v1070 = vadd.f32 %v975, 1.0
      %v1071 = vadd.f32 %v977, 1.0
      %v1072 = vadd.f32 %v979, 1.0
      %v1073 = vadd.f32 %v981, 1.0
      %v1074 = vadd.f32 %v983, 1.0
      %v1075 = vadd.f32 %v985, 1.0
      %v1076 = vadd.f32 %v987, 1.0
      %v1077 = vadd.f32 %v989, 1.0
      %v1078 = vadd.f32 %v991, 1.0
      %v1079 = vadd.f32 %v993, 1.0
      %v1080 = vadd.f32 %v995, 1.0
      %v1081 = vadd.f32 %v997, 1.0
      %v1082 = vadd.f32 %v999, 1.0
      %v1083 = vadd.f32 %v1001, 1.0
      %v1084 = vadd.f32 %v1003, 1.0
      %v1085 = vadd.f32 %v1005, 1.0
      %v1086 = vadd.f32 %v1007, 1.0
      %v1087 = vadd.f32 %v1009, 1.0
      %v1088 = vadd.f32 %v1011, 1.0
      %v1089 = vadd.f32 %v1013, 1.0
      %v1090 = vadd.f32 %v1015, 1.0
      %v1091 = vadd.f32 %v1017, 1.0
      %v1092 = vadd.f32 %v1019, 1.0
      %v1093 = vadd.f32 %v1021, 1.0
      %v1094 = vadd.f32 %v1023, 1.0
      %v1095 = vadd.f32 %v1025, 1.0
      %v1096 = vadd.f32 %v1027, 1.0
      %v1097 = vadd.f32 %v1029, 1.0
      %v1098 = vadd.f32 %v1031, 1.0
      %v1099 = vadd.f32 %v1033, 1.0
      %v1100 = vadd.f32 %v1035, 1.0
      %v1101 = vadd.f32 %v1037, 1.0
      %v1102 = vadd.f32 %v1039, 1.0
      %v1103 = vadd.f32 %v1041, 1.0
      %v1104 = vadd.f32 %v1043, 1.0
      %v1105 = vadd.f32 %v1045, 1.0
      %v1106 = vadd.f32 %v1047, 1.0
      %v1107 = vadd.f32 %v1049, 1.0
      %v1108 = vadd.f32 %v1051, 1.0
      %v1109 = vadd.f32 %v1053, 1.0
      %v1110 = vadd.f32 %v1055, 1.0
      %v1111 = vadd.f32 %v1057, 1.0
      %v1112 = vrcp.pop %v1058
      %v1113 = vmul.f32 1.0, %v1112
      %v1114 = vrcp.pop %v1059
      %v1115 = vmul.f32 1.0, %v1114
      %v1116 = vrcp.pop %v1060
      %v1117 = vmul.f32 1.0, %v1116
      %v1118 = vrcp.pop %v1061
      %v1119 = vmul.f32 1.0, %v1118
      %v1120 = vrcp.pop %v1062
      %v1121 = vmul.f32 1.0, %v1120
      %v1122 = vrcp.pop %v1063
      %v1123 = vmul.f32 1.0, %v1122
      %v1124 = vrcp.pop %v1064
      %v1125 = vmul.f32 1.0, %v1124
      %v1126 = vrcp.pop %v1065
      %v1127 = vmul.f32 1.0, %v1126
      %v1128 = vrcp.pop %v1066
      %v1129 = vmul.f32 1.0, %v1128
      %v1130 = vrcp.pop %v1067
      %v1131 = vmul.f32 1.0, %v1130
      %v1132 = vrcp.pop %v1068
      %v1133 = vmul.f32 1.0, %v1132
      %v1134 = vrcp.pop %v1069
      %v1135 = vmul.f32 1.0, %v1134
      %v1136 = vrcp.pop %v1070
      %v1137 = vmul.f32 1.0, %v1136
      %v1138 = vrcp.pop %v1071
      %v1139 = vmul.f32 1.0, %v1138
      %v1140 = vrcp.pop %v1072
      %v1141 = vmul.f32 1.0, %v1140
      %v1142 = vrcp.pop %v1073
      %v1143 = vmul.f32 1.0, %v1142
      %v1144 = vrcp.pop %v1074
      %v1145 = vmul.f32 1.0, %v1144
      %v1146 = vrcp.pop %v1075
      %v1147 = vmul.f32 1.0, %v1146
      %v1148 = vrcp.pop %v1076
      %v1149 = vmul.f32 1.0, %v1148
      %v1150 = vrcp.pop %v1077
      %v1151 = vmul.f32 1.0, %v1150
      %v1152 = vrcp.pop %v1078
      %v1153 = vmul.f32 1.0, %v1152
      %v1154 = vrcp.pop %v1079
      %v1155 = vmul.f32 1.0, %v1154
      %v1156 = vrcp.pop %v1080
      %v1157 = vmul.f32 1.0, %v1156
      %v1158 = vrcp.pop %v1081
      %v1159 = vmul.f32 1.0, %v1158
      %v1160 = vrcp.pop %v1082
      %v1161 = vmul.f32 1.0, %v1160
      %v1162 = vrcp.pop %v1083
      %v1163 = vmul.f32 1.0, %v1162
      %v1164 = vrcp.pop %v1084
      %v1165 = vmul.f32 1.0, %v1164
      %v1166 = vrcp.pop %v1085
      %v1167 = vmul.f32 1.0, %v1166
      %v1168 = vrcp.pop %v1086
      %v1169 = vmul.f32 1.0, %v1168
      %v1170 = vrcp.pop %v1087
      %v1171 = vmul.f32 1.0, %v1170
      %v1172 = vrcp.pop %v1088
      %v1173 = vmul.f32 1.0, %v1172
      %v1174 = vrcp.pop %v1089
      %v1175 = vmul.f32 1.0, %v1174
      %v1176 = vrcp.pop %v1090
      %v1177 = vmul.f32 1.0, %v1176
      %v1178 = vrcp.pop %v1091
      %v1179 = vmul.f32 1.0, %v1178
      %v1180 = vrcp.pop %v1092
      %v1181 = vmul.f32 1.0, %v1180
      %v1182 = vrcp.pop %v1093
      %v1183 = vmul.f32 1.0, %v1182
      %v1184 = vrcp.pop %v1094
      %v1185 = vmul.f32 1.0, %v1184
      %v1186 = vrcp.pop %v1095
      %v1187 = vmul.f32 1.0, %v1186
      %v1188 = vrcp.pop %v1096
      %v1189 = vmul.f32 1.0, %v1188
      %v1190 = vrcp.pop %v1097
      %v1191 = vmul.f32 1.0, %v1190
      %v1192 = vrcp.pop %v1098
      %v1193 = vmul.f32 1.0, %v1192
      %v1194 = vrcp.pop %v1099
      %v1195 = vmul.f32 1.0, %v1194
      %v1196 = vrcp.pop %v1100
      %v1197 = vmul.f32 1.0, %v1196
      %v1198 = vrcp.pop %v1101
      %v1199 = vmul.f32 1.0, %v1198
      %v1200 = vrcp.pop %v1102
      %v1201 = vmul.f32 1.0, %v1200
      %v1202 = vrcp.pop %v1103
      %v1203 = vmul.f32 1.0, %v1202
      %v1204 = vrcp.pop %v1104
      %v1205 = vmul.f32 1.0, %v1204
      %v1206 = vrcp.pop %v1105
      %v1207 = vmul.f32 1.0, %v1206
      %v1208 = vrcp.pop %v1106
      %v1209 = vmul.f32 1.0, %v1208
      %v1210 = vrcp.pop %v1107
      %v1211 = vmul.f32 1.0, %v1210
      %v1212 = vrcp.pop %v1108
      %v1213 = vmul.f32 1.0, %v1212
      %v1214 = vrcp.pop %v1109
      %v1215 = vmul.f32 1.0, %v1214
      %v1216 = vrcp.pop %v1110
      %v1217 = vmul.f32 1.0, %v1216
      %v1218 = vrcp.pop %v1111
      %v1219 = vmul.f32 1.0, %v1218
      %v1220 = vmul.f32 %v682, %v1113
      %v1221 = vmul.f32 %v685, %v1115
      %v1222 = vmul.f32 %v690, %v1117
      %v1223 = vmul.f32 %v693, %v1119
      %v1224 = vmul.f32 %v698, %v1121
      %v1225 = vmul.f32 %v701, %v1123
      %v1226 = vmul.f32 %v706, %v1125
      %v1227 = vmul.f32 %v709, %v1127
      %v1228 = vmul.f32 %v714, %v1129
      %v1229 = vmul.f32 %v717, %v1131
      %v1230 = vmul.f32 %v722, %v1133
      %v1231 = vmul.f32 %v725, %v1135
      %v1232 = vmul.f32 %v730, %v1137
      %v1233 = vmul.f32 %v733, %v1139
      %v1234 = vmul.f32 %v738, %v1141
      %v1235 = vmul.f32 %v741, %v1143
      %v1236 = vmul.f32 %v746, %v1145
      %v1237 = vmul.f32 %v749, %v1147
      %v1238 = vmul.f32 %v754, %v1149
      %v1239 = vmul.f32 %v757, %v1151
      %v1240 = vmul.f32 %v762, %v1153
      %v1241 = vmul.f32 %v765, %v1155
      %v1242 = vmul.f32 %v770, %v1157
      %v1243 = vmul.f32 %v773, %v1159
      %v1244 = vmul.f32 %v778, %v1161
      %v1245 = vmul.f32 %v781, %v1163
      %v1246 = vmul.f32 %v786, %v1165
      %v1247 = vmul.f32 %v789, %v1167
      %v1248 = vmul.f32 %v794, %v1169
      %v1249 = vmul.f32 %v797, %v1171
      %v1250 = vmul.f32 %v802, %v1173
      %v1251 = vmul.f32 %v805, %v1175
      %v1252 = vmul.f32 %v810, %v1177
      %v1253 = vmul.f32 %v813, %v1179
      %v1254 = vmul.f32 %v818, %v1181
      %v1255 = vmul.f32 %v821, %v1183
      %v1256 = vmul.f32 %v826, %v1185
      %v1257 = vmul.f32 %v829, %v1187
      %v1258 = vmul.f32 %v834, %v1189
      %v1259 = vmul.f32 %v837, %v1191
      %v1260 = vmul.f32 %v842, %v1193
      %v1261 = vmul.f32 %v845, %v1195
      %v1262 = vmul.f32 %v850, %v1197
      %v1263 = vmul.f32 %v853, %v1199
      %v1264 = vmul.f32 %v858, %v1201
      %v1265 = vmul.f32 %v861, %v1203
      %v1266 = vmul.f32 %v866, %v1205
      %v1267 = vmul.f32 %v869, %v1207
      %v1268 = vmul.f32 %v874, %v1209
      %v1269 = vmul.f32 %v877, %v1211
      %v1270 = vmul.f32 %v882, %v1213
      %v1271 = vmul.f32 %v885, %v1215
      %v1272 = vmul.f32 %v890, %v1217
      %v1273 = vmul.f32 %v893, %v1219
      %1275 = vset.pattern.permute.xlu0 0
      %1276 = vperm.xlu0 %1275, %v310
      %v1277 = vpop.permute.xlu0 %1276
      %1280 = vset.pattern.permute.xlu0 0
      %1281 = vperm.xlu0 %1280, %v311
      %v1282 = vpop.permute.xlu0 %1281
      %1285 = vset.pattern.permute.xlu0 0
      %1286 = vperm.xlu0 %1285, %v312
      %v1287 = vpop.permute.xlu0 %1286
      %1290 = vset.pattern.permute.xlu0 0
      %1291 = vperm.xlu0 %1290, %v313
      %v1292 = vpop.permute.xlu0 %1291
      %1295 = vset.pattern.permute.xlu0 0
      %1296 = vperm.xlu0 %1295, %v314
      %v1297 = vpop.permute.xlu0 %1296
      %1300 = vset.pattern.permute.xlu0 0
      %1301 = vperm.xlu0 %1300, %v315
      %v1302 = vpop.permute.xlu0 %1301
      %1305 = vset.pattern.permute.xlu0 0
      %1306 = vperm.xlu0 %1305, %v316
      %v1307 = vpop.permute.xlu0 %1306
      %1310 = vset.pattern.permute.xlu0 0
      %1311 = vperm.xlu0 %1310, %v317
      %v1312 = vpop.permute.xlu0 %1311
      %1315 = vset.pattern.permute.xlu0 0
      %1316 = vperm.xlu0 %1315, %v318
      %v1317 = vpop.permute.xlu0 %1316
      %1320 = vset.pattern.permute.xlu0 0
      %1321 = vperm.xlu0 %1320, %v319
      %v1322 = vpop.permute.xlu0 %1321
      %1325 = vset.pattern.permute.xlu0 0
      %1326 = vperm.xlu0 %1325, %v320
      %v1327 = vpop.permute.xlu0 %1326
      %1330 = vset.pattern.permute.xlu0 0
      %1331 = vperm.xlu0 %1330, %v321
      %v1332 = vpop.permute.xlu0 %1331
      %1335 = vset.pattern.permute.xlu0 0
      %1336 = vperm.xlu0 %1335, %v322
      %v1337 = vpop.permute.xlu0 %1336
      %1340 = vset.pattern.permute.xlu0 0
      %1341 = vperm.xlu0 %1340, %v323
      %v1342 = vpop.permute.xlu0 %1341
      %1345 = vset.pattern.permute.xlu0 0
      %1346 = vperm.xlu0 %1345, %v324
      %v1347 = vpop.permute.xlu0 %1346
      %1350 = vset.pattern.permute.xlu0 0
      %1351 = vperm.xlu0 %1350, %v325
      %v1352 = vpop.permute.xlu0 %1351
      %1355 = vset.pattern.permute.xlu0 0
      %1356 = vperm.xlu0 %1355, %v326
      %v1357 = vpop.permute.xlu0 %1356
      %1360 = vset.pattern.permute.xlu0 0
      %1361 = vperm.xlu0 %1360, %v327
      %v1362 = vpop.permute.xlu0 %1361
      %1365 = vset.pattern.permute.xlu0 0
      %1366 = vperm.xlu0 %1365, %v328
      %v1367 = vpop.permute.xlu0 %1366
      %1370 = vset.pattern.permute.xlu0 0
      %1371 = vperm.xlu0 %1370, %v329
      %v1372 = vpop.permute.xlu0 %1371
      %1375 = vset.pattern.permute.xlu0 0
      %1376 = vperm.xlu0 %1375, %v330
      %v1377 = vpop.permute.xlu0 %1376
      %1380 = vset.pattern.permute.xlu0 0
      %1381 = vperm.xlu0 %1380, %v331
      %v1382 = vpop.permute.xlu0 %1381
      %1385 = vset.pattern.permute.xlu0 0
      %1386 = vperm.xlu0 %1385, %v332
      %v1387 = vpop.permute.xlu0 %1386
      %1390 = vset.pattern.permute.xlu0 0
      %1391 = vperm.xlu0 %1390, %v333
      %v1392 = vpop.permute.xlu0 %1391
      %1395 = vset.pattern.permute.xlu0 0
      %1396 = vperm.xlu0 %1395, %v334
      %v1397 = vpop.permute.xlu0 %1396
      %1400 = vset.pattern.permute.xlu0 0
      %1401 = vperm.xlu0 %1400, %v335
      %v1402 = vpop.permute.xlu0 %1401
      %1405 = vset.pattern.permute.xlu0 0
      %1406 = vperm.xlu0 %1405, %v336
      %v1407 = vpop.permute.xlu0 %1406
      %1410 = vset.pattern.permute.xlu0 0
      %1411 = vperm.xlu0 %1410, %v337
      %v1412 = vpop.permute.xlu0 %1411
      %1415 = vset.pattern.permute.xlu0 0
      %1416 = vperm.xlu0 %1415, %v338
      %v1417 = vpop.permute.xlu0 %1416
      %1420 = vset.pattern.permute.xlu0 0
      %1421 = vperm.xlu0 %1420, %v339
      %v1422 = vpop.permute.xlu0 %1421
      %1425 = vset.pattern.permute.xlu0 0
      %1426 = vperm.xlu0 %1425, %v340
      %v1427 = vpop.permute.xlu0 %1426
      %1430 = vset.pattern.permute.xlu0 0
      %1431 = vperm.xlu0 %1430, %v341
      %v1432 = vpop.permute.xlu0 %1431
      %1435 = vset.pattern.permute.xlu0 0
      %1436 = vperm.xlu0 %1435, %v342
      %v1437 = vpop.permute.xlu0 %1436
      %1440 = vset.pattern.permute.xlu0 0
      %1441 = vperm.xlu0 %1440, %v343
      %v1442 = vpop.permute.xlu0 %1441
      %1445 = vset.pattern.permute.xlu0 0
      %1446 = vperm.xlu0 %1445, %v344
      %v1447 = vpop.permute.xlu0 %1446
      %1450 = vset.pattern.permute.xlu0 0
      %1451 = vperm.xlu0 %1450, %v345
      %v1452 = vpop.permute.xlu0 %1451
      %1455 = vset.pattern.permute.xlu0 0
      %1456 = vperm.xlu0 %1455, %v346
      %v1457 = vpop.permute.xlu0 %1456
      %1460 = vset.pattern.permute.xlu0 0
      %1461 = vperm.xlu0 %1460, %v347
      %v1462 = vpop.permute.xlu0 %1461
      %1465 = vset.pattern.permute.xlu0 0
      %1466 = vperm.xlu0 %1465, %v348
      %v1467 = vpop.permute.xlu0 %1466
      %1470 = vset.pattern.permute.xlu0 0
      %1471 = vperm.xlu0 %1470, %v349
      %v1472 = vpop.permute.xlu0 %1471
      %1475 = vset.pattern.permute.xlu0 0
      %1476 = vperm.xlu0 %1475, %v350
      %v1477 = vpop.permute.xlu0 %1476
      %1480 = vset.pattern.permute.xlu0 0
      %1481 = vperm.xlu0 %1480, %v351
      %v1482 = vpop.permute.xlu0 %1481
      %1485 = vset.pattern.permute.xlu0 0
      %1486 = vperm.xlu0 %1485, %v352
      %v1487 = vpop.permute.xlu0 %1486
      %1490 = vset.pattern.permute.xlu0 0
      %1491 = vperm.xlu0 %1490, %v353
      %v1492 = vpop.permute.xlu0 %1491
      %1495 = vset.pattern.permute.xlu0 0
      %1496 = vperm.xlu0 %1495, %v354
      %v1497 = vpop.permute.xlu0 %1496
      %1500 = vset.pattern.permute.xlu0 0
      %1501 = vperm.xlu0 %1500, %v355
      %v1502 = vpop.permute.xlu0 %1501
      %1505 = vset.pattern.permute.xlu0 0
      %1506 = vperm.xlu0 %1505, %v356
      %v1507 = vpop.permute.xlu0 %1506
      %1510 = vset.pattern.permute.xlu0 0
      %1511 = vperm.xlu0 %1510, %v357
      %v1512 = vpop.permute.xlu0 %1511
      %1515 = vset.pattern.permute.xlu0 0
      %1516 = vperm.xlu0 %1515, %v358
      %v1517 = vpop.permute.xlu0 %1516
      %1520 = vset.pattern.permute.xlu0 0
      %1521 = vperm.xlu0 %1520, %v359
      %v1522 = vpop.permute.xlu0 %1521
      %1525 = vset.pattern.permute.xlu0 0
      %1526 = vperm.xlu0 %1525, %v360
      %v1527 = vpop.permute.xlu0 %1526
      %1530 = vset.pattern.permute.xlu0 0
      %1531 = vperm.xlu0 %1530, %v361
      %v1532 = vpop.permute.xlu0 %1531
      %1535 = vset.pattern.permute.xlu0 0
      %1536 = vperm.xlu0 %1535, %v362
      %v1537 = vpop.permute.xlu0 %1536
      %1540 = vset.pattern.permute.xlu0 0
      %1541 = vperm.xlu0 %1540, %v363
      %v1542 = vpop.permute.xlu0 %1541
      %v1544 = vmul.f32 %v1220, %v1277
      %v1545 = vmul.f32 %v1221, %v1282
      %v1546 = vmul.f32 %v1222, %v1287
      %v1547 = vmul.f32 %v1223, %v1292
      %v1548 = vmul.f32 %v1224, %v1297
      %v1549 = vmul.f32 %v1225, %v1302
      %v1550 = vmul.f32 %v1226, %v1307
      %v1551 = vmul.f32 %v1227, %v1312
      %v1552 = vmul.f32 %v1228, %v1317
      %v1553 = vmul.f32 %v1229, %v1322
      %v1554 = vmul.f32 %v1230, %v1327
      %v1555 = vmul.f32 %v1231, %v1332
      %v1556 = vmul.f32 %v1232, %v1337
      %v1557 = vmul.f32 %v1233, %v1342
      %v1558 = vmul.f32 %v1234, %v1347
      %v1559 = vmul.f32 %v1235, %v1352
      %v1560 = vmul.f32 %v1236, %v1357
      %v1561 = vmul.f32 %v1237, %v1362
      %v1562 = vmul.f32 %v1238, %v1367
      %v1563 = vmul.f32 %v1239, %v1372
      %v1564 = vmul.f32 %v1240, %v1377
      %v1565 = vmul.f32 %v1241, %v1382
      %v1566 = vmul.f32 %v1242, %v1387
      %v1567 = vmul.f32 %v1243, %v1392
      %v1568 = vmul.f32 %v1244, %v1397
      %v1569 = vmul.f32 %v1245, %v1402
      %v1570 = vmul.f32 %v1246, %v1407
      %v1571 = vmul.f32 %v1247, %v1412
      %v1572 = vmul.f32 %v1248, %v1417
      %v1573 = vmul.f32 %v1249, %v1422
      %v1574 = vmul.f32 %v1250, %v1427
      %v1575 = vmul.f32 %v1251, %v1432
      %v1576 = vmul.f32 %v1252, %v1437
      %v1577 = vmul.f32 %v1253, %v1442
      %v1578 = vmul.f32 %v1254, %v1447
      %v1579 = vmul.f32 %v1255, %v1452
      %v1580 = vmul.f32 %v1256, %v1457
      %v1581 = vmul.f32 %v1257, %v1462
      %v1582 = vmul.f32 %v1258, %v1467
      %v1583 = vmul.f32 %v1259, %v1472
      %v1584 = vmul.f32 %v1260, %v1477
      %v1585 = vmul.f32 %v1261, %v1482
      %v1586 = vmul.f32 %v1262, %v1487
      %v1587 = vmul.f32 %v1263, %v1492
      %v1588 = vmul.f32 %v1264, %v1497
      %v1589 = vmul.f32 %v1265, %v1502
      %v1590 = vmul.f32 %v1266, %v1507
      %v1591 = vmul.f32 %v1267, %v1512
      %v1592 = vmul.f32 %v1268, %v1517
      %v1593 = vmul.f32 %v1269, %v1522
      %v1594 = vmul.f32 %v1270, %v1527
      %v1595 = vmul.f32 %v1271, %v1532
      %v1596 = vmul.f32 %v1272, %v1537
      %v1597 = vmul.f32 %v1273, %v1542
      %vm1598 = vcmask 130048
      %1599 = vst.msk [vmem:[#allocation3] sm:$0xff] %vm1598, %v1547
      %1600 = vst.msk [vmem:[#allocation3 + $0x8] sm:$0xff] %vm1598, %v1548
      %1601 = vst.msk [vmem:[#allocation3 + $0x10] sm:$0xff] %vm1598, %v1549
      %1602 = vst.msk [vmem:[#allocation3 + $0x18] sm:$0xff] %vm1598, %v1550
      %1603 = vst.msk [vmem:[#allocation3 + $0x20] sm:$0xff] %vm1598, %v1551
      %1604 = vst.msk [vmem:[#allocation3 + $0x28] sm:$0xff] %vm1598, %v1552
      %1605 = vst.msk [vmem:[#allocation3 + $0x30] sm:$0xff] %vm1598, %v1553
      %1606 = vst.msk [vmem:[#allocation3 + $0x38] sm:$0xff] %vm1598, %v1554
      %1607 = vst.msk [vmem:[#allocation3 + $0x40] sm:$0xff] %vm1598, %v1555
      %1608 = vst.msk [vmem:[#allocation3 + $0x48] sm:$0xff] %vm1598, %v1556
      %1609 = vst.msk [vmem:[#allocation3 + $0x50] sm:$0xff] %vm1598, %v1557
      %1610 = vst.msk [vmem:[#allocation3 + $0x58] sm:$0xff] %vm1598, %v1558
      %1611 = vst.msk [vmem:[#allocation3 + $0x60] sm:$0xff] %vm1598, %v1559
      %1612 = vst.msk [vmem:[#allocation3 + $0x68] sm:$0xff] %vm1598, %v1560
      %1613 = vst.msk [vmem:[#allocation3 + $0x70] sm:$0xff] %vm1598, %v1561
      %1614 = vst.msk [vmem:[#allocation3 + $0x78] sm:$0xff] %vm1598, %v1562
      %1615 = vst.msk [vmem:[#allocation3 + $0x80] sm:$0xff] %vm1598, %v1563
      %1616 = vst.msk [vmem:[#allocation3 + $0x88] sm:$0xff] %vm1598, %v1564
      %1617 = vst.msk [vmem:[#allocation3 + $0x90] sm:$0xff] %vm1598, %v1565
      %1618 = vst.msk [vmem:[#allocation3 + $0x98] sm:$0xff] %vm1598, %v1566
      %1619 = vst.msk [vmem:[#allocation3 + $0xa0] sm:$0xff] %vm1598, %v1567
      %1620 = vst.msk [vmem:[#allocation3 + $0xa8] sm:$0xff] %vm1598, %v1568
      %1621 = vst.msk [vmem:[#allocation3 + $0xb0] sm:$0xff] %vm1598, %v1569
      %1622 = vst.msk [vmem:[#allocation3 + $0xb8] sm:$0xff] %vm1598, %v1570
      %1623 = vst.msk [vmem:[#allocation3 + $0xc0] sm:$0xff] %vm1598, %v1571
      %1624 = vst.msk [vmem:[#allocation3 + $0xc8] sm:$0xff] %vm1598, %v1572
      %1625 = vst.msk [vmem:[#allocation3 + $0xd0] sm:$0xff] %vm1598, %v1573
      %1626 = vst.msk [vmem:[#allocation3 + $0xd8] sm:$0xff] %vm1598, %v1574
      %1627 = vst.msk [vmem:[#allocation3 + $0xe0] sm:$0xff] %vm1598, %v1575
      %1628 = vst.msk [vmem:[#allocation3 + $0xe8] sm:$0xff] %vm1598, %v1576
      %1629 = vst.msk [vmem:[#allocation3 + $0xf0] sm:$0xff] %vm1598, %v1577
      %1630 = vst.msk [vmem:[#allocation3 + $0xf8] sm:$0xff] %vm1598, %v1578
      %1631 = vst.msk [vmem:[#allocation3 + $0x100] sm:$0xff] %vm1598, %v1579
      %1632 = vst.msk [vmem:[#allocation3 + $0x108] sm:$0xff] %vm1598, %v1580
      %1633 = vst.msk [vmem:[#allocation3 + $0x110] sm:$0xff] %vm1598, %v1581
      %1634 = vst.msk [vmem:[#allocation3 + $0x118] sm:$0xff] %vm1598, %v1582
      %1635 = vst.msk [vmem:[#allocation3 + $0x120] sm:$0xff] %vm1598, %v1583
      %1636 = vst.msk [vmem:[#allocation3 + $0x128] sm:$0xff] %vm1598, %v1584
      %1637 = vst.msk [vmem:[#allocation3 + $0x130] sm:$0xff] %vm1598, %v1585
      %1638 = vst.msk [vmem:[#allocation3 + $0x138] sm:$0xff] %vm1598, %v1586
      %1639 = vst.msk [vmem:[#allocation3 + $0x140] sm:$0xff] %vm1598, %v1587
      %1640 = vst.msk [vmem:[#allocation3 + $0x148] sm:$0xff] %vm1598, %v1588
      %1641 = vst.msk [vmem:[#allocation3 + $0x150] sm:$0xff] %vm1598, %v1589
      %1642 = vst.msk [vmem:[#allocation3 + $0x158] sm:$0xff] %vm1598, %v1590
      %1643 = vst.msk [vmem:[#allocation3 + $0x160] sm:$0xff] %vm1598, %v1591
      %1644 = vst.msk [vmem:[#allocation3 + $0x168] sm:$0xff] %vm1598, %v1592
      %1645 = vst.msk [vmem:[#allocation3 + $0x170] sm:$0xff] %vm1598, %v1593
      %1646 = vst.msk [vmem:[#allocation3 + $0x178] sm:$0xff] %vm1598, %v1594
      %vm1647 = vcmask 125952
      %1648 = vst.msk [vmem:[#allocation2] sm:$0xf] %vm1647, 0
      %1649 = vst.msk [vmem:[#allocation2 + $0x4] sm:$0xf] %vm1647, 0
      %1650 = vst.msk [vmem:[#allocation2 + $0x8] sm:$0xf] %vm1647, 0
      %1651 = vst.msk [vmem:[#allocation2 + $0xc] sm:$0xf] %vm1647, 0
      %1652 = vst.msk [vmem:[#allocation2 + $0xe8] sm:$0xf] %vm1647, 0
      %1653 = vst.msk [vmem:[#allocation2 + $0xec] sm:$0xf] %vm1647, 0
      %1654 = vst.msk [vmem:[#allocation2 + $0xf0] sm:$0xf] %vm1647, 0
      %1655 = vst.msk [vmem:[#allocation2 + $0xf4] sm:$0xf] %vm1647, 0
      %v1656 = vpack.c.bf16 %v1545, %v1544
      %v1657 = vpack.c.bf16 %v1547, %v1546
      %v1658 = vpack.c.bf16 %v1549, %v1548
      %v1659 = vpack.c.bf16 %v1551, %v1550
      %v1660 = vpack.c.bf16 %v1553, %v1552
      %v1661 = vpack.c.bf16 %v1555, %v1554
      %v1662 = vpack.c.bf16 %v1557, %v1556
      %v1663 = vpack.c.bf16 %v1559, %v1558
      %v1664 = vpack.c.bf16 %v1561, %v1560
      %v1665 = vpack.c.bf16 %v1563, %v1562
      %v1666 = vpack.c.bf16 %v1565, %v1564
      %v1667 = vpack.c.bf16 %v1567, %v1566
      %v1668 = vpack.c.bf16 %v1569, %v1568
      %v1669 = vpack.c.bf16 %v1571, %v1570
      %v1670 = vpack.c.bf16 %v1573, %v1572
      %v1671 = vpack.c.bf16 %v1575, %v1574
      %v1672 = vpack.c.bf16 %v1577, %v1576
      %v1673 = vpack.c.bf16 %v1579, %v1578
      %v1674 = vpack.c.bf16 %v1581, %v1580
      %v1675 = vpack.c.bf16 %v1583, %v1582
      %v1676 = vpack.c.bf16 %v1585, %v1584
      %v1677 = vpack.c.bf16 %v1587, %v1586
      %v1678 = vpack.c.bf16 %v1589, %v1588
      %v1679 = vpack.c.bf16 %v1591, %v1590
      %v1680 = vpack.c.bf16 %v1593, %v1592
      %v1681 = vpack.c.bf16 %v1595, %v1594
      %v1682 = vpack.c.bf16 %v1597, %v1596
      %v1710 = vunpack.c.l.b16 %v1656
      %v1711 = vunpack.c.h.b16 %v1656
      %v1712 = vunpack.c.l.b16 %v1657
      %v1713 = vunpack.c.h.b16 %v1657
      %v1714 = vunpack.c.l.b16 %v1658
      %v1715 = vunpack.c.h.b16 %v1658
      %v1716 = vunpack.c.l.b16 %v1659
      %v1717 = vunpack.c.h.b16 %v1659
      %v1718 = vunpack.c.l.b16 %v1660
      %v1719 = vunpack.c.h.b16 %v1660
      %v1720 = vunpack.c.l.b16 %v1661
      %v1721 = vunpack.c.h.b16 %v1661
      %v1722 = vunpack.c.l.b16 %v1662
      %v1723 = vunpack.c.h.b16 %v1662
      %v1724 = vunpack.c.l.b16 %v1663
      %v1725 = vunpack.c.h.b16 %v1663
      %v1726 = vunpack.c.l.b16 %v1664
      %v1727 = vunpack.c.h.b16 %v1664
      %v1728 = vunpack.c.l.b16 %v1665
      %v1729 = vunpack.c.h.b16 %v1665
      %v1730 = vunpack.c.l.b16 %v1666
      %v1731 = vunpack.c.h.b16 %v1666
      %v1732 = vunpack.c.l.b16 %v1667
      %v1733 = vunpack.c.h.b16 %v1667
      %v1734 = vunpack.c.l.b16 %v1668
      %v1735 = vunpack.c.h.b16 %v1668
      %v1736 = vunpack.c.l.b16 %v1669
      %v1737 = vunpack.c.h.b16 %v1669
      %v1738 = vunpack.c.l.b16 %v1670
      %v1739 = vunpack.c.h.b16 %v1670
      %v1740 = vunpack.c.l.b16 %v1671
      %v1741 = vunpack.c.h.b16 %v1671
      %v1742 = vunpack.c.l.b16 %v1672
      %v1743 = vunpack.c.h.b16 %v1672
      %v1744 = vunpack.c.l.b16 %v1673
      %v1745 = vunpack.c.h.b16 %v1673
      %v1746 = vunpack.c.l.b16 %v1674
      %v1747 = vunpack.c.h.b16 %v1674
      %v1748 = vunpack.c.l.b16 %v1675
      %v1749 = vunpack.c.h.b16 %v1675
      %v1750 = vunpack.c.l.b16 %v1676
      %v1751 = vunpack.c.h.b16 %v1676
      %v1752 = vunpack.c.l.b16 %v1677
      %v1753 = vunpack.c.h.b16 %v1677
      %v1754 = vunpack.c.l.b16 %v1678
      %v1755 = vunpack.c.h.b16 %v1678
      %v1756 = vunpack.c.l.b16 %v1679
      %v1757 = vunpack.c.h.b16 %v1679
      %v1758 = vunpack.c.l.b16 %v1680
      %v1759 = vunpack.c.h.b16 %v1680
      %v1760 = vunpack.c.l.b16 %v1681
      %v1761 = vunpack.c.h.b16 %v1681
      %v1762 = vunpack.c.l.b16 %v1682
      %v1763 = vunpack.c.h.b16 %v1682
      %v1764 = vpack.c.b16 %v1710, %v1710
      %v1765 = vpack.c.b16 %v1711, %v1711
      %v1766 = vpack.c.b16 %v1712, %v1712
      %v1767 = vpack.c.b16 %v1713, %v1713
      %v1768 = vpack.c.b16 %v1714, %v1714
      %v1769 = vpack.c.b16 %v1715, %v1715
      %v1770 = vpack.c.b16 %v1716, %v1716
      %v1771 = vpack.c.b16 %v1717, %v1717
      %v1772 = vpack.c.b16 %v1718, %v1718
      %v1773 = vpack.c.b16 %v1719, %v1719
      %v1774 = vpack.c.b16 %v1720, %v1720
      %v1775 = vpack.c.b16 %v1721, %v1721
      %v1776 = vpack.c.b16 %v1722, %v1722
      %v1777 = vpack.c.b16 %v1723, %v1723
      %v1778 = vpack.c.b16 %v1724, %v1724
      %v1779 = vpack.c.b16 %v1725, %v1725
      %v1780 = vpack.c.b16 %v1726, %v1726
      %v1781 = vpack.c.b16 %v1727, %v1727
      %v1782 = vpack.c.b16 %v1728, %v1728
      %v1783 = vpack.c.b16 %v1729, %v1729
      %v1784 = vpack.c.b16 %v1730, %v1730
      %v1785 = vpack.c.b16 %v1731, %v1731
      %v1786 = vpack.c.b16 %v1732, %v1732
      %v1787 = vpack.c.b16 %v1733, %v1733
      %v1788 = vpack.c.b16 %v1734, %v1734
      %v1789 = vpack.c.b16 %v1735, %v1735
      %v1790 = vpack.c.b16 %v1736, %v1736
      %v1791 = vpack.c.b16 %v1737, %v1737
      %v1792 = vpack.c.b16 %v1738, %v1738
      %v1793 = vpack.c.b16 %v1739, %v1739
      %v1794 = vpack.c.b16 %v1740, %v1740
      %v1795 = vpack.c.b16 %v1741, %v1741
      %v1796 = vpack.c.b16 %v1742, %v1742
      %v1797 = vpack.c.b16 %v1743, %v1743
      %v1798 = vpack.c.b16 %v1744, %v1744
      %v1799 = vpack.c.b16 %v1745, %v1745
      %v1800 = vpack.c.b16 %v1746, %v1746
      %v1801 = vpack.c.b16 %v1747, %v1747
      %v1802 = vpack.c.b16 %v1748, %v1748
      %v1803 = vpack.c.b16 %v1749, %v1749
      %v1804 = vpack.c.b16 %v1750, %v1750
      %v1805 = vpack.c.b16 %v1751, %v1751
      %v1806 = vpack.c.b16 %v1752, %v1752
      %v1807 = vpack.c.b16 %v1753, %v1753
      %v1808 = vpack.c.b16 %v1754, %v1754
      %v1809 = vpack.c.b16 %v1755, %v1755
      %v1810 = vpack.c.b16 %v1756, %v1756
      %v1811 = vpack.c.b16 %v1757, %v1757
      %v1812 = vpack.c.b16 %v1758, %v1758
      %v1813 = vpack.c.b16 %v1759, %v1759
      %v1814 = vpack.c.b16 %v1760, %v1760
      %v1815 = vpack.c.b16 %v1761, %v1761
      %v1816 = vpack.c.b16 %v1762, %v1762
      %v1817 = vpack.c.b16 %v1763, %v1763
      %1872 = vst.msk [vmem:[#allocation2 + $0x10] sm:$0xf] %vm1647, %v1764
      %1873 = vst.msk [vmem:[#allocation2 + $0x14] sm:$0xf] %vm1647, %v1765
      %1874 = vst.msk [vmem:[#allocation2 + $0x18] sm:$0xf] %vm1647, %v1766
      %1875 = vst.msk [vmem:[#allocation2 + $0x1c] sm:$0xf] %vm1647, %v1767
      %1876 = vst.msk [vmem:[#allocation2 + $0x20] sm:$0xf] %vm1647, %v1768
      %1877 = vst.msk [vmem:[#allocation2 + $0x24] sm:$0xf] %vm1647, %v1769
      %1878 = vst.msk [vmem:[#allocation2 + $0x28] sm:$0xf] %vm1647, %v1770
      %1879 = vst.msk [vmem:[#allocation2 + $0x2c] sm:$0xf] %vm1647, %v1771
      %1880 = vst.msk [vmem:[#allocation2 + $0x30] sm:$0xf] %vm1647, %v1772
      %1881 = vst.msk [vmem:[#allocation2 + $0x34] sm:$0xf] %vm1647, %v1773
      %1882 = vst.msk [vmem:[#allocation2 + $0x38] sm:$0xf] %vm1647, %v1774
      %1883 = vst.msk [vmem:[#allocation2 + $0x3c] sm:$0xf] %vm1647, %v1775
      %1884 = vst.msk [vmem:[#allocation2 + $0x40] sm:$0xf] %vm1647, %v1776
      %1885 = vst.msk [vmem:[#allocation2 + $0x44] sm:$0xf] %vm1647, %v1777
      %1886 = vst.msk [vmem:[#allocation2 + $0x48] sm:$0xf] %vm1647, %v1778
      %1887 = vst.msk [vmem:[#allocation2 + $0x4c] sm:$0xf] %vm1647, %v1779
      %1888 = vst.msk [vmem:[#allocation2 + $0x50] sm:$0xf] %vm1647, %v1780
      %1889 = vst.msk [vmem:[#allocation2 + $0x54] sm:$0xf] %vm1647, %v1781
      %1890 = vst.msk [vmem:[#allocation2 + $0x58] sm:$0xf] %vm1647, %v1782
      %1891 = vst.msk [vmem:[#allocation2 + $0x5c] sm:$0xf] %vm1647, %v1783
      %1892 = vst.msk [vmem:[#allocation2 + $0x60] sm:$0xf] %vm1647, %v1784
      %1893 = vst.msk [vmem:[#allocation2 + $0x64] sm:$0xf] %vm1647, %v1785
      %1894 = vst.msk [vmem:[#allocation2 + $0x68] sm:$0xf] %vm1647, %v1786
      %1895 = vst.msk [vmem:[#allocation2 + $0x6c] sm:$0xf] %vm1647, %v1787
      %1896 = vst.msk [vmem:[#allocation2 + $0x70] sm:$0xf] %vm1647, %v1788
      %1897 = vst.msk [vmem:[#allocation2 + $0x74] sm:$0xf] %vm1647, %v1789
      %1898 = vst.msk [vmem:[#allocation2 + $0x78] sm:$0xf] %vm1647, %v1790
      %1899 = vst.msk [vmem:[#allocation2 + $0x7c] sm:$0xf] %vm1647, %v1791
      %1900 = vst.msk [vmem:[#allocation2 + $0x80] sm:$0xf] %vm1647, %v1792
      %1901 = vst.msk [vmem:[#allocation2 + $0x84] sm:$0xf] %vm1647, %v1793
      %1902 = vst.msk [vmem:[#allocation2 + $0x88] sm:$0xf] %vm1647, %v1794
      %1903 = vst.msk [vmem:[#allocation2 + $0x8c] sm:$0xf] %vm1647, %v1795
      %1904 = vst.msk [vmem:[#allocation2 + $0x90] sm:$0xf] %vm1647, %v1796
      %1905 = vst.msk [vmem:[#allocation2 + $0x94] sm:$0xf] %vm1647, %v1797
      %1906 = vst.msk [vmem:[#allocation2 + $0x98] sm:$0xf] %vm1647, %v1798
      %1907 = vst.msk [vmem:[#allocation2 + $0x9c] sm:$0xf] %vm1647, %v1799
      %1908 = vst.msk [vmem:[#allocation2 + $0xa0] sm:$0xf] %vm1647, %v1800
      %1909 = vst.msk [vmem:[#allocation2 + $0xa4] sm:$0xf] %vm1647, %v1801
      %1910 = vst.msk [vmem:[#allocation2 + $0xa8] sm:$0xf] %vm1647, %v1802
      %1911 = vst.msk [vmem:[#allocation2 + $0xac] sm:$0xf] %vm1647, %v1803
      %1912 = vst.msk [vmem:[#allocation2 + $0xb0] sm:$0xf] %vm1647, %v1804
      %1913 = vst.msk [vmem:[#allocation2 + $0xb4] sm:$0xf] %vm1647, %v1805
      %1914 = vst.msk [vmem:[#allocation2 + $0xb8] sm:$0xf] %vm1647, %v1806
      %1915 = vst.msk [vmem:[#allocation2 + $0xbc] sm:$0xf] %vm1647, %v1807
      %1916 = vst.msk [vmem:[#allocation2 + $0xc0] sm:$0xf] %vm1647, %v1808
      %1917 = vst.msk [vmem:[#allocation2 + $0xc4] sm:$0xf] %vm1647, %v1809
      %1918 = vst.msk [vmem:[#allocation2 + $0xc8] sm:$0xf] %vm1647, %v1810
      %1919 = vst.msk [vmem:[#allocation2 + $0xcc] sm:$0xf] %vm1647, %v1811
      %1920 = vst.msk [vmem:[#allocation2 + $0xd0] sm:$0xf] %vm1647, %v1812
      %1921 = vst.msk [vmem:[#allocation2 + $0xd4] sm:$0xf] %vm1647, %v1813
      %1922 = vst.msk [vmem:[#allocation2 + $0xd8] sm:$0xf] %vm1647, %v1814
      %1923 = vst.msk [vmem:[#allocation2 + $0xdc] sm:$0xf] %vm1647, %v1815
      %1924 = vst.msk [vmem:[#allocation2 + $0xe0] sm:$0xf] %vm1647, %v1816
      %1925 = vst.msk [vmem:[#allocation2 + $0xe4] sm:$0xf] %vm1647, %v1817
      %v1926 = vld [vmem:[#allocation2] sm:$0x8]
      %v1927 = vld [vmem:[#allocation2 + $0x4] sm:$0xf]
      %v1928 = vld [vmem:[#allocation2 + $0x8] sm:$0xf]
      %v1929 = vld [vmem:[#allocation2 + $0xc] sm:$0xf]
      %v1930 = vld [vmem:[#allocation2 + $0x10] sm:$0xf]
      %v1931 = vld [vmem:[#allocation2 + $0x14] sm:$0xf]
      %v1932 = vld [vmem:[#allocation2 + $0x18] sm:$0xf]
      %v1933 = vld [vmem:[#allocation2 + $0x1c] sm:$0xf]
      %v1934 = vld [vmem:[#allocation2 + $0x20] sm:$0xf]
      %v1935 = vld [vmem:[#allocation2 + $0x24] sm:$0xf]
      %v1936 = vld [vmem:[#allocation2 + $0x28] sm:$0xf]
      %v1937 = vld [vmem:[#allocation2 + $0x2c] sm:$0xf]
      %v1938 = vld [vmem:[#allocation2 + $0x30] sm:$0xf]
      %v1939 = vld [vmem:[#allocation2 + $0x34] sm:$0xf]
      %v1940 = vld [vmem:[#allocation2 + $0x38] sm:$0xf]
      %v1941 = vld [vmem:[#allocation2 + $0x3c] sm:$0xf]
      %v1942 = vld [vmem:[#allocation2 + $0x40] sm:$0xf]
      %v1943 = vld [vmem:[#allocation2 + $0x44] sm:$0xf]
      %v1944 = vld [vmem:[#allocation2 + $0x48] sm:$0xf]
      %v1945 = vld [vmem:[#allocation2 + $0x4c] sm:$0xf]
      %v1946 = vld [vmem:[#allocation2 + $0x50] sm:$0xf]
      %v1947 = vld [vmem:[#allocation2 + $0x54] sm:$0xf]
      %v1948 = vld [vmem:[#allocation2 + $0x58] sm:$0xf]
      %v1949 = vld [vmem:[#allocation2 + $0x5c] sm:$0xf]
      %v1950 = vld [vmem:[#allocation2 + $0x60] sm:$0xf]
      %v1951 = vld [vmem:[#allocation2 + $0x64] sm:$0xf]
      %v1952 = vld [vmem:[#allocation2 + $0x68] sm:$0xf]
      %v1953 = vld [vmem:[#allocation2 + $0x6c] sm:$0xf]
      %v1954 = vld [vmem:[#allocation2 + $0x70] sm:$0xf]
      %v1955 = vld [vmem:[#allocation2 + $0x74] sm:$0xf]
      %v1956 = vld [vmem:[#allocation2 + $0x78] sm:$0xf]
      %v1957 = vld [vmem:[#allocation2 + $0x7c] sm:$0xf]
      %v1958 = vld [vmem:[#allocation2 + $0x80] sm:$0xf]
      %v1959 = vld [vmem:[#allocation2 + $0x84] sm:$0xf]
      %v1960 = vld [vmem:[#allocation2 + $0x88] sm:$0xf]
      %v1961 = vld [vmem:[#allocation2 + $0x8c] sm:$0xf]
      %v1962 = vld [vmem:[#allocation2 + $0x90] sm:$0xf]
      %v1963 = vld [vmem:[#allocation2 + $0x94] sm:$0xf]
      %v1964 = vld [vmem:[#allocation2 + $0x98] sm:$0xf]
      %v1965 = vld [vmem:[#allocation2 + $0x9c] sm:$0xf]
      %v1966 = vld [vmem:[#allocation2 + $0xa0] sm:$0xf]
      %v1967 = vld [vmem:[#allocation2 + $0xa4] sm:$0xf]
      %v1968 = vld [vmem:[#allocation2 + $0xa8] sm:$0xf]
      %v1969 = vld [vmem:[#allocation2 + $0xac] sm:$0xf]
      %v1970 = vld [vmem:[#allocation2 + $0xb0] sm:$0xf]
      %v1971 = vld [vmem:[#allocation2 + $0xb4] sm:$0xf]
      %v1972 = vld [vmem:[#allocation2 + $0xb8] sm:$0xf]
      %v1973 = vld [vmem:[#allocation2 + $0xbc] sm:$0xf]
      %v1974 = vld [vmem:[#allocation2 + $0xc0] sm:$0xf]
      %v1975 = vld [vmem:[#allocation2 + $0xc4] sm:$0xf]
      %v1976 = vld [vmem:[#allocation2 + $0xc8] sm:$0xf]
      %v1977 = vld [vmem:[#allocation2 + $0xcc] sm:$0xf]
      %v1978 = vld [vmem:[#allocation2 + $0xd0] sm:$0xf]
      %v1979 = vld [vmem:[#allocation2 + $0xd4] sm:$0xf]
      %v1980 = vld [vmem:[#allocation2 + $0xd8] sm:$0xf]
      %v1981 = vld [vmem:[%s4] sm:$0xf]
      %v1982 = vld [vmem:[%s4 + $0x4] sm:$0xf]
      %s1983 = scalar_lea.vmem %s4, 8
      %v1984 = vld [vmem:[%s1983] sm:$0xf]
      %v1985 = vld [vmem:[%s1983 + $0x4] sm:$0xf]
      %v2040 = vunpack.c.l.b16 %v1927
      %v2041 = vunpack.c.l.b16 %v1928
      %v2042 = vunpack.c.l.b16 %v1929
      %v2043 = vunpack.c.l.b16 %v1930
      %v2044 = vunpack.c.l.b16 %v1931
      %v2045 = vunpack.c.l.b16 %v1932
      %v2046 = vunpack.c.l.b16 %v1933
      %v2047 = vunpack.c.l.b16 %v1934
      %v2048 = vunpack.c.l.b16 %v1935
      %v2049 = vunpack.c.l.b16 %v1936
      %v2050 = vunpack.c.l.b16 %v1937
      %v2051 = vunpack.c.l.b16 %v1938
      %v2052 = vunpack.c.l.b16 %v1939
      %v2053 = vunpack.c.l.b16 %v1940
      %v2054 = vunpack.c.l.b16 %v1941
      %v2055 = vunpack.c.l.b16 %v1942
      %v2056 = vunpack.c.l.b16 %v1943
      %v2057 = vunpack.c.l.b16 %v1944
      %v2058 = vunpack.c.l.b16 %v1945
      %v2059 = vunpack.c.l.b16 %v1946
      %v2060 = vunpack.c.l.b16 %v1947
      %v2061 = vunpack.c.l.b16 %v1948
      %v2062 = vunpack.c.l.b16 %v1949
      %v2063 = vunpack.c.l.b16 %v1950
      %v2064 = vunpack.c.l.b16 %v1951
      %v2065 = vunpack.c.l.b16 %v1952
      %v2066 = vunpack.c.l.b16 %v1953
      %v2067 = vunpack.c.l.b16 %v1954
      %v2068 = vunpack.c.l.b16 %v1955
      %v2069 = vunpack.c.l.b16 %v1956
      %v2070 = vunpack.c.l.b16 %v1957
      %v2071 = vunpack.c.l.b16 %v1958
      %v2072 = vunpack.c.l.b16 %v1959
      %v2073 = vunpack.c.l.b16 %v1960
      %v2074 = vunpack.c.l.b16 %v1961
      %v2075 = vunpack.c.l.b16 %v1962
      %v2076 = vunpack.c.l.b16 %v1963
      %v2077 = vunpack.c.l.b16 %v1964
      %v2078 = vunpack.c.l.b16 %v1965
      %v2079 = vunpack.c.l.b16 %v1966
      %v2080 = vunpack.c.l.b16 %v1967
      %v2081 = vunpack.c.l.b16 %v1968
      %v2082 = vunpack.c.l.b16 %v1969
      %v2083 = vunpack.c.l.b16 %v1970
      %v2084 = vunpack.c.l.b16 %v1971
      %v2085 = vunpack.c.l.b16 %v1972
      %v2086 = vunpack.c.l.b16 %v1973
      %v2087 = vunpack.c.l.b16 %v1974
      %v2088 = vunpack.c.l.b16 %v1975
      %v2089 = vunpack.c.l.b16 %v1976
      %v2090 = vunpack.c.l.b16 %v1977
      %v2091 = vunpack.c.l.b16 %v1978
      %v2092 = vunpack.c.l.b16 %v1979
      %v2093 = vunpack.c.l.b16 %v1980
      %v2094 = vpack.c.b16 %v2041, %v2040
      %v2095 = vpack.c.b16 %v2043, %v2042
      %v2096 = vpack.c.b16 %v2045, %v2044
      %v2097 = vpack.c.b16 %v2047, %v2046
      %v2098 = vpack.c.b16 %v2049, %v2048
      %v2099 = vpack.c.b16 %v2051, %v2050
      %v2100 = vpack.c.b16 %v2053, %v2052
      %v2101 = vpack.c.b16 %v2055, %v2054
      %v2102 = vpack.c.b16 %v2057, %v2056
      %v2103 = vpack.c.b16 %v2059, %v2058
      %v2104 = vpack.c.b16 %v2061, %v2060
      %v2105 = vpack.c.b16 %v2063, %v2062
      %v2106 = vpack.c.b16 %v2065, %v2064
      %v2107 = vpack.c.b16 %v2067, %v2066
      %v2108 = vpack.c.b16 %v2069, %v2068
      %v2109 = vpack.c.b16 %v2071, %v2070
      %v2110 = vpack.c.b16 %v2073, %v2072
      %v2111 = vpack.c.b16 %v2075, %v2074
      %v2112 = vpack.c.b16 %v2077, %v2076
      %v2113 = vpack.c.b16 %v2079, %v2078
      %v2114 = vpack.c.b16 %v2081, %v2080
      %v2115 = vpack.c.b16 %v2083, %v2082
      %v2116 = vpack.c.b16 %v2085, %v2084
      %v2117 = vpack.c.b16 %v2087, %v2086
      %v2118 = vpack.c.b16 %v2089, %v2088
      %v2119 = vpack.c.b16 %v2091, %v2090
      %v2120 = vpack.c.b16 %v2093, %v2092
      %v2123 = vunpack.c.l.b16 %v1984
      %v2124 = vunpack.c.l.b16 %v1985
      %v2125 = vpack.c.b16 %v2124, %v2123
      %v2128 = vsel %vm1598, %v2094, 0
      %v2131 = vsel %vm1598, %v2095, 0
      %v2134 = vsel %vm1598, %v2096, 0
      %v2137 = vsel %vm1598, %v2097, 0
      %v2140 = vsel %vm1598, %v2098, 0
      %v2143 = vsel %vm1598, %v2099, 0
      %v2146 = vsel %vm1598, %v2100, 0
      %v2149 = vsel %vm1598, %v2101, 0
      %v2152 = vsel %vm1598, %v2102, 0
      %v2155 = vsel %vm1598, %v2103, 0
      %v2158 = vsel %vm1598, %v2104, 0
      %v2161 = vsel %vm1598, %v2105, 0
      %v2164 = vsel %vm1598, %v2106, 0
      %v2167 = vsel %vm1598, %v2107, 0
      %v2170 = vsel %vm1598, %v2108, 0
      %v2173 = vsel %vm1598, %v2109, 0
      %v2176 = vsel %vm1598, %v2110, 0
      %v2179 = vsel %vm1598, %v2111, 0
      %v2182 = vsel %vm1598, %v2112, 0
      %v2185 = vsel %vm1598, %v2113, 0
      %v2188 = vsel %vm1598, %v2114, 0
      %v2191 = vsel %vm1598, %v2115, 0
      %v2194 = vsel %vm1598, %v2116, 0
      %v2197 = vsel %vm1598, %v2117, 0
      %v2200 = vsel %vm1598, %v2118, 0
      %v2203 = vsel %vm1598, %v2119, 0
      %v2206 = vsel %vm1598, %v2120, 0
      %2208 = vmatprep.subr.bf16.mxu0 0
      %2209 = vmatpush1.bf16.msra.mxu0 0
      %2210 = vmatprep.subr.bf16.mxu0 0
      %2211 = vmatpush1.bf16.msra.mxu0 0
      %2212 = vmatprep.subr.bf16.mxu0 0
      %2213 = vmatpush1.bf16.msra.mxu0 0
      %2214 = vmatprep.subr.bf16.mxu0 0
      %2215 = vmatpush1.bf16.msra.mxu0 0
      %2216 = vmatprep.subr.bf16.mxu0 0
      %2217 = vmatpush1.bf16.msra.mxu0 0
      %2218 = vmatprep.subr.bf16.mxu0 0
      %2219 = vmatpush1.bf16.msra.mxu0 0
      %2220 = vmatprep.subr.bf16.mxu0 0
      %2221 = vmatpush1.bf16.msra.mxu0 0
      %2222 = vmatprep.subr.bf16.mxu0 0
      %2223 = vmatpush1.bf16.msra.mxu0 %v2125
      %2224 = vmatprep.subr.bf16.mxu0 0
      %2225 = vmatpush2.bf16.msra.mxu0 0
      %2226 = vmatprep.subr.bf16.mxu0 0
      %2227 = vmatpush2.bf16.msra.mxu0 0
      %2228 = vmatprep.subr.bf16.mxu0 0
      %2229 = vmatpush2.bf16.msra.mxu0 0
      %2230 = vmatprep.subr.bf16.mxu0 0
      %2231 = vmatpush2.bf16.msra.mxu0 0
      %2232 = vmatprep.subr.bf16.mxu0 0
      %2233 = vmatpush2.bf16.msra.mxu0 0
      %2234 = vmatprep.subr.bf16.mxu0 0
      %2235 = vmatpush2.bf16.msra.mxu0 0
      %2236 = vmatprep.subr.bf16.mxu0 0
      %2237 = vmatpush2.bf16.msra.mxu0 0
      %2238 = vmatprep.subr.bf16.mxu0 0
      %2239 = vmatpush2.bf16.msra.mxu0 0
      %2240 = vmatprep.mubr.bf16.mxu0 0
      %2241 = vmatmul.mubr.bf16.gmra.mxu0 %v2128
      %v2242 = vpop.f32.mrf.mxu0
      %v2243 = vpop.f32.mrf.mxu0
      %v2244 = vpop.f32.mrf.mxu0
      %v2245 = vpop.f32.mrf.mxu0
      %2246 = vmatprep.mubr.bf16.mxu0 0
      %2247 = vmatmul.mubr.bf16.gmra.mxu0 %v2131
      %v2248 = vpop.f32.mrf.mxu0
      %v2249 = vpop.f32.mrf.mxu0
      %v2250 = vpop.f32.mrf.mxu0
      %v2251 = vadd.f32 0.0, %v2250
      %v2252 = vpop.f32.mrf.mxu0
      %2253 = vmatprep.mubr.bf16.mxu0 0
      %2254 = vmatmul.mubr.bf16.gmra.mxu0 %v2134
      %v2255 = vpop.f32.mrf.mxu0
      %v2256 = vadd.f32 0.0, %v2255
      %v2257 = vpop.f32.mrf.mxu0
      %v2258 = vpop.f32.mrf.mxu0
      %v2259 = vadd.f32 0.0, %v2258
      %v2260 = vpop.f32.mrf.mxu0
      %2261 = vmatprep.mubr.bf16.mxu0 0
      %2262 = vmatmul.mubr.bf16.gmra.mxu0 %v2137
      %v2263 = vpop.f32.mrf.mxu0
      %v2264 = vadd.f32 0.0, %v2263
      %v2265 = vpop.f32.mrf.mxu0
      %v2266 = vpop.f32.mrf.mxu0
      %v2267 = vadd.f32 0.0, %v2266
      %v2268 = vpop.f32.mrf.mxu0
      %2269 = vmatprep.mubr.bf16.mxu0 0
      %2270 = vmatmul.mubr.bf16.gmra.mxu0 %v2140
      %v2271 = vpop.f32.mrf.mxu0
      %v2272 = vadd.f32 0.0, %v2271
      %v2273 = vpop.f32.mrf.mxu0
      %v2274 = vpop.f32.mrf.mxu0
      %v2275 = vadd.f32 0.0, %v2274
      %v2276 = vpop.f32.mrf.mxu0
      %2277 = vmatprep.mubr.bf16.mxu0 0
      %2278 = vmatmul.mubr.bf16.gmra.mxu0 %v2143
      %v2279 = vpop.f32.mrf.mxu0
      %v2280 = vadd.f32 0.0, %v2279
      %v2281 = vpop.f32.mrf.mxu0
      %v2282 = vpop.f32.mrf.mxu0
      %v2283 = vadd.f32 0.0, %v2282
      %v2284 = vpop.f32.mrf.mxu0
      %2285 = vmatprep.mubr.bf16.mxu0 0
      %2286 = vmatmul.mubr.bf16.gmra.mxu0 %v2146
      %v2287 = vpop.f32.mrf.mxu0
      %v2288 = vadd.f32 0.0, %v2287
      %v2289 = vpop.f32.mrf.mxu0
      %v2290 = vpop.f32.mrf.mxu0
      %v2291 = vadd.f32 0.0, %v2290
      %v2292 = vpop.f32.mrf.mxu0
      %2293 = vmatprep.mubr.bf16.mxu0 0
      %2294 = vmatmul.mubr.bf16.gmra.mxu0 %v2149
      %v2295 = vpop.f32.mrf.mxu0
      %v2296 = vadd.f32 0.0, %v2295
      %v2297 = vpop.f32.mrf.mxu0
      %v2298 = vpop.f32.mrf.mxu0
      %v2299 = vadd.f32 0.0, %v2298
      %v2300 = vpop.f32.mrf.mxu0
      %2301 = vmatprep.mubr.bf16.mxu0 0
      %2302 = vmatmul.mubr.bf16.gmra.mxu0 %v2152
      %v2303 = vpop.f32.mrf.mxu0
      %v2304 = vadd.f32 0.0, %v2303
      %v2305 = vpop.f32.mrf.mxu0
      %v2306 = vpop.f32.mrf.mxu0
      %v2307 = vadd.f32 0.0, %v2306
      %v2308 = vpop.f32.mrf.mxu0
      %2309 = vmatprep.mubr.bf16.mxu0 0
      %2310 = vmatmul.mubr.bf16.gmra.mxu0 %v2155
      %v2311 = vpop.f32.mrf.mxu0
      %v2312 = vadd.f32 0.0, %v2311
      %v2313 = vpop.f32.mrf.mxu0
      %v2314 = vpop.f32.mrf.mxu0
      %v2315 = vadd.f32 0.0, %v2314
      %v2316 = vpop.f32.mrf.mxu0
      %2317 = vmatprep.mubr.bf16.mxu0 0
      %2318 = vmatmul.mubr.bf16.gmra.mxu0 %v2158
      %v2319 = vpop.f32.mrf.mxu0
      %v2320 = vadd.f32 0.0, %v2319
      %v2321 = vpop.f32.mrf.mxu0
      %v2322 = vpop.f32.mrf.mxu0
      %v2323 = vadd.f32 0.0, %v2322
      %v2324 = vpop.f32.mrf.mxu0
      %2325 = vmatprep.mubr.bf16.mxu0 0
      %2326 = vmatmul.mubr.bf16.gmra.mxu0 %v2161
      %v2327 = vpop.f32.mrf.mxu0
      %v2328 = vadd.f32 0.0, %v2327
      %v2329 = vpop.f32.mrf.mxu0
      %v2330 = vpop.f32.mrf.mxu0
      %v2331 = vadd.f32 0.0, %v2330
      %v2332 = vpop.f32.mrf.mxu0
      %2333 = vmatprep.mubr.bf16.mxu0 0
      %2334 = vmatmul.mubr.bf16.gmra.mxu0 %v2164
      %v2335 = vpop.f32.mrf.mxu0
      %v2336 = vadd.f32 0.0, %v2335
      %v2337 = vpop.f32.mrf.mxu0
      %v2338 = vpop.f32.mrf.mxu0
      %v2339 = vadd.f32 0.0, %v2338
      %v2340 = vpop.f32.mrf.mxu0
      %2341 = vmatprep.mubr.bf16.mxu0 0
      %2342 = vmatmul.mubr.bf16.gmra.mxu0 %v2167
      %v2343 = vpop.f32.mrf.mxu0
      %v2344 = vadd.f32 0.0, %v2343
      %v2345 = vpop.f32.mrf.mxu0
      %v2346 = vpop.f32.mrf.mxu0
      %v2347 = vadd.f32 0.0, %v2346
      %v2348 = vpop.f32.mrf.mxu0
      %2349 = vmatprep.mubr.bf16.mxu0 0
      %2350 = vmatmul.mubr.bf16.gmra.mxu0 %v2170
      %v2351 = vpop.f32.mrf.mxu0
      %v2352 = vadd.f32 0.0, %v2351
      %v2353 = vpop.f32.mrf.mxu0
      %v2354 = vpop.f32.mrf.mxu0
      %v2355 = vadd.f32 0.0, %v2354
      %v2356 = vpop.f32.mrf.mxu0
      %2357 = vmatprep.mubr.bf16.mxu0 0
      %2358 = vmatmul.mubr.bf16.gmra.mxu0 %v2173
      %v2359 = vpop.f32.mrf.mxu0
      %v2360 = vadd.f32 0.0, %v2359
      %v2361 = vpop.f32.mrf.mxu0
      %v2362 = vpop.f32.mrf.mxu0
      %v2363 = vadd.f32 0.0, %v2362
      %v2364 = vpop.f32.mrf.mxu0
      %2365 = vmatprep.mubr.bf16.mxu0 0
      %2366 = vmatmul.mubr.bf16.gmra.mxu0 %v2176
      %v2367 = vpop.f32.mrf.mxu0
      %v2368 = vadd.f32 0.0, %v2367
      %v2369 = vpop.f32.mrf.mxu0
      %v2370 = vpop.f32.mrf.mxu0
      %v2371 = vadd.f32 0.0, %v2370
      %v2372 = vpop.f32.mrf.mxu0
      %2373 = vmatprep.mubr.bf16.mxu0 0
      %2374 = vmatmul.mubr.bf16.gmra.mxu0 %v2179
      %v2375 = vpop.f32.mrf.mxu0
      %v2376 = vadd.f32 0.0, %v2375
      %v2377 = vpop.f32.mrf.mxu0
      %v2378 = vpop.f32.mrf.mxu0
      %v2379 = vadd.f32 0.0, %v2378
      %v2380 = vpop.f32.mrf.mxu0
      %2381 = vmatprep.mubr.bf16.mxu0 0
      %2382 = vmatmul.mubr.bf16.gmra.mxu0 %v2182
      %v2383 = vpop.f32.mrf.mxu0
      %v2384 = vadd.f32 0.0, %v2383
      %v2385 = vpop.f32.mrf.mxu0
      %v2386 = vpop.f32.mrf.mxu0
      %v2387 = vadd.f32 0.0, %v2386
      %v2388 = vpop.f32.mrf.mxu0
      %2389 = vmatprep.mubr.bf16.mxu0 0
      %2390 = vmatmul.mubr.bf16.gmra.mxu0 %v2185
      %v2391 = vpop.f32.mrf.mxu0
      %v2392 = vadd.f32 0.0, %v2391
      %v2393 = vpop.f32.mrf.mxu0
      %v2394 = vpop.f32.mrf.mxu0
      %v2395 = vadd.f32 0.0, %v2394
      %v2396 = vpop.f32.mrf.mxu0
      %2397 = vmatprep.mubr.bf16.mxu0 0
      %2398 = vmatmul.mubr.bf16.gmra.mxu0 %v2188
      %v2399 = vpop.f32.mrf.mxu0
      %v2400 = vadd.f32 0.0, %v2399
      %v2401 = vpop.f32.mrf.mxu0
      %v2402 = vpop.f32.mrf.mxu0
      %v2403 = vadd.f32 0.0, %v2402
      %v2404 = vpop.f32.mrf.mxu0
      %2405 = vmatprep.mubr.bf16.mxu0 0
      %2406 = vmatmul.mubr.bf16.gmra.mxu0 %v2191
      %v2407 = vpop.f32.mrf.mxu0
      %v2408 = vadd.f32 0.0, %v2407
      %v2409 = vpop.f32.mrf.mxu0
      %v2410 = vpop.f32.mrf.mxu0
      %v2411 = vadd.f32 0.0, %v2410
      %v2412 = vpop.f32.mrf.mxu0
      %2413 = vmatprep.mubr.bf16.mxu0 0
      %2414 = vmatmul.mubr.bf16.gmra.mxu0 %v2194
      %v2415 = vpop.f32.mrf.mxu0
      %v2416 = vadd.f32 0.0, %v2415
      %v2417 = vpop.f32.mrf.mxu0
      %v2418 = vpop.f32.mrf.mxu0
      %v2419 = vadd.f32 0.0, %v2418
      %v2420 = vpop.f32.mrf.mxu0
      %2421 = vmatprep.mubr.bf16.mxu0 0
      %2422 = vmatmul.mubr.bf16.gmra.mxu0 %v2197
      %v2423 = vpop.f32.mrf.mxu0
      %v2424 = vadd.f32 0.0, %v2423
      %v2425 = vpop.f32.mrf.mxu0
      %v2426 = vpop.f32.mrf.mxu0
      %v2427 = vadd.f32 0.0, %v2426
      %v2428 = vpop.f32.mrf.mxu0
      %2429 = vmatprep.mubr.bf16.mxu0 0
      %2430 = vmatmul.mubr.bf16.gmra.mxu0 %v2200
      %v2431 = vpop.f32.mrf.mxu0
      %v2432 = vadd.f32 0.0, %v2431
      %v2433 = vpop.f32.mrf.mxu0
      %v2434 = vpop.f32.mrf.mxu0
      %v2435 = vadd.f32 0.0, %v2434
      %v2436 = vpop.f32.mrf.mxu0
      %2437 = vmatprep.mubr.bf16.mxu0 0
      %2438 = vmatmul.mubr.bf16.gmra.mxu0 %v2203
      %v2439 = vpop.f32.mrf.mxu0
      %v2440 = vadd.f32 0.0, %v2439
      %v2441 = vpop.f32.mrf.mxu0
      %v2442 = vpop.f32.mrf.mxu0
      %v2443 = vpop.f32.mrf.mxu0
      %2444 = vmatprep.mubr.bf16.mxu0 0
      %2445 = vmatmul.mubr.bf16.gmra.mxu0 %v2206
      %v2446 = vpop.f32.mrf.mxu0
      %v2447 = vpop.f32.mrf.mxu0
      %v2448 = vpop.f32.mrf.mxu0
      %v2449 = vpop.f32.mrf.mxu0
      %2450 = vdwg.mxu0
      %v2452 = vunpack.c.l.b16 %v1926
      %v2453 = vpack.c.b16 %v2040, %v2452
      %v2454 = vpack.c.b16 %v2042, %v2041
      %v2455 = vpack.c.b16 %v2044, %v2043
      %v2456 = vpack.c.b16 %v2046, %v2045
      %v2457 = vpack.c.b16 %v2048, %v2047
      %v2458 = vpack.c.b16 %v2050, %v2049
      %v2459 = vpack.c.b16 %v2052, %v2051
      %v2460 = vpack.c.b16 %v2054, %v2053
      %v2461 = vpack.c.b16 %v2056, %v2055
      %v2462 = vpack.c.b16 %v2058, %v2057
      %v2463 = vpack.c.b16 %v2060, %v2059
      %v2464 = vpack.c.b16 %v2062, %v2061
      %v2465 = vpack.c.b16 %v2064, %v2063
      %v2466 = vpack.c.b16 %v2066, %v2065
      %v2467 = vpack.c.b16 %v2068, %v2067
      %v2468 = vpack.c.b16 %v2070, %v2069
      %v2469 = vpack.c.b16 %v2072, %v2071
      %v2470 = vpack.c.b16 %v2074, %v2073
      %v2471 = vpack.c.b16 %v2076, %v2075
      %v2472 = vpack.c.b16 %v2078, %v2077
      %v2473 = vpack.c.b16 %v2080, %v2079
      %v2474 = vpack.c.b16 %v2082, %v2081
      %v2475 = vpack.c.b16 %v2084, %v2083
      %v2476 = vpack.c.b16 %v2086, %v2085
      %v2477 = vpack.c.b16 %v2088, %v2087
      %v2478 = vpack.c.b16 %v2090, %v2089
      %v2479 = vpack.c.b16 %v2092, %v2091
      %v2480 = vpack.c.b16 %v2093, %v2093
      %vm2481 = vsmask.f32 4352
      %v2483 = vshrl.u32 %v2453, 16
      %v2485 = vrot.slane %v2483, 3
      %v2486 = vshll.u32 %v2453, 16
      %v2488 = vrot.slane %v2486, 4
      %v2489 = vor.u32 %v2485, %v2488
      %v2491 = vshrl.u32 %v2454, 16
      %v2493 = vrot.slane %v2491, 3
      %v2494 = vshll.u32 %v2454, 16
      %v2496 = vrot.slane %v2494, 4
      %v2497 = vor.u32 %v2493, %v2496
      %v2498 = vsel %vm2481, %v2489, %v2497
      %v2500 = vshrl.u32 %v2455, 16
      %v2502 = vrot.slane %v2500, 3
      %v2503 = vshll.u32 %v2455, 16
      %v2505 = vrot.slane %v2503, 4
      %v2506 = vor.u32 %v2502, %v2505
      %v2507 = vsel %vm2481, %v2497, %v2506
      %v2509 = vshrl.u32 %v2456, 16
      %v2511 = vrot.slane %v2509, 3
      %v2512 = vshll.u32 %v2456, 16
      %v2514 = vrot.slane %v2512, 4
      %v2515 = vor.u32 %v2511, %v2514
      %v2516 = vsel %vm2481, %v2506, %v2515
      %v2518 = vshrl.u32 %v2457, 16
      %v2520 = vrot.slane %v2518, 3
      %v2521 = vshll.u32 %v2457, 16
      %v2523 = vrot.slane %v2521, 4
      %v2524 = vor.u32 %v2520, %v2523
      %v2525 = vsel %vm2481, %v2515, %v2524
      %v2527 = vshrl.u32 %v2458, 16
      %v2529 = vrot.slane %v2527, 3
      %v2530 = vshll.u32 %v2458, 16
      %v2532 = vrot.slane %v2530, 4
      %v2533 = vor.u32 %v2529, %v2532
      %v2534 = vsel %vm2481, %v2524, %v2533
      %v2536 = vshrl.u32 %v2459, 16
      %v2538 = vrot.slane %v2536, 3
      %v2539 = vshll.u32 %v2459, 16
      %v2541 = vrot.slane %v2539, 4
      %v2542 = vor.u32 %v2538, %v2541
      %v2543 = vsel %vm2481, %v2533, %v2542
      %v2545 = vshrl.u32 %v2460, 16
      %v2547 = vrot.slane %v2545, 3
      %v2548 = vshll.u32 %v2460, 16
      %v2550 = vrot.slane %v2548, 4
      %v2551 = vor.u32 %v2547, %v2550
      %v2552 = vsel %vm2481, %v2542, %v2551
      %v2554 = vshrl.u32 %v2461, 16
      %v2556 = vrot.slane %v2554, 3
      %v2557 = vshll.u32 %v2461, 16
      %v2559 = vrot.slane %v2557, 4
      %v2560 = vor.u32 %v2556, %v2559
      %v2561 = vsel %vm2481, %v2551, %v2560
      %v2563 = vshrl.u32 %v2462, 16
      %v2565 = vrot.slane %v2563, 3
      %v2566 = vshll.u32 %v2462, 16
      %v2568 = vrot.slane %v2566, 4
      %v2569 = vor.u32 %v2565, %v2568
      %v2570 = vsel %vm2481, %v2560, %v2569
      %v2572 = vshrl.u32 %v2463, 16
      %v2574 = vrot.slane %v2572, 3
      %v2575 = vshll.u32 %v2463, 16
      %v2577 = vrot.slane %v2575, 4
      %v2578 = vor.u32 %v2574, %v2577
      %v2579 = vsel %vm2481, %v2569, %v2578
      %v2581 = vshrl.u32 %v2464, 16
      %v2583 = vrot.slane %v2581, 3
      %v2584 = vshll.u32 %v2464, 16
      %v2586 = vrot.slane %v2584, 4
      %v2587 = vor.u32 %v2583, %v2586
      %v2588 = vsel %vm2481, %v2578, %v2587
      %v2590 = vshrl.u32 %v2465, 16
      %v2592 = vrot.slane %v2590, 3
      %v2593 = vshll.u32 %v2465, 16
      %v2595 = vrot.slane %v2593, 4
      %v2596 = vor.u32 %v2592, %v2595
      %v2597 = vsel %vm2481, %v2587, %v2596
      %v2599 = vshrl.u32 %v2466, 16
      %v2601 = vrot.slane %v2599, 3
      %v2602 = vshll.u32 %v2466, 16
      %v2604 = vrot.slane %v2602, 4
      %v2605 = vor.u32 %v2601, %v2604
      %v2606 = vsel %vm2481, %v2596, %v2605
      %v2608 = vshrl.u32 %v2467, 16
      %v2610 = vrot.slane %v2608, 3
      %v2611 = vshll.u32 %v2467, 16
      %v2613 = vrot.slane %v2611, 4
      %v2614 = vor.u32 %v2610, %v2613
      %v2615 = vsel %vm2481, %v2605, %v2614
      %v2617 = vshrl.u32 %v2468, 16
      %v2619 = vrot.slane %v2617, 3
      %v2620 = vshll.u32 %v2468, 16
      %v2622 = vrot.slane %v2620, 4
      %v2623 = vor.u32 %v2619, %v2622
      %v2624 = vsel %vm2481, %v2614, %v2623
      %v2626 = vshrl.u32 %v2469, 16
      %v2628 = vrot.slane %v2626, 3
      %v2629 = vshll.u32 %v2469, 16
      %v2631 = vrot.slane %v2629, 4
      %v2632 = vor.u32 %v2628, %v2631
      %v2633 = vsel %vm2481, %v2623, %v2632
      %v2635 = vshrl.u32 %v2470, 16
      %v2637 = vrot.slane %v2635, 3
      %v2638 = vshll.u32 %v2470, 16
      %v2640 = vrot.slane %v2638, 4
      %v2641 = vor.u32 %v2637, %v2640
      %v2642 = vsel %vm2481, %v2632, %v2641
      %v2644 = vshrl.u32 %v2471, 16
      %v2646 = vrot.slane %v2644, 3
      %v2647 = vshll.u32 %v2471, 16
      %v2649 = vrot.slane %v2647, 4
      %v2650 = vor.u32 %v2646, %v2649
      %v2651 = vsel %vm2481, %v2641, %v2650
      %v2653 = vshrl.u32 %v2472, 16
      %v2655 = vrot.slane %v2653, 3
      %v2656 = vshll.u32 %v2472, 16
      %v2658 = vrot.slane %v2656, 4
      %v2659 = vor.u32 %v2655, %v2658
      %v2660 = vsel %vm2481, %v2650, %v2659
      %v2662 = vshrl.u32 %v2473, 16
      %v2664 = vrot.slane %v2662, 3
      %v2665 = vshll.u32 %v2473, 16
      %v2667 = vrot.slane %v2665, 4
      %v2668 = vor.u32 %v2664, %v2667
      %v2669 = vsel %vm2481, %v2659, %v2668
      %v2671 = vshrl.u32 %v2474, 16
      %v2673 = vrot.slane %v2671, 3
      %v2674 = vshll.u32 %v2474, 16
      %v2676 = vrot.slane %v2674, 4
      %v2677 = vor.u32 %v2673, %v2676
      %v2678 = vsel %vm2481, %v2668, %v2677
      %v2680 = vshrl.u32 %v2475, 16
      %v2682 = vrot.slane %v2680, 3
      %v2683 = vshll.u32 %v2475, 16
      %v2685 = vrot.slane %v2683, 4
      %v2686 = vor.u32 %v2682, %v2685
      %v2687 = vsel %vm2481, %v2677, %v2686
      %v2689 = vshrl.u32 %v2476, 16
      %v2691 = vrot.slane %v2689, 3
      %v2692 = vshll.u32 %v2476, 16
      %v2694 = vrot.slane %v2692, 4
      %v2695 = vor.u32 %v2691, %v2694
      %v2696 = vsel %vm2481, %v2686, %v2695
      %v2698 = vshrl.u32 %v2477, 16
      %v2700 = vrot.slane %v2698, 3
      %v2701 = vshll.u32 %v2477, 16
      %v2703 = vrot.slane %v2701, 4
      %v2704 = vor.u32 %v2700, %v2703
      %v2705 = vsel %vm2481, %v2695, %v2704
      %v2707 = vshrl.u32 %v2478, 16
      %v2709 = vrot.slane %v2707, 3
      %v2710 = vshll.u32 %v2478, 16
      %v2712 = vrot.slane %v2710, 4
      %v2713 = vor.u32 %v2709, %v2712
      %v2714 = vsel %vm2481, %v2704, %v2713
      %v2716 = vshrl.u32 %v2479, 16
      %v2718 = vrot.slane %v2716, 3
      %v2719 = vshll.u32 %v2479, 16
      %v2721 = vrot.slane %v2719, 4
      %v2722 = vor.u32 %v2718, %v2721
      %v2723 = vsel %vm2481, %v2713, %v2722
      %v2725 = vshrl.u32 %v2480, 16
      %v2727 = vrot.slane %v2725, 3
      %v2728 = vshll.u32 %v2480, 16
      %v2730 = vrot.slane %v2728, 4
      %v2731 = vor.u32 %v2727, %v2730
      %v2732 = vsel %vm2481, %v2722, %v2731
      %v2735 = vunpack.c.l.b16 %v1981
      %v2736 = vunpack.c.l.b16 %v1982
      %v2737 = vpack.c.b16 %v2736, %v2735
      %v2740 = vsel %vm1598, %v2498, 0
      %v2743 = vsel %vm1598, %v2507, 0
      %v2746 = vsel %vm1598, %v2516, 0
      %v2749 = vsel %vm1598, %v2525, 0
      %v2752 = vsel %vm1598, %v2534, 0
      %v2755 = vsel %vm1598, %v2543, 0
      %v2758 = vsel %vm1598, %v2552, 0
      %v2761 = vsel %vm1598, %v2561, 0
      %v2764 = vsel %vm1598, %v2570, 0
      %v2767 = vsel %vm1598, %v2579, 0
      %v2770 = vsel %vm1598, %v2588, 0
      %v2773 = vsel %vm1598, %v2597, 0
      %v2776 = vsel %vm1598, %v2606, 0
      %v2779 = vsel %vm1598, %v2615, 0
      %v2782 = vsel %vm1598, %v2624, 0
      %v2785 = vsel %vm1598, %v2633, 0
      %v2788 = vsel %vm1598, %v2642, 0
      %v2791 = vsel %vm1598, %v2651, 0
      %v2794 = vsel %vm1598, %v2660, 0
      %v2797 = vsel %vm1598, %v2669, 0
      %v2800 = vsel %vm1598, %v2678, 0
      %v2803 = vsel %vm1598, %v2687, 0
      %v2806 = vsel %vm1598, %v2696, 0
      %v2809 = vsel %vm1598, %v2705, 0
      %v2812 = vsel %vm1598, %v2714, 0
      %v2815 = vsel %vm1598, %v2723, 0
      %v2818 = vsel %vm1598, %v2732, 0
      %2820 = vmatprep.subr.bf16.mxu0 0
      %2821 = vmatpush1.bf16.msra.mxu0 0
      %2822 = vmatprep.subr.bf16.mxu0 0
      %2823 = vmatpush1.bf16.msra.mxu0 0
      %2824 = vmatprep.subr.bf16.mxu0 0
      %2825 = vmatpush1.bf16.msra.mxu0 0
      %2826 = vmatprep.subr.bf16.mxu0 0
      %2827 = vmatpush1.bf16.msra.mxu0 0
      %2828 = vmatprep.subr.bf16.mxu0 0
      %2829 = vmatpush1.bf16.msra.mxu0 0
      %2830 = vmatprep.subr.bf16.mxu0 0
      %2831 = vmatpush1.bf16.msra.mxu0 0
      %2832 = vmatprep.subr.bf16.mxu0 0
      %2833 = vmatpush1.bf16.msra.mxu0 0
      %2834 = vmatprep.subr.bf16.mxu0 0
      %2835 = vmatpush1.bf16.msra.mxu0 %v2737
      %2836 = vmatprep.subr.bf16.mxu0 0
      %2837 = vmatpush2.bf16.msra.mxu0 0
      %2838 = vmatprep.subr.bf16.mxu0 0
      %2839 = vmatpush2.bf16.msra.mxu0 0
      %2840 = vmatprep.subr.bf16.mxu0 0
      %2841 = vmatpush2.bf16.msra.mxu0 0
      %2842 = vmatprep.subr.bf16.mxu0 0
      %2843 = vmatpush2.bf16.msra.mxu0 0
      %2844 = vmatprep.subr.bf16.mxu0 0
      %2845 = vmatpush2.bf16.msra.mxu0 0
      %2846 = vmatprep.subr.bf16.mxu0 0
      %2847 = vmatpush2.bf16.msra.mxu0 0
      %2848 = vmatprep.subr.bf16.mxu0 0
      %2849 = vmatpush2.bf16.msra.mxu0 0
      %2850 = vmatprep.subr.bf16.mxu0 0
      %2851 = vmatpush2.bf16.msra.mxu0 0
      %2852 = vmatprep.mubr.bf16.mxu0 0
      %2853 = vmatmul.mubr.bf16.gmra.mxu0 %v2740
      %v2854 = vpop.f32.mrf.mxu0
      %v2855 = vpop.f32.mrf.mxu0
      %v2856 = vpop.f32.mrf.mxu0
      %v2857 = vpop.f32.mrf.mxu0
      %2858 = vmatprep.mubr.bf16.mxu0 0
      %2859 = vmatmul.mubr.bf16.gmra.mxu0 %v2743
      %v2860 = vpop.f32.mrf.mxu0
      %v2861 = vpop.f32.mrf.mxu0
      %v2862 = vpop.f32.mrf.mxu0
      %v2863 = vadd.f32 %v2251, %v2862
      %v2864 = vpop.f32.mrf.mxu0
      %2865 = vmatprep.mubr.bf16.mxu0 0
      %2866 = vmatmul.mubr.bf16.gmra.mxu0 %v2746
      %v2867 = vpop.f32.mrf.mxu0
      %v2868 = vadd.f32 %v2256, %v2867
      %v2869 = vpop.f32.mrf.mxu0
      %v2870 = vpop.f32.mrf.mxu0
      %v2871 = vadd.f32 %v2259, %v2870
      %v2872 = vpop.f32.mrf.mxu0
      %2873 = vmatprep.mubr.bf16.mxu0 0
      %2874 = vmatmul.mubr.bf16.gmra.mxu0 %v2749
      %v2875 = vpop.f32.mrf.mxu0
      %v2876 = vadd.f32 %v2264, %v2875
      %v2877 = vpop.f32.mrf.mxu0
      %v2878 = vpop.f32.mrf.mxu0
      %v2879 = vadd.f32 %v2267, %v2878
      %v2880 = vpop.f32.mrf.mxu0
      %2881 = vmatprep.mubr.bf16.mxu0 0
      %2882 = vmatmul.mubr.bf16.gmra.mxu0 %v2752
      %v2883 = vpop.f32.mrf.mxu0
      %v2884 = vadd.f32 %v2272, %v2883
      %v2885 = vpop.f32.mrf.mxu0
      %v2886 = vpop.f32.mrf.mxu0
      %v2887 = vadd.f32 %v2275, %v2886
      %v2888 = vpop.f32.mrf.mxu0
      %2889 = vmatprep.mubr.bf16.mxu0 0
      %2890 = vmatmul.mubr.bf16.gmra.mxu0 %v2755
      %v2891 = vpop.f32.mrf.mxu0
      %v2892 = vadd.f32 %v2280, %v2891
      %v2893 = vpop.f32.mrf.mxu0
      %v2894 = vpop.f32.mrf.mxu0
      %v2895 = vadd.f32 %v2283, %v2894
      %v2896 = vpop.f32.mrf.mxu0
      %2897 = vmatprep.mubr.bf16.mxu0 0
      %2898 = vmatmul.mubr.bf16.gmra.mxu0 %v2758
      %v2899 = vpop.f32.mrf.mxu0
      %v2900 = vadd.f32 %v2288, %v2899
      %v2901 = vpop.f32.mrf.mxu0
      %v2902 = vpop.f32.mrf.mxu0
      %v2903 = vadd.f32 %v2291, %v2902
      %v2904 = vpop.f32.mrf.mxu0
      %2905 = vmatprep.mubr.bf16.mxu0 0
      %2906 = vmatmul.mubr.bf16.gmra.mxu0 %v2761
      %v2907 = vpop.f32.mrf.mxu0
      %v2908 = vadd.f32 %v2296, %v2907
      %v2909 = vpop.f32.mrf.mxu0
      %v2910 = vpop.f32.mrf.mxu0
      %v2911 = vadd.f32 %v2299, %v2910
      %v2912 = vpop.f32.mrf.mxu0
      %2913 = vmatprep.mubr.bf16.mxu0 0
      %2914 = vmatmul.mubr.bf16.gmra.mxu0 %v2764
      %v2915 = vpop.f32.mrf.mxu0
      %v2916 = vadd.f32 %v2304, %v2915
      %v2917 = vpop.f32.mrf.mxu0
      %v2918 = vpop.f32.mrf.mxu0
      %v2919 = vadd.f32 %v2307, %v2918
      %v2920 = vpop.f32.mrf.mxu0
      %2921 = vmatprep.mubr.bf16.mxu0 0
      %2922 = vmatmul.mubr.bf16.gmra.mxu0 %v2767
      %v2923 = vpop.f32.mrf.mxu0
      %v2924 = vadd.f32 %v2312, %v2923
      %v2925 = vpop.f32.mrf.mxu0
      %v2926 = vpop.f32.mrf.mxu0
      %v2927 = vadd.f32 %v2315, %v2926
      %v2928 = vpop.f32.mrf.mxu0
      %2929 = vmatprep.mubr.bf16.mxu0 0
      %2930 = vmatmul.mubr.bf16.gmra.mxu0 %v2770
      %v2931 = vpop.f32.mrf.mxu0
      %v2932 = vadd.f32 %v2320, %v2931
      %v2933 = vpop.f32.mrf.mxu0
      %v2934 = vpop.f32.mrf.mxu0
      %v2935 = vadd.f32 %v2323, %v2934
      %v2936 = vpop.f32.mrf.mxu0
      %2937 = vmatprep.mubr.bf16.mxu0 0
      %2938 = vmatmul.mubr.bf16.gmra.mxu0 %v2773
      %v2939 = vpop.f32.mrf.mxu0
      %v2940 = vadd.f32 %v2328, %v2939
      %v2941 = vpop.f32.mrf.mxu0
      %v2942 = vpop.f32.mrf.mxu0
      %v2943 = vadd.f32 %v2331, %v2942
      %v2944 = vpop.f32.mrf.mxu0
      %2945 = vmatprep.mubr.bf16.mxu0 0
      %2946 = vmatmul.mubr.bf16.gmra.mxu0 %v2776
      %v2947 = vpop.f32.mrf.mxu0
      %v2948 = vadd.f32 %v2336, %v2947
      %v2949 = vpop.f32.mrf.mxu0
      %v2950 = vpop.f32.mrf.mxu0
      %v2951 = vadd.f32 %v2339, %v2950
      %v2952 = vpop.f32.mrf.mxu0
      %2953 = vmatprep.mubr.bf16.mxu0 0
      %2954 = vmatmul.mubr.bf16.gmra.mxu0 %v2779
      %v2955 = vpop.f32.mrf.mxu0
      %v2956 = vadd.f32 %v2344, %v2955
      %v2957 = vpop.f32.mrf.mxu0
      %v2958 = vpop.f32.mrf.mxu0
      %v2959 = vadd.f32 %v2347, %v2958
      %v2960 = vpop.f32.mrf.mxu0
      %2961 = vmatprep.mubr.bf16.mxu0 0
      %2962 = vmatmul.mubr.bf16.gmra.mxu0 %v2782
      %v2963 = vpop.f32.mrf.mxu0
      %v2964 = vadd.f32 %v2352, %v2963
      %v2965 = vpop.f32.mrf.mxu0
      %v2966 = vpop.f32.mrf.mxu0
      %v2967 = vadd.f32 %v2355, %v2966
      %v2968 = vpop.f32.mrf.mxu0
      %2969 = vmatprep.mubr.bf16.mxu0 0
      %2970 = vmatmul.mubr.bf16.gmra.mxu0 %v2785
      %v2971 = vpop.f32.mrf.mxu0
      %v2972 = vadd.f32 %v2360, %v2971
      %v2973 = vpop.f32.mrf.mxu0
      %v2974 = vpop.f32.mrf.mxu0
      %v2975 = vadd.f32 %v2363, %v2974
      %v2976 = vpop.f32.mrf.mxu0
      %2977 = vmatprep.mubr.bf16.mxu0 0
      %2978 = vmatmul.mubr.bf16.gmra.mxu0 %v2788
      %v2979 = vpop.f32.mrf.mxu0
      %v2980 = vadd.f32 %v2368, %v2979
      %v2981 = vpop.f32.mrf.mxu0
      %v2982 = vpop.f32.mrf.mxu0
      %v2983 = vadd.f32 %v2371, %v2982
      %v2984 = vpop.f32.mrf.mxu0
      %2985 = vmatprep.mubr.bf16.mxu0 0
      %2986 = vmatmul.mubr.bf16.gmra.mxu0 %v2791
      %v2987 = vpop.f32.mrf.mxu0
      %v2988 = vadd.f32 %v2376, %v2987
      %v2989 = vpop.f32.mrf.mxu0
      %v2990 = vpop.f32.mrf.mxu0
      %v2991 = vadd.f32 %v2379, %v2990
      %v2992 = vpop.f32.mrf.mxu0
      %2993 = vmatprep.mubr.bf16.mxu0 0
      %2994 = vmatmul.mubr.bf16.gmra.mxu0 %v2794
      %v2995 = vpop.f32.mrf.mxu0
      %v2996 = vadd.f32 %v2384, %v2995
      %v2997 = vpop.f32.mrf.mxu0
      %v2998 = vpop.f32.mrf.mxu0
      %v2999 = vadd.f32 %v2387, %v2998
      %v3000 = vpop.f32.mrf.mxu0
      %3001 = vmatprep.mubr.bf16.mxu0 0
      %3002 = vmatmul.mubr.bf16.gmra.mxu0 %v2797
      %v3003 = vpop.f32.mrf.mxu0
      %v3004 = vadd.f32 %v2392, %v3003
      %v3005 = vpop.f32.mrf.mxu0
      %v3006 = vpop.f32.mrf.mxu0
      %v3007 = vadd.f32 %v2395, %v3006
      %v3008 = vpop.f32.mrf.mxu0
      %3009 = vmatprep.mubr.bf16.mxu0 0
      %3010 = vmatmul.mubr.bf16.gmra.mxu0 %v2800
      %v3011 = vpop.f32.mrf.mxu0
      %v3012 = vadd.f32 %v2400, %v3011
      %v3013 = vpop.f32.mrf.mxu0
      %v3014 = vpop.f32.mrf.mxu0
      %v3015 = vadd.f32 %v2403, %v3014
      %v3016 = vpop.f32.mrf.mxu0
      %3017 = vmatprep.mubr.bf16.mxu0 0
      %3018 = vmatmul.mubr.bf16.gmra.mxu0 %v2803
      %v3019 = vpop.f32.mrf.mxu0
      %v3020 = vadd.f32 %v2408, %v3019
      %v3021 = vpop.f32.mrf.mxu0
      %v3022 = vpop.f32.mrf.mxu0
      %v3023 = vadd.f32 %v2411, %v3022
      %v3024 = vpop.f32.mrf.mxu0
      %3025 = vmatprep.mubr.bf16.mxu0 0
      %3026 = vmatmul.mubr.bf16.gmra.mxu0 %v2806
      %v3027 = vpop.f32.mrf.mxu0
      %v3028 = vadd.f32 %v2416, %v3027
      %v3029 = vpop.f32.mrf.mxu0
      %v3030 = vpop.f32.mrf.mxu0
      %v3031 = vadd.f32 %v2419, %v3030
      %v3032 = vpop.f32.mrf.mxu0
      %3033 = vmatprep.mubr.bf16.mxu0 0
      %3034 = vmatmul.mubr.bf16.gmra.mxu0 %v2809
      %v3035 = vpop.f32.mrf.mxu0
      %v3036 = vadd.f32 %v2424, %v3035
      %v3037 = vpop.f32.mrf.mxu0
      %v3038 = vpop.f32.mrf.mxu0
      %v3039 = vadd.f32 %v2427, %v3038
      %v3040 = vpop.f32.mrf.mxu0
      %3041 = vmatprep.mubr.bf16.mxu0 0
      %3042 = vmatmul.mubr.bf16.gmra.mxu0 %v2812
      %v3043 = vpop.f32.mrf.mxu0
      %v3044 = vadd.f32 %v2432, %v3043
      %v3045 = vpop.f32.mrf.mxu0
      %v3046 = vpop.f32.mrf.mxu0
      %v3047 = vadd.f32 %v2435, %v3046
      %v3048 = vpop.f32.mrf.mxu0
      %3049 = vmatprep.mubr.bf16.mxu0 0
      %3050 = vmatmul.mubr.bf16.gmra.mxu0 %v2815
      %v3051 = vpop.f32.mrf.mxu0
      %v3052 = vadd.f32 %v2440, %v3051
      %v3053 = vpop.f32.mrf.mxu0
      %v3054 = vpop.f32.mrf.mxu0
      %v3055 = vpop.f32.mrf.mxu0
      %3056 = vmatprep.mubr.bf16.mxu0 0
      %3057 = vmatmul.mubr.bf16.gmra.mxu0 %v2818
      %v3058 = vpop.f32.mrf.mxu0
      %v3059 = vpop.f32.mrf.mxu0
      %v3060 = vpop.f32.mrf.mxu0
      %v3061 = vpop.f32.mrf.mxu0
      %3062 = vdwg.mxu0
      %v3063 = vld [vmem:[#allocation2 + $0x4] sm:$0xf]
      %v3064 = vld [vmem:[#allocation2 + $0x8] sm:$0xf]
      %v3065 = vld [vmem:[#allocation2 + $0xc] sm:$0xf]
      %v3066 = vld [vmem:[#allocation2 + $0x10] sm:$0xf]
      %v3067 = vld [vmem:[#allocation2 + $0x14] sm:$0xf]
      %v3068 = vld [vmem:[#allocation2 + $0x18] sm:$0xf]
      %v3069 = vld [vmem:[#allocation2 + $0x1c] sm:$0xf]
      %v3070 = vld [vmem:[#allocation2 + $0x20] sm:$0xf]
      %v3071 = vld [vmem:[#allocation2 + $0x24] sm:$0xf]
      %v3072 = vld [vmem:[#allocation2 + $0x28] sm:$0xf]
      %v3073 = vld [vmem:[#allocation2 + $0x2c] sm:$0xf]
      %v3074 = vld [vmem:[#allocation2 + $0x30] sm:$0xf]
      %v3075 = vld [vmem:[#allocation2 + $0x34] sm:$0xf]
      %v3076 = vld [vmem:[#allocation2 + $0x38] sm:$0xf]
      %v3077 = vld [vmem:[#allocation2 + $0x3c] sm:$0xf]
      %v3078 = vld [vmem:[#allocation2 + $0x40] sm:$0xf]
      %v3079 = vld [vmem:[#allocation2 + $0x44] sm:$0xf]
      %v3080 = vld [vmem:[#allocation2 + $0x48] sm:$0xf]
      %v3081 = vld [vmem:[#allocation2 + $0x4c] sm:$0xf]
      %v3082 = vld [vmem:[#allocation2 + $0x50] sm:$0xf]
      %v3083 = vld [vmem:[#allocation2 + $0x54] sm:$0xf]
      %v3084 = vld [vmem:[#allocation2 + $0x58] sm:$0xf]
      %v3085 = vld [vmem:[#allocation2 + $0x5c] sm:$0xf]
      %v3086 = vld [vmem:[#allocation2 + $0x60] sm:$0xf]
      %v3087 = vld [vmem:[#allocation2 + $0x64] sm:$0xf]
      %v3088 = vld [vmem:[#allocation2 + $0x68] sm:$0xf]
      %v3089 = vld [vmem:[#allocation2 + $0x6c] sm:$0xf]
      %v3090 = vld [vmem:[#allocation2 + $0x70] sm:$0xf]
      %v3091 = vld [vmem:[#allocation2 + $0x74] sm:$0xf]
      %v3092 = vld [vmem:[#allocation2 + $0x78] sm:$0xf]
      %v3093 = vld [vmem:[#allocation2 + $0x7c] sm:$0xf]
      %v3094 = vld [vmem:[#allocation2 + $0x80] sm:$0xf]
      %v3095 = vld [vmem:[#allocation2 + $0x84] sm:$0xf]
      %v3096 = vld [vmem:[#allocation2 + $0x88] sm:$0xf]
      %v3097 = vld [vmem:[#allocation2 + $0x8c] sm:$0xf]
      %v3098 = vld [vmem:[#allocation2 + $0x90] sm:$0xf]
      %v3099 = vld [vmem:[#allocation2 + $0x94] sm:$0xf]
      %v3100 = vld [vmem:[#allocation2 + $0x98] sm:$0xf]
      %v3101 = vld [vmem:[#allocation2 + $0x9c] sm:$0xf]
      %v3102 = vld [vmem:[#allocation2 + $0xa0] sm:$0xf]
      %v3103 = vld [vmem:[#allocation2 + $0xa4] sm:$0xf]
      %v3104 = vld [vmem:[#allocation2 + $0xa8] sm:$0xf]
      %v3105 = vld [vmem:[#allocation2 + $0xac] sm:$0xf]
      %v3106 = vld [vmem:[#allocation2 + $0xb0] sm:$0xf]
      %v3107 = vld [vmem:[#allocation2 + $0xb4] sm:$0xf]
      %v3108 = vld [vmem:[#allocation2 + $0xb8] sm:$0xf]
      %v3109 = vld [vmem:[#allocation2 + $0xbc] sm:$0xf]
      %v3110 = vld [vmem:[#allocation2 + $0xc0] sm:$0xf]
      %v3111 = vld [vmem:[#allocation2 + $0xc4] sm:$0xf]
      %v3112 = vld [vmem:[#allocation2 + $0xc8] sm:$0xf]
      %v3113 = vld [vmem:[#allocation2 + $0xcc] sm:$0xf]
      %v3114 = vld [vmem:[#allocation2 + $0xd0] sm:$0xf]
      %v3115 = vld [vmem:[#allocation2 + $0xd4] sm:$0xf]
      %v3116 = vld [vmem:[#allocation2 + $0xd8] sm:$0xf]
      %v3117 = vld [vmem:[#allocation2 + $0xdc] sm:$0x1]
      %s3118 = scalar_lea.vmem %s4, 16
      %v3119 = vld [vmem:[%s3118] sm:$0xf]
      %v3120 = vld [vmem:[%s3118 + $0x4] sm:$0xf]
      %v3176 = vunpack.c.l.b16 %v3063
      %v3177 = vunpack.c.l.b16 %v3064
      %v3178 = vunpack.c.l.b16 %v3065
      %v3179 = vunpack.c.l.b16 %v3066
      %v3180 = vunpack.c.l.b16 %v3067
      %v3181 = vunpack.c.l.b16 %v3068
      %v3182 = vunpack.c.l.b16 %v3069
      %v3183 = vunpack.c.l.b16 %v3070
      %v3184 = vunpack.c.l.b16 %v3071
      %v3185 = vunpack.c.l.b16 %v3072
      %v3186 = vunpack.c.l.b16 %v3073
      %v3187 = vunpack.c.l.b16 %v3074
      %v3188 = vunpack.c.l.b16 %v3075
      %v3189 = vunpack.c.l.b16 %v3076
      %v3190 = vunpack.c.l.b16 %v3077
      %v3191 = vunpack.c.l.b16 %v3078
      %v3192 = vunpack.c.l.b16 %v3079
      %v3193 = vunpack.c.l.b16 %v3080
      %v3194 = vunpack.c.l.b16 %v3081
      %v3195 = vunpack.c.l.b16 %v3082
      %v3196 = vunpack.c.l.b16 %v3083
      %v3197 = vunpack.c.l.b16 %v3084
      %v3198 = vunpack.c.l.b16 %v3085
      %v3199 = vunpack.c.l.b16 %v3086
      %v3200 = vunpack.c.l.b16 %v3087
      %v3201 = vunpack.c.l.b16 %v3088
      %v3202 = vunpack.c.l.b16 %v3089
      %v3203 = vunpack.c.l.b16 %v3090
      %v3204 = vunpack.c.l.b16 %v3091
      %v3205 = vunpack.c.l.b16 %v3092
      %v3206 = vunpack.c.l.b16 %v3093
      %v3207 = vunpack.c.l.b16 %v3094
      %v3208 = vunpack.c.l.b16 %v3095
      %v3209 = vunpack.c.l.b16 %v3096
      %v3210 = vunpack.c.l.b16 %v3097
      %v3211 = vunpack.c.l.b16 %v3098
      %v3212 = vunpack.c.l.b16 %v3099
      %v3213 = vunpack.c.l.b16 %v3100
      %v3214 = vunpack.c.l.b16 %v3101
      %v3215 = vunpack.c.l.b16 %v3102
      %v3216 = vunpack.c.l.b16 %v3103
      %v3217 = vunpack.c.l.b16 %v3104
      %v3218 = vunpack.c.l.b16 %v3105
      %v3219 = vunpack.c.l.b16 %v3106
      %v3220 = vunpack.c.l.b16 %v3107
      %v3221 = vunpack.c.l.b16 %v3108
      %v3222 = vunpack.c.l.b16 %v3109
      %v3223 = vunpack.c.l.b16 %v3110
      %v3224 = vunpack.c.l.b16 %v3111
      %v3225 = vunpack.c.l.b16 %v3112
      %v3226 = vunpack.c.l.b16 %v3113
      %v3227 = vunpack.c.l.b16 %v3114
      %v3228 = vunpack.c.l.b16 %v3115
      %v3229 = vunpack.c.l.b16 %v3116
      %v3230 = vunpack.c.l.b16 %v3117
      %v3231 = vpack.c.b16 %v3177, %v3176
      %v3232 = vpack.c.b16 %v3179, %v3178
      %v3233 = vpack.c.b16 %v3181, %v3180
      %v3234 = vpack.c.b16 %v3183, %v3182
      %v3235 = vpack.c.b16 %v3185, %v3184
      %v3236 = vpack.c.b16 %v3187, %v3186
      %v3237 = vpack.c.b16 %v3189, %v3188
      %v3238 = vpack.c.b16 %v3191, %v3190
      %v3239 = vpack.c.b16 %v3193, %v3192
      %v3240 = vpack.c.b16 %v3195, %v3194
      %v3241 = vpack.c.b16 %v3197, %v3196
      %v3242 = vpack.c.b16 %v3199, %v3198
      %v3243 = vpack.c.b16 %v3201, %v3200
      %v3244 = vpack.c.b16 %v3203, %v3202
      %v3245 = vpack.c.b16 %v3205, %v3204
      %v3246 = vpack.c.b16 %v3207, %v3206
      %v3247 = vpack.c.b16 %v3209, %v3208
      %v3248 = vpack.c.b16 %v3211, %v3210
      %v3249 = vpack.c.b16 %v3213, %v3212
      %v3250 = vpack.c.b16 %v3215, %v3214
      %v3251 = vpack.c.b16 %v3217, %v3216
      %v3252 = vpack.c.b16 %v3219, %v3218
      %v3253 = vpack.c.b16 %v3221, %v3220
      %v3254 = vpack.c.b16 %v3223, %v3222
      %v3255 = vpack.c.b16 %v3225, %v3224
      %v3256 = vpack.c.b16 %v3227, %v3226
      %v3257 = vpack.c.b16 %v3229, %v3228
      %v3258 = vpack.c.b16 %v3230, %v3230
      %vm3259 = vsmask.f32 7424
      %v3261 = vshrl.u32 %v3231, 16
      %v3263 = vshll.u32 %v3231, 16
      %v3265 = vrot.slane %v3263, 1
      %v3266 = vor.u32 %v3261, %v3265
      %v3268 = vshll.u32 %v3232, 16
      %v3270 = vrot.slane %v3268, 1
      %v3271 = vsel %vm3259, %v3266, %v3270
      %v3272 = vshrl.u32 %v3232, 16
      %v3274 = vor.u32 %v3272, %v3270
      %v3276 = vshll.u32 %v3233, 16
      %v3278 = vrot.slane %v3276, 1
      %v3279 = vsel %vm3259, %v3274, %v3278
      %v3280 = vshrl.u32 %v3233, 16
      %v3282 = vor.u32 %v3280, %v3278
      %v3284 = vshll.u32 %v3234, 16
      %v3286 = vrot.slane %v3284, 1
      %v3287 = vsel %vm3259, %v3282, %v3286
      %v3288 = vshrl.u32 %v3234, 16
      %v3290 = vor.u32 %v3288, %v3286
      %v3292 = vshll.u32 %v3235, 16
      %v3294 = vrot.slane %v3292, 1
      %v3295 = vsel %vm3259, %v3290, %v3294
      %v3296 = vshrl.u32 %v3235, 16
      %v3298 = vor.u32 %v3296, %v3294
      %v3300 = vshll.u32 %v3236, 16
      %v3302 = vrot.slane %v3300, 1
      %v3303 = vsel %vm3259, %v3298, %v3302
      %v3304 = vshrl.u32 %v3236, 16
      %v3306 = vor.u32 %v3304, %v3302
      %v3308 = vshll.u32 %v3237, 16
      %v3310 = vrot.slane %v3308, 1
      %v3311 = vsel %vm3259, %v3306, %v3310
      %v3312 = vshrl.u32 %v3237, 16
      %v3314 = vor.u32 %v3312, %v3310
      %v3316 = vshll.u32 %v3238, 16
      %v3318 = vrot.slane %v3316, 1
      %v3319 = vsel %vm3259, %v3314, %v3318
      %v3320 = vshrl.u32 %v3238, 16
      %v3322 = vor.u32 %v3320, %v3318
      %v3324 = vshll.u32 %v3239, 16
      %v3326 = vrot.slane %v3324, 1
      %v3327 = vsel %vm3259, %v3322, %v3326
      %v3328 = vshrl.u32 %v3239, 16
      %v3330 = vor.u32 %v3328, %v3326
      %v3332 = vshll.u32 %v3240, 16
      %v3334 = vrot.slane %v3332, 1
      %v3335 = vsel %vm3259, %v3330, %v3334
      %v3336 = vshrl.u32 %v3240, 16
      %v3338 = vor.u32 %v3336, %v3334
      %v3340 = vshll.u32 %v3241, 16
      %v3342 = vrot.slane %v3340, 1
      %v3343 = vsel %vm3259, %v3338, %v3342
      %v3344 = vshrl.u32 %v3241, 16
      %v3346 = vor.u32 %v3344, %v3342
      %v3348 = vshll.u32 %v3242, 16
      %v3350 = vrot.slane %v3348, 1
      %v3351 = vsel %vm3259, %v3346, %v3350
      %v3352 = vshrl.u32 %v3242, 16
      %v3354 = vor.u32 %v3352, %v3350
      %v3356 = vshll.u32 %v3243, 16
      %v3358 = vrot.slane %v3356, 1
      %v3359 = vsel %vm3259, %v3354, %v3358
      %v3360 = vshrl.u32 %v3243, 16
      %v3362 = vor.u32 %v3360, %v3358
      %v3364 = vshll.u32 %v3244, 16
      %v3366 = vrot.slane %v3364, 1
      %v3367 = vsel %vm3259, %v3362, %v3366
      %v3368 = vshrl.u32 %v3244, 16
      %v3370 = vor.u32 %v3368, %v3366
      %v3372 = vshll.u32 %v3245, 16
      %v3374 = vrot.slane %v3372, 1
      %v3375 = vsel %vm3259, %v3370, %v3374
      %v3376 = vshrl.u32 %v3245, 16
      %v3378 = vor.u32 %v3376, %v3374
      %v3380 = vshll.u32 %v3246, 16
      %v3382 = vrot.slane %v3380, 1
      %v3383 = vsel %vm3259, %v3378, %v3382
      %v3384 = vshrl.u32 %v3246, 16
      %v3386 = vor.u32 %v3384, %v3382
      %v3388 = vshll.u32 %v3247, 16
      %v3390 = vrot.slane %v3388, 1
      %v3391 = vsel %vm3259, %v3386, %v3390
      %v3392 = vshrl.u32 %v3247, 16
      %v3394 = vor.u32 %v3392, %v3390
      %v3396 = vshll.u32 %v3248, 16
      %v3398 = vrot.slane %v3396, 1
      %v3399 = vsel %vm3259, %v3394, %v3398
      %v3400 = vshrl.u32 %v3248, 16
      %v3402 = vor.u32 %v3400, %v3398
      %v3404 = vshll.u32 %v3249, 16
      %v3406 = vrot.slane %v3404, 1
      %v3407 = vsel %vm3259, %v3402, %v3406
      %v3408 = vshrl.u32 %v3249, 16
      %v3410 = vor.u32 %v3408, %v3406
      %v3412 = vshll.u32 %v3250, 16
      %v3414 = vrot.slane %v3412, 1
      %v3415 = vsel %vm3259, %v3410, %v3414
      %v3416 = vshrl.u32 %v3250, 16
      %v3418 = vor.u32 %v3416, %v3414
      %v3420 = vshll.u32 %v3251, 16
      %v3422 = vrot.slane %v3420, 1
      %v3423 = vsel %vm3259, %v3418, %v3422
      %v3424 = vshrl.u32 %v3251, 16
      %v3426 = vor.u32 %v3424, %v3422
      %v3428 = vshll.u32 %v3252, 16
      %v3430 = vrot.slane %v3428, 1
      %v3431 = vsel %vm3259, %v3426, %v3430
      %v3432 = vshrl.u32 %v3252, 16
      %v3434 = vor.u32 %v3432, %v3430
      %v3436 = vshll.u32 %v3253, 16
      %v3438 = vrot.slane %v3436, 1
      %v3439 = vsel %vm3259, %v3434, %v3438
      %v3440 = vshrl.u32 %v3253, 16
      %v3442 = vor.u32 %v3440, %v3438
      %v3444 = vshll.u32 %v3254, 16
      %v3446 = vrot.slane %v3444, 1
      %v3447 = vsel %vm3259, %v3442, %v3446
      %v3448 = vshrl.u32 %v3254, 16
      %v3450 = vor.u32 %v3448, %v3446
      %v3452 = vshll.u32 %v3255, 16
      %v3454 = vrot.slane %v3452, 1
      %v3455 = vsel %vm3259, %v3450, %v3454
      %v3456 = vshrl.u32 %v3255, 16
      %v3458 = vor.u32 %v3456, %v3454
      %v3460 = vshll.u32 %v3256, 16
      %v3462 = vrot.slane %v3460, 1
      %v3463 = vsel %vm3259, %v3458, %v3462
      %v3464 = vshrl.u32 %v3256, 16
      %v3466 = vor.u32 %v3464, %v3462
      %v3468 = vshll.u32 %v3257, 16
      %v3470 = vrot.slane %v3468, 1
      %v3471 = vsel %vm3259, %v3466, %v3470
      %v3472 = vshrl.u32 %v3257, 16
      %v3474 = vor.u32 %v3472, %v3470
      %v3476 = vshll.u32 %v3258, 16
      %v3478 = vrot.slane %v3476, 1
      %v3479 = vsel %vm3259, %v3474, %v3478
      %v3482 = vunpack.c.l.b16 %v3119
      %v3483 = vunpack.c.l.b16 %v3120
      %v3484 = vpack.c.b16 %v3483, %v3482
      %v3487 = vsel %vm1598, %v3271, 0
      %v3490 = vsel %vm1598, %v3279, 0
      %v3493 = vsel %vm1598, %v3287, 0
      %v3496 = vsel %vm1598, %v3295, 0
      %v3499 = vsel %vm1598, %v3303, 0
      %v3502 = vsel %vm1598, %v3311, 0
      %v3505 = vsel %vm1598, %v3319, 0
      %v3508 = vsel %vm1598, %v3327, 0
      %v3511 = vsel %vm1598, %v3335, 0
      %v3514 = vsel %vm1598, %v3343, 0
      %v3517 = vsel %vm1598, %v3351, 0
      %v3520 = vsel %vm1598, %v3359, 0
      %v3523 = vsel %vm1598, %v3367, 0
      %v3526 = vsel %vm1598, %v3375, 0
      %v3529 = vsel %vm1598, %v3383, 0
      %v3532 = vsel %vm1598, %v3391, 0
      %v3535 = vsel %vm1598, %v3399, 0
      %v3538 = vsel %vm1598, %v3407, 0
      %v3541 = vsel %vm1598, %v3415, 0
      %v3544 = vsel %vm1598, %v3423, 0
      %v3547 = vsel %vm1598, %v3431, 0
      %v3550 = vsel %vm1598, %v3439, 0
      %v3553 = vsel %vm1598, %v3447, 0
      %v3556 = vsel %vm1598, %v3455, 0
      %v3559 = vsel %vm1598, %v3463, 0
      %v3562 = vsel %vm1598, %v3471, 0
      %v3565 = vsel %vm1598, %v3479, 0
      %3567 = vmatprep.subr.bf16.mxu0 0
      %3568 = vmatpush1.bf16.msra.mxu0 0
      %3569 = vmatprep.subr.bf16.mxu0 0
      %3570 = vmatpush1.bf16.msra.mxu0 0
      %3571 = vmatprep.subr.bf16.mxu0 0
      %3572 = vmatpush1.bf16.msra.mxu0 0
      %3573 = vmatprep.subr.bf16.mxu0 0
      %3574 = vmatpush1.bf16.msra.mxu0 0
      %3575 = vmatprep.subr.bf16.mxu0 0
      %3576 = vmatpush1.bf16.msra.mxu0 0
      %3577 = vmatprep.subr.bf16.mxu0 0
      %3578 = vmatpush1.bf16.msra.mxu0 0
      %3579 = vmatprep.subr.bf16.mxu0 0
      %3580 = vmatpush1.bf16.msra.mxu0 0
      %3581 = vmatprep.subr.bf16.mxu0 0
      %3582 = vmatpush1.bf16.msra.mxu0 %v3484
      %3583 = vmatprep.subr.bf16.mxu0 0
      %3584 = vmatpush2.bf16.msra.mxu0 0
      %3585 = vmatprep.subr.bf16.mxu0 0
      %3586 = vmatpush2.bf16.msra.mxu0 0
      %3587 = vmatprep.subr.bf16.mxu0 0
      %3588 = vmatpush2.bf16.msra.mxu0 0
      %3589 = vmatprep.subr.bf16.mxu0 0
      %3590 = vmatpush2.bf16.msra.mxu0 0
      %3591 = vmatprep.subr.bf16.mxu0 0
      %3592 = vmatpush2.bf16.msra.mxu0 0
      %3593 = vmatprep.subr.bf16.mxu0 0
      %3594 = vmatpush2.bf16.msra.mxu0 0
      %3595 = vmatprep.subr.bf16.mxu0 0
      %3596 = vmatpush2.bf16.msra.mxu0 0
      %3597 = vmatprep.subr.bf16.mxu0 0
      %3598 = vmatpush2.bf16.msra.mxu0 0
      %3599 = vmatprep.mubr.bf16.mxu0 0
      %3600 = vmatmul.mubr.bf16.gmra.mxu0 %v3487
      %v3601 = vpop.f32.mrf.mxu0
      %v3602 = vpop.f32.mrf.mxu0
      %v3603 = vpop.f32.mrf.mxu0
      %v3604 = vpop.f32.mrf.mxu0
      %3605 = vmatprep.mubr.bf16.mxu0 0
      %3606 = vmatmul.mubr.bf16.gmra.mxu0 %v3490
      %v3607 = vpop.f32.mrf.mxu0
      %v3608 = vpop.f32.mrf.mxu0
      %v3609 = vpop.f32.mrf.mxu0
      %v3610 = vadd.f32 0.0, %v3609
      %v3611 = vpop.f32.mrf.mxu0
      %3612 = vmatprep.mubr.bf16.mxu0 0
      %3613 = vmatmul.mubr.bf16.gmra.mxu0 %v3493
      %v3614 = vpop.f32.mrf.mxu0
      %v3615 = vadd.f32 0.0, %v3614
      %v3616 = vpop.f32.mrf.mxu0
      %v3617 = vpop.f32.mrf.mxu0
      %v3618 = vadd.f32 0.0, %v3617
      %v3619 = vpop.f32.mrf.mxu0
      %3620 = vmatprep.mubr.bf16.mxu0 0
      %3621 = vmatmul.mubr.bf16.gmra.mxu0 %v3496
      %v3622 = vpop.f32.mrf.mxu0
      %v3623 = vadd.f32 0.0, %v3622
      %v3624 = vpop.f32.mrf.mxu0
      %v3625 = vpop.f32.mrf.mxu0
      %v3626 = vadd.f32 0.0, %v3625
      %v3627 = vpop.f32.mrf.mxu0
      %3628 = vmatprep.mubr.bf16.mxu0 0
      %3629 = vmatmul.mubr.bf16.gmra.mxu0 %v3499
      %v3630 = vpop.f32.mrf.mxu0
      %v3631 = vadd.f32 0.0, %v3630
      %v3632 = vpop.f32.mrf.mxu0
      %v3633 = vpop.f32.mrf.mxu0
      %v3634 = vadd.f32 0.0, %v3633
      %v3635 = vpop.f32.mrf.mxu0
      %3636 = vmatprep.mubr.bf16.mxu0 0
      %3637 = vmatmul.mubr.bf16.gmra.mxu0 %v3502
      %v3638 = vpop.f32.mrf.mxu0
      %v3639 = vadd.f32 0.0, %v3638
      %v3640 = vpop.f32.mrf.mxu0
      %v3641 = vpop.f32.mrf.mxu0
      %v3642 = vadd.f32 0.0, %v3641
      %v3643 = vpop.f32.mrf.mxu0
      %3644 = vmatprep.mubr.bf16.mxu0 0
      %3645 = vmatmul.mubr.bf16.gmra.mxu0 %v3505
      %v3646 = vpop.f32.mrf.mxu0
      %v3647 = vadd.f32 0.0, %v3646
      %v3648 = vpop.f32.mrf.mxu0
      %v3649 = vpop.f32.mrf.mxu0
      %v3650 = vadd.f32 0.0, %v3649
      %v3651 = vpop.f32.mrf.mxu0
      %3652 = vmatprep.mubr.bf16.mxu0 0
      %3653 = vmatmul.mubr.bf16.gmra.mxu0 %v3508
      %v3654 = vpop.f32.mrf.mxu0
      %v3655 = vadd.f32 0.0, %v3654
      %v3656 = vpop.f32.mrf.mxu0
      %v3657 = vpop.f32.mrf.mxu0
      %v3658 = vadd.f32 0.0, %v3657
      %v3659 = vpop.f32.mrf.mxu0
      %3660 = vmatprep.mubr.bf16.mxu0 0
      %3661 = vmatmul.mubr.bf16.gmra.mxu0 %v3511
      %v3662 = vpop.f32.mrf.mxu0
      %v3663 = vadd.f32 0.0, %v3662
      %v3664 = vpop.f32.mrf.mxu0
      %v3665 = vpop.f32.mrf.mxu0
      %v3666 = vadd.f32 0.0, %v3665
      %v3667 = vpop.f32.mrf.mxu0
      %3668 = vmatprep.mubr.bf16.mxu0 0
      %3669 = vmatmul.mubr.bf16.gmra.mxu0 %v3514
      %v3670 = vpop.f32.mrf.mxu0
      %v3671 = vadd.f32 0.0, %v3670
      %v3672 = vpop.f32.mrf.mxu0
      %v3673 = vpop.f32.mrf.mxu0
      %v3674 = vadd.f32 0.0, %v3673
      %v3675 = vpop.f32.mrf.mxu0
      %3676 = vmatprep.mubr.bf16.mxu0 0
      %3677 = vmatmul.mubr.bf16.gmra.mxu0 %v3517
      %v3678 = vpop.f32.mrf.mxu0
      %v3679 = vadd.f32 0.0, %v3678
      %v3680 = vpop.f32.mrf.mxu0
      %v3681 = vpop.f32.mrf.mxu0
      %v3682 = vadd.f32 0.0, %v3681
      %v3683 = vpop.f32.mrf.mxu0
      %3684 = vmatprep.mubr.bf16.mxu0 0
      %3685 = vmatmul.mubr.bf16.gmra.mxu0 %v3520
      %v3686 = vpop.f32.mrf.mxu0
      %v3687 = vadd.f32 0.0, %v3686
      %v3688 = vpop.f32.mrf.mxu0
      %v3689 = vpop.f32.mrf.mxu0
      %v3690 = vadd.f32 0.0, %v3689
      %v3691 = vpop.f32.mrf.mxu0
      %3692 = vmatprep.mubr.bf16.mxu0 0
      %3693 = vmatmul.mubr.bf16.gmra.mxu0 %v3523
      %v3694 = vpop.f32.mrf.mxu0
      %v3695 = vadd.f32 0.0, %v3694
      %v3696 = vpop.f32.mrf.mxu0
      %v3697 = vpop.f32.mrf.mxu0
      %v3698 = vadd.f32 0.0, %v3697
      %v3699 = vpop.f32.mrf.mxu0
      %3700 = vmatprep.mubr.bf16.mxu0 0
      %3701 = vmatmul.mubr.bf16.gmra.mxu0 %v3526
      %v3702 = vpop.f32.mrf.mxu0
      %v3703 = vadd.f32 0.0, %v3702
      %v3704 = vpop.f32.mrf.mxu0
      %v3705 = vpop.f32.mrf.mxu0
      %v3706 = vadd.f32 0.0, %v3705
      %v3707 = vpop.f32.mrf.mxu0
      %3708 = vmatprep.mubr.bf16.mxu0 0
      %3709 = vmatmul.mubr.bf16.gmra.mxu0 %v3529
      %v3710 = vpop.f32.mrf.mxu0
      %v3711 = vadd.f32 0.0, %v3710
      %v3712 = vpop.f32.mrf.mxu0
      %v3713 = vpop.f32.mrf.mxu0
      %v3714 = vadd.f32 0.0, %v3713
      %v3715 = vpop.f32.mrf.mxu0
      %3716 = vmatprep.mubr.bf16.mxu0 0
      %3717 = vmatmul.mubr.bf16.gmra.mxu0 %v3532
      %v3718 = vpop.f32.mrf.mxu0
      %v3719 = vadd.f32 0.0, %v3718
      %v3720 = vpop.f32.mrf.mxu0
      %v3721 = vpop.f32.mrf.mxu0
      %v3722 = vadd.f32 0.0, %v3721
      %v3723 = vpop.f32.mrf.mxu0
      %3724 = vmatprep.mubr.bf16.mxu0 0
      %3725 = vmatmul.mubr.bf16.gmra.mxu0 %v3535
      %v3726 = vpop.f32.mrf.mxu0
      %v3727 = vadd.f32 0.0, %v3726
      %v3728 = vpop.f32.mrf.mxu0
      %v3729 = vpop.f32.mrf.mxu0
      %v3730 = vadd.f32 0.0, %v3729
      %v3731 = vpop.f32.mrf.mxu0
      %3732 = vmatprep.mubr.bf16.mxu0 0
      %3733 = vmatmul.mubr.bf16.gmra.mxu0 %v3538
      %v3734 = vpop.f32.mrf.mxu0
      %v3735 = vadd.f32 0.0, %v3734
      %v3736 = vpop.f32.mrf.mxu0
      %v3737 = vpop.f32.mrf.mxu0
      %v3738 = vadd.f32 0.0, %v3737
      %v3739 = vpop.f32.mrf.mxu0
      %3740 = vmatprep.mubr.bf16.mxu0 0
      %3741 = vmatmul.mubr.bf16.gmra.mxu0 %v3541
      %v3742 = vpop.f32.mrf.mxu0
      %v3743 = vadd.f32 0.0, %v3742
      %v3744 = vpop.f32.mrf.mxu0
      %v3745 = vpop.f32.mrf.mxu0
      %v3746 = vadd.f32 0.0, %v3745
      %v3747 = vpop.f32.mrf.mxu0
      %3748 = vmatprep.mubr.bf16.mxu0 0
      %3749 = vmatmul.mubr.bf16.gmra.mxu0 %v3544
      %v3750 = vpop.f32.mrf.mxu0
      %v3751 = vadd.f32 0.0, %v3750
      %v3752 = vpop.f32.mrf.mxu0
      %v3753 = vpop.f32.mrf.mxu0
      %v3754 = vadd.f32 0.0, %v3753
      %v3755 = vpop.f32.mrf.mxu0
      %3756 = vmatprep.mubr.bf16.mxu0 0
      %3757 = vmatmul.mubr.bf16.gmra.mxu0 %v3547
      %v3758 = vpop.f32.mrf.mxu0
      %v3759 = vadd.f32 0.0, %v3758
      %v3760 = vpop.f32.mrf.mxu0
      %v3761 = vpop.f32.mrf.mxu0
      %v3762 = vadd.f32 0.0, %v3761
      %v3763 = vpop.f32.mrf.mxu0
      %3764 = vmatprep.mubr.bf16.mxu0 0
      %3765 = vmatmul.mubr.bf16.gmra.mxu0 %v3550
      %v3766 = vpop.f32.mrf.mxu0
      %v3767 = vadd.f32 0.0, %v3766
      %v3768 = vpop.f32.mrf.mxu0
      %v3769 = vpop.f32.mrf.mxu0
      %v3770 = vadd.f32 0.0, %v3769
      %v3771 = vpop.f32.mrf.mxu0
      %3772 = vmatprep.mubr.bf16.mxu0 0
      %3773 = vmatmul.mubr.bf16.gmra.mxu0 %v3553
      %v3774 = vpop.f32.mrf.mxu0
      %v3775 = vadd.f32 0.0, %v3774
      %v3776 = vpop.f32.mrf.mxu0
      %v3777 = vpop.f32.mrf.mxu0
      %v3778 = vadd.f32 0.0, %v3777
      %v3779 = vpop.f32.mrf.mxu0
      %3780 = vmatprep.mubr.bf16.mxu0 0
      %3781 = vmatmul.mubr.bf16.gmra.mxu0 %v3556
      %v3782 = vpop.f32.mrf.mxu0
      %v3783 = vadd.f32 0.0, %v3782
      %v3784 = vpop.f32.mrf.mxu0
      %v3785 = vpop.f32.mrf.mxu0
      %v3786 = vadd.f32 0.0, %v3785
      %v3787 = vpop.f32.mrf.mxu0
      %3788 = vmatprep.mubr.bf16.mxu0 0
      %3789 = vmatmul.mubr.bf16.gmra.mxu0 %v3559
      %v3790 = vpop.f32.mrf.mxu0
      %v3791 = vadd.f32 0.0, %v3790
      %v3792 = vpop.f32.mrf.mxu0
      %v3793 = vpop.f32.mrf.mxu0
      %v3794 = vadd.f32 0.0, %v3793
      %v3795 = vpop.f32.mrf.mxu0
      %3796 = vmatprep.mubr.bf16.mxu0 0
      %3797 = vmatmul.mubr.bf16.gmra.mxu0 %v3562
      %v3798 = vpop.f32.mrf.mxu0
      %v3799 = vadd.f32 0.0, %v3798
      %v3800 = vpop.f32.mrf.mxu0
      %v3801 = vpop.f32.mrf.mxu0
      %v3802 = vpop.f32.mrf.mxu0
      %3803 = vmatprep.mubr.bf16.mxu0 0
      %3804 = vmatmul.mubr.bf16.gmra.mxu0 %v3565
      %v3805 = vpop.f32.mrf.mxu0
      %v3806 = vpop.f32.mrf.mxu0
      %v3807 = vpop.f32.mrf.mxu0
      %v3808 = vpop.f32.mrf.mxu0
      %3809 = vdwg.mxu0
      %v3810 = vadd.f32 %v2863, %v3610
      %v3811 = vadd.f32 %v2868, %v3615
      %v3812 = vadd.f32 %v2871, %v3618
      %v3813 = vadd.f32 %v2876, %v3623
      %v3814 = vadd.f32 %v2879, %v3626
      %v3815 = vadd.f32 %v2884, %v3631
      %v3816 = vadd.f32 %v2887, %v3634
      %v3817 = vadd.f32 %v2892, %v3639
      %v3818 = vadd.f32 %v2895, %v3642
      %v3819 = vadd.f32 %v2900, %v3647
      %v3820 = vadd.f32 %v2903, %v3650
      %v3821 = vadd.f32 %v2908, %v3655
      %v3822 = vadd.f32 %v2911, %v3658
      %v3823 = vadd.f32 %v2916, %v3663
      %v3824 = vadd.f32 %v2919, %v3666
      %v3825 = vadd.f32 %v2924, %v3671
      %v3826 = vadd.f32 %v2927, %v3674
      %v3827 = vadd.f32 %v2932, %v3679
      %v3828 = vadd.f32 %v2935, %v3682
      %v3829 = vadd.f32 %v2940, %v3687
      %v3830 = vadd.f32 %v2943, %v3690
      %v3831 = vadd.f32 %v2948, %v3695
      %v3832 = vadd.f32 %v2951, %v3698
      %v3833 = vadd.f32 %v2956, %v3703
      %v3834 = vadd.f32 %v2959, %v3706
      %v3835 = vadd.f32 %v2964, %v3711
      %v3836 = vadd.f32 %v2967, %v3714
      %v3837 = vadd.f32 %v2972, %v3719
      %v3838 = vadd.f32 %v2975, %v3722
      %v3839 = vadd.f32 %v2980, %v3727
      %v3840 = vadd.f32 %v2983, %v3730
      %v3841 = vadd.f32 %v2988, %v3735
      %v3842 = vadd.f32 %v2991, %v3738
      %v3843 = vadd.f32 %v2996, %v3743
      %v3844 = vadd.f32 %v2999, %v3746
      %v3845 = vadd.f32 %v3004, %v3751
      %v3846 = vadd.f32 %v3007, %v3754
      %v3847 = vadd.f32 %v3012, %v3759
      %v3848 = vadd.f32 %v3015, %v3762
      %v3849 = vadd.f32 %v3020, %v3767
      %v3850 = vadd.f32 %v3023, %v3770
      %v3851 = vadd.f32 %v3028, %v3775
      %v3852 = vadd.f32 %v3031, %v3778
      %v3853 = vadd.f32 %v3036, %v3783
      %v3854 = vadd.f32 %v3039, %v3786
      %v3855 = vadd.f32 %v3044, %v3791
      %v3856 = vadd.f32 %v3047, %v3794
      %v3857 = vadd.f32 %v3052, %v3799
      %v3858 = vld [vmem:[#allocation2 + $0xc] sm:$0x8]
      %v3859 = vld [vmem:[#allocation2 + $0x10] sm:$0xf]
      %v3860 = vld [vmem:[#allocation2 + $0x14] sm:$0xf]
      %v3861 = vld [vmem:[#allocation2 + $0x18] sm:$0xf]
      %v3862 = vld [vmem:[#allocation2 + $0x1c] sm:$0xf]
      %v3863 = vld [vmem:[#allocation2 + $0x20] sm:$0xf]
      %v3864 = vld [vmem:[#allocation2 + $0x24] sm:$0xf]
      %v3865 = vld [vmem:[#allocation2 + $0x28] sm:$0xf]
      %v3866 = vld [vmem:[#allocation2 + $0x2c] sm:$0xf]
      %v3867 = vld [vmem:[#allocation2 + $0x30] sm:$0xf]
      %v3868 = vld [vmem:[#allocation2 + $0x34] sm:$0xf]
      %v3869 = vld [vmem:[#allocation2 + $0x38] sm:$0xf]
      %v3870 = vld [vmem:[#allocation2 + $0x3c] sm:$0xf]
      %v3871 = vld [vmem:[#allocation2 + $0x40] sm:$0xf]
      %v3872 = vld [vmem:[#allocation2 + $0x44] sm:$0xf]
      %v3873 = vld [vmem:[#allocation2 + $0x48] sm:$0xf]
      %v3874 = vld [vmem:[#allocation2 + $0x4c] sm:$0xf]
      %v3875 = vld [vmem:[#allocation2 + $0x50] sm:$0xf]
      %v3876 = vld [vmem:[#allocation2 + $0x54] sm:$0xf]
      %v3877 = vld [vmem:[#allocation2 + $0x58] sm:$0xf]
      %v3878 = vld [vmem:[#allocation2 + $0x5c] sm:$0xf]
      %v3879 = vld [vmem:[#allocation2 + $0x60] sm:$0xf]
      %v3880 = vld [vmem:[#allocation2 + $0x64] sm:$0xf]
      %v3881 = vld [vmem:[#allocation2 + $0x68] sm:$0xf]
      %v3882 = vld [vmem:[#allocation2 + $0x6c] sm:$0xf]
      %v3883 = vld [vmem:[#allocation2 + $0x70] sm:$0xf]
      %v3884 = vld [vmem:[#allocation2 + $0x74] sm:$0xf]
      %v3885 = vld [vmem:[#allocation2 + $0x78] sm:$0xf]
      %v3886 = vld [vmem:[#allocation2 + $0x7c] sm:$0xf]
      %v3887 = vld [vmem:[#allocation2 + $0x80] sm:$0xf]
      %v3888 = vld [vmem:[#allocation2 + $0x84] sm:$0xf]
      %v3889 = vld [vmem:[#allocation2 + $0x88] sm:$0xf]
      %v3890 = vld [vmem:[#allocation2 + $0x8c] sm:$0xf]
      %v3891 = vld [vmem:[#allocation2 + $0x90] sm:$0xf]
      %v3892 = vld [vmem:[#allocation2 + $0x94] sm:$0xf]
      %v3893 = vld [vmem:[#allocation2 + $0x98] sm:$0xf]
      %v3894 = vld [vmem:[#allocation2 + $0x9c] sm:$0xf]
      %v3895 = vld [vmem:[#allocation2 + $0xa0] sm:$0xf]
      %v3896 = vld [vmem:[#allocation2 + $0xa4] sm:$0xf]
      %v3897 = vld [vmem:[#allocation2 + $0xa8] sm:$0xf]
      %v3898 = vld [vmem:[#allocation2 + $0xac] sm:$0xf]
      %v3899 = vld [vmem:[#allocation2 + $0xb0] sm:$0xf]
      %v3900 = vld [vmem:[#allocation2 + $0xb4] sm:$0xf]
      %v3901 = vld [vmem:[#allocation2 + $0xb8] sm:$0xf]
      %v3902 = vld [vmem:[#allocation2 + $0xbc] sm:$0xf]
      %v3903 = vld [vmem:[#allocation2 + $0xc0] sm:$0xf]
      %v3904 = vld [vmem:[#allocation2 + $0xc4] sm:$0xf]
      %v3905 = vld [vmem:[#allocation2 + $0xc8] sm:$0xf]
      %v3906 = vld [vmem:[#allocation2 + $0xcc] sm:$0xf]
      %v3907 = vld [vmem:[#allocation2 + $0xd0] sm:$0xf]
      %v3908 = vld [vmem:[#allocation2 + $0xd4] sm:$0xf]
      %v3909 = vld [vmem:[#allocation2 + $0xd8] sm:$0xf]
      %v3910 = vld [vmem:[#allocation2 + $0xdc] sm:$0xf]
      %v3911 = vld [vmem:[#allocation2 + $0xe0] sm:$0xf]
      %v3912 = vld [vmem:[#allocation2 + $0xe4] sm:$0xf]
      %s3913 = scalar_lea.vmem %s4, 24
      %v3914 = vld [vmem:[%s3913] sm:$0xf]
      %v3915 = vld [vmem:[%s3913 + $0x4] sm:$0xf]
      %v3971 = vunpack.c.l.b16 %v3858
      %v3972 = vunpack.c.l.b16 %v3859
      %v3973 = vunpack.c.l.b16 %v3860
      %v3974 = vunpack.c.l.b16 %v3861
      %v3975 = vunpack.c.l.b16 %v3862
      %v3976 = vunpack.c.l.b16 %v3863
      %v3977 = vunpack.c.l.b16 %v3864
      %v3978 = vunpack.c.l.b16 %v3865
      %v3979 = vunpack.c.l.b16 %v3866
      %v3980 = vunpack.c.l.b16 %v3867
      %v3981 = vunpack.c.l.b16 %v3868
      %v3982 = vunpack.c.l.b16 %v3869
      %v3983 = vunpack.c.l.b16 %v3870
      %v3984 = vunpack.c.l.b16 %v3871
      %v3985 = vunpack.c.l.b16 %v3872
      %v3986 = vunpack.c.l.b16 %v3873
      %v3987 = vunpack.c.l.b16 %v3874
      %v3988 = vunpack.c.l.b16 %v3875
      %v3989 = vunpack.c.l.b16 %v3876
      %v3990 = vunpack.c.l.b16 %v3877
      %v3991 = vunpack.c.l.b16 %v3878
      %v3992 = vunpack.c.l.b16 %v3879
      %v3993 = vunpack.c.l.b16 %v3880
      %v3994 = vunpack.c.l.b16 %v3881
      %v3995 = vunpack.c.l.b16 %v3882
      %v3996 = vunpack.c.l.b16 %v3883
      %v3997 = vunpack.c.l.b16 %v3884
      %v3998 = vunpack.c.l.b16 %v3885
      %v3999 = vunpack.c.l.b16 %v3886
      %v4000 = vunpack.c.l.b16 %v3887
      %v4001 = vunpack.c.l.b16 %v3888
      %v4002 = vunpack.c.l.b16 %v3889
      %v4003 = vunpack.c.l.b16 %v3890
      %v4004 = vunpack.c.l.b16 %v3891
      %v4005 = vunpack.c.l.b16 %v3892
      %v4006 = vunpack.c.l.b16 %v3893
      %v4007 = vunpack.c.l.b16 %v3894
      %v4008 = vunpack.c.l.b16 %v3895
      %v4009 = vunpack.c.l.b16 %v3896
      %v4010 = vunpack.c.l.b16 %v3897
      %v4011 = vunpack.c.l.b16 %v3898
      %v4012 = vunpack.c.l.b16 %v3899
      %v4013 = vunpack.c.l.b16 %v3900
      %v4014 = vunpack.c.l.b16 %v3901
      %v4015 = vunpack.c.l.b16 %v3902
      %v4016 = vunpack.c.l.b16 %v3903
      %v4017 = vunpack.c.l.b16 %v3904
      %v4018 = vunpack.c.l.b16 %v3905
      %v4019 = vunpack.c.l.b16 %v3906
      %v4020 = vunpack.c.l.b16 %v3907
      %v4021 = vunpack.c.l.b16 %v3908
      %v4022 = vunpack.c.l.b16 %v3909
      %v4023 = vunpack.c.l.b16 %v3910
      %v4024 = vunpack.c.l.b16 %v3911
      %v4025 = vunpack.c.l.b16 %v3912
      %v4026 = vpack.c.b16 %v3972, %v3971
      %v4027 = vpack.c.b16 %v3974, %v3973
      %v4028 = vpack.c.b16 %v3976, %v3975
      %v4029 = vpack.c.b16 %v3978, %v3977
      %v4030 = vpack.c.b16 %v3980, %v3979
      %v4031 = vpack.c.b16 %v3982, %v3981
      %v4032 = vpack.c.b16 %v3984, %v3983
      %v4033 = vpack.c.b16 %v3986, %v3985
      %v4034 = vpack.c.b16 %v3988, %v3987
      %v4035 = vpack.c.b16 %v3990, %v3989
      %v4036 = vpack.c.b16 %v3992, %v3991
      %v4037 = vpack.c.b16 %v3994, %v3993
      %v4038 = vpack.c.b16 %v3996, %v3995
      %v4039 = vpack.c.b16 %v3998, %v3997
      %v4040 = vpack.c.b16 %v4000, %v3999
      %v4041 = vpack.c.b16 %v4002, %v4001
      %v4042 = vpack.c.b16 %v4004, %v4003
      %v4043 = vpack.c.b16 %v4006, %v4005
      %v4044 = vpack.c.b16 %v4008, %v4007
      %v4045 = vpack.c.b16 %v4010, %v4009
      %v4046 = vpack.c.b16 %v4012, %v4011
      %v4047 = vpack.c.b16 %v4014, %v4013
      %v4048 = vpack.c.b16 %v4016, %v4015
      %v4049 = vpack.c.b16 %v4018, %v4017
      %v4050 = vpack.c.b16 %v4020, %v4019
      %v4051 = vpack.c.b16 %v4022, %v4021
      %v4052 = vpack.c.b16 %v4024, %v4023
      %v4053 = vpack.c.b16 %v4025, %v4025
      %v4055 = vshrl.u32 %v4026, 16
      %v4057 = vrot.slane %v4055, 3
      %v4058 = vshll.u32 %v4026, 16
      %v4060 = vrot.slane %v4058, 4
      %v4061 = vor.u32 %v4057, %v4060
      %v4063 = vshrl.u32 %v4027, 16
      %v4065 = vrot.slane %v4063, 3
      %v4066 = vshll.u32 %v4027, 16
      %v4068 = vrot.slane %v4066, 4
      %v4069 = vor.u32 %v4065, %v4068
      %v4070 = vsel %vm2481, %v4061, %v4069
      %v4072 = vshrl.u32 %v4028, 16
      %v4074 = vrot.slane %v4072, 3
      %v4075 = vshll.u32 %v4028, 16
      %v4077 = vrot.slane %v4075, 4
      %v4078 = vor.u32 %v4074, %v4077
      %v4079 = vsel %vm2481, %v4069, %v4078
      %v4081 = vshrl.u32 %v4029, 16
      %v4083 = vrot.slane %v4081, 3
      %v4084 = vshll.u32 %v4029, 16
      %v4086 = vrot.slane %v4084, 4
      %v4087 = vor.u32 %v4083, %v4086
      %v4088 = vsel %vm2481, %v4078, %v4087
      %v4090 = vshrl.u32 %v4030, 16
      %v4092 = vrot.slane %v4090, 3
      %v4093 = vshll.u32 %v4030, 16
      %v4095 = vrot.slane %v4093, 4
      %v4096 = vor.u32 %v4092, %v4095
      %v4097 = vsel %vm2481, %v4087, %v4096
      %v4099 = vshrl.u32 %v4031, 16
      %v4101 = vrot.slane %v4099, 3
      %v4102 = vshll.u32 %v4031, 16
      %v4104 = vrot.slane %v4102, 4
      %v4105 = vor.u32 %v4101, %v4104
      %v4106 = vsel %vm2481, %v4096, %v4105
      %v4108 = vshrl.u32 %v4032, 16
      %v4110 = vrot.slane %v4108, 3
      %v4111 = vshll.u32 %v4032, 16
      %v4113 = vrot.slane %v4111, 4
      %v4114 = vor.u32 %v4110, %v4113
      %v4115 = vsel %vm2481, %v4105, %v4114
      %v4117 = vshrl.u32 %v4033, 16
      %v4119 = vrot.slane %v4117, 3
      %v4120 = vshll.u32 %v4033, 16
      %v4122 = vrot.slane %v4120, 4
      %v4123 = vor.u32 %v4119, %v4122
      %v4124 = vsel %vm2481, %v4114, %v4123
      %v4126 = vshrl.u32 %v4034, 16
      %v4128 = vrot.slane %v4126, 3
      %v4129 = vshll.u32 %v4034, 16
      %v4131 = vrot.slane %v4129, 4
      %v4132 = vor.u32 %v4128, %v4131
      %v4133 = vsel %vm2481, %v4123, %v4132
      %v4135 = vshrl.u32 %v4035, 16
      %v4137 = vrot.slane %v4135, 3
      %v4138 = vshll.u32 %v4035, 16
      %v4140 = vrot.slane %v4138, 4
      %v4141 = vor.u32 %v4137, %v4140
      %v4142 = vsel %vm2481, %v4132, %v4141
      %v4144 = vshrl.u32 %v4036, 16
      %v4146 = vrot.slane %v4144, 3
      %v4147 = vshll.u32 %v4036, 16
      %v4149 = vrot.slane %v4147, 4
      %v4150 = vor.u32 %v4146, %v4149
      %v4151 = vsel %vm2481, %v4141, %v4150
      %v4153 = vshrl.u32 %v4037, 16
      %v4155 = vrot.slane %v4153, 3
      %v4156 = vshll.u32 %v4037, 16
      %v4158 = vrot.slane %v4156, 4
      %v4159 = vor.u32 %v4155, %v4158
      %v4160 = vsel %vm2481, %v4150, %v4159
      %v4162 = vshrl.u32 %v4038, 16
      %v4164 = vrot.slane %v4162, 3
      %v4165 = vshll.u32 %v4038, 16
      %v4167 = vrot.slane %v4165, 4
      %v4168 = vor.u32 %v4164, %v4167
      %v4169 = vsel %vm2481, %v4159, %v4168
      %v4171 = vshrl.u32 %v4039, 16
      %v4173 = vrot.slane %v4171, 3
      %v4174 = vshll.u32 %v4039, 16
      %v4176 = vrot.slane %v4174, 4
      %v4177 = vor.u32 %v4173, %v4176
      %v4178 = vsel %vm2481, %v4168, %v4177
      %v4180 = vshrl.u32 %v4040, 16
      %v4182 = vrot.slane %v4180, 3
      %v4183 = vshll.u32 %v4040, 16
      %v4185 = vrot.slane %v4183, 4
      %v4186 = vor.u32 %v4182, %v4185
      %v4187 = vsel %vm2481, %v4177, %v4186
      %v4189 = vshrl.u32 %v4041, 16
      %v4191 = vrot.slane %v4189, 3
      %v4192 = vshll.u32 %v4041, 16
      %v4194 = vrot.slane %v4192, 4
      %v4195 = vor.u32 %v4191, %v4194
      %v4196 = vsel %vm2481, %v4186, %v4195
      %v4198 = vshrl.u32 %v4042, 16
      %v4200 = vrot.slane %v4198, 3
      %v4201 = vshll.u32 %v4042, 16
      %v4203 = vrot.slane %v4201, 4
      %v4204 = vor.u32 %v4200, %v4203
      %v4205 = vsel %vm2481, %v4195, %v4204
      %v4207 = vshrl.u32 %v4043, 16
      %v4209 = vrot.slane %v4207, 3
      %v4210 = vshll.u32 %v4043, 16
      %v4212 = vrot.slane %v4210, 4
      %v4213 = vor.u32 %v4209, %v4212
      %v4214 = vsel %vm2481, %v4204, %v4213
      %v4216 = vshrl.u32 %v4044, 16
      %v4218 = vrot.slane %v4216, 3
      %v4219 = vshll.u32 %v4044, 16
      %v4221 = vrot.slane %v4219, 4
      %v4222 = vor.u32 %v4218, %v4221
      %v4223 = vsel %vm2481, %v4213, %v4222
      %v4225 = vshrl.u32 %v4045, 16
      %v4227 = vrot.slane %v4225, 3
      %v4228 = vshll.u32 %v4045, 16
      %v4230 = vrot.slane %v4228, 4
      %v4231 = vor.u32 %v4227, %v4230
      %v4232 = vsel %vm2481, %v4222, %v4231
      %v4234 = vshrl.u32 %v4046, 16
      %v4236 = vrot.slane %v4234, 3
      %v4237 = vshll.u32 %v4046, 16
      %v4239 = vrot.slane %v4237, 4
      %v4240 = vor.u32 %v4236, %v4239
      %v4241 = vsel %vm2481, %v4231, %v4240
      %v4243 = vshrl.u32 %v4047, 16
      %v4245 = vrot.slane %v4243, 3
      %v4246 = vshll.u32 %v4047, 16
      %v4248 = vrot.slane %v4246, 4
      %v4249 = vor.u32 %v4245, %v4248
      %v4250 = vsel %vm2481, %v4240, %v4249
      %v4252 = vshrl.u32 %v4048, 16
      %v4254 = vrot.slane %v4252, 3
      %v4255 = vshll.u32 %v4048, 16
      %v4257 = vrot.slane %v4255, 4
      %v4258 = vor.u32 %v4254, %v4257
      %v4259 = vsel %vm2481, %v4249, %v4258
      %v4261 = vshrl.u32 %v4049, 16
      %v4263 = vrot.slane %v4261, 3
      %v4264 = vshll.u32 %v4049, 16
      %v4266 = vrot.slane %v4264, 4
      %v4267 = vor.u32 %v4263, %v4266
      %v4268 = vsel %vm2481, %v4258, %v4267
      %v4270 = vshrl.u32 %v4050, 16
      %v4272 = vrot.slane %v4270, 3
      %v4273 = vshll.u32 %v4050, 16
      %v4275 = vrot.slane %v4273, 4
      %v4276 = vor.u32 %v4272, %v4275
      %v4277 = vsel %vm2481, %v4267, %v4276
      %v4279 = vshrl.u32 %v4051, 16
      %v4281 = vrot.slane %v4279, 3
      %v4282 = vshll.u32 %v4051, 16
      %v4284 = vrot.slane %v4282, 4
      %v4285 = vor.u32 %v4281, %v4284
      %v4286 = vsel %vm2481, %v4276, %v4285
      %v4288 = vshrl.u32 %v4052, 16
      %v4290 = vrot.slane %v4288, 3
      %v4291 = vshll.u32 %v4052, 16
      %v4293 = vrot.slane %v4291, 4
      %v4294 = vor.u32 %v4290, %v4293
      %v4295 = vsel %vm2481, %v4285, %v4294
      %v4297 = vshrl.u32 %v4053, 16
      %v4299 = vrot.slane %v4297, 3
      %v4300 = vshll.u32 %v4053, 16
      %v4302 = vrot.slane %v4300, 4
      %v4303 = vor.u32 %v4299, %v4302
      %v4304 = vsel %vm2481, %v4294, %v4303
      %v4307 = vunpack.c.l.b16 %v3914
      %v4308 = vunpack.c.l.b16 %v3915
      %v4309 = vpack.c.b16 %v4308, %v4307
      %v4312 = vsel %vm1598, %v4070, 0
      %v4315 = vsel %vm1598, %v4079, 0
      %v4318 = vsel %vm1598, %v4088, 0
      %v4321 = vsel %vm1598, %v4097, 0
      %v4324 = vsel %vm1598, %v4106, 0
      %v4327 = vsel %vm1598, %v4115, 0
      %v4330 = vsel %vm1598, %v4124, 0
      %v4333 = vsel %vm1598, %v4133, 0
      %v4336 = vsel %vm1598, %v4142, 0
      %v4339 = vsel %vm1598, %v4151, 0
      %v4342 = vsel %vm1598, %v4160, 0
      %v4345 = vsel %vm1598, %v4169, 0
      %v4348 = vsel %vm1598, %v4178, 0
      %v4351 = vsel %vm1598, %v4187, 0
      %v4354 = vsel %vm1598, %v4196, 0
      %v4357 = vsel %vm1598, %v4205, 0
      %v4360 = vsel %vm1598, %v4214, 0
      %v4363 = vsel %vm1598, %v4223, 0
      %v4366 = vsel %vm1598, %v4232, 0
      %v4369 = vsel %vm1598, %v4241, 0
      %v4372 = vsel %vm1598, %v4250, 0
      %v4375 = vsel %vm1598, %v4259, 0
      %v4378 = vsel %vm1598, %v4268, 0
      %v4381 = vsel %vm1598, %v4277, 0
      %v4384 = vsel %vm1598, %v4286, 0
      %v4387 = vsel %vm1598, %v4295, 0
      %v4390 = vsel %vm1598, %v4304, 0
      %4392 = vmatprep.subr.bf16.mxu0 0
      %4393 = vmatpush1.bf16.msra.mxu0 0
      %4394 = vmatprep.subr.bf16.mxu0 0
      %4395 = vmatpush1.bf16.msra.mxu0 0
      %4396 = vmatprep.subr.bf16.mxu0 0
      %4397 = vmatpush1.bf16.msra.mxu0 0
      %4398 = vmatprep.subr.bf16.mxu0 0
      %4399 = vmatpush1.bf16.msra.mxu0 0
      %4400 = vmatprep.subr.bf16.mxu0 0
      %4401 = vmatpush1.bf16.msra.mxu0 0
      %4402 = vmatprep.subr.bf16.mxu0 0
      %4403 = vmatpush1.bf16.msra.mxu0 0
      %4404 = vmatprep.subr.bf16.mxu0 0
      %4405 = vmatpush1.bf16.msra.mxu0 0
      %4406 = vmatprep.subr.bf16.mxu0 0
      %4407 = vmatpush1.bf16.msra.mxu0 %v4309
      %4408 = vmatprep.subr.bf16.mxu0 0
      %4409 = vmatpush2.bf16.msra.mxu0 0
      %4410 = vmatprep.subr.bf16.mxu0 0
      %4411 = vmatpush2.bf16.msra.mxu0 0
      %4412 = vmatprep.subr.bf16.mxu0 0
      %4413 = vmatpush2.bf16.msra.mxu0 0
      %4414 = vmatprep.subr.bf16.mxu0 0
      %4415 = vmatpush2.bf16.msra.mxu0 0
      %4416 = vmatprep.subr.bf16.mxu0 0
      %4417 = vmatpush2.bf16.msra.mxu0 0
      %4418 = vmatprep.subr.bf16.mxu0 0
      %4419 = vmatpush2.bf16.msra.mxu0 0
      %4420 = vmatprep.subr.bf16.mxu0 0
      %4421 = vmatpush2.bf16.msra.mxu0 0
      %4422 = vmatprep.subr.bf16.mxu0 0
      %4423 = vmatpush2.bf16.msra.mxu0 0
      %4424 = vmatprep.mubr.bf16.mxu0 0
      %4425 = vmatmul.mubr.bf16.gmra.mxu0 %v4312
      %v4426 = vpop.f32.mrf.mxu0
      %v4427 = vpop.f32.mrf.mxu0
      %v4428 = vpop.f32.mrf.mxu0
      %v4429 = vpop.f32.mrf.mxu0
      %4430 = vmatprep.mubr.bf16.mxu0 0
      %4431 = vmatmul.mubr.bf16.gmra.mxu0 %v4315
      %v4432 = vpop.f32.mrf.mxu0
      %v4433 = vpop.f32.mrf.mxu0
      %v4434 = vpop.f32.mrf.mxu0
      %v4435 = vadd.f32 0.0, %v4434
      %v4436 = vpop.f32.mrf.mxu0
      %4437 = vmatprep.mubr.bf16.mxu0 0
      %4438 = vmatmul.mubr.bf16.gmra.mxu0 %v4318
      %v4439 = vpop.f32.mrf.mxu0
      %v4440 = vadd.f32 0.0, %v4439
      %v4441 = vpop.f32.mrf.mxu0
      %v4442 = vpop.f32.mrf.mxu0
      %v4443 = vadd.f32 0.0, %v4442
      %v4444 = vpop.f32.mrf.mxu0
      %4445 = vmatprep.mubr.bf16.mxu0 0
      %4446 = vmatmul.mubr.bf16.gmra.mxu0 %v4321
      %v4447 = vpop.f32.mrf.mxu0
      %v4448 = vadd.f32 0.0, %v4447
      %v4449 = vpop.f32.mrf.mxu0
      %v4450 = vpop.f32.mrf.mxu0
      %v4451 = vadd.f32 0.0, %v4450
      %v4452 = vpop.f32.mrf.mxu0
      %4453 = vmatprep.mubr.bf16.mxu0 0
      %4454 = vmatmul.mubr.bf16.gmra.mxu0 %v4324
      %v4455 = vpop.f32.mrf.mxu0
      %v4456 = vadd.f32 0.0, %v4455
      %v4457 = vpop.f32.mrf.mxu0
      %v4458 = vpop.f32.mrf.mxu0
      %v4459 = vadd.f32 0.0, %v4458
      %v4460 = vpop.f32.mrf.mxu0
      %4461 = vmatprep.mubr.bf16.mxu0 0
      %4462 = vmatmul.mubr.bf16.gmra.mxu0 %v4327
      %v4463 = vpop.f32.mrf.mxu0
      %v4464 = vadd.f32 0.0, %v4463
      %v4465 = vpop.f32.mrf.mxu0
      %v4466 = vpop.f32.mrf.mxu0
      %v4467 = vadd.f32 0.0, %v4466
      %v4468 = vpop.f32.mrf.mxu0
      %4469 = vmatprep.mubr.bf16.mxu0 0
      %4470 = vmatmul.mubr.bf16.gmra.mxu0 %v4330
      %v4471 = vpop.f32.mrf.mxu0
      %v4472 = vadd.f32 0.0, %v4471
      %v4473 = vpop.f32.mrf.mxu0
      %v4474 = vpop.f32.mrf.mxu0
      %v4475 = vadd.f32 0.0, %v4474
      %v4476 = vpop.f32.mrf.mxu0
      %4477 = vmatprep.mubr.bf16.mxu0 0
      %4478 = vmatmul.mubr.bf16.gmra.mxu0 %v4333
      %v4479 = vpop.f32.mrf.mxu0
      %v4480 = vadd.f32 0.0, %v4479
      %v4481 = vpop.f32.mrf.mxu0
      %v4482 = vpop.f32.mrf.mxu0
      %v4483 = vadd.f32 0.0, %v4482
      %v4484 = vpop.f32.mrf.mxu0
      %4485 = vmatprep.mubr.bf16.mxu0 0
      %4486 = vmatmul.mubr.bf16.gmra.mxu0 %v4336
      %v4487 = vpop.f32.mrf.mxu0
      %v4488 = vadd.f32 0.0, %v4487
      %v4489 = vpop.f32.mrf.mxu0
      %v4490 = vpop.f32.mrf.mxu0
      %v4491 = vadd.f32 0.0, %v4490
      %v4492 = vpop.f32.mrf.mxu0
      %4493 = vmatprep.mubr.bf16.mxu0 0
      %4494 = vmatmul.mubr.bf16.gmra.mxu0 %v4339
      %v4495 = vpop.f32.mrf.mxu0
      %v4496 = vadd.f32 0.0, %v4495
      %v4497 = vpop.f32.mrf.mxu0
      %v4498 = vpop.f32.mrf.mxu0
      %v4499 = vadd.f32 0.0, %v4498
      %v4500 = vpop.f32.mrf.mxu0
      %4501 = vmatprep.mubr.bf16.mxu0 0
      %4502 = vmatmul.mubr.bf16.gmra.mxu0 %v4342
      %v4503 = vpop.f32.mrf.mxu0
      %v4504 = vadd.f32 0.0, %v4503
      %v4505 = vpop.f32.mrf.mxu0
      %v4506 = vpop.f32.mrf.mxu0
      %v4507 = vadd.f32 0.0, %v4506
      %v4508 = vpop.f32.mrf.mxu0
      %4509 = vmatprep.mubr.bf16.mxu0 0
      %4510 = vmatmul.mubr.bf16.gmra.mxu0 %v4345
      %v4511 = vpop.f32.mrf.mxu0
      %v4512 = vadd.f32 0.0, %v4511
      %v4513 = vpop.f32.mrf.mxu0
      %v4514 = vpop.f32.mrf.mxu0
      %v4515 = vadd.f32 0.0, %v4514
      %v4516 = vpop.f32.mrf.mxu0
      %4517 = vmatprep.mubr.bf16.mxu0 0
      %4518 = vmatmul.mubr.bf16.gmra.mxu0 %v4348
      %v4519 = vpop.f32.mrf.mxu0
      %v4520 = vadd.f32 0.0, %v4519
      %v4521 = vpop.f32.mrf.mxu0
      %v4522 = vpop.f32.mrf.mxu0
      %v4523 = vadd.f32 0.0, %v4522
      %v4524 = vpop.f32.mrf.mxu0
      %4525 = vmatprep.mubr.bf16.mxu0 0
      %4526 = vmatmul.mubr.bf16.gmra.mxu0 %v4351
      %v4527 = vpop.f32.mrf.mxu0
      %v4528 = vadd.f32 0.0, %v4527
      %v4529 = vpop.f32.mrf.mxu0
      %v4530 = vpop.f32.mrf.mxu0
      %v4531 = vadd.f32 0.0, %v4530
      %v4532 = vpop.f32.mrf.mxu0
      %4533 = vmatprep.mubr.bf16.mxu0 0
      %4534 = vmatmul.mubr.bf16.gmra.mxu0 %v4354
      %v4535 = vpop.f32.mrf.mxu0
      %v4536 = vadd.f32 0.0, %v4535
      %v4537 = vpop.f32.mrf.mxu0
      %v4538 = vpop.f32.mrf.mxu0
      %v4539 = vadd.f32 0.0, %v4538
      %v4540 = vpop.f32.mrf.mxu0
      %4541 = vmatprep.mubr.bf16.mxu0 0
      %4542 = vmatmul.mubr.bf16.gmra.mxu0 %v4357
      %v4543 = vpop.f32.mrf.mxu0
      %v4544 = vadd.f32 0.0, %v4543
      %v4545 = vpop.f32.mrf.mxu0
      %v4546 = vpop.f32.mrf.mxu0
      %v4547 = vadd.f32 0.0, %v4546
      %v4548 = vpop.f32.mrf.mxu0
      %4549 = vmatprep.mubr.bf16.mxu0 0
      %4550 = vmatmul.mubr.bf16.gmra.mxu0 %v4360
      %v4551 = vpop.f32.mrf.mxu0
      %v4552 = vadd.f32 0.0, %v4551
      %v4553 = vpop.f32.mrf.mxu0
      %v4554 = vpop.f32.mrf.mxu0
      %v4555 = vadd.f32 0.0, %v4554
      %v4556 = vpop.f32.mrf.mxu0
      %4557 = vmatprep.mubr.bf16.mxu0 0
      %4558 = vmatmul.mubr.bf16.gmra.mxu0 %v4363
      %v4559 = vpop.f32.mrf.mxu0
      %v4560 = vadd.f32 0.0, %v4559
      %v4561 = vpop.f32.mrf.mxu0
      %v4562 = vpop.f32.mrf.mxu0
      %v4563 = vadd.f32 0.0, %v4562
      %v4564 = vpop.f32.mrf.mxu0
      %4565 = vmatprep.mubr.bf16.mxu0 0
      %4566 = vmatmul.mubr.bf16.gmra.mxu0 %v4366
      %v4567 = vpop.f32.mrf.mxu0
      %v4568 = vadd.f32 0.0, %v4567
      %v4569 = vpop.f32.mrf.mxu0
      %v4570 = vpop.f32.mrf.mxu0
      %v4571 = vadd.f32 0.0, %v4570
      %v4572 = vpop.f32.mrf.mxu0
      %4573 = vmatprep.mubr.bf16.mxu0 0
      %4574 = vmatmul.mubr.bf16.gmra.mxu0 %v4369
      %v4575 = vpop.f32.mrf.mxu0
      %v4576 = vadd.f32 0.0, %v4575
      %v4577 = vpop.f32.mrf.mxu0
      %v4578 = vpop.f32.mrf.mxu0
      %v4579 = vadd.f32 0.0, %v4578
      %v4580 = vpop.f32.mrf.mxu0
      %4581 = vmatprep.mubr.bf16.mxu0 0
      %4582 = vmatmul.mubr.bf16.gmra.mxu0 %v4372
      %v4583 = vpop.f32.mrf.mxu0
      %v4584 = vadd.f32 0.0, %v4583
      %v4585 = vpop.f32.mrf.mxu0
      %v4586 = vpop.f32.mrf.mxu0
      %v4587 = vadd.f32 0.0, %v4586
      %v4588 = vpop.f32.mrf.mxu0
      %4589 = vmatprep.mubr.bf16.mxu0 0
      %4590 = vmatmul.mubr.bf16.gmra.mxu0 %v4375
      %v4591 = vpop.f32.mrf.mxu0
      %v4592 = vadd.f32 0.0, %v4591
      %v4593 = vpop.f32.mrf.mxu0
      %v4594 = vpop.f32.mrf.mxu0
      %v4595 = vadd.f32 0.0, %v4594
      %v4596 = vpop.f32.mrf.mxu0
      %4597 = vmatprep.mubr.bf16.mxu0 0
      %4598 = vmatmul.mubr.bf16.gmra.mxu0 %v4378
      %v4599 = vpop.f32.mrf.mxu0
      %v4600 = vadd.f32 0.0, %v4599
      %v4601 = vpop.f32.mrf.mxu0
      %v4602 = vpop.f32.mrf.mxu0
      %v4603 = vadd.f32 0.0, %v4602
      %v4604 = vpop.f32.mrf.mxu0
      %4605 = vmatprep.mubr.bf16.mxu0 0
      %4606 = vmatmul.mubr.bf16.gmra.mxu0 %v4381
      %v4607 = vpop.f32.mrf.mxu0
      %v4608 = vadd.f32 0.0, %v4607
      %v4609 = vpop.f32.mrf.mxu0
      %v4610 = vpop.f32.mrf.mxu0
      %v4611 = vadd.f32 0.0, %v4610
      %v4612 = vpop.f32.mrf.mxu0
      %4613 = vmatprep.mubr.bf16.mxu0 0
      %4614 = vmatmul.mubr.bf16.gmra.mxu0 %v4384
      %v4615 = vpop.f32.mrf.mxu0
      %v4616 = vadd.f32 0.0, %v4615
      %v4617 = vpop.f32.mrf.mxu0
      %v4618 = vpop.f32.mrf.mxu0
      %v4619 = vadd.f32 0.0, %v4618
      %v4620 = vpop.f32.mrf.mxu0
      %4621 = vmatprep.mubr.bf16.mxu0 0
      %4622 = vmatmul.mubr.bf16.gmra.mxu0 %v4387
      %v4623 = vpop.f32.mrf.mxu0
      %v4624 = vadd.f32 0.0, %v4623
      %v4625 = vpop.f32.mrf.mxu0
      %v4626 = vpop.f32.mrf.mxu0
      %v4627 = vpop.f32.mrf.mxu0
      %4628 = vmatprep.mubr.bf16.mxu0 0
      %4629 = vmatmul.mubr.bf16.gmra.mxu0 %v4390
      %v4630 = vpop.f32.mrf.mxu0
      %v4631 = vpop.f32.mrf.mxu0
      %v4632 = vpop.f32.mrf.mxu0
      %v4633 = vpop.f32.mrf.mxu0
      %4634 = vdwg.mxu0
      %v4635 = vadd.f32 %v3810, %v4435
      %v4636 = vadd.f32 %v3811, %v4440
      %v4637 = vadd.f32 %v3812, %v4443
      %v4638 = vadd.f32 %v3813, %v4448
      %v4639 = vadd.f32 %v3814, %v4451
      %v4640 = vadd.f32 %v3815, %v4456
      %v4641 = vadd.f32 %v3816, %v4459
      %v4642 = vadd.f32 %v3817, %v4464
      %v4643 = vadd.f32 %v3818, %v4467
      %v4644 = vadd.f32 %v3819, %v4472
      %v4645 = vadd.f32 %v3820, %v4475
      %v4646 = vadd.f32 %v3821, %v4480
      %v4647 = vadd.f32 %v3822, %v4483
      %v4648 = vadd.f32 %v3823, %v4488
      %v4649 = vadd.f32 %v3824, %v4491
      %v4650 = vadd.f32 %v3825, %v4496
      %v4651 = vadd.f32 %v3826, %v4499
      %v4652 = vadd.f32 %v3827, %v4504
      %v4653 = vadd.f32 %v3828, %v4507
      %v4654 = vadd.f32 %v3829, %v4512
      %v4655 = vadd.f32 %v3830, %v4515
      %v4656 = vadd.f32 %v3831, %v4520
      %v4657 = vadd.f32 %v3832, %v4523
      %v4658 = vadd.f32 %v3833, %v4528
      %v4659 = vadd.f32 %v3834, %v4531
      %v4660 = vadd.f32 %v3835, %v4536
      %v4661 = vadd.f32 %v3836, %v4539
      %v4662 = vadd.f32 %v3837, %v4544
      %v4663 = vadd.f32 %v3838, %v4547
      %v4664 = vadd.f32 %v3839, %v4552
      %v4665 = vadd.f32 %v3840, %v4555
      %v4666 = vadd.f32 %v3841, %v4560
      %v4667 = vadd.f32 %v3842, %v4563
      %v4668 = vadd.f32 %v3843, %v4568
      %v4669 = vadd.f32 %v3844, %v4571
      %v4670 = vadd.f32 %v3845, %v4576
      %v4671 = vadd.f32 %v3846, %v4579
      %v4672 = vadd.f32 %v3847, %v4584
      %v4673 = vadd.f32 %v3848, %v4587
      %v4674 = vadd.f32 %v3849, %v4592
      %v4675 = vadd.f32 %v3850, %v4595
      %v4676 = vadd.f32 %v3851, %v4600
      %v4677 = vadd.f32 %v3852, %v4603
      %v4678 = vadd.f32 %v3853, %v4608
      %v4679 = vadd.f32 %v3854, %v4611
      %v4680 = vadd.f32 %v3855, %v4616
      %v4681 = vadd.f32 %v3856, %v4619
      %v4682 = vadd.f32 %v3857, %v4624
      %s4683 = scalar_lea.vmem %s4, 32
      %v4684 = vld [vmem:[%s4683] sm:$0xf]
      %v4685 = vld [vmem:[%s4683 + $0x4] sm:$0xf]
      %v4686 = vpack.c.b16 %v3973, %v3972
      %v4687 = vpack.c.b16 %v3975, %v3974
      %v4688 = vpack.c.b16 %v3977, %v3976
      %v4689 = vpack.c.b16 %v3979, %v3978
      %v4690 = vpack.c.b16 %v3981, %v3980
      %v4691 = vpack.c.b16 %v3983, %v3982
      %v4692 = vpack.c.b16 %v3985, %v3984
      %v4693 = vpack.c.b16 %v3987, %v3986
      %v4694 = vpack.c.b16 %v3989, %v3988
      %v4695 = vpack.c.b16 %v3991, %v3990
      %v4696 = vpack.c.b16 %v3993, %v3992
      %v4697 = vpack.c.b16 %v3995, %v3994
      %v4698 = vpack.c.b16 %v3997, %v3996
      %v4699 = vpack.c.b16 %v3999, %v3998
      %v4700 = vpack.c.b16 %v4001, %v4000
      %v4701 = vpack.c.b16 %v4003, %v4002
      %v4702 = vpack.c.b16 %v4005, %v4004
      %v4703 = vpack.c.b16 %v4007, %v4006
      %v4704 = vpack.c.b16 %v4009, %v4008
      %v4705 = vpack.c.b16 %v4011, %v4010
      %v4706 = vpack.c.b16 %v4013, %v4012
      %v4707 = vpack.c.b16 %v4015, %v4014
      %v4708 = vpack.c.b16 %v4017, %v4016
      %v4709 = vpack.c.b16 %v4019, %v4018
      %v4710 = vpack.c.b16 %v4021, %v4020
      %v4711 = vpack.c.b16 %v4023, %v4022
      %v4712 = vpack.c.b16 %v4025, %v4024
      %v4715 = vunpack.c.l.b16 %v4684
      %v4716 = vunpack.c.l.b16 %v4685
      %v4717 = vpack.c.b16 %v4716, %v4715
      %v4720 = vsel %vm1598, %v4686, 0
      %v4723 = vsel %vm1598, %v4687, 0
      %v4726 = vsel %vm1598, %v4688, 0
      %v4729 = vsel %vm1598, %v4689, 0
      %v4732 = vsel %vm1598, %v4690, 0
      %v4735 = vsel %vm1598, %v4691, 0
      %v4738 = vsel %vm1598, %v4692, 0
      %v4741 = vsel %vm1598, %v4693, 0
      %v4744 = vsel %vm1598, %v4694, 0
      %v4747 = vsel %vm1598, %v4695, 0
      %v4750 = vsel %vm1598, %v4696, 0
      %v4753 = vsel %vm1598, %v4697, 0
      %v4756 = vsel %vm1598, %v4698, 0
      %v4759 = vsel %vm1598, %v4699, 0
      %v4762 = vsel %vm1598, %v4700, 0
      %v4765 = vsel %vm1598, %v4701, 0
      %v4768 = vsel %vm1598, %v4702, 0
      %v4771 = vsel %vm1598, %v4703, 0
      %v4774 = vsel %vm1598, %v4704, 0
      %v4777 = vsel %vm1598, %v4705, 0
      %v4780 = vsel %vm1598, %v4706, 0
      %v4783 = vsel %vm1598, %v4707, 0
      %v4786 = vsel %vm1598, %v4708, 0
      %v4789 = vsel %vm1598, %v4709, 0
      %v4792 = vsel %vm1598, %v4710, 0
      %v4795 = vsel %vm1598, %v4711, 0
      %v4798 = vsel %vm1598, %v4712, 0
      %4800 = vmatprep.subr.bf16.mxu0 0
      %4801 = vmatpush1.bf16.msra.mxu0 0
      %4802 = vmatprep.subr.bf16.mxu0 0
      %4803 = vmatpush1.bf16.msra.mxu0 0
      %4804 = vmatprep.subr.bf16.mxu0 0
      %4805 = vmatpush1.bf16.msra.mxu0 0
      %4806 = vmatprep.subr.bf16.mxu0 0
      %4807 = vmatpush1.bf16.msra.mxu0 0
      %4808 = vmatprep.subr.bf16.mxu0 0
      %4809 = vmatpush1.bf16.msra.mxu0 0
      %4810 = vmatprep.subr.bf16.mxu0 0
      %4811 = vmatpush1.bf16.msra.mxu0 0
      %4812 = vmatprep.subr.bf16.mxu0 0
      %4813 = vmatpush1.bf16.msra.mxu0 0
      %4814 = vmatprep.subr.bf16.mxu0 0
      %4815 = vmatpush1.bf16.msra.mxu0 %v4717
      %4816 = vmatprep.subr.bf16.mxu0 0
      %4817 = vmatpush2.bf16.msra.mxu0 0
      %4818 = vmatprep.subr.bf16.mxu0 0
      %4819 = vmatpush2.bf16.msra.mxu0 0
      %4820 = vmatprep.subr.bf16.mxu0 0
      %4821 = vmatpush2.bf16.msra.mxu0 0
      %4822 = vmatprep.subr.bf16.mxu0 0
      %4823 = vmatpush2.bf16.msra.mxu0 0
      %4824 = vmatprep.subr.bf16.mxu0 0
      %4825 = vmatpush2.bf16.msra.mxu0 0
      %4826 = vmatprep.subr.bf16.mxu0 0
      %4827 = vmatpush2.bf16.msra.mxu0 0
      %4828 = vmatprep.subr.bf16.mxu0 0
      %4829 = vmatpush2.bf16.msra.mxu0 0
      %4830 = vmatprep.subr.bf16.mxu0 0
      %4831 = vmatpush2.bf16.msra.mxu0 0
      %4832 = vmatprep.mubr.bf16.mxu0 0
      %4833 = vmatmul.mubr.bf16.gmra.mxu0 %v4720
      %v4834 = vpop.f32.mrf.mxu0
      %v4835 = vpop.f32.mrf.mxu0
      %v4836 = vpop.f32.mrf.mxu0
      %v4837 = vpop.f32.mrf.mxu0
      %4838 = vmatprep.mubr.bf16.mxu0 0
      %4839 = vmatmul.mubr.bf16.gmra.mxu0 %v4723
      %v4840 = vpop.f32.mrf.mxu0
      %v4841 = vpop.f32.mrf.mxu0
      %v4842 = vpop.f32.mrf.mxu0
      %v4843 = vadd.f32 0.0, %v4842
      %v4844 = vpop.f32.mrf.mxu0
      %4845 = vmatprep.mubr.bf16.mxu0 0
      %4846 = vmatmul.mubr.bf16.gmra.mxu0 %v4726
      %v4847 = vpop.f32.mrf.mxu0
      %v4848 = vadd.f32 0.0, %v4847
      %v4849 = vpop.f32.mrf.mxu0
      %v4850 = vpop.f32.mrf.mxu0
      %v4851 = vadd.f32 0.0, %v4850
      %v4852 = vpop.f32.mrf.mxu0
      %4853 = vmatprep.mubr.bf16.mxu0 0
      %4854 = vmatmul.mubr.bf16.gmra.mxu0 %v4729
      %v4855 = vpop.f32.mrf.mxu0
      %v4856 = vadd.f32 0.0, %v4855
      %v4857 = vpop.f32.mrf.mxu0
      %v4858 = vpop.f32.mrf.mxu0
      %v4859 = vadd.f32 0.0, %v4858
      %v4860 = vpop.f32.mrf.mxu0
      %4861 = vmatprep.mubr.bf16.mxu0 0
      %4862 = vmatmul.mubr.bf16.gmra.mxu0 %v4732
      %v4863 = vpop.f32.mrf.mxu0
      %v4864 = vadd.f32 0.0, %v4863
      %v4865 = vpop.f32.mrf.mxu0
      %v4866 = vpop.f32.mrf.mxu0
      %v4867 = vadd.f32 0.0, %v4866
      %v4868 = vpop.f32.mrf.mxu0
      %4869 = vmatprep.mubr.bf16.mxu0 0
      %4870 = vmatmul.mubr.bf16.gmra.mxu0 %v4735
      %v4871 = vpop.f32.mrf.mxu0
      %v4872 = vadd.f32 0.0, %v4871
      %v4873 = vpop.f32.mrf.mxu0
      %v4874 = vpop.f32.mrf.mxu0
      %v4875 = vadd.f32 0.0, %v4874
      %v4876 = vpop.f32.mrf.mxu0
      %4877 = vmatprep.mubr.bf16.mxu0 0
      %4878 = vmatmul.mubr.bf16.gmra.mxu0 %v4738
      %v4879 = vpop.f32.mrf.mxu0
      %v4880 = vadd.f32 0.0, %v4879
      %v4881 = vpop.f32.mrf.mxu0
      %v4882 = vpop.f32.mrf.mxu0
      %v4883 = vadd.f32 0.0, %v4882
      %v4884 = vpop.f32.mrf.mxu0
      %4885 = vmatprep.mubr.bf16.mxu0 0
      %4886 = vmatmul.mubr.bf16.gmra.mxu0 %v4741
      %v4887 = vpop.f32.mrf.mxu0
      %v4888 = vadd.f32 0.0, %v4887
      %v4889 = vpop.f32.mrf.mxu0
      %v4890 = vpop.f32.mrf.mxu0
      %v4891 = vadd.f32 0.0, %v4890
      %v4892 = vpop.f32.mrf.mxu0
      %4893 = vmatprep.mubr.bf16.mxu0 0
      %4894 = vmatmul.mubr.bf16.gmra.mxu0 %v4744
      %v4895 = vpop.f32.mrf.mxu0
      %v4896 = vadd.f32 0.0, %v4895
      %v4897 = vpop.f32.mrf.mxu0
      %v4898 = vpop.f32.mrf.mxu0
      %v4899 = vadd.f32 0.0, %v4898
      %v4900 = vpop.f32.mrf.mxu0
      %4901 = vmatprep.mubr.bf16.mxu0 0
      %4902 = vmatmul.mubr.bf16.gmra.mxu0 %v4747
      %v4903 = vpop.f32.mrf.mxu0
      %v4904 = vadd.f32 0.0, %v4903
      %v4905 = vpop.f32.mrf.mxu0
      %v4906 = vpop.f32.mrf.mxu0
      %v4907 = vadd.f32 0.0, %v4906
      %v4908 = vpop.f32.mrf.mxu0
      %4909 = vmatprep.mubr.bf16.mxu0 0
      %4910 = vmatmul.mubr.bf16.gmra.mxu0 %v4750
      %v4911 = vpop.f32.mrf.mxu0
      %v4912 = vadd.f32 0.0, %v4911
      %v4913 = vpop.f32.mrf.mxu0
      %v4914 = vpop.f32.mrf.mxu0
      %v4915 = vadd.f32 0.0, %v4914
      %v4916 = vpop.f32.mrf.mxu0
      %4917 = vmatprep.mubr.bf16.mxu0 0
      %4918 = vmatmul.mubr.bf16.gmra.mxu0 %v4753
      %v4919 = vpop.f32.mrf.mxu0
      %v4920 = vadd.f32 0.0, %v4919
      %v4921 = vpop.f32.mrf.mxu0
      %v4922 = vpop.f32.mrf.mxu0
      %v4923 = vadd.f32 0.0, %v4922
      %v4924 = vpop.f32.mrf.mxu0
      %4925 = vmatprep.mubr.bf16.mxu0 0
      %4926 = vmatmul.mubr.bf16.gmra.mxu0 %v4756
      %v4927 = vpop.f32.mrf.mxu0
      %v4928 = vadd.f32 0.0, %v4927
      %v4929 = vpop.f32.mrf.mxu0
      %v4930 = vpop.f32.mrf.mxu0
      %v4931 = vadd.f32 0.0, %v4930
      %v4932 = vpop.f32.mrf.mxu0
      %4933 = vmatprep.mubr.bf16.mxu0 0
      %4934 = vmatmul.mubr.bf16.gmra.mxu0 %v4759
      %v4935 = vpop.f32.mrf.mxu0
      %v4936 = vadd.f32 0.0, %v4935
      %v4937 = vpop.f32.mrf.mxu0
      %v4938 = vpop.f32.mrf.mxu0
      %v4939 = vadd.f32 0.0, %v4938
      %v4940 = vpop.f32.mrf.mxu0
      %4941 = vmatprep.mubr.bf16.mxu0 0
      %4942 = vmatmul.mubr.bf16.gmra.mxu0 %v4762
      %v4943 = vpop.f32.mrf.mxu0
      %v4944 = vadd.f32 0.0, %v4943
      %v4945 = vpop.f32.mrf.mxu0
      %v4946 = vpop.f32.mrf.mxu0
      %v4947 = vadd.f32 0.0, %v4946
      %v4948 = vpop.f32.mrf.mxu0
      %4949 = vmatprep.mubr.bf16.mxu0 0
      %4950 = vmatmul.mubr.bf16.gmra.mxu0 %v4765
      %v4951 = vpop.f32.mrf.mxu0
      %v4952 = vadd.f32 0.0, %v4951
      %v4953 = vpop.f32.mrf.mxu0
      %v4954 = vpop.f32.mrf.mxu0
      %v4955 = vadd.f32 0.0, %v4954
      %v4956 = vpop.f32.mrf.mxu0
      %4957 = vmatprep.mubr.bf16.mxu0 0
      %4958 = vmatmul.mubr.bf16.gmra.mxu0 %v4768
      %v4959 = vpop.f32.mrf.mxu0
      %v4960 = vadd.f32 0.0, %v4959
      %v4961 = vpop.f32.mrf.mxu0
      %v4962 = vpop.f32.mrf.mxu0
      %v4963 = vadd.f32 0.0, %v4962
      %v4964 = vpop.f32.mrf.mxu0
      %4965 = vmatprep.mubr.bf16.mxu0 0
      %4966 = vmatmul.mubr.bf16.gmra.mxu0 %v4771
      %v4967 = vpop.f32.mrf.mxu0
      %v4968 = vadd.f32 0.0, %v4967
      %v4969 = vpop.f32.mrf.mxu0
      %v4970 = vpop.f32.mrf.mxu0
      %v4971 = vadd.f32 0.0, %v4970
      %v4972 = vpop.f32.mrf.mxu0
      %4973 = vmatprep.mubr.bf16.mxu0 0
      %4974 = vmatmul.mubr.bf16.gmra.mxu0 %v4774
      %v4975 = vpop.f32.mrf.mxu0
      %v4976 = vadd.f32 0.0, %v4975
      %v4977 = vpop.f32.mrf.mxu0
      %v4978 = vpop.f32.mrf.mxu0
      %v4979 = vadd.f32 0.0, %v4978
      %v4980 = vpop.f32.mrf.mxu0
      %4981 = vmatprep.mubr.bf16.mxu0 0
      %4982 = vmatmul.mubr.bf16.gmra.mxu0 %v4777
      %v4983 = vpop.f32.mrf.mxu0
      %v4984 = vadd.f32 0.0, %v4983
      %v4985 = vpop.f32.mrf.mxu0
      %v4986 = vpop.f32.mrf.mxu0
      %v4987 = vadd.f32 0.0, %v4986
      %v4988 = vpop.f32.mrf.mxu0
      %4989 = vmatprep.mubr.bf16.mxu0 0
      %4990 = vmatmul.mubr.bf16.gmra.mxu0 %v4780
      %v4991 = vpop.f32.mrf.mxu0
      %v4992 = vadd.f32 0.0, %v4991
      %v4993 = vpop.f32.mrf.mxu0
      %v4994 = vpop.f32.mrf.mxu0
      %v4995 = vadd.f32 0.0, %v4994
      %v4996 = vpop.f32.mrf.mxu0
      %4997 = vmatprep.mubr.bf16.mxu0 0
      %4998 = vmatmul.mubr.bf16.gmra.mxu0 %v4783
      %v4999 = vpop.f32.mrf.mxu0
      %v5000 = vadd.f32 0.0, %v4999
      %v5001 = vpop.f32.mrf.mxu0
      %v5002 = vpop.f32.mrf.mxu0
      %v5003 = vadd.f32 0.0, %v5002
      %v5004 = vpop.f32.mrf.mxu0
      %5005 = vmatprep.mubr.bf16.mxu0 0
      %5006 = vmatmul.mubr.bf16.gmra.mxu0 %v4786
      %v5007 = vpop.f32.mrf.mxu0
      %v5008 = vadd.f32 0.0, %v5007
      %v5009 = vpop.f32.mrf.mxu0
      %v5010 = vpop.f32.mrf.mxu0
      %v5011 = vadd.f32 0.0, %v5010
      %v5012 = vpop.f32.mrf.mxu0
      %5013 = vmatprep.mubr.bf16.mxu0 0
      %5014 = vmatmul.mubr.bf16.gmra.mxu0 %v4789
      %v5015 = vpop.f32.mrf.mxu0
      %v5016 = vadd.f32 0.0, %v5015
      %v5017 = vpop.f32.mrf.mxu0
      %v5018 = vpop.f32.mrf.mxu0
      %v5019 = vadd.f32 0.0, %v5018
      %v5020 = vpop.f32.mrf.mxu0
      %5021 = vmatprep.mubr.bf16.mxu0 0
      %5022 = vmatmul.mubr.bf16.gmra.mxu0 %v4792
      %v5023 = vpop.f32.mrf.mxu0
      %v5024 = vadd.f32 0.0, %v5023
      %v5025 = vpop.f32.mrf.mxu0
      %v5026 = vpop.f32.mrf.mxu0
      %v5027 = vadd.f32 0.0, %v5026
      %v5028 = vpop.f32.mrf.mxu0
      %5029 = vmatprep.mubr.bf16.mxu0 0
      %5030 = vmatmul.mubr.bf16.gmra.mxu0 %v4795
      %v5031 = vpop.f32.mrf.mxu0
      %v5032 = vadd.f32 0.0, %v5031
      %v5033 = vpop.f32.mrf.mxu0
      %v5034 = vpop.f32.mrf.mxu0
      %v5035 = vpop.f32.mrf.mxu0
      %5036 = vmatprep.mubr.bf16.mxu0 0
      %5037 = vmatmul.mubr.bf16.gmra.mxu0 %v4798
      %v5038 = vpop.f32.mrf.mxu0
      %v5039 = vpop.f32.mrf.mxu0
      %v5040 = vpop.f32.mrf.mxu0
      %v5041 = vpop.f32.mrf.mxu0
      %5042 = vdwg.mxu0
      %v5043 = vadd.f32 %v4635, %v4843
      %v5044 = vadd.f32 %v4636, %v4848
      %v5045 = vadd.f32 %v4637, %v4851
      %v5046 = vadd.f32 %v4638, %v4856
      %v5047 = vadd.f32 %v4639, %v4859
      %v5048 = vadd.f32 %v4640, %v4864
      %v5049 = vadd.f32 %v4641, %v4867
      %v5050 = vadd.f32 %v4642, %v4872
      %v5051 = vadd.f32 %v4643, %v4875
      %v5052 = vadd.f32 %v4644, %v4880
      %v5053 = vadd.f32 %v4645, %v4883
      %v5054 = vadd.f32 %v4646, %v4888
      %v5055 = vadd.f32 %v4647, %v4891
      %v5056 = vadd.f32 %v4648, %v4896
      %v5057 = vadd.f32 %v4649, %v4899
      %v5058 = vadd.f32 %v4650, %v4904
      %v5059 = vadd.f32 %v4651, %v4907
      %v5060 = vadd.f32 %v4652, %v4912
      %v5061 = vadd.f32 %v4653, %v4915
      %v5062 = vadd.f32 %v4654, %v4920
      %v5063 = vadd.f32 %v4655, %v4923
      %v5064 = vadd.f32 %v4656, %v4928
      %v5065 = vadd.f32 %v4657, %v4931
      %v5066 = vadd.f32 %v4658, %v4936
      %v5067 = vadd.f32 %v4659, %v4939
      %v5068 = vadd.f32 %v4660, %v4944
      %v5069 = vadd.f32 %v4661, %v4947
      %v5070 = vadd.f32 %v4662, %v4952
      %v5071 = vadd.f32 %v4663, %v4955
      %v5072 = vadd.f32 %v4664, %v4960
      %v5073 = vadd.f32 %v4665, %v4963
      %v5074 = vadd.f32 %v4666, %v4968
      %v5075 = vadd.f32 %v4667, %v4971
      %v5076 = vadd.f32 %v4668, %v4976
      %v5077 = vadd.f32 %v4669, %v4979
      %v5078 = vadd.f32 %v4670, %v4984
      %v5079 = vadd.f32 %v4671, %v4987
      %v5080 = vadd.f32 %v4672, %v4992
      %v5081 = vadd.f32 %v4673, %v4995
      %v5082 = vadd.f32 %v4674, %v5000
      %v5083 = vadd.f32 %v4675, %v5003
      %v5084 = vadd.f32 %v4676, %v5008
      %v5085 = vadd.f32 %v4677, %v5011
      %v5086 = vadd.f32 %v4678, %v5016
      %v5087 = vadd.f32 %v4679, %v5019
      %v5088 = vadd.f32 %v4680, %v5024
      %v5089 = vadd.f32 %v4681, %v5027
      %v5090 = vadd.f32 %v4682, %v5032
      %v5091 = vld [vmem:[#allocation2 + $0x10] sm:$0xf]
      %v5092 = vld [vmem:[#allocation2 + $0x14] sm:$0xf]
      %v5093 = vld [vmem:[#allocation2 + $0x18] sm:$0xf]
      %v5094 = vld [vmem:[#allocation2 + $0x1c] sm:$0xf]
      %v5095 = vld [vmem:[#allocation2 + $0x20] sm:$0xf]
      %v5096 = vld [vmem:[#allocation2 + $0x24] sm:$0xf]
      %v5097 = vld [vmem:[#allocation2 + $0x28] sm:$0xf]
      %v5098 = vld [vmem:[#allocation2 + $0x2c] sm:$0xf]
      %v5099 = vld [vmem:[#allocation2 + $0x30] sm:$0xf]
      %v5100 = vld [vmem:[#allocation2 + $0x34] sm:$0xf]
      %v5101 = vld [vmem:[#allocation2 + $0x38] sm:$0xf]
      %v5102 = vld [vmem:[#allocation2 + $0x3c] sm:$0xf]
      %v5103 = vld [vmem:[#allocation2 + $0x40] sm:$0xf]
      %v5104 = vld [vmem:[#allocation2 + $0x44] sm:$0xf]
      %v5105 = vld [vmem:[#allocation2 + $0x48] sm:$0xf]
      %v5106 = vld [vmem:[#allocation2 + $0x4c] sm:$0xf]
      %v5107 = vld [vmem:[#allocation2 + $0x50] sm:$0xf]
      %v5108 = vld [vmem:[#allocation2 + $0x54] sm:$0xf]
      %v5109 = vld [vmem:[#allocation2 + $0x58] sm:$0xf]
      %v5110 = vld [vmem:[#allocation2 + $0x5c] sm:$0xf]
      %v5111 = vld [vmem:[#allocation2 + $0x60] sm:$0xf]
      %v5112 = vld [vmem:[#allocation2 + $0x64] sm:$0xf]
      %v5113 = vld [vmem:[#allocation2 + $0x68] sm:$0xf]
      %v5114 = vld [vmem:[#allocation2 + $0x6c] sm:$0xf]
      %v5115 = vld [vmem:[#allocation2 + $0x70] sm:$0xf]
      %v5116 = vld [vmem:[#allocation2 + $0x74] sm:$0xf]
      %v5117 = vld [vmem:[#allocation2 + $0x78] sm:$0xf]
      %v5118 = vld [vmem:[#allocation2 + $0x7c] sm:$0xf]
      %v5119 = vld [vmem:[#allocation2 + $0x80] sm:$0xf]
      %v5120 = vld [vmem:[#allocation2 + $0x84] sm:$0xf]
      %v5121 = vld [vmem:[#allocation2 + $0x88] sm:$0xf]
      %v5122 = vld [vmem:[#allocation2 + $0x8c] sm:$0xf]
      %v5123 = vld [vmem:[#allocation2 + $0x90] sm:$0xf]
      %v5124 = vld [vmem:[#allocation2 + $0x94] sm:$0xf]
      %v5125 = vld [vmem:[#allocation2 + $0x98] sm:$0xf]
      %v5126 = vld [vmem:[#allocation2 + $0x9c] sm:$0xf]
      %v5127 = vld [vmem:[#allocation2 + $0xa0] sm:$0xf]
      %v5128 = vld [vmem:[#allocation2 + $0xa4] sm:$0xf]
      %v5129 = vld [vmem:[#allocation2 + $0xa8] sm:$0xf]
      %v5130 = vld [vmem:[#allocation2 + $0xac] sm:$0xf]
      %v5131 = vld [vmem:[#allocation2 + $0xb0] sm:$0xf]
      %v5132 = vld [vmem:[#allocation2 + $0xb4] sm:$0xf]
      %v5133 = vld [vmem:[#allocation2 + $0xb8] sm:$0xf]
      %v5134 = vld [vmem:[#allocation2 + $0xbc] sm:$0xf]
      %v5135 = vld [vmem:[#allocation2 + $0xc0] sm:$0xf]
      %v5136 = vld [vmem:[#allocation2 + $0xc4] sm:$0xf]
      %v5137 = vld [vmem:[#allocation2 + $0xc8] sm:$0xf]
      %v5138 = vld [vmem:[#allocation2 + $0xcc] sm:$0xf]
      %v5139 = vld [vmem:[#allocation2 + $0xd0] sm:$0xf]
      %v5140 = vld [vmem:[#allocation2 + $0xd4] sm:$0xf]
      %v5141 = vld [vmem:[#allocation2 + $0xd8] sm:$0xf]
      %v5142 = vld [vmem:[#allocation2 + $0xdc] sm:$0xf]
      %v5143 = vld [vmem:[#allocation2 + $0xe0] sm:$0xf]
      %v5144 = vld [vmem:[#allocation2 + $0xe4] sm:$0xf]
      %v5145 = vld [vmem:[#allocation2 + $0xe8] sm:$0x1]
      %s5146 = scalar_lea.vmem %s4, 40
      %v5147 = vld [vmem:[%s5146] sm:$0xf]
      %v5148 = vld [vmem:[%s5146 + $0x4] sm:$0xf]
      %v5204 = vunpack.c.l.b16 %v5091
      %v5205 = vunpack.c.l.b16 %v5092
      %v5206 = vunpack.c.l.b16 %v5093
      %v5207 = vunpack.c.l.b16 %v5094
      %v5208 = vunpack.c.l.b16 %v5095
      %v5209 = vunpack.c.l.b16 %v5096
      %v5210 = vunpack.c.l.b16 %v5097
      %v5211 = vunpack.c.l.b16 %v5098
      %v5212 = vunpack.c.l.b16 %v5099
      %v5213 = vunpack.c.l.b16 %v5100
      %v5214 = vunpack.c.l.b16 %v5101
      %v5215 = vunpack.c.l.b16 %v5102
      %v5216 = vunpack.c.l.b16 %v5103
      %v5217 = vunpack.c.l.b16 %v5104
      %v5218 = vunpack.c.l.b16 %v5105
      %v5219 = vunpack.c.l.b16 %v5106
      %v5220 = vunpack.c.l.b16 %v5107
      %v5221 = vunpack.c.l.b16 %v5108
      %v5222 = vunpack.c.l.b16 %v5109
      %v5223 = vunpack.c.l.b16 %v5110
      %v5224 = vunpack.c.l.b16 %v5111
      %v5225 = vunpack.c.l.b16 %v5112
      %v5226 = vunpack.c.l.b16 %v5113
      %v5227 = vunpack.c.l.b16 %v5114
      %v5228 = vunpack.c.l.b16 %v5115
      %v5229 = vunpack.c.l.b16 %v5116
      %v5230 = vunpack.c.l.b16 %v5117
      %v5231 = vunpack.c.l.b16 %v5118
      %v5232 = vunpack.c.l.b16 %v5119
      %v5233 = vunpack.c.l.b16 %v5120
      %v5234 = vunpack.c.l.b16 %v5121
      %v5235 = vunpack.c.l.b16 %v5122
      %v5236 = vunpack.c.l.b16 %v5123
      %v5237 = vunpack.c.l.b16 %v5124
      %v5238 = vunpack.c.l.b16 %v5125
      %v5239 = vunpack.c.l.b16 %v5126
      %v5240 = vunpack.c.l.b16 %v5127
      %v5241 = vunpack.c.l.b16 %v5128
      %v5242 = vunpack.c.l.b16 %v5129
      %v5243 = vunpack.c.l.b16 %v5130
      %v5244 = vunpack.c.l.b16 %v5131
      %v5245 = vunpack.c.l.b16 %v5132
      %v5246 = vunpack.c.l.b16 %v5133
      %v5247 = vunpack.c.l.b16 %v5134
      %v5248 = vunpack.c.l.b16 %v5135
      %v5249 = vunpack.c.l.b16 %v5136
      %v5250 = vunpack.c.l.b16 %v5137
      %v5251 = vunpack.c.l.b16 %v5138
      %v5252 = vunpack.c.l.b16 %v5139
      %v5253 = vunpack.c.l.b16 %v5140
      %v5254 = vunpack.c.l.b16 %v5141
      %v5255 = vunpack.c.l.b16 %v5142
      %v5256 = vunpack.c.l.b16 %v5143
      %v5257 = vunpack.c.l.b16 %v5144
      %v5258 = vunpack.c.l.b16 %v5145
      %v5259 = vpack.c.b16 %v5205, %v5204
      %v5260 = vpack.c.b16 %v5207, %v5206
      %v5261 = vpack.c.b16 %v5209, %v5208
      %v5262 = vpack.c.b16 %v5211, %v5210
      %v5263 = vpack.c.b16 %v5213, %v5212
      %v5264 = vpack.c.b16 %v5215, %v5214
      %v5265 = vpack.c.b16 %v5217, %v5216
      %v5266 = vpack.c.b16 %v5219, %v5218
      %v5267 = vpack.c.b16 %v5221, %v5220
      %v5268 = vpack.c.b16 %v5223, %v5222
      %v5269 = vpack.c.b16 %v5225, %v5224
      %v5270 = vpack.c.b16 %v5227, %v5226
      %v5271 = vpack.c.b16 %v5229, %v5228
      %v5272 = vpack.c.b16 %v5231, %v5230
      %v5273 = vpack.c.b16 %v5233, %v5232
      %v5274 = vpack.c.b16 %v5235, %v5234
      %v5275 = vpack.c.b16 %v5237, %v5236
      %v5276 = vpack.c.b16 %v5239, %v5238
      %v5277 = vpack.c.b16 %v5241, %v5240
      %v5278 = vpack.c.b16 %v5243, %v5242
      %v5279 = vpack.c.b16 %v5245, %v5244
      %v5280 = vpack.c.b16 %v5247, %v5246
      %v5281 = vpack.c.b16 %v5249, %v5248
      %v5282 = vpack.c.b16 %v5251, %v5250
      %v5283 = vpack.c.b16 %v5253, %v5252
      %v5284 = vpack.c.b16 %v5255, %v5254
      %v5285 = vpack.c.b16 %v5257, %v5256
      %v5286 = vpack.c.b16 %v5258, %v5258
      %v5288 = vshrl.u32 %v5259, 16
      %v5290 = vshll.u32 %v5259, 16
      %v5292 = vrot.slane %v5290, 1
      %v5293 = vor.u32 %v5288, %v5292
      %v5295 = vshll.u32 %v5260, 16
      %v5297 = vrot.slane %v5295, 1
      %v5298 = vsel %vm3259, %v5293, %v5297
      %v5299 = vshrl.u32 %v5260, 16
      %v5301 = vor.u32 %v5299, %v5297
      %v5303 = vshll.u32 %v5261, 16
      %v5305 = vrot.slane %v5303, 1
      %v5306 = vsel %vm3259, %v5301, %v5305
      %v5307 = vshrl.u32 %v5261, 16
      %v5309 = vor.u32 %v5307, %v5305
      %v5311 = vshll.u32 %v5262, 16
      %v5313 = vrot.slane %v5311, 1
      %v5314 = vsel %vm3259, %v5309, %v5313
      %v5315 = vshrl.u32 %v5262, 16
      %v5317 = vor.u32 %v5315, %v5313
      %v5319 = vshll.u32 %v5263, 16
      %v5321 = vrot.slane %v5319, 1
      %v5322 = vsel %vm3259, %v5317, %v5321
      %v5323 = vshrl.u32 %v5263, 16
      %v5325 = vor.u32 %v5323, %v5321
      %v5327 = vshll.u32 %v5264, 16
      %v5329 = vrot.slane %v5327, 1
      %v5330 = vsel %vm3259, %v5325, %v5329
      %v5331 = vshrl.u32 %v5264, 16
      %v5333 = vor.u32 %v5331, %v5329
      %v5335 = vshll.u32 %v5265, 16
      %v5337 = vrot.slane %v5335, 1
      %v5338 = vsel %vm3259, %v5333, %v5337
      %v5339 = vshrl.u32 %v5265, 16
      %v5341 = vor.u32 %v5339, %v5337
      %v5343 = vshll.u32 %v5266, 16
      %v5345 = vrot.slane %v5343, 1
      %v5346 = vsel %vm3259, %v5341, %v5345
      %v5347 = vshrl.u32 %v5266, 16
      %v5349 = vor.u32 %v5347, %v5345
      %v5351 = vshll.u32 %v5267, 16
      %v5353 = vrot.slane %v5351, 1
      %v5354 = vsel %vm3259, %v5349, %v5353
      %v5355 = vshrl.u32 %v5267, 16
      %v5357 = vor.u32 %v5355, %v5353
      %v5359 = vshll.u32 %v5268, 16
      %v5361 = vrot.slane %v5359, 1
      %v5362 = vsel %vm3259, %v5357, %v5361
      %v5363 = vshrl.u32 %v5268, 16
      %v5365 = vor.u32 %v5363, %v5361
      %v5367 = vshll.u32 %v5269, 16
      %v5369 = vrot.slane %v5367, 1
      %v5370 = vsel %vm3259, %v5365, %v5369
      %v5371 = vshrl.u32 %v5269, 16
      %v5373 = vor.u32 %v5371, %v5369
      %v5375 = vshll.u32 %v5270, 16
      %v5377 = vrot.slane %v5375, 1
      %v5378 = vsel %vm3259, %v5373, %v5377
      %v5379 = vshrl.u32 %v5270, 16
      %v5381 = vor.u32 %v5379, %v5377
      %v5383 = vshll.u32 %v5271, 16
      %v5385 = vrot.slane %v5383, 1
      %v5386 = vsel %vm3259, %v5381, %v5385
      %v5387 = vshrl.u32 %v5271, 16
      %v5389 = vor.u32 %v5387, %v5385
      %v5391 = vshll.u32 %v5272, 16
      %v5393 = vrot.slane %v5391, 1
      %v5394 = vsel %vm3259, %v5389, %v5393
      %v5395 = vshrl.u32 %v5272, 16
      %v5397 = vor.u32 %v5395, %v5393
      %v5399 = vshll.u32 %v5273, 16
      %v5401 = vrot.slane %v5399, 1
      %v5402 = vsel %vm3259, %v5397, %v5401
      %v5403 = vshrl.u32 %v5273, 16
      %v5405 = vor.u32 %v5403, %v5401
      %v5407 = vshll.u32 %v5274, 16
      %v5409 = vrot.slane %v5407, 1
      %v5410 = vsel %vm3259, %v5405, %v5409
      %v5411 = vshrl.u32 %v5274, 16
      %v5413 = vor.u32 %v5411, %v5409
      %v5415 = vshll.u32 %v5275, 16
      %v5417 = vrot.slane %v5415, 1
      %v5418 = vsel %vm3259, %v5413, %v5417
      %v5419 = vshrl.u32 %v5275, 16
      %v5421 = vor.u32 %v5419, %v5417
      %v5423 = vshll.u32 %v5276, 16
      %v5425 = vrot.slane %v5423, 1
      %v5426 = vsel %vm3259, %v5421, %v5425
      %v5427 = vshrl.u32 %v5276, 16
      %v5429 = vor.u32 %v5427, %v5425
      %v5431 = vshll.u32 %v5277, 16
      %v5433 = vrot.slane %v5431, 1
      %v5434 = vsel %vm3259, %v5429, %v5433
      %v5435 = vshrl.u32 %v5277, 16
      %v5437 = vor.u32 %v5435, %v5433
      %v5439 = vshll.u32 %v5278, 16
      %v5441 = vrot.slane %v5439, 1
      %v5442 = vsel %vm3259, %v5437, %v5441
      %v5443 = vshrl.u32 %v5278, 16
      %v5445 = vor.u32 %v5443, %v5441
      %v5447 = vshll.u32 %v5279, 16
      %v5449 = vrot.slane %v5447, 1
      %v5450 = vsel %vm3259, %v5445, %v5449
      %v5451 = vshrl.u32 %v5279, 16
      %v5453 = vor.u32 %v5451, %v5449
      %v5455 = vshll.u32 %v5280, 16
      %v5457 = vrot.slane %v5455, 1
      %v5458 = vsel %vm3259, %v5453, %v5457
      %v5459 = vshrl.u32 %v5280, 16
      %v5461 = vor.u32 %v5459, %v5457
      %v5463 = vshll.u32 %v5281, 16
      %v5465 = vrot.slane %v5463, 1
      %v5466 = vsel %vm3259, %v5461, %v5465
      %v5467 = vshrl.u32 %v5281, 16
      %v5469 = vor.u32 %v5467, %v5465
      %v5471 = vshll.u32 %v5282, 16
      %v5473 = vrot.slane %v5471, 1
      %v5474 = vsel %vm3259, %v5469, %v5473
      %v5475 = vshrl.u32 %v5282, 16
      %v5477 = vor.u32 %v5475, %v5473
      %v5479 = vshll.u32 %v5283, 16
      %v5481 = vrot.slane %v5479, 1
      %v5482 = vsel %vm3259, %v5477, %v5481
      %v5483 = vshrl.u32 %v5283, 16
      %v5485 = vor.u32 %v5483, %v5481
      %v5487 = vshll.u32 %v5284, 16
      %v5489 = vrot.slane %v5487, 1
      %v5490 = vsel %vm3259, %v5485, %v5489
      %v5491 = vshrl.u32 %v5284, 16
      %v5493 = vor.u32 %v5491, %v5489
      %v5495 = vshll.u32 %v5285, 16
      %v5497 = vrot.slane %v5495, 1
      %v5498 = vsel %vm3259, %v5493, %v5497
      %v5499 = vshrl.u32 %v5285, 16
      %v5501 = vor.u32 %v5499, %v5497
      %v5503 = vshll.u32 %v5286, 16
      %v5505 = vrot.slane %v5503, 1
      %v5506 = vsel %vm3259, %v5501, %v5505
      %v5509 = vunpack.c.l.b16 %v5147
      %v5510 = vunpack.c.l.b16 %v5148
      %v5511 = vpack.c.b16 %v5510, %v5509
      %v5514 = vsel %vm1598, %v5298, 0
      %v5517 = vsel %vm1598, %v5306, 0
      %v5520 = vsel %vm1598, %v5314, 0
      %v5523 = vsel %vm1598, %v5322, 0
      %v5526 = vsel %vm1598, %v5330, 0
      %v5529 = vsel %vm1598, %v5338, 0
      %v5532 = vsel %vm1598, %v5346, 0
      %v5535 = vsel %vm1598, %v5354, 0
      %v5538 = vsel %vm1598, %v5362, 0
      %v5541 = vsel %vm1598, %v5370, 0
      %v5544 = vsel %vm1598, %v5378, 0
      %v5547 = vsel %vm1598, %v5386, 0
      %v5550 = vsel %vm1598, %v5394, 0
      %v5553 = vsel %vm1598, %v5402, 0
      %v5556 = vsel %vm1598, %v5410, 0
      %v5559 = vsel %vm1598, %v5418, 0
      %v5562 = vsel %vm1598, %v5426, 0
      %v5565 = vsel %vm1598, %v5434, 0
      %v5568 = vsel %vm1598, %v5442, 0
      %v5571 = vsel %vm1598, %v5450, 0
      %v5574 = vsel %vm1598, %v5458, 0
      %v5577 = vsel %vm1598, %v5466, 0
      %v5580 = vsel %vm1598, %v5474, 0
      %v5583 = vsel %vm1598, %v5482, 0
      %v5586 = vsel %vm1598, %v5490, 0
      %v5589 = vsel %vm1598, %v5498, 0
      %v5592 = vsel %vm1598, %v5506, 0
      %5594 = vmatprep.subr.bf16.mxu0 0
      %5595 = vmatpush1.bf16.msra.mxu0 0
      %5596 = vmatprep.subr.bf16.mxu0 0
      %5597 = vmatpush1.bf16.msra.mxu0 0
      %5598 = vmatprep.subr.bf16.mxu0 0
      %5599 = vmatpush1.bf16.msra.mxu0 0
      %5600 = vmatprep.subr.bf16.mxu0 0
      %5601 = vmatpush1.bf16.msra.mxu0 0
      %5602 = vmatprep.subr.bf16.mxu0 0
      %5603 = vmatpush1.bf16.msra.mxu0 0
      %5604 = vmatprep.subr.bf16.mxu0 0
      %5605 = vmatpush1.bf16.msra.mxu0 0
      %5606 = vmatprep.subr.bf16.mxu0 0
      %5607 = vmatpush1.bf16.msra.mxu0 0
      %5608 = vmatprep.subr.bf16.mxu0 0
      %5609 = vmatpush1.bf16.msra.mxu0 %v5511
      %5610 = vmatprep.subr.bf16.mxu0 0
      %5611 = vmatpush2.bf16.msra.mxu0 0
      %5612 = vmatprep.subr.bf16.mxu0 0
      %5613 = vmatpush2.bf16.msra.mxu0 0
      %5614 = vmatprep.subr.bf16.mxu0 0
      %5615 = vmatpush2.bf16.msra.mxu0 0
      %5616 = vmatprep.subr.bf16.mxu0 0
      %5617 = vmatpush2.bf16.msra.mxu0 0
      %5618 = vmatprep.subr.bf16.mxu0 0
      %5619 = vmatpush2.bf16.msra.mxu0 0
      %5620 = vmatprep.subr.bf16.mxu0 0
      %5621 = vmatpush2.bf16.msra.mxu0 0
      %5622 = vmatprep.subr.bf16.mxu0 0
      %5623 = vmatpush2.bf16.msra.mxu0 0
      %5624 = vmatprep.subr.bf16.mxu0 0
      %5625 = vmatpush2.bf16.msra.mxu0 0
      %5626 = vmatprep.mubr.bf16.mxu0 0
      %5627 = vmatmul.mubr.bf16.gmra.mxu0 %v5514
      %v5628 = vpop.f32.mrf.mxu0
      %v5629 = vpop.f32.mrf.mxu0
      %v5630 = vpop.f32.mrf.mxu0
      %v5631 = vpop.f32.mrf.mxu0
      %5632 = vmatprep.mubr.bf16.mxu0 0
      %5633 = vmatmul.mubr.bf16.gmra.mxu0 %v5517
      %v5634 = vpop.f32.mrf.mxu0
      %v5635 = vpop.f32.mrf.mxu0
      %v5636 = vpop.f32.mrf.mxu0
      %v5637 = vadd.f32 0.0, %v5636
      %v5638 = vpop.f32.mrf.mxu0
      %5639 = vmatprep.mubr.bf16.mxu0 0
      %5640 = vmatmul.mubr.bf16.gmra.mxu0 %v5520
      %v5641 = vpop.f32.mrf.mxu0
      %v5642 = vadd.f32 0.0, %v5641
      %v5643 = vpop.f32.mrf.mxu0
      %v5644 = vpop.f32.mrf.mxu0
      %v5645 = vadd.f32 0.0, %v5644
      %v5646 = vpop.f32.mrf.mxu0
      %5647 = vmatprep.mubr.bf16.mxu0 0
      %5648 = vmatmul.mubr.bf16.gmra.mxu0 %v5523
      %v5649 = vpop.f32.mrf.mxu0
      %v5650 = vadd.f32 0.0, %v5649
      %v5651 = vpop.f32.mrf.mxu0
      %v5652 = vpop.f32.mrf.mxu0
      %v5653 = vadd.f32 0.0, %v5652
      %v5654 = vpop.f32.mrf.mxu0
      %5655 = vmatprep.mubr.bf16.mxu0 0
      %5656 = vmatmul.mubr.bf16.gmra.mxu0 %v5526
      %v5657 = vpop.f32.mrf.mxu0
      %v5658 = vadd.f32 0.0, %v5657
      %v5659 = vpop.f32.mrf.mxu0
      %v5660 = vpop.f32.mrf.mxu0
      %v5661 = vadd.f32 0.0, %v5660
      %v5662 = vpop.f32.mrf.mxu0
      %5663 = vmatprep.mubr.bf16.mxu0 0
      %5664 = vmatmul.mubr.bf16.gmra.mxu0 %v5529
      %v5665 = vpop.f32.mrf.mxu0
      %v5666 = vadd.f32 0.0, %v5665
      %v5667 = vpop.f32.mrf.mxu0
      %v5668 = vpop.f32.mrf.mxu0
      %v5669 = vadd.f32 0.0, %v5668
      %v5670 = vpop.f32.mrf.mxu0
      %5671 = vmatprep.mubr.bf16.mxu0 0
      %5672 = vmatmul.mubr.bf16.gmra.mxu0 %v5532
      %v5673 = vpop.f32.mrf.mxu0
      %v5674 = vadd.f32 0.0, %v5673
      %v5675 = vpop.f32.mrf.mxu0
      %v5676 = vpop.f32.mrf.mxu0
      %v5677 = vadd.f32 0.0, %v5676
      %v5678 = vpop.f32.mrf.mxu0
      %5679 = vmatprep.mubr.bf16.mxu0 0
      %5680 = vmatmul.mubr.bf16.gmra.mxu0 %v5535
      %v5681 = vpop.f32.mrf.mxu0
      %v5682 = vadd.f32 0.0, %v5681
      %v5683 = vpop.f32.mrf.mxu0
      %v5684 = vpop.f32.mrf.mxu0
      %v5685 = vadd.f32 0.0, %v5684
      %v5686 = vpop.f32.mrf.mxu0
      %5687 = vmatprep.mubr.bf16.mxu0 0
      %5688 = vmatmul.mubr.bf16.gmra.mxu0 %v5538
      %v5689 = vpop.f32.mrf.mxu0
      %v5690 = vadd.f32 0.0, %v5689
      %v5691 = vpop.f32.mrf.mxu0
      %v5692 = vpop.f32.mrf.mxu0
      %v5693 = vadd.f32 0.0, %v5692
      %v5694 = vpop.f32.mrf.mxu0
      %5695 = vmatprep.mubr.bf16.mxu0 0
      %5696 = vmatmul.mubr.bf16.gmra.mxu0 %v5541
      %v5697 = vpop.f32.mrf.mxu0
      %v5698 = vadd.f32 0.0, %v5697
      %v5699 = vpop.f32.mrf.mxu0
      %v5700 = vpop.f32.mrf.mxu0
      %v5701 = vadd.f32 0.0, %v5700
      %v5702 = vpop.f32.mrf.mxu0
      %5703 = vmatprep.mubr.bf16.mxu0 0
      %5704 = vmatmul.mubr.bf16.gmra.mxu0 %v5544
      %v5705 = vpop.f32.mrf.mxu0
      %v5706 = vadd.f32 0.0, %v5705
      %v5707 = vpop.f32.mrf.mxu0
      %v5708 = vpop.f32.mrf.mxu0
      %v5709 = vadd.f32 0.0, %v5708
      %v5710 = vpop.f32.mrf.mxu0
      %5711 = vmatprep.mubr.bf16.mxu0 0
      %5712 = vmatmul.mubr.bf16.gmra.mxu0 %v5547
      %v5713 = vpop.f32.mrf.mxu0
      %v5714 = vadd.f32 0.0, %v5713
      %v5715 = vpop.f32.mrf.mxu0
      %v5716 = vpop.f32.mrf.mxu0
      %v5717 = vadd.f32 0.0, %v5716
      %v5718 = vpop.f32.mrf.mxu0
      %5719 = vmatprep.mubr.bf16.mxu0 0
      %5720 = vmatmul.mubr.bf16.gmra.mxu0 %v5550
      %v5721 = vpop.f32.mrf.mxu0
      %v5722 = vadd.f32 0.0, %v5721
      %v5723 = vpop.f32.mrf.mxu0
      %v5724 = vpop.f32.mrf.mxu0
      %v5725 = vadd.f32 0.0, %v5724
      %v5726 = vpop.f32.mrf.mxu0
      %5727 = vmatprep.mubr.bf16.mxu0 0
      %5728 = vmatmul.mubr.bf16.gmra.mxu0 %v5553
      %v5729 = vpop.f32.mrf.mxu0
      %v5730 = vadd.f32 0.0, %v5729
      %v5731 = vpop.f32.mrf.mxu0
      %v5732 = vpop.f32.mrf.mxu0
      %v5733 = vadd.f32 0.0, %v5732
      %v5734 = vpop.f32.mrf.mxu0
      %5735 = vmatprep.mubr.bf16.mxu0 0
      %5736 = vmatmul.mubr.bf16.gmra.mxu0 %v5556
      %v5737 = vpop.f32.mrf.mxu0
      %v5738 = vadd.f32 0.0, %v5737
      %v5739 = vpop.f32.mrf.mxu0
      %v5740 = vpop.f32.mrf.mxu0
      %v5741 = vadd.f32 0.0, %v5740
      %v5742 = vpop.f32.mrf.mxu0
      %5743 = vmatprep.mubr.bf16.mxu0 0
      %5744 = vmatmul.mubr.bf16.gmra.mxu0 %v5559
      %v5745 = vpop.f32.mrf.mxu0
      %v5746 = vadd.f32 0.0, %v5745
      %v5747 = vpop.f32.mrf.mxu0
      %v5748 = vpop.f32.mrf.mxu0
      %v5749 = vadd.f32 0.0, %v5748
      %v5750 = vpop.f32.mrf.mxu0
      %5751 = vmatprep.mubr.bf16.mxu0 0
      %5752 = vmatmul.mubr.bf16.gmra.mxu0 %v5562
      %v5753 = vpop.f32.mrf.mxu0
      %v5754 = vadd.f32 0.0, %v5753
      %v5755 = vpop.f32.mrf.mxu0
      %v5756 = vpop.f32.mrf.mxu0
      %v5757 = vadd.f32 0.0, %v5756
      %v5758 = vpop.f32.mrf.mxu0
      %5759 = vmatprep.mubr.bf16.mxu0 0
      %5760 = vmatmul.mubr.bf16.gmra.mxu0 %v5565
      %v5761 = vpop.f32.mrf.mxu0
      %v5762 = vadd.f32 0.0, %v5761
      %v5763 = vpop.f32.mrf.mxu0
      %v5764 = vpop.f32.mrf.mxu0
      %v5765 = vadd.f32 0.0, %v5764
      %v5766 = vpop.f32.mrf.mxu0
      %5767 = vmatprep.mubr.bf16.mxu0 0
      %5768 = vmatmul.mubr.bf16.gmra.mxu0 %v5568
      %v5769 = vpop.f32.mrf.mxu0
      %v5770 = vadd.f32 0.0, %v5769
      %v5771 = vpop.f32.mrf.mxu0
      %v5772 = vpop.f32.mrf.mxu0
      %v5773 = vadd.f32 0.0, %v5772
      %v5774 = vpop.f32.mrf.mxu0
      %5775 = vmatprep.mubr.bf16.mxu0 0
      %5776 = vmatmul.mubr.bf16.gmra.mxu0 %v5571
      %v5777 = vpop.f32.mrf.mxu0
      %v5778 = vadd.f32 0.0, %v5777
      %v5779 = vpop.f32.mrf.mxu0
      %v5780 = vpop.f32.mrf.mxu0
      %v5781 = vadd.f32 0.0, %v5780
      %v5782 = vpop.f32.mrf.mxu0
      %5783 = vmatprep.mubr.bf16.mxu0 0
      %5784 = vmatmul.mubr.bf16.gmra.mxu0 %v5574
      %v5785 = vpop.f32.mrf.mxu0
      %v5786 = vadd.f32 0.0, %v5785
      %v5787 = vpop.f32.mrf.mxu0
      %v5788 = vpop.f32.mrf.mxu0
      %v5789 = vadd.f32 0.0, %v5788
      %v5790 = vpop.f32.mrf.mxu0
      %5791 = vmatprep.mubr.bf16.mxu0 0
      %5792 = vmatmul.mubr.bf16.gmra.mxu0 %v5577
      %v5793 = vpop.f32.mrf.mxu0
      %v5794 = vadd.f32 0.0, %v5793
      %v5795 = vpop.f32.mrf.mxu0
      %v5796 = vpop.f32.mrf.mxu0
      %v5797 = vadd.f32 0.0, %v5796
      %v5798 = vpop.f32.mrf.mxu0
      %5799 = vmatprep.mubr.bf16.mxu0 0
      %5800 = vmatmul.mubr.bf16.gmra.mxu0 %v5580
      %v5801 = vpop.f32.mrf.mxu0
      %v5802 = vadd.f32 0.0, %v5801
      %v5803 = vpop.f32.mrf.mxu0
      %v5804 = vpop.f32.mrf.mxu0
      %v5805 = vadd.f32 0.0, %v5804
      %v5806 = vpop.f32.mrf.mxu0
      %5807 = vmatprep.mubr.bf16.mxu0 0
      %5808 = vmatmul.mubr.bf16.gmra.mxu0 %v5583
      %v5809 = vpop.f32.mrf.mxu0
      %v5810 = vadd.f32 0.0, %v5809
      %v5811 = vpop.f32.mrf.mxu0
      %v5812 = vpop.f32.mrf.mxu0
      %v5813 = vadd.f32 0.0, %v5812
      %v5814 = vpop.f32.mrf.mxu0
      %5815 = vmatprep.mubr.bf16.mxu0 0
      %5816 = vmatmul.mubr.bf16.gmra.mxu0 %v5586
      %v5817 = vpop.f32.mrf.mxu0
      %v5818 = vadd.f32 0.0, %v5817
      %v5819 = vpop.f32.mrf.mxu0
      %v5820 = vpop.f32.mrf.mxu0
      %v5821 = vadd.f32 0.0, %v5820
      %v5822 = vpop.f32.mrf.mxu0
      %5823 = vmatprep.mubr.bf16.mxu0 0
      %5824 = vmatmul.mubr.bf16.gmra.mxu0 %v5589
      %v5825 = vpop.f32.mrf.mxu0
      %v5826 = vadd.f32 0.0, %v5825
      %v5827 = vpop.f32.mrf.mxu0
      %v5828 = vpop.f32.mrf.mxu0
      %v5829 = vpop.f32.mrf.mxu0
      %5830 = vmatprep.mubr.bf16.mxu0 0
      %5831 = vmatmul.mubr.bf16.gmra.mxu0 %v5592
      %v5832 = vpop.f32.mrf.mxu0
      %v5833 = vpop.f32.mrf.mxu0
      %v5834 = vpop.f32.mrf.mxu0
      %v5835 = vpop.f32.mrf.mxu0
      %5836 = vdwg.mxu0
      %v5837 = vadd.f32 %v5043, %v5637
      %v5838 = vadd.f32 %v5044, %v5642
      %v5839 = vadd.f32 %v5045, %v5645
      %v5840 = vadd.f32 %v5046, %v5650
      %v5841 = vadd.f32 %v5047, %v5653
      %v5842 = vadd.f32 %v5048, %v5658
      %v5843 = vadd.f32 %v5049, %v5661
      %v5844 = vadd.f32 %v5050, %v5666
      %v5845 = vadd.f32 %v5051, %v5669
      %v5846 = vadd.f32 %v5052, %v5674
      %v5847 = vadd.f32 %v5053, %v5677
      %v5848 = vadd.f32 %v5054, %v5682
      %v5849 = vadd.f32 %v5055, %v5685
      %v5850 = vadd.f32 %v5056, %v5690
      %v5851 = vadd.f32 %v5057, %v5693
      %v5852 = vadd.f32 %v5058, %v5698
      %v5853 = vadd.f32 %v5059, %v5701
      %v5854 = vadd.f32 %v5060, %v5706
      %v5855 = vadd.f32 %v5061, %v5709
      %v5856 = vadd.f32 %v5062, %v5714
      %v5857 = vadd.f32 %v5063, %v5717
      %v5858 = vadd.f32 %v5064, %v5722
      %v5859 = vadd.f32 %v5065, %v5725
      %v5860 = vadd.f32 %v5066, %v5730
      %v5861 = vadd.f32 %v5067, %v5733
      %v5862 = vadd.f32 %v5068, %v5738
      %v5863 = vadd.f32 %v5069, %v5741
      %v5864 = vadd.f32 %v5070, %v5746
      %v5865 = vadd.f32 %v5071, %v5749
      %v5866 = vadd.f32 %v5072, %v5754
      %v5867 = vadd.f32 %v5073, %v5757
      %v5868 = vadd.f32 %v5074, %v5762
      %v5869 = vadd.f32 %v5075, %v5765
      %v5870 = vadd.f32 %v5076, %v5770
      %v5871 = vadd.f32 %v5077, %v5773
      %v5872 = vadd.f32 %v5078, %v5778
      %v5873 = vadd.f32 %v5079, %v5781
      %v5874 = vadd.f32 %v5080, %v5786
      %v5875 = vadd.f32 %v5081, %v5789
      %v5876 = vadd.f32 %v5082, %v5794
      %v5877 = vadd.f32 %v5083, %v5797
      %v5878 = vadd.f32 %v5084, %v5802
      %v5879 = vadd.f32 %v5085, %v5805
      %v5880 = vadd.f32 %v5086, %v5810
      %v5881 = vadd.f32 %v5087, %v5813
      %v5882 = vadd.f32 %v5088, %v5818
      %v5883 = vadd.f32 %v5089, %v5821
      %v5884 = vadd.f32 %v5090, %v5826
      %v5885 = vld [vmem:[#allocation2 + $0x18] sm:$0x8]
      %v5886 = vld [vmem:[#allocation2 + $0x1c] sm:$0xf]
      %v5887 = vld [vmem:[#allocation2 + $0x20] sm:$0xf]
      %v5888 = vld [vmem:[#allocation2 + $0x24] sm:$0xf]
      %v5889 = vld [vmem:[#allocation2 + $0x28] sm:$0xf]
      %v5890 = vld [vmem:[#allocation2 + $0x2c] sm:$0xf]
      %v5891 = vld [vmem:[#allocation2 + $0x30] sm:$0xf]
      %v5892 = vld [vmem:[#allocation2 + $0x34] sm:$0xf]
      %v5893 = vld [vmem:[#allocation2 + $0x38] sm:$0xf]
      %v5894 = vld [vmem:[#allocation2 + $0x3c] sm:$0xf]
      %v5895 = vld [vmem:[#allocation2 + $0x40] sm:$0xf]
      %v5896 = vld [vmem:[#allocation2 + $0x44] sm:$0xf]
      %v5897 = vld [vmem:[#allocation2 + $0x48] sm:$0xf]
      %v5898 = vld [vmem:[#allocation2 + $0x4c] sm:$0xf]
      %v5899 = vld [vmem:[#allocation2 + $0x50] sm:$0xf]
      %v5900 = vld [vmem:[#allocation2 + $0x54] sm:$0xf]
      %v5901 = vld [vmem:[#allocation2 + $0x58] sm:$0xf]
      %v5902 = vld [vmem:[#allocation2 + $0x5c] sm:$0xf]
      %v5903 = vld [vmem:[#allocation2 + $0x60] sm:$0xf]
      %v5904 = vld [vmem:[#allocation2 + $0x64] sm:$0xf]
      %v5905 = vld [vmem:[#allocation2 + $0x68] sm:$0xf]
      %v5906 = vld [vmem:[#allocation2 + $0x6c] sm:$0xf]
      %v5907 = vld [vmem:[#allocation2 + $0x70] sm:$0xf]
      %v5908 = vld [vmem:[#allocation2 + $0x74] sm:$0xf]
      %v5909 = vld [vmem:[#allocation2 + $0x78] sm:$0xf]
      %v5910 = vld [vmem:[#allocation2 + $0x7c] sm:$0xf]
      %v5911 = vld [vmem:[#allocation2 + $0x80] sm:$0xf]
      %v5912 = vld [vmem:[#allocation2 + $0x84] sm:$0xf]
      %v5913 = vld [vmem:[#allocation2 + $0x88] sm:$0xf]
      %v5914 = vld [vmem:[#allocation2 + $0x8c] sm:$0xf]
      %v5915 = vld [vmem:[#allocation2 + $0x90] sm:$0xf]
      %v5916 = vld [vmem:[#allocation2 + $0x94] sm:$0xf]
      %v5917 = vld [vmem:[#allocation2 + $0x98] sm:$0xf]
      %v5918 = vld [vmem:[#allocation2 + $0x9c] sm:$0xf]
      %v5919 = vld [vmem:[#allocation2 + $0xa0] sm:$0xf]
      %v5920 = vld [vmem:[#allocation2 + $0xa4] sm:$0xf]
      %v5921 = vld [vmem:[#allocation2 + $0xa8] sm:$0xf]
      %v5922 = vld [vmem:[#allocation2 + $0xac] sm:$0xf]
      %v5923 = vld [vmem:[#allocation2 + $0xb0] sm:$0xf]
      %v5924 = vld [vmem:[#allocation2 + $0xb4] sm:$0xf]
      %v5925 = vld [vmem:[#allocation2 + $0xb8] sm:$0xf]
      %v5926 = vld [vmem:[#allocation2 + $0xbc] sm:$0xf]
      %v5927 = vld [vmem:[#allocation2 + $0xc0] sm:$0xf]
      %v5928 = vld [vmem:[#allocation2 + $0xc4] sm:$0xf]
      %v5929 = vld [vmem:[#allocation2 + $0xc8] sm:$0xf]
      %v5930 = vld [vmem:[#allocation2 + $0xcc] sm:$0xf]
      %v5931 = vld [vmem:[#allocation2 + $0xd0] sm:$0xf]
      %v5932 = vld [vmem:[#allocation2 + $0xd4] sm:$0xf]
      %v5933 = vld [vmem:[#allocation2 + $0xd8] sm:$0xf]
      %v5934 = vld [vmem:[#allocation2 + $0xdc] sm:$0xf]
      %v5935 = vld [vmem:[#allocation2 + $0xe0] sm:$0xf]
      %v5936 = vld [vmem:[#allocation2 + $0xe4] sm:$0xf]
      %v5937 = vld [vmem:[#allocation2 + $0xe8] sm:$0xf]
      %v5938 = vld [vmem:[#allocation2 + $0xec] sm:$0xf]
      %v5939 = vld [vmem:[#allocation2 + $0xf0] sm:$0xf]
      %s5940 = scalar_lea.vmem %s4, 48
      %v5941 = vld [vmem:[%s5940] sm:$0xf]
      %v5942 = vld [vmem:[%s5940 + $0x4] sm:$0xf]
      %v5998 = vunpack.c.l.b16 %v5885
      %v5999 = vunpack.c.l.b16 %v5886
      %v6000 = vunpack.c.l.b16 %v5887
      %v6001 = vunpack.c.l.b16 %v5888
      %v6002 = vunpack.c.l.b16 %v5889
      %v6003 = vunpack.c.l.b16 %v5890
      %v6004 = vunpack.c.l.b16 %v5891
      %v6005 = vunpack.c.l.b16 %v5892
      %v6006 = vunpack.c.l.b16 %v5893
      %v6007 = vunpack.c.l.b16 %v5894
      %v6008 = vunpack.c.l.b16 %v5895
      %v6009 = vunpack.c.l.b16 %v5896
      %v6010 = vunpack.c.l.b16 %v5897
      %v6011 = vunpack.c.l.b16 %v5898
      %v6012 = vunpack.c.l.b16 %v5899
      %v6013 = vunpack.c.l.b16 %v5900
      %v6014 = vunpack.c.l.b16 %v5901
      %v6015 = vunpack.c.l.b16 %v5902
      %v6016 = vunpack.c.l.b16 %v5903
      %v6017 = vunpack.c.l.b16 %v5904
      %v6018 = vunpack.c.l.b16 %v5905
      %v6019 = vunpack.c.l.b16 %v5906
      %v6020 = vunpack.c.l.b16 %v5907
      %v6021 = vunpack.c.l.b16 %v5908
      %v6022 = vunpack.c.l.b16 %v5909
      %v6023 = vunpack.c.l.b16 %v5910
      %v6024 = vunpack.c.l.b16 %v5911
      %v6025 = vunpack.c.l.b16 %v5912
      %v6026 = vunpack.c.l.b16 %v5913
      %v6027 = vunpack.c.l.b16 %v5914
      %v6028 = vunpack.c.l.b16 %v5915
      %v6029 = vunpack.c.l.b16 %v5916
      %v6030 = vunpack.c.l.b16 %v5917
      %v6031 = vunpack.c.l.b16 %v5918
      %v6032 = vunpack.c.l.b16 %v5919
      %v6033 = vunpack.c.l.b16 %v5920
      %v6034 = vunpack.c.l.b16 %v5921
      %v6035 = vunpack.c.l.b16 %v5922
      %v6036 = vunpack.c.l.b16 %v5923
      %v6037 = vunpack.c.l.b16 %v5924
      %v6038 = vunpack.c.l.b16 %v5925
      %v6039 = vunpack.c.l.b16 %v5926
      %v6040 = vunpack.c.l.b16 %v5927
      %v6041 = vunpack.c.l.b16 %v5928
      %v6042 = vunpack.c.l.b16 %v5929
      %v6043 = vunpack.c.l.b16 %v5930
      %v6044 = vunpack.c.l.b16 %v5931
      %v6045 = vunpack.c.l.b16 %v5932
      %v6046 = vunpack.c.l.b16 %v5933
      %v6047 = vunpack.c.l.b16 %v5934
      %v6048 = vunpack.c.l.b16 %v5935
      %v6049 = vunpack.c.l.b16 %v5936
      %v6050 = vunpack.c.l.b16 %v5937
      %v6051 = vunpack.c.l.b16 %v5938
      %v6052 = vunpack.c.l.b16 %v5939
      %v6053 = vpack.c.b16 %v5999, %v5998
      %v6054 = vpack.c.b16 %v6001, %v6000
      %v6055 = vpack.c.b16 %v6003, %v6002
      %v6056 = vpack.c.b16 %v6005, %v6004
      %v6057 = vpack.c.b16 %v6007, %v6006
      %v6058 = vpack.c.b16 %v6009, %v6008
      %v6059 = vpack.c.b16 %v6011, %v6010
      %v6060 = vpack.c.b16 %v6013, %v6012
      %v6061 = vpack.c.b16 %v6015, %v6014
      %v6062 = vpack.c.b16 %v6017, %v6016
      %v6063 = vpack.c.b16 %v6019, %v6018
      %v6064 = vpack.c.b16 %v6021, %v6020
      %v6065 = vpack.c.b16 %v6023, %v6022
      %v6066 = vpack.c.b16 %v6025, %v6024
      %v6067 = vpack.c.b16 %v6027, %v6026
      %v6068 = vpack.c.b16 %v6029, %v6028
      %v6069 = vpack.c.b16 %v6031, %v6030
      %v6070 = vpack.c.b16 %v6033, %v6032
      %v6071 = vpack.c.b16 %v6035, %v6034
      %v6072 = vpack.c.b16 %v6037, %v6036
      %v6073 = vpack.c.b16 %v6039, %v6038
      %v6074 = vpack.c.b16 %v6041, %v6040
      %v6075 = vpack.c.b16 %v6043, %v6042
      %v6076 = vpack.c.b16 %v6045, %v6044
      %v6077 = vpack.c.b16 %v6047, %v6046
      %v6078 = vpack.c.b16 %v6049, %v6048
      %v6079 = vpack.c.b16 %v6051, %v6050
      %v6080 = vpack.c.b16 %v6052, %v6052
      %v6082 = vshrl.u32 %v6053, 16
      %v6084 = vrot.slane %v6082, 3
      %v6085 = vshll.u32 %v6053, 16
      %v6087 = vrot.slane %v6085, 4
      %v6088 = vor.u32 %v6084, %v6087
      %v6090 = vshrl.u32 %v6054, 16
      %v6092 = vrot.slane %v6090, 3
      %v6093 = vshll.u32 %v6054, 16
      %v6095 = vrot.slane %v6093, 4
      %v6096 = vor.u32 %v6092, %v6095
      %v6097 = vsel %vm2481, %v6088, %v6096
      %v6099 = vshrl.u32 %v6055, 16
      %v6101 = vrot.slane %v6099, 3
      %v6102 = vshll.u32 %v6055, 16
      %v6104 = vrot.slane %v6102, 4
      %v6105 = vor.u32 %v6101, %v6104
      %v6106 = vsel %vm2481, %v6096, %v6105
      %v6108 = vshrl.u32 %v6056, 16
      %v6110 = vrot.slane %v6108, 3
      %v6111 = vshll.u32 %v6056, 16
      %v6113 = vrot.slane %v6111, 4
      %v6114 = vor.u32 %v6110, %v6113
      %v6115 = vsel %vm2481, %v6105, %v6114
      %v6117 = vshrl.u32 %v6057, 16
      %v6119 = vrot.slane %v6117, 3
      %v6120 = vshll.u32 %v6057, 16
      %v6122 = vrot.slane %v6120, 4
      %v6123 = vor.u32 %v6119, %v6122
      %v6124 = vsel %vm2481, %v6114, %v6123
      %v6126 = vshrl.u32 %v6058, 16
      %v6128 = vrot.slane %v6126, 3
      %v6129 = vshll.u32 %v6058, 16
      %v6131 = vrot.slane %v6129, 4
      %v6132 = vor.u32 %v6128, %v6131
      %v6133 = vsel %vm2481, %v6123, %v6132
      %v6135 = vshrl.u32 %v6059, 16
      %v6137 = vrot.slane %v6135, 3
      %v6138 = vshll.u32 %v6059, 16
      %v6140 = vrot.slane %v6138, 4
      %v6141 = vor.u32 %v6137, %v6140
      %v6142 = vsel %vm2481, %v6132, %v6141
      %v6144 = vshrl.u32 %v6060, 16
      %v6146 = vrot.slane %v6144, 3
      %v6147 = vshll.u32 %v6060, 16
      %v6149 = vrot.slane %v6147, 4
      %v6150 = vor.u32 %v6146, %v6149
      %v6151 = vsel %vm2481, %v6141, %v6150
      %v6153 = vshrl.u32 %v6061, 16
      %v6155 = vrot.slane %v6153, 3
      %v6156 = vshll.u32 %v6061, 16
      %v6158 = vrot.slane %v6156, 4
      %v6159 = vor.u32 %v6155, %v6158
      %v6160 = vsel %vm2481, %v6150, %v6159
      %v6162 = vshrl.u32 %v6062, 16
      %v6164 = vrot.slane %v6162, 3
      %v6165 = vshll.u32 %v6062, 16
      %v6167 = vrot.slane %v6165, 4
      %v6168 = vor.u32 %v6164, %v6167
      %v6169 = vsel %vm2481, %v6159, %v6168
      %v6171 = vshrl.u32 %v6063, 16
      %v6173 = vrot.slane %v6171, 3
      %v6174 = vshll.u32 %v6063, 16
      %v6176 = vrot.slane %v6174, 4
      %v6177 = vor.u32 %v6173, %v6176
      %v6178 = vsel %vm2481, %v6168, %v6177
      %v6180 = vshrl.u32 %v6064, 16
      %v6182 = vrot.slane %v6180, 3
      %v6183 = vshll.u32 %v6064, 16
      %v6185 = vrot.slane %v6183, 4
      %v6186 = vor.u32 %v6182, %v6185
      %v6187 = vsel %vm2481, %v6177, %v6186
      %v6189 = vshrl.u32 %v6065, 16
      %v6191 = vrot.slane %v6189, 3
      %v6192 = vshll.u32 %v6065, 16
      %v6194 = vrot.slane %v6192, 4
      %v6195 = vor.u32 %v6191, %v6194
      %v6196 = vsel %vm2481, %v6186, %v6195
      %v6198 = vshrl.u32 %v6066, 16
      %v6200 = vrot.slane %v6198, 3
      %v6201 = vshll.u32 %v6066, 16
      %v6203 = vrot.slane %v6201, 4
      %v6204 = vor.u32 %v6200, %v6203
      %v6205 = vsel %vm2481, %v6195, %v6204
      %v6207 = vshrl.u32 %v6067, 16
      %v6209 = vrot.slane %v6207, 3
      %v6210 = vshll.u32 %v6067, 16
      %v6212 = vrot.slane %v6210, 4
      %v6213 = vor.u32 %v6209, %v6212
      %v6214 = vsel %vm2481, %v6204, %v6213
      %v6216 = vshrl.u32 %v6068, 16
      %v6218 = vrot.slane %v6216, 3
      %v6219 = vshll.u32 %v6068, 16
      %v6221 = vrot.slane %v6219, 4
      %v6222 = vor.u32 %v6218, %v6221
      %v6223 = vsel %vm2481, %v6213, %v6222
      %v6225 = vshrl.u32 %v6069, 16
      %v6227 = vrot.slane %v6225, 3
      %v6228 = vshll.u32 %v6069, 16
      %v6230 = vrot.slane %v6228, 4
      %v6231 = vor.u32 %v6227, %v6230
      %v6232 = vsel %vm2481, %v6222, %v6231
      %v6234 = vshrl.u32 %v6070, 16
      %v6236 = vrot.slane %v6234, 3
      %v6237 = vshll.u32 %v6070, 16
      %v6239 = vrot.slane %v6237, 4
      %v6240 = vor.u32 %v6236, %v6239
      %v6241 = vsel %vm2481, %v6231, %v6240
      %v6243 = vshrl.u32 %v6071, 16
      %v6245 = vrot.slane %v6243, 3
      %v6246 = vshll.u32 %v6071, 16
      %v6248 = vrot.slane %v6246, 4
      %v6249 = vor.u32 %v6245, %v6248
      %v6250 = vsel %vm2481, %v6240, %v6249
      %v6252 = vshrl.u32 %v6072, 16
      %v6254 = vrot.slane %v6252, 3
      %v6255 = vshll.u32 %v6072, 16
      %v6257 = vrot.slane %v6255, 4
      %v6258 = vor.u32 %v6254, %v6257
      %v6259 = vsel %vm2481, %v6249, %v6258
      %v6261 = vshrl.u32 %v6073, 16
      %v6263 = vrot.slane %v6261, 3
      %v6264 = vshll.u32 %v6073, 16
      %v6266 = vrot.slane %v6264, 4
      %v6267 = vor.u32 %v6263, %v6266
      %v6268 = vsel %vm2481, %v6258, %v6267
      %v6270 = vshrl.u32 %v6074, 16
      %v6272 = vrot.slane %v6270, 3
      %v6273 = vshll.u32 %v6074, 16
      %v6275 = vrot.slane %v6273, 4
      %v6276 = vor.u32 %v6272, %v6275
      %v6277 = vsel %vm2481, %v6267, %v6276
      %v6279 = vshrl.u32 %v6075, 16
      %v6281 = vrot.slane %v6279, 3
      %v6282 = vshll.u32 %v6075, 16
      %v6284 = vrot.slane %v6282, 4
      %v6285 = vor.u32 %v6281, %v6284
      %v6286 = vsel %vm2481, %v6276, %v6285
      %v6288 = vshrl.u32 %v6076, 16
      %v6290 = vrot.slane %v6288, 3
      %v6291 = vshll.u32 %v6076, 16
      %v6293 = vrot.slane %v6291, 4
      %v6294 = vor.u32 %v6290, %v6293
      %v6295 = vsel %vm2481, %v6285, %v6294
      %v6297 = vshrl.u32 %v6077, 16
      %v6299 = vrot.slane %v6297, 3
      %v6300 = vshll.u32 %v6077, 16
      %v6302 = vrot.slane %v6300, 4
      %v6303 = vor.u32 %v6299, %v6302
      %v6304 = vsel %vm2481, %v6294, %v6303
      %v6306 = vshrl.u32 %v6078, 16
      %v6308 = vrot.slane %v6306, 3
      %v6309 = vshll.u32 %v6078, 16
      %v6311 = vrot.slane %v6309, 4
      %v6312 = vor.u32 %v6308, %v6311
      %v6313 = vsel %vm2481, %v6303, %v6312
      %v6315 = vshrl.u32 %v6079, 16
      %v6317 = vrot.slane %v6315, 3
      %v6318 = vshll.u32 %v6079, 16
      %v6320 = vrot.slane %v6318, 4
      %v6321 = vor.u32 %v6317, %v6320
      %v6322 = vsel %vm2481, %v6312, %v6321
      %v6324 = vshrl.u32 %v6080, 16
      %v6326 = vrot.slane %v6324, 3
      %v6327 = vshll.u32 %v6080, 16
      %v6329 = vrot.slane %v6327, 4
      %v6330 = vor.u32 %v6326, %v6329
      %v6331 = vsel %vm2481, %v6321, %v6330
      %v6334 = vunpack.c.l.b16 %v5941
      %v6335 = vunpack.c.l.b16 %v5942
      %v6336 = vpack.c.b16 %v6335, %v6334
      %v6339 = vsel %vm1598, %v6097, 0
      %v6342 = vsel %vm1598, %v6106, 0
      %v6345 = vsel %vm1598, %v6115, 0
      %v6348 = vsel %vm1598, %v6124, 0
      %v6351 = vsel %vm1598, %v6133, 0
      %v6354 = vsel %vm1598, %v6142, 0
      %v6357 = vsel %vm1598, %v6151, 0
      %v6360 = vsel %vm1598, %v6160, 0
      %v6363 = vsel %vm1598, %v6169, 0
      %v6366 = vsel %vm1598, %v6178, 0
      %v6369 = vsel %vm1598, %v6187, 0
      %v6372 = vsel %vm1598, %v6196, 0
      %v6375 = vsel %vm1598, %v6205, 0
      %v6378 = vsel %vm1598, %v6214, 0
      %v6381 = vsel %vm1598, %v6223, 0
      %v6384 = vsel %vm1598, %v6232, 0
      %v6387 = vsel %vm1598, %v6241, 0
      %v6390 = vsel %vm1598, %v6250, 0
      %v6393 = vsel %vm1598, %v6259, 0
      %v6396 = vsel %vm1598, %v6268, 0
      %v6399 = vsel %vm1598, %v6277, 0
      %v6402 = vsel %vm1598, %v6286, 0
      %v6405 = vsel %vm1598, %v6295, 0
      %v6408 = vsel %vm1598, %v6304, 0
      %v6411 = vsel %vm1598, %v6313, 0
      %v6414 = vsel %vm1598, %v6322, 0
      %v6417 = vsel %vm1598, %v6331, 0
      %6419 = vmatprep.subr.bf16.mxu0 0
      %6420 = vmatpush1.bf16.msra.mxu0 0
      %6421 = vmatprep.subr.bf16.mxu0 0
      %6422 = vmatpush1.bf16.msra.mxu0 0
      %6423 = vmatprep.subr.bf16.mxu0 0
      %6424 = vmatpush1.bf16.msra.mxu0 0
      %6425 = vmatprep.subr.bf16.mxu0 0
      %6426 = vmatpush1.bf16.msra.mxu0 0
      %6427 = vmatprep.subr.bf16.mxu0 0
      %6428 = vmatpush1.bf16.msra.mxu0 0
      %6429 = vmatprep.subr.bf16.mxu0 0
      %6430 = vmatpush1.bf16.msra.mxu0 0
      %6431 = vmatprep.subr.bf16.mxu0 0
      %6432 = vmatpush1.bf16.msra.mxu0 0
      %6433 = vmatprep.subr.bf16.mxu0 0
      %6434 = vmatpush1.bf16.msra.mxu0 %v6336
      %6435 = vmatprep.subr.bf16.mxu0 0
      %6436 = vmatpush2.bf16.msra.mxu0 0
      %6437 = vmatprep.subr.bf16.mxu0 0
      %6438 = vmatpush2.bf16.msra.mxu0 0
      %6439 = vmatprep.subr.bf16.mxu0 0
      %6440 = vmatpush2.bf16.msra.mxu0 0
      %6441 = vmatprep.subr.bf16.mxu0 0
      %6442 = vmatpush2.bf16.msra.mxu0 0
      %6443 = vmatprep.subr.bf16.mxu0 0
      %6444 = vmatpush2.bf16.msra.mxu0 0
      %6445 = vmatprep.subr.bf16.mxu0 0
      %6446 = vmatpush2.bf16.msra.mxu0 0
      %6447 = vmatprep.subr.bf16.mxu0 0
      %6448 = vmatpush2.bf16.msra.mxu0 0
      %6449 = vmatprep.subr.bf16.mxu0 0
      %6450 = vmatpush2.bf16.msra.mxu0 0
      %6451 = vmatprep.mubr.bf16.mxu0 0
      %6452 = vmatmul.mubr.bf16.gmra.mxu0 %v6339
      %v6453 = vpop.f32.mrf.mxu0
      %v6454 = vpop.f32.mrf.mxu0
      %v6455 = vpop.f32.mrf.mxu0
      %v6456 = vpop.f32.mrf.mxu0
      %6457 = vmatprep.mubr.bf16.mxu0 0
      %6458 = vmatmul.mubr.bf16.gmra.mxu0 %v6342
      %v6459 = vpop.f32.mrf.mxu0
      %v6460 = vpop.f32.mrf.mxu0
      %v6461 = vpop.f32.mrf.mxu0
      %v6462 = vadd.f32 0.0, %v6461
      %v6463 = vpop.f32.mrf.mxu0
      %6464 = vmatprep.mubr.bf16.mxu0 0
      %6465 = vmatmul.mubr.bf16.gmra.mxu0 %v6345
      %v6466 = vpop.f32.mrf.mxu0
      %v6467 = vadd.f32 0.0, %v6466
      %v6468 = vpop.f32.mrf.mxu0
      %v6469 = vpop.f32.mrf.mxu0
      %v6470 = vadd.f32 0.0, %v6469
      %v6471 = vpop.f32.mrf.mxu0
      %6472 = vmatprep.mubr.bf16.mxu0 0
      %6473 = vmatmul.mubr.bf16.gmra.mxu0 %v6348
      %v6474 = vpop.f32.mrf.mxu0
      %v6475 = vadd.f32 0.0, %v6474
      %v6476 = vpop.f32.mrf.mxu0
      %v6477 = vpop.f32.mrf.mxu0
      %v6478 = vadd.f32 0.0, %v6477
      %v6479 = vpop.f32.mrf.mxu0
      %6480 = vmatprep.mubr.bf16.mxu0 0
      %6481 = vmatmul.mubr.bf16.gmra.mxu0 %v6351
      %v6482 = vpop.f32.mrf.mxu0
      %v6483 = vadd.f32 0.0, %v6482
      %v6484 = vpop.f32.mrf.mxu0
      %v6485 = vpop.f32.mrf.mxu0
      %v6486 = vadd.f32 0.0, %v6485
      %v6487 = vpop.f32.mrf.mxu0
      %6488 = vmatprep.mubr.bf16.mxu0 0
      %6489 = vmatmul.mubr.bf16.gmra.mxu0 %v6354
      %v6490 = vpop.f32.mrf.mxu0
      %v6491 = vadd.f32 0.0, %v6490
      %v6492 = vpop.f32.mrf.mxu0
      %v6493 = vpop.f32.mrf.mxu0
      %v6494 = vadd.f32 0.0, %v6493
      %v6495 = vpop.f32.mrf.mxu0
      %6496 = vmatprep.mubr.bf16.mxu0 0
      %6497 = vmatmul.mubr.bf16.gmra.mxu0 %v6357
      %v6498 = vpop.f32.mrf.mxu0
      %v6499 = vadd.f32 0.0, %v6498
      %v6500 = vpop.f32.mrf.mxu0
      %v6501 = vpop.f32.mrf.mxu0
      %v6502 = vadd.f32 0.0, %v6501
      %v6503 = vpop.f32.mrf.mxu0
      %6504 = vmatprep.mubr.bf16.mxu0 0
      %6505 = vmatmul.mubr.bf16.gmra.mxu0 %v6360
      %v6506 = vpop.f32.mrf.mxu0
      %v6507 = vadd.f32 0.0, %v6506
      %v6508 = vpop.f32.mrf.mxu0
      %v6509 = vpop.f32.mrf.mxu0
      %v6510 = vadd.f32 0.0, %v6509
      %v6511 = vpop.f32.mrf.mxu0
      %6512 = vmatprep.mubr.bf16.mxu0 0
      %6513 = vmatmul.mubr.bf16.gmra.mxu0 %v6363
      %v6514 = vpop.f32.mrf.mxu0
      %v6515 = vadd.f32 0.0, %v6514
      %v6516 = vpop.f32.mrf.mxu0
      %v6517 = vpop.f32.mrf.mxu0
      %v6518 = vadd.f32 0.0, %v6517
      %v6519 = vpop.f32.mrf.mxu0
      %6520 = vmatprep.mubr.bf16.mxu0 0
      %6521 = vmatmul.mubr.bf16.gmra.mxu0 %v6366
      %v6522 = vpop.f32.mrf.mxu0
      %v6523 = vadd.f32 0.0, %v6522
      %v6524 = vpop.f32.mrf.mxu0
      %v6525 = vpop.f32.mrf.mxu0
      %v6526 = vadd.f32 0.0, %v6525
      %v6527 = vpop.f32.mrf.mxu0
      %6528 = vmatprep.mubr.bf16.mxu0 0
      %6529 = vmatmul.mubr.bf16.gmra.mxu0 %v6369
      %v6530 = vpop.f32.mrf.mxu0
      %v6531 = vadd.f32 0.0, %v6530
      %v6532 = vpop.f32.mrf.mxu0
      %v6533 = vpop.f32.mrf.mxu0
      %v6534 = vadd.f32 0.0, %v6533
      %v6535 = vpop.f32.mrf.mxu0
      %6536 = vmatprep.mubr.bf16.mxu0 0
      %6537 = vmatmul.mubr.bf16.gmra.mxu0 %v6372
      %v6538 = vpop.f32.mrf.mxu0
      %v6539 = vadd.f32 0.0, %v6538
      %v6540 = vpop.f32.mrf.mxu0
      %v6541 = vpop.f32.mrf.mxu0
      %v6542 = vadd.f32 0.0, %v6541
      %v6543 = vpop.f32.mrf.mxu0
      %6544 = vmatprep.mubr.bf16.mxu0 0
      %6545 = vmatmul.mubr.bf16.gmra.mxu0 %v6375
      %v6546 = vpop.f32.mrf.mxu0
      %v6547 = vadd.f32 0.0, %v6546
      %v6548 = vpop.f32.mrf.mxu0
      %v6549 = vpop.f32.mrf.mxu0
      %v6550 = vadd.f32 0.0, %v6549
      %v6551 = vpop.f32.mrf.mxu0
      %6552 = vmatprep.mubr.bf16.mxu0 0
      %6553 = vmatmul.mubr.bf16.gmra.mxu0 %v6378
      %v6554 = vpop.f32.mrf.mxu0
      %v6555 = vadd.f32 0.0, %v6554
      %v6556 = vpop.f32.mrf.mxu0
      %v6557 = vpop.f32.mrf.mxu0
      %v6558 = vadd.f32 0.0, %v6557
      %v6559 = vpop.f32.mrf.mxu0
      %6560 = vmatprep.mubr.bf16.mxu0 0
      %6561 = vmatmul.mubr.bf16.gmra.mxu0 %v6381
      %v6562 = vpop.f32.mrf.mxu0
      %v6563 = vadd.f32 0.0, %v6562
      %v6564 = vpop.f32.mrf.mxu0
      %v6565 = vpop.f32.mrf.mxu0
      %v6566 = vadd.f32 0.0, %v6565
      %v6567 = vpop.f32.mrf.mxu0
      %6568 = vmatprep.mubr.bf16.mxu0 0
      %6569 = vmatmul.mubr.bf16.gmra.mxu0 %v6384
      %v6570 = vpop.f32.mrf.mxu0
      %v6571 = vadd.f32 0.0, %v6570
      %v6572 = vpop.f32.mrf.mxu0
      %v6573 = vpop.f32.mrf.mxu0
      %v6574 = vadd.f32 0.0, %v6573
      %v6575 = vpop.f32.mrf.mxu0
      %6576 = vmatprep.mubr.bf16.mxu0 0
      %6577 = vmatmul.mubr.bf16.gmra.mxu0 %v6387
      %v6578 = vpop.f32.mrf.mxu0
      %v6579 = vadd.f32 0.0, %v6578
      %v6580 = vpop.f32.mrf.mxu0
      %v6581 = vpop.f32.mrf.mxu0
      %v6582 = vadd.f32 0.0, %v6581
      %v6583 = vpop.f32.mrf.mxu0
      %6584 = vmatprep.mubr.bf16.mxu0 0
      %6585 = vmatmul.mubr.bf16.gmra.mxu0 %v6390
      %v6586 = vpop.f32.mrf.mxu0
      %v6587 = vadd.f32 0.0, %v6586
      %v6588 = vpop.f32.mrf.mxu0
      %v6589 = vpop.f32.mrf.mxu0
      %v6590 = vadd.f32 0.0, %v6589
      %v6591 = vpop.f32.mrf.mxu0
      %6592 = vmatprep.mubr.bf16.mxu0 0
      %6593 = vmatmul.mubr.bf16.gmra.mxu0 %v6393
      %v6594 = vpop.f32.mrf.mxu0
      %v6595 = vadd.f32 0.0, %v6594
      %v6596 = vpop.f32.mrf.mxu0
      %v6597 = vpop.f32.mrf.mxu0
      %v6598 = vadd.f32 0.0, %v6597
      %v6599 = vpop.f32.mrf.mxu0
      %6600 = vmatprep.mubr.bf16.mxu0 0
      %6601 = vmatmul.mubr.bf16.gmra.mxu0 %v6396
      %v6602 = vpop.f32.mrf.mxu0
      %v6603 = vadd.f32 0.0, %v6602
      %v6604 = vpop.f32.mrf.mxu0
      %v6605 = vpop.f32.mrf.mxu0
      %v6606 = vadd.f32 0.0, %v6605
      %v6607 = vpop.f32.mrf.mxu0
      %6608 = vmatprep.mubr.bf16.mxu0 0
      %6609 = vmatmul.mubr.bf16.gmra.mxu0 %v6399
      %v6610 = vpop.f32.mrf.mxu0
      %v6611 = vadd.f32 0.0, %v6610
      %v6612 = vpop.f32.mrf.mxu0
      %v6613 = vpop.f32.mrf.mxu0
      %v6614 = vadd.f32 0.0, %v6613
      %v6615 = vpop.f32.mrf.mxu0
      %6616 = vmatprep.mubr.bf16.mxu0 0
      %6617 = vmatmul.mubr.bf16.gmra.mxu0 %v6402
      %v6618 = vpop.f32.mrf.mxu0
      %v6619 = vadd.f32 0.0, %v6618
      %v6620 = vpop.f32.mrf.mxu0
      %v6621 = vpop.f32.mrf.mxu0
      %v6622 = vadd.f32 0.0, %v6621
      %v6623 = vpop.f32.mrf.mxu0
      %6624 = vmatprep.mubr.bf16.mxu0 0
      %6625 = vmatmul.mubr.bf16.gmra.mxu0 %v6405
      %v6626 = vpop.f32.mrf.mxu0
      %v6627 = vadd.f32 0.0, %v6626
      %v6628 = vpop.f32.mrf.mxu0
      %v6629 = vpop.f32.mrf.mxu0
      %v6630 = vadd.f32 0.0, %v6629
      %v6631 = vpop.f32.mrf.mxu0
      %6632 = vmatprep.mubr.bf16.mxu0 0
      %6633 = vmatmul.mubr.bf16.gmra.mxu0 %v6408
      %v6634 = vpop.f32.mrf.mxu0
      %v6635 = vadd.f32 0.0, %v6634
      %v6636 = vpop.f32.mrf.mxu0
      %v6637 = vpop.f32.mrf.mxu0
      %v6638 = vadd.f32 0.0, %v6637
      %v6639 = vpop.f32.mrf.mxu0
      %6640 = vmatprep.mubr.bf16.mxu0 0
      %6641 = vmatmul.mubr.bf16.gmra.mxu0 %v6411
      %v6642 = vpop.f32.mrf.mxu0
      %v6643 = vadd.f32 0.0, %v6642
      %v6644 = vpop.f32.mrf.mxu0
      %v6645 = vpop.f32.mrf.mxu0
      %v6646 = vadd.f32 0.0, %v6645
      %v6647 = vpop.f32.mrf.mxu0
      %6648 = vmatprep.mubr.bf16.mxu0 0
      %6649 = vmatmul.mubr.bf16.gmra.mxu0 %v6414
      %v6650 = vpop.f32.mrf.mxu0
      %v6651 = vadd.f32 0.0, %v6650
      %v6652 = vpop.f32.mrf.mxu0
      %v6653 = vpop.f32.mrf.mxu0
      %v6654 = vpop.f32.mrf.mxu0
      %6655 = vmatprep.mubr.bf16.mxu0 0
      %6656 = vmatmul.mubr.bf16.gmra.mxu0 %v6417
      %v6657 = vpop.f32.mrf.mxu0
      %v6658 = vpop.f32.mrf.mxu0
      %v6659 = vpop.f32.mrf.mxu0
      %v6660 = vpop.f32.mrf.mxu0
      %6661 = vdwg.mxu0
      %v6662 = vadd.f32 %v5837, %v6462
      %v6663 = vadd.f32 %v5838, %v6467
      %v6664 = vadd.f32 %v5839, %v6470
      %v6665 = vadd.f32 %v5840, %v6475
      %v6666 = vadd.f32 %v5841, %v6478
      %v6667 = vadd.f32 %v5842, %v6483
      %v6668 = vadd.f32 %v5843, %v6486
      %v6669 = vadd.f32 %v5844, %v6491
      %v6670 = vadd.f32 %v5845, %v6494
      %v6671 = vadd.f32 %v5846, %v6499
      %v6672 = vadd.f32 %v5847, %v6502
      %v6673 = vadd.f32 %v5848, %v6507
      %v6674 = vadd.f32 %v5849, %v6510
      %v6675 = vadd.f32 %v5850, %v6515
      %v6676 = vadd.f32 %v5851, %v6518
      %v6677 = vadd.f32 %v5852, %v6523
      %v6678 = vadd.f32 %v5853, %v6526
      %v6679 = vadd.f32 %v5854, %v6531
      %v6680 = vadd.f32 %v5855, %v6534
      %v6681 = vadd.f32 %v5856, %v6539
      %v6682 = vadd.f32 %v5857, %v6542
      %v6683 = vadd.f32 %v5858, %v6547
      %v6684 = vadd.f32 %v5859, %v6550
      %v6685 = vadd.f32 %v5860, %v6555
      %v6686 = vadd.f32 %v5861, %v6558
      %v6687 = vadd.f32 %v5862, %v6563
      %v6688 = vadd.f32 %v5863, %v6566
      %v6689 = vadd.f32 %v5864, %v6571
      %v6690 = vadd.f32 %v5865, %v6574
      %v6691 = vadd.f32 %v5866, %v6579
      %v6692 = vadd.f32 %v5867, %v6582
      %v6693 = vadd.f32 %v5868, %v6587
      %v6694 = vadd.f32 %v5869, %v6590
      %v6695 = vadd.f32 %v5870, %v6595
      %v6696 = vadd.f32 %v5871, %v6598
      %v6697 = vadd.f32 %v5872, %v6603
      %v6698 = vadd.f32 %v5873, %v6606
      %v6699 = vadd.f32 %v5874, %v6611
      %v6700 = vadd.f32 %v5875, %v6614
      %v6701 = vadd.f32 %v5876, %v6619
      %v6702 = vadd.f32 %v5877, %v6622
      %v6703 = vadd.f32 %v5878, %v6627
      %v6704 = vadd.f32 %v5879, %v6630
      %v6705 = vadd.f32 %v5880, %v6635
      %v6706 = vadd.f32 %v5881, %v6638
      %v6707 = vadd.f32 %v5882, %v6643
      %v6708 = vadd.f32 %v5883, %v6646
      %v6709 = vadd.f32 %v5884, %v6651
      %s6710 = scalar_lea.vmem %s4, 56
      %v6711 = vld [vmem:[%s6710] sm:$0xf]
      %v6712 = vld [vmem:[%s6710 + $0x4] sm:$0xf]
      %v6713 = vpack.c.b16 %v6000, %v5999
      %v6714 = vpack.c.b16 %v6002, %v6001
      %v6715 = vpack.c.b16 %v6004, %v6003
      %v6716 = vpack.c.b16 %v6006, %v6005
      %v6717 = vpack.c.b16 %v6008, %v6007
      %v6718 = vpack.c.b16 %v6010, %v6009
      %v6719 = vpack.c.b16 %v6012, %v6011
      %v6720 = vpack.c.b16 %v6014, %v6013
      %v6721 = vpack.c.b16 %v6016, %v6015
      %v6722 = vpack.c.b16 %v6018, %v6017
      %v6723 = vpack.c.b16 %v6020, %v6019
      %v6724 = vpack.c.b16 %v6022, %v6021
      %v6725 = vpack.c.b16 %v6024, %v6023
      %v6726 = vpack.c.b16 %v6026, %v6025
      %v6727 = vpack.c.b16 %v6028, %v6027
      %v6728 = vpack.c.b16 %v6030, %v6029
      %v6729 = vpack.c.b16 %v6032, %v6031
      %v6730 = vpack.c.b16 %v6034, %v6033
      %v6731 = vpack.c.b16 %v6036, %v6035
      %v6732 = vpack.c.b16 %v6038, %v6037
      %v6733 = vpack.c.b16 %v6040, %v6039
      %v6734 = vpack.c.b16 %v6042, %v6041
      %v6735 = vpack.c.b16 %v6044, %v6043
      %v6736 = vpack.c.b16 %v6046, %v6045
      %v6737 = vpack.c.b16 %v6048, %v6047
      %v6738 = vpack.c.b16 %v6050, %v6049
      %v6739 = vpack.c.b16 %v6052, %v6051
      %v6742 = vunpack.c.l.b16 %v6711
      %v6743 = vunpack.c.l.b16 %v6712
      %v6744 = vpack.c.b16 %v6743, %v6742
      %v6747 = vsel %vm1598, %v6713, 0
      %v6750 = vsel %vm1598, %v6714, 0
      %v6753 = vsel %vm1598, %v6715, 0
      %v6756 = vsel %vm1598, %v6716, 0
      %v6759 = vsel %vm1598, %v6717, 0
      %v6762 = vsel %vm1598, %v6718, 0
      %v6765 = vsel %vm1598, %v6719, 0
      %v6768 = vsel %vm1598, %v6720, 0
      %v6771 = vsel %vm1598, %v6721, 0
      %v6774 = vsel %vm1598, %v6722, 0
      %v6777 = vsel %vm1598, %v6723, 0
      %v6780 = vsel %vm1598, %v6724, 0
      %v6783 = vsel %vm1598, %v6725, 0
      %v6786 = vsel %vm1598, %v6726, 0
      %v6789 = vsel %vm1598, %v6727, 0
      %v6792 = vsel %vm1598, %v6728, 0
      %v6795 = vsel %vm1598, %v6729, 0
      %v6798 = vsel %vm1598, %v6730, 0
      %v6801 = vsel %vm1598, %v6731, 0
      %v6804 = vsel %vm1598, %v6732, 0
      %v6807 = vsel %vm1598, %v6733, 0
      %v6810 = vsel %vm1598, %v6734, 0
      %v6813 = vsel %vm1598, %v6735, 0
      %v6816 = vsel %vm1598, %v6736, 0
      %v6819 = vsel %vm1598, %v6737, 0
      %v6822 = vsel %vm1598, %v6738, 0
      %v6825 = vsel %vm1598, %v6739, 0
      %6827 = vmatprep.subr.bf16.mxu0 0
      %6828 = vmatpush1.bf16.msra.mxu0 0
      %6829 = vmatprep.subr.bf16.mxu0 0
      %6830 = vmatpush1.bf16.msra.mxu0 0
      %6831 = vmatprep.subr.bf16.mxu0 0
      %6832 = vmatpush1.bf16.msra.mxu0 0
      %6833 = vmatprep.subr.bf16.mxu0 0
      %6834 = vmatpush1.bf16.msra.mxu0 0
      %6835 = vmatprep.subr.bf16.mxu0 0
      %6836 = vmatpush1.bf16.msra.mxu0 0
      %6837 = vmatprep.subr.bf16.mxu0 0
      %6838 = vmatpush1.bf16.msra.mxu0 0
      %6839 = vmatprep.subr.bf16.mxu0 0
      %6840 = vmatpush1.bf16.msra.mxu0 0
      %6841 = vmatprep.subr.bf16.mxu0 0
      %6842 = vmatpush1.bf16.msra.mxu0 %v6744
      %6843 = vmatprep.subr.bf16.mxu0 0
      %6844 = vmatpush2.bf16.msra.mxu0 0
      %6845 = vmatprep.subr.bf16.mxu0 0
      %6846 = vmatpush2.bf16.msra.mxu0 0
      %6847 = vmatprep.subr.bf16.mxu0 0
      %6848 = vmatpush2.bf16.msra.mxu0 0
      %6849 = vmatprep.subr.bf16.mxu0 0
      %6850 = vmatpush2.bf16.msra.mxu0 0
      %6851 = vmatprep.subr.bf16.mxu0 0
      %6852 = vmatpush2.bf16.msra.mxu0 0
      %6853 = vmatprep.subr.bf16.mxu0 0
      %6854 = vmatpush2.bf16.msra.mxu0 0
      %6855 = vmatprep.subr.bf16.mxu0 0
      %6856 = vmatpush2.bf16.msra.mxu0 0
      %6857 = vmatprep.subr.bf16.mxu0 0
      %6858 = vmatpush2.bf16.msra.mxu0 0
      %6859 = vmatprep.mubr.bf16.mxu0 0
      %6860 = vmatmul.mubr.bf16.gmra.mxu0 %v6747
      %v6861 = vpop.f32.mrf.mxu0
      %v6862 = vpop.f32.mrf.mxu0
      %v6863 = vpop.f32.mrf.mxu0
      %v6864 = vpop.f32.mrf.mxu0
      %6865 = vmatprep.mubr.bf16.mxu0 0
      %6866 = vmatmul.mubr.bf16.gmra.mxu0 %v6750
      %v6867 = vpop.f32.mrf.mxu0
      %v6868 = vpop.f32.mrf.mxu0
      %v6869 = vpop.f32.mrf.mxu0
      %v6870 = vadd.f32 0.0, %v6869
      %v6871 = vpop.f32.mrf.mxu0
      %6872 = vmatprep.mubr.bf16.mxu0 0
      %6873 = vmatmul.mubr.bf16.gmra.mxu0 %v6753
      %v6874 = vpop.f32.mrf.mxu0
      %v6875 = vadd.f32 0.0, %v6874
      %v6876 = vpop.f32.mrf.mxu0
      %v6877 = vpop.f32.mrf.mxu0
      %v6878 = vadd.f32 0.0, %v6877
      %v6879 = vpop.f32.mrf.mxu0
      %6880 = vmatprep.mubr.bf16.mxu0 0
      %6881 = vmatmul.mubr.bf16.gmra.mxu0 %v6756
      %v6882 = vpop.f32.mrf.mxu0
      %v6883 = vadd.f32 0.0, %v6882
      %v6884 = vpop.f32.mrf.mxu0
      %v6885 = vpop.f32.mrf.mxu0
      %v6886 = vadd.f32 0.0, %v6885
      %v6887 = vpop.f32.mrf.mxu0
      %6888 = vmatprep.mubr.bf16.mxu0 0
      %6889 = vmatmul.mubr.bf16.gmra.mxu0 %v6759
      %v6890 = vpop.f32.mrf.mxu0
      %v6891 = vadd.f32 0.0, %v6890
      %v6892 = vpop.f32.mrf.mxu0
      %v6893 = vpop.f32.mrf.mxu0
      %v6894 = vadd.f32 0.0, %v6893
      %v6895 = vpop.f32.mrf.mxu0
      %6896 = vmatprep.mubr.bf16.mxu0 0
      %6897 = vmatmul.mubr.bf16.gmra.mxu0 %v6762
      %v6898 = vpop.f32.mrf.mxu0
      %v6899 = vadd.f32 0.0, %v6898
      %v6900 = vpop.f32.mrf.mxu0
      %v6901 = vpop.f32.mrf.mxu0
      %v6902 = vadd.f32 0.0, %v6901
      %v6903 = vpop.f32.mrf.mxu0
      %6904 = vmatprep.mubr.bf16.mxu0 0
      %6905 = vmatmul.mubr.bf16.gmra.mxu0 %v6765
      %v6906 = vpop.f32.mrf.mxu0
      %v6907 = vadd.f32 0.0, %v6906
      %v6908 = vpop.f32.mrf.mxu0
      %v6909 = vpop.f32.mrf.mxu0
      %v6910 = vadd.f32 0.0, %v6909
      %v6911 = vpop.f32.mrf.mxu0
      %6912 = vmatprep.mubr.bf16.mxu0 0
      %6913 = vmatmul.mubr.bf16.gmra.mxu0 %v6768
      %v6914 = vpop.f32.mrf.mxu0
      %v6915 = vadd.f32 0.0, %v6914
      %v6916 = vpop.f32.mrf.mxu0
      %v6917 = vpop.f32.mrf.mxu0
      %v6918 = vadd.f32 0.0, %v6917
      %v6919 = vpop.f32.mrf.mxu0
      %6920 = vmatprep.mubr.bf16.mxu0 0
      %6921 = vmatmul.mubr.bf16.gmra.mxu0 %v6771
      %v6922 = vpop.f32.mrf.mxu0
      %v6923 = vadd.f32 0.0, %v6922
      %v6924 = vpop.f32.mrf.mxu0
      %v6925 = vpop.f32.mrf.mxu0
      %v6926 = vadd.f32 0.0, %v6925
      %v6927 = vpop.f32.mrf.mxu0
      %6928 = vmatprep.mubr.bf16.mxu0 0
      %6929 = vmatmul.mubr.bf16.gmra.mxu0 %v6774
      %v6930 = vpop.f32.mrf.mxu0
      %v6931 = vadd.f32 0.0, %v6930
      %v6932 = vpop.f32.mrf.mxu0
      %v6933 = vpop.f32.mrf.mxu0
      %v6934 = vadd.f32 0.0, %v6933
      %v6935 = vpop.f32.mrf.mxu0
      %6936 = vmatprep.mubr.bf16.mxu0 0
      %6937 = vmatmul.mubr.bf16.gmra.mxu0 %v6777
      %v6938 = vpop.f32.mrf.mxu0
      %v6939 = vadd.f32 0.0, %v6938
      %v6940 = vpop.f32.mrf.mxu0
      %v6941 = vpop.f32.mrf.mxu0
      %v6942 = vadd.f32 0.0, %v6941
      %v6943 = vpop.f32.mrf.mxu0
      %6944 = vmatprep.mubr.bf16.mxu0 0
      %6945 = vmatmul.mubr.bf16.gmra.mxu0 %v6780
      %v6946 = vpop.f32.mrf.mxu0
      %v6947 = vadd.f32 0.0, %v6946
      %v6948 = vpop.f32.mrf.mxu0
      %v6949 = vpop.f32.mrf.mxu0
      %v6950 = vadd.f32 0.0, %v6949
      %v6951 = vpop.f32.mrf.mxu0
      %6952 = vmatprep.mubr.bf16.mxu0 0
      %6953 = vmatmul.mubr.bf16.gmra.mxu0 %v6783
      %v6954 = vpop.f32.mrf.mxu0
      %v6955 = vadd.f32 0.0, %v6954
      %v6956 = vpop.f32.mrf.mxu0
      %v6957 = vpop.f32.mrf.mxu0
      %v6958 = vadd.f32 0.0, %v6957
      %v6959 = vpop.f32.mrf.mxu0
      %6960 = vmatprep.mubr.bf16.mxu0 0
      %6961 = vmatmul.mubr.bf16.gmra.mxu0 %v6786
      %v6962 = vpop.f32.mrf.mxu0
      %v6963 = vadd.f32 0.0, %v6962
      %v6964 = vpop.f32.mrf.mxu0
      %v6965 = vpop.f32.mrf.mxu0
      %v6966 = vadd.f32 0.0, %v6965
      %v6967 = vpop.f32.mrf.mxu0
      %6968 = vmatprep.mubr.bf16.mxu0 0
      %6969 = vmatmul.mubr.bf16.gmra.mxu0 %v6789
      %v6970 = vpop.f32.mrf.mxu0
      %v6971 = vadd.f32 0.0, %v6970
      %v6972 = vpop.f32.mrf.mxu0
      %v6973 = vpop.f32.mrf.mxu0
      %v6974 = vadd.f32 0.0, %v6973
      %v6975 = vpop.f32.mrf.mxu0
      %6976 = vmatprep.mubr.bf16.mxu0 0
      %6977 = vmatmul.mubr.bf16.gmra.mxu0 %v6792
      %v6978 = vpop.f32.mrf.mxu0
      %v6979 = vadd.f32 0.0, %v6978
      %v6980 = vpop.f32.mrf.mxu0
      %v6981 = vpop.f32.mrf.mxu0
      %v6982 = vadd.f32 0.0, %v6981
      %v6983 = vpop.f32.mrf.mxu0
      %6984 = vmatprep.mubr.bf16.mxu0 0
      %6985 = vmatmul.mubr.bf16.gmra.mxu0 %v6795
      %v6986 = vpop.f32.mrf.mxu0
      %v6987 = vadd.f32 0.0, %v6986
      %v6988 = vpop.f32.mrf.mxu0
      %v6989 = vpop.f32.mrf.mxu0
      %v6990 = vadd.f32 0.0, %v6989
      %v6991 = vpop.f32.mrf.mxu0
      %6992 = vmatprep.mubr.bf16.mxu0 0
      %6993 = vmatmul.mubr.bf16.gmra.mxu0 %v6798
      %v6994 = vpop.f32.mrf.mxu0
      %v6995 = vadd.f32 0.0, %v6994
      %v6996 = vpop.f32.mrf.mxu0
      %v6997 = vpop.f32.mrf.mxu0
      %v6998 = vadd.f32 0.0, %v6997
      %v6999 = vpop.f32.mrf.mxu0
      %7000 = vmatprep.mubr.bf16.mxu0 0
      %7001 = vmatmul.mubr.bf16.gmra.mxu0 %v6801
      %v7002 = vpop.f32.mrf.mxu0
      %v7003 = vadd.f32 0.0, %v7002
      %v7004 = vpop.f32.mrf.mxu0
      %v7005 = vpop.f32.mrf.mxu0
      %v7006 = vadd.f32 0.0, %v7005
      %v7007 = vpop.f32.mrf.mxu0
      %7008 = vmatprep.mubr.bf16.mxu0 0
      %7009 = vmatmul.mubr.bf16.gmra.mxu0 %v6804
      %v7010 = vpop.f32.mrf.mxu0
      %v7011 = vadd.f32 0.0, %v7010
      %v7012 = vpop.f32.mrf.mxu0
      %v7013 = vpop.f32.mrf.mxu0
      %v7014 = vadd.f32 0.0, %v7013
      %v7015 = vpop.f32.mrf.mxu0
      %7016 = vmatprep.mubr.bf16.mxu0 0
      %7017 = vmatmul.mubr.bf16.gmra.mxu0 %v6807
      %v7018 = vpop.f32.mrf.mxu0
      %v7019 = vadd.f32 0.0, %v7018
      %v7020 = vpop.f32.mrf.mxu0
      %v7021 = vpop.f32.mrf.mxu0
      %v7022 = vadd.f32 0.0, %v7021
      %v7023 = vpop.f32.mrf.mxu0
      %7024 = vmatprep.mubr.bf16.mxu0 0
      %7025 = vmatmul.mubr.bf16.gmra.mxu0 %v6810
      %v7026 = vpop.f32.mrf.mxu0
      %v7027 = vadd.f32 0.0, %v7026
      %v7028 = vpop.f32.mrf.mxu0
      %v7029 = vpop.f32.mrf.mxu0
      %v7030 = vadd.f32 0.0, %v7029
      %v7031 = vpop.f32.mrf.mxu0
      %7032 = vmatprep.mubr.bf16.mxu0 0
      %7033 = vmatmul.mubr.bf16.gmra.mxu0 %v6813
      %v7034 = vpop.f32.mrf.mxu0
      %v7035 = vadd.f32 0.0, %v7034
      %v7036 = vpop.f32.mrf.mxu0
      %v7037 = vpop.f32.mrf.mxu0
      %v7038 = vadd.f32 0.0, %v7037
      %v7039 = vpop.f32.mrf.mxu0
      %7040 = vmatprep.mubr.bf16.mxu0 0
      %7041 = vmatmul.mubr.bf16.gmra.mxu0 %v6816
      %v7042 = vpop.f32.mrf.mxu0
      %v7043 = vadd.f32 0.0, %v7042
      %v7044 = vpop.f32.mrf.mxu0
      %v7045 = vpop.f32.mrf.mxu0
      %v7046 = vadd.f32 0.0, %v7045
      %v7047 = vpop.f32.mrf.mxu0
      %7048 = vmatprep.mubr.bf16.mxu0 0
      %7049 = vmatmul.mubr.bf16.gmra.mxu0 %v6819
      %v7050 = vpop.f32.mrf.mxu0
      %v7051 = vadd.f32 0.0, %v7050
      %v7052 = vpop.f32.mrf.mxu0
      %v7053 = vpop.f32.mrf.mxu0
      %v7054 = vadd.f32 0.0, %v7053
      %v7055 = vpop.f32.mrf.mxu0
      %7056 = vmatprep.mubr.bf16.mxu0 0
      %7057 = vmatmul.mubr.bf16.gmra.mxu0 %v6822
      %v7058 = vpop.f32.mrf.mxu0
      %v7059 = vadd.f32 0.0, %v7058
      %v7060 = vpop.f32.mrf.mxu0
      %v7061 = vpop.f32.mrf.mxu0
      %v7062 = vpop.f32.mrf.mxu0
      %7063 = vmatprep.mubr.bf16.mxu0 0
      %7064 = vmatmul.mubr.bf16.gmra.mxu0 %v6825
      %v7065 = vpop.f32.mrf.mxu0
      %v7066 = vpop.f32.mrf.mxu0
      %v7067 = vpop.f32.mrf.mxu0
      %v7068 = vpop.f32.mrf.mxu0
      %7069 = vdwg.mxu0
      %v7070 = vadd.f32 %v6662, %v6870
      %v7071 = vadd.f32 %v6663, %v6875
      %v7072 = vadd.f32 %v6664, %v6878
      %v7073 = vadd.f32 %v6665, %v6883
      %v7074 = vadd.f32 %v6666, %v6886
      %v7075 = vadd.f32 %v6667, %v6891
      %v7076 = vadd.f32 %v6668, %v6894
      %v7077 = vadd.f32 %v6669, %v6899
      %v7078 = vadd.f32 %v6670, %v6902
      %v7079 = vadd.f32 %v6671, %v6907
      %v7080 = vadd.f32 %v6672, %v6910
      %v7081 = vadd.f32 %v6673, %v6915
      %v7082 = vadd.f32 %v6674, %v6918
      %v7083 = vadd.f32 %v6675, %v6923
      %v7084 = vadd.f32 %v6676, %v6926
      %v7085 = vadd.f32 %v6677, %v6931
      %v7086 = vadd.f32 %v6678, %v6934
      %v7087 = vadd.f32 %v6679, %v6939
      %v7088 = vadd.f32 %v6680, %v6942
      %v7089 = vadd.f32 %v6681, %v6947
      %v7090 = vadd.f32 %v6682, %v6950
      %v7091 = vadd.f32 %v6683, %v6955
      %v7092 = vadd.f32 %v6684, %v6958
      %v7093 = vadd.f32 %v6685, %v6963
      %v7094 = vadd.f32 %v6686, %v6966
      %v7095 = vadd.f32 %v6687, %v6971
      %v7096 = vadd.f32 %v6688, %v6974
      %v7097 = vadd.f32 %v6689, %v6979
      %v7098 = vadd.f32 %v6690, %v6982
      %v7099 = vadd.f32 %v6691, %v6987
      %v7100 = vadd.f32 %v6692, %v6990
      %v7101 = vadd.f32 %v6693, %v6995
      %v7102 = vadd.f32 %v6694, %v6998
      %v7103 = vadd.f32 %v6695, %v7003
      %v7104 = vadd.f32 %v6696, %v7006
      %v7105 = vadd.f32 %v6697, %v7011
      %v7106 = vadd.f32 %v6698, %v7014
      %v7107 = vadd.f32 %v6699, %v7019
      %v7108 = vadd.f32 %v6700, %v7022
      %v7109 = vadd.f32 %v6701, %v7027
      %v7110 = vadd.f32 %v6702, %v7030
      %v7111 = vadd.f32 %v6703, %v7035
      %v7112 = vadd.f32 %v6704, %v7038
      %v7113 = vadd.f32 %v6705, %v7043
      %v7114 = vadd.f32 %v6706, %v7046
      %v7115 = vadd.f32 %v6707, %v7051
      %v7116 = vadd.f32 %v6708, %v7054
      %v7117 = vadd.f32 %v6709, %v7059
      %v7118 = vld [vmem:[#allocation2 + $0x1c] sm:$0xf]
      %v7119 = vld [vmem:[#allocation2 + $0x20] sm:$0xf]
      %v7120 = vld [vmem:[#allocation2 + $0x24] sm:$0xf]
      %v7121 = vld [vmem:[#allocation2 + $0x28] sm:$0xf]
      %v7122 = vld [vmem:[#allocation2 + $0x2c] sm:$0xf]
      %v7123 = vld [vmem:[#allocation2 + $0x30] sm:$0xf]
      %v7124 = vld [vmem:[#allocation2 + $0x34] sm:$0xf]
      %v7125 = vld [vmem:[#allocation2 + $0x38] sm:$0xf]
      %v7126 = vld [vmem:[#allocation2 + $0x3c] sm:$0xf]
      %v7127 = vld [vmem:[#allocation2 + $0x40] sm:$0xf]
      %v7128 = vld [vmem:[#allocation2 + $0x44] sm:$0xf]
      %v7129 = vld [vmem:[#allocation2 + $0x48] sm:$0xf]
      %v7130 = vld [vmem:[#allocation2 + $0x4c] sm:$0xf]
      %v7131 = vld [vmem:[#allocation2 + $0x50] sm:$0xf]
      %v7132 = vld [vmem:[#allocation2 + $0x54] sm:$0xf]
      %v7133 = vld [vmem:[#allocation2 + $0x58] sm:$0xf]
      %v7134 = vld [vmem:[#allocation2 + $0x5c] sm:$0xf]
      %v7135 = vld [vmem:[#allocation2 + $0x60] sm:$0xf]
      %v7136 = vld [vmem:[#allocation2 + $0x64] sm:$0xf]
      %v7137 = vld [vmem:[#allocation2 + $0x68] sm:$0xf]
      %v7138 = vld [vmem:[#allocation2 + $0x6c] sm:$0xf]
      %v7139 = vld [vmem:[#allocation2 + $0x70] sm:$0xf]
      %v7140 = vld [vmem:[#allocation2 + $0x74] sm:$0xf]
      %v7141 = vld [vmem:[#allocation2 + $0x78] sm:$0xf]
      %v7142 = vld [vmem:[#allocation2 + $0x7c] sm:$0xf]
      %v7143 = vld [vmem:[#allocation2 + $0x80] sm:$0xf]
      %v7144 = vld [vmem:[#allocation2 + $0x84] sm:$0xf]
      %v7145 = vld [vmem:[#allocation2 + $0x88] sm:$0xf]
      %v7146 = vld [vmem:[#allocation2 + $0x8c] sm:$0xf]
      %v7147 = vld [vmem:[#allocation2 + $0x90] sm:$0xf]
      %v7148 = vld [vmem:[#allocation2 + $0x94] sm:$0xf]
      %v7149 = vld [vmem:[#allocation2 + $0x98] sm:$0xf]
      %v7150 = vld [vmem:[#allocation2 + $0x9c] sm:$0xf]
      %v7151 = vld [vmem:[#allocation2 + $0xa0] sm:$0xf]
      %v7152 = vld [vmem:[#allocation2 + $0xa4] sm:$0xf]
      %v7153 = vld [vmem:[#allocation2 + $0xa8] sm:$0xf]
      %v7154 = vld [vmem:[#allocation2 + $0xac] sm:$0xf]
      %v7155 = vld [vmem:[#allocation2 + $0xb0] sm:$0xf]
      %v7156 = vld [vmem:[#allocation2 + $0xb4] sm:$0xf]
      %v7157 = vld [vmem:[#allocation2 + $0xb8] sm:$0xf]
      %v7158 = vld [vmem:[#allocation2 + $0xbc] sm:$0xf]
      %v7159 = vld [vmem:[#allocation2 + $0xc0] sm:$0xf]
      %v7160 = vld [vmem:[#allocation2 + $0xc4] sm:$0xf]
      %v7161 = vld [vmem:[#allocation2 + $0xc8] sm:$0xf]
      %v7162 = vld [vmem:[#allocation2 + $0xcc] sm:$0xf]
      %v7163 = vld [vmem:[#allocation2 + $0xd0] sm:$0xf]
      %v7164 = vld [vmem:[#allocation2 + $0xd4] sm:$0xf]
      %v7165 = vld [vmem:[#allocation2 + $0xd8] sm:$0xf]
      %v7166 = vld [vmem:[#allocation2 + $0xdc] sm:$0xf]
      %v7167 = vld [vmem:[#allocation2 + $0xe0] sm:$0xf]
      %v7168 = vld [vmem:[#allocation2 + $0xe4] sm:$0xf]
      %v7169 = vld [vmem:[#allocation2 + $0xe8] sm:$0xf]
      %v7170 = vld [vmem:[#allocation2 + $0xec] sm:$0xf]
      %v7171 = vld [vmem:[#allocation2 + $0xf0] sm:$0xf]
      %v7172 = vld [vmem:[#allocation2 + $0xf4] sm:$0x1]
      %s7173 = scalar_lea.vmem %s4, 64
      %v7174 = vld [vmem:[%s7173] sm:$0xf]
      %v7175 = vld [vmem:[%s7173 + $0x4] sm:$0xf]
      %v7231 = vunpack.c.l.b16 %v7118
      %v7232 = vunpack.c.l.b16 %v7119
      %v7233 = vunpack.c.l.b16 %v7120
      %v7234 = vunpack.c.l.b16 %v7121
      %v7235 = vunpack.c.l.b16 %v7122
      %v7236 = vunpack.c.l.b16 %v7123
      %v7237 = vunpack.c.l.b16 %v7124
      %v7238 = vunpack.c.l.b16 %v7125
      %v7239 = vunpack.c.l.b16 %v7126
      %v7240 = vunpack.c.l.b16 %v7127
      %v7241 = vunpack.c.l.b16 %v7128
      %v7242 = vunpack.c.l.b16 %v7129
      %v7243 = vunpack.c.l.b16 %v7130
      %v7244 = vunpack.c.l.b16 %v7131
      %v7245 = vunpack.c.l.b16 %v7132
      %v7246 = vunpack.c.l.b16 %v7133
      %v7247 = vunpack.c.l.b16 %v7134
      %v7248 = vunpack.c.l.b16 %v7135
      %v7249 = vunpack.c.l.b16 %v7136
      %v7250 = vunpack.c.l.b16 %v7137
      %v7251 = vunpack.c.l.b16 %v7138
      %v7252 = vunpack.c.l.b16 %v7139
      %v7253 = vunpack.c.l.b16 %v7140
      %v7254 = vunpack.c.l.b16 %v7141
      %v7255 = vunpack.c.l.b16 %v7142
      %v7256 = vunpack.c.l.b16 %v7143
      %v7257 = vunpack.c.l.b16 %v7144
      %v7258 = vunpack.c.l.b16 %v7145
      %v7259 = vunpack.c.l.b16 %v7146
      %v7260 = vunpack.c.l.b16 %v7147
      %v7261 = vunpack.c.l.b16 %v7148
      %v7262 = vunpack.c.l.b16 %v7149
      %v7263 = vunpack.c.l.b16 %v7150
      %v7264 = vunpack.c.l.b16 %v7151
      %v7265 = vunpack.c.l.b16 %v7152
      %v7266 = vunpack.c.l.b16 %v7153
      %v7267 = vunpack.c.l.b16 %v7154
      %v7268 = vunpack.c.l.b16 %v7155
      %v7269 = vunpack.c.l.b16 %v7156
      %v7270 = vunpack.c.l.b16 %v7157
      %v7271 = vunpack.c.l.b16 %v7158
      %v7272 = vunpack.c.l.b16 %v7159
      %v7273 = vunpack.c.l.b16 %v7160
      %v7274 = vunpack.c.l.b16 %v7161
      %v7275 = vunpack.c.l.b16 %v7162
      %v7276 = vunpack.c.l.b16 %v7163
      %v7277 = vunpack.c.l.b16 %v7164
      %v7278 = vunpack.c.l.b16 %v7165
      %v7279 = vunpack.c.l.b16 %v7166
      %v7280 = vunpack.c.l.b16 %v7167
      %v7281 = vunpack.c.l.b16 %v7168
      %v7282 = vunpack.c.l.b16 %v7169
      %v7283 = vunpack.c.l.b16 %v7170
      %v7284 = vunpack.c.l.b16 %v7171
      %v7285 = vunpack.c.l.b16 %v7172
      %v7286 = vpack.c.b16 %v7232, %v7231
      %v7287 = vpack.c.b16 %v7234, %v7233
      %v7288 = vpack.c.b16 %v7236, %v7235
      %v7289 = vpack.c.b16 %v7238, %v7237
      %v7290 = vpack.c.b16 %v7240, %v7239
      %v7291 = vpack.c.b16 %v7242, %v7241
      %v7292 = vpack.c.b16 %v7244, %v7243
      %v7293 = vpack.c.b16 %v7246, %v7245
      %v7294 = vpack.c.b16 %v7248, %v7247
      %v7295 = vpack.c.b16 %v7250, %v7249
      %v7296 = vpack.c.b16 %v7252, %v7251
      %v7297 = vpack.c.b16 %v7254, %v7253
      %v7298 = vpack.c.b16 %v7256, %v7255
      %v7299 = vpack.c.b16 %v7258, %v7257
      %v7300 = vpack.c.b16 %v7260, %v7259
      %v7301 = vpack.c.b16 %v7262, %v7261
      %v7302 = vpack.c.b16 %v7264, %v7263
      %v7303 = vpack.c.b16 %v7266, %v7265
      %v7304 = vpack.c.b16 %v7268, %v7267
      %v7305 = vpack.c.b16 %v7270, %v7269
      %v7306 = vpack.c.b16 %v7272, %v7271
      %v7307 = vpack.c.b16 %v7274, %v7273
      %v7308 = vpack.c.b16 %v7276, %v7275
      %v7309 = vpack.c.b16 %v7278, %v7277
      %v7310 = vpack.c.b16 %v7280, %v7279
      %v7311 = vpack.c.b16 %v7282, %v7281
      %v7312 = vpack.c.b16 %v7284, %v7283
      %v7313 = vpack.c.b16 %v7285, %v7285
      %v7315 = vshrl.u32 %v7286, 16
      %v7317 = vshll.u32 %v7286, 16
      %v7319 = vrot.slane %v7317, 1
      %v7320 = vor.u32 %v7315, %v7319
      %v7322 = vshll.u32 %v7287, 16
      %v7324 = vrot.slane %v7322, 1
      %v7325 = vsel %vm3259, %v7320, %v7324
      %v7326 = vshrl.u32 %v7287, 16
      %v7328 = vor.u32 %v7326, %v7324
      %v7330 = vshll.u32 %v7288, 16
      %v7332 = vrot.slane %v7330, 1
      %v7333 = vsel %vm3259, %v7328, %v7332
      %v7334 = vshrl.u32 %v7288, 16
      %v7336 = vor.u32 %v7334, %v7332
      %v7338 = vshll.u32 %v7289, 16
      %v7340 = vrot.slane %v7338, 1
      %v7341 = vsel %vm3259, %v7336, %v7340
      %v7342 = vshrl.u32 %v7289, 16
      %v7344 = vor.u32 %v7342, %v7340
      %v7346 = vshll.u32 %v7290, 16
      %v7348 = vrot.slane %v7346, 1
      %v7349 = vsel %vm3259, %v7344, %v7348
      %v7350 = vshrl.u32 %v7290, 16
      %v7352 = vor.u32 %v7350, %v7348
      %v7354 = vshll.u32 %v7291, 16
      %v7356 = vrot.slane %v7354, 1
      %v7357 = vsel %vm3259, %v7352, %v7356
      %v7358 = vshrl.u32 %v7291, 16
      %v7360 = vor.u32 %v7358, %v7356
      %v7362 = vshll.u32 %v7292, 16
      %v7364 = vrot.slane %v7362, 1
      %v7365 = vsel %vm3259, %v7360, %v7364
      %v7366 = vshrl.u32 %v7292, 16
      %v7368 = vor.u32 %v7366, %v7364
      %v7370 = vshll.u32 %v7293, 16
      %v7372 = vrot.slane %v7370, 1
      %v7373 = vsel %vm3259, %v7368, %v7372
      %v7374 = vshrl.u32 %v7293, 16
      %v7376 = vor.u32 %v7374, %v7372
      %v7378 = vshll.u32 %v7294, 16
      %v7380 = vrot.slane %v7378, 1
      %v7381 = vsel %vm3259, %v7376, %v7380
      %v7382 = vshrl.u32 %v7294, 16
      %v7384 = vor.u32 %v7382, %v7380
      %v7386 = vshll.u32 %v7295, 16
      %v7388 = vrot.slane %v7386, 1
      %v7389 = vsel %vm3259, %v7384, %v7388
      %v7390 = vshrl.u32 %v7295, 16
      %v7392 = vor.u32 %v7390, %v7388
      %v7394 = vshll.u32 %v7296, 16
      %v7396 = vrot.slane %v7394, 1
      %v7397 = vsel %vm3259, %v7392, %v7396
      %v7398 = vshrl.u32 %v7296, 16
      %v7400 = vor.u32 %v7398, %v7396
      %v7402 = vshll.u32 %v7297, 16
      %v7404 = vrot.slane %v7402, 1
      %v7405 = vsel %vm3259, %v7400, %v7404
      %v7406 = vshrl.u32 %v7297, 16
      %v7408 = vor.u32 %v7406, %v7404
      %v7410 = vshll.u32 %v7298, 16
      %v7412 = vrot.slane %v7410, 1
      %v7413 = vsel %vm3259, %v7408, %v7412
      %v7414 = vshrl.u32 %v7298, 16
      %v7416 = vor.u32 %v7414, %v7412
      %v7418 = vshll.u32 %v7299, 16
      %v7420 = vrot.slane %v7418, 1
      %v7421 = vsel %vm3259, %v7416, %v7420
      %v7422 = vshrl.u32 %v7299, 16
      %v7424 = vor.u32 %v7422, %v7420
      %v7426 = vshll.u32 %v7300, 16
      %v7428 = vrot.slane %v7426, 1
      %v7429 = vsel %vm3259, %v7424, %v7428
      %v7430 = vshrl.u32 %v7300, 16
      %v7432 = vor.u32 %v7430, %v7428
      %v7434 = vshll.u32 %v7301, 16
      %v7436 = vrot.slane %v7434, 1
      %v7437 = vsel %vm3259, %v7432, %v7436
      %v7438 = vshrl.u32 %v7301, 16
      %v7440 = vor.u32 %v7438, %v7436
      %v7442 = vshll.u32 %v7302, 16
      %v7444 = vrot.slane %v7442, 1
      %v7445 = vsel %vm3259, %v7440, %v7444
      %v7446 = vshrl.u32 %v7302, 16
      %v7448 = vor.u32 %v7446, %v7444
      %v7450 = vshll.u32 %v7303, 16
      %v7452 = vrot.slane %v7450, 1
      %v7453 = vsel %vm3259, %v7448, %v7452
      %v7454 = vshrl.u32 %v7303, 16
      %v7456 = vor.u32 %v7454, %v7452
      %v7458 = vshll.u32 %v7304, 16
      %v7460 = vrot.slane %v7458, 1
      %v7461 = vsel %vm3259, %v7456, %v7460
      %v7462 = vshrl.u32 %v7304, 16
      %v7464 = vor.u32 %v7462, %v7460
      %v7466 = vshll.u32 %v7305, 16
      %v7468 = vrot.slane %v7466, 1
      %v7469 = vsel %vm3259, %v7464, %v7468
      %v7470 = vshrl.u32 %v7305, 16
      %v7472 = vor.u32 %v7470, %v7468
      %v7474 = vshll.u32 %v7306, 16
      %v7476 = vrot.slane %v7474, 1
      %v7477 = vsel %vm3259, %v7472, %v7476
      %v7478 = vshrl.u32 %v7306, 16
      %v7480 = vor.u32 %v7478, %v7476
      %v7482 = vshll.u32 %v7307, 16
      %v7484 = vrot.slane %v7482, 1
      %v7485 = vsel %vm3259, %v7480, %v7484
      %v7486 = vshrl.u32 %v7307, 16
      %v7488 = vor.u32 %v7486, %v7484
      %v7490 = vshll.u32 %v7308, 16
      %v7492 = vrot.slane %v7490, 1
      %v7493 = vsel %vm3259, %v7488, %v7492
      %v7494 = vshrl.u32 %v7308, 16
      %v7496 = vor.u32 %v7494, %v7492
      %v7498 = vshll.u32 %v7309, 16
      %v7500 = vrot.slane %v7498, 1
      %v7501 = vsel %vm3259, %v7496, %v7500
      %v7502 = vshrl.u32 %v7309, 16
      %v7504 = vor.u32 %v7502, %v7500
      %v7506 = vshll.u32 %v7310, 16
      %v7508 = vrot.slane %v7506, 1
      %v7509 = vsel %vm3259, %v7504, %v7508
      %v7510 = vshrl.u32 %v7310, 16
      %v7512 = vor.u32 %v7510, %v7508
      %v7514 = vshll.u32 %v7311, 16
      %v7516 = vrot.slane %v7514, 1
      %v7517 = vsel %vm3259, %v7512, %v7516
      %v7518 = vshrl.u32 %v7311, 16
      %v7520 = vor.u32 %v7518, %v7516
      %v7522 = vshll.u32 %v7312, 16
      %v7524 = vrot.slane %v7522, 1
      %v7525 = vsel %vm3259, %v7520, %v7524
      %v7526 = vshrl.u32 %v7312, 16
      %v7528 = vor.u32 %v7526, %v7524
      %v7530 = vshll.u32 %v7313, 16
      %v7532 = vrot.slane %v7530, 1
      %v7533 = vsel %vm3259, %v7528, %v7532
      %v7536 = vunpack.c.l.b16 %v7174
      %v7537 = vunpack.c.l.b16 %v7175
      %v7538 = vpack.c.b16 %v7537, %v7536
      %v7541 = vsel %vm1598, %v7325, 0
      %v7544 = vsel %vm1598, %v7333, 0
      %v7547 = vsel %vm1598, %v7341, 0
      %v7550 = vsel %vm1598, %v7349, 0
      %v7553 = vsel %vm1598, %v7357, 0
      %v7556 = vsel %vm1598, %v7365, 0
      %v7559 = vsel %vm1598, %v7373, 0
      %v7562 = vsel %vm1598, %v7381, 0
      %v7565 = vsel %vm1598, %v7389, 0
      %v7568 = vsel %vm1598, %v7397, 0
      %v7571 = vsel %vm1598, %v7405, 0
      %v7574 = vsel %vm1598, %v7413, 0
      %v7577 = vsel %vm1598, %v7421, 0
      %v7580 = vsel %vm1598, %v7429, 0
      %v7583 = vsel %vm1598, %v7437, 0
      %v7586 = vsel %vm1598, %v7445, 0
      %v7589 = vsel %vm1598, %v7453, 0
      %v7592 = vsel %vm1598, %v7461, 0
      %v7595 = vsel %vm1598, %v7469, 0
      %v7598 = vsel %vm1598, %v7477, 0
      %v7601 = vsel %vm1598, %v7485, 0
      %v7604 = vsel %vm1598, %v7493, 0
      %v7607 = vsel %vm1598, %v7501, 0
      %v7610 = vsel %vm1598, %v7509, 0
      %v7613 = vsel %vm1598, %v7517, 0
      %v7616 = vsel %vm1598, %v7525, 0
      %v7619 = vsel %vm1598, %v7533, 0
      %7621 = vmatprep.subr.bf16.mxu0 0
      %7622 = vmatpush1.bf16.msra.mxu0 0
      %7623 = vmatprep.subr.bf16.mxu0 0
      %7624 = vmatpush1.bf16.msra.mxu0 0
      %7625 = vmatprep.subr.bf16.mxu0 0
      %7626 = vmatpush1.bf16.msra.mxu0 0
      %7627 = vmatprep.subr.bf16.mxu0 0
      %7628 = vmatpush1.bf16.msra.mxu0 0
      %7629 = vmatprep.subr.bf16.mxu0 0
      %7630 = vmatpush1.bf16.msra.mxu0 0
      %7631 = vmatprep.subr.bf16.mxu0 0
      %7632 = vmatpush1.bf16.msra.mxu0 0
      %7633 = vmatprep.subr.bf16.mxu0 0
      %7634 = vmatpush1.bf16.msra.mxu0 0
      %7635 = vmatprep.subr.bf16.mxu0 0
      %7636 = vmatpush1.bf16.msra.mxu0 %v7538
      %7637 = vmatprep.subr.bf16.mxu0 0
      %7638 = vmatpush2.bf16.msra.mxu0 0
      %7639 = vmatprep.subr.bf16.mxu0 0
      %7640 = vmatpush2.bf16.msra.mxu0 0
      %7641 = vmatprep.subr.bf16.mxu0 0
      %7642 = vmatpush2.bf16.msra.mxu0 0
      %7643 = vmatprep.subr.bf16.mxu0 0
      %7644 = vmatpush2.bf16.msra.mxu0 0
      %7645 = vmatprep.subr.bf16.mxu0 0
      %7646 = vmatpush2.bf16.msra.mxu0 0
      %7647 = vmatprep.subr.bf16.mxu0 0
      %7648 = vmatpush2.bf16.msra.mxu0 0
      %7649 = vmatprep.subr.bf16.mxu0 0
      %7650 = vmatpush2.bf16.msra.mxu0 0
      %7651 = vmatprep.subr.bf16.mxu0 0
      %7652 = vmatpush2.bf16.msra.mxu0 0
      %7653 = vmatprep.mubr.bf16.mxu0 0
      %7654 = vmatmul.mubr.bf16.gmra.mxu0 %v7541
      %v7655 = vpop.f32.mrf.mxu0
      %v7656 = vpop.f32.mrf.mxu0
      %v7657 = vpop.f32.mrf.mxu0
      %v7658 = vpop.f32.mrf.mxu0
      %7659 = vmatprep.mubr.bf16.mxu0 0
      %7660 = vmatmul.mubr.bf16.gmra.mxu0 %v7544
      %v7661 = vpop.f32.mrf.mxu0
      %v7662 = vpop.f32.mrf.mxu0
      %v7663 = vpop.f32.mrf.mxu0
      %v7664 = vadd.f32 0.0, %v7663
      %v7665 = vpop.f32.mrf.mxu0
      %7666 = vmatprep.mubr.bf16.mxu0 0
      %7667 = vmatmul.mubr.bf16.gmra.mxu0 %v7547
      %v7668 = vpop.f32.mrf.mxu0
      %v7669 = vadd.f32 0.0, %v7668
      %v7670 = vpop.f32.mrf.mxu0
      %v7671 = vpop.f32.mrf.mxu0
      %v7672 = vadd.f32 0.0, %v7671
      %v7673 = vpop.f32.mrf.mxu0
      %7674 = vmatprep.mubr.bf16.mxu0 0
      %7675 = vmatmul.mubr.bf16.gmra.mxu0 %v7550
      %v7676 = vpop.f32.mrf.mxu0
      %v7677 = vadd.f32 0.0, %v7676
      %v7678 = vpop.f32.mrf.mxu0
      %v7679 = vpop.f32.mrf.mxu0
      %v7680 = vadd.f32 0.0, %v7679
      %v7681 = vpop.f32.mrf.mxu0
      %7682 = vmatprep.mubr.bf16.mxu0 0
      %7683 = vmatmul.mubr.bf16.gmra.mxu0 %v7553
      %v7684 = vpop.f32.mrf.mxu0
      %v7685 = vadd.f32 0.0, %v7684
      %v7686 = vpop.f32.mrf.mxu0
      %v7687 = vpop.f32.mrf.mxu0
      %v7688 = vadd.f32 0.0, %v7687
      %v7689 = vpop.f32.mrf.mxu0
      %7690 = vmatprep.mubr.bf16.mxu0 0
      %7691 = vmatmul.mubr.bf16.gmra.mxu0 %v7556
      %v7692 = vpop.f32.mrf.mxu0
      %v7693 = vadd.f32 0.0, %v7692
      %v7694 = vpop.f32.mrf.mxu0
      %v7695 = vpop.f32.mrf.mxu0
      %v7696 = vadd.f32 0.0, %v7695
      %v7697 = vpop.f32.mrf.mxu0
      %7698 = vmatprep.mubr.bf16.mxu0 0
      %7699 = vmatmul.mubr.bf16.gmra.mxu0 %v7559
      %v7700 = vpop.f32.mrf.mxu0
      %v7701 = vadd.f32 0.0, %v7700
      %v7702 = vpop.f32.mrf.mxu0
      %v7703 = vpop.f32.mrf.mxu0
      %v7704 = vadd.f32 0.0, %v7703
      %v7705 = vpop.f32.mrf.mxu0
      %7706 = vmatprep.mubr.bf16.mxu0 0
      %7707 = vmatmul.mubr.bf16.gmra.mxu0 %v7562
      %v7708 = vpop.f32.mrf.mxu0
      %v7709 = vadd.f32 0.0, %v7708
      %v7710 = vpop.f32.mrf.mxu0
      %v7711 = vpop.f32.mrf.mxu0
      %v7712 = vadd.f32 0.0, %v7711
      %v7713 = vpop.f32.mrf.mxu0
      %7714 = vmatprep.mubr.bf16.mxu0 0
      %7715 = vmatmul.mubr.bf16.gmra.mxu0 %v7565
      %v7716 = vpop.f32.mrf.mxu0
      %v7717 = vadd.f32 0.0, %v7716
      %v7718 = vpop.f32.mrf.mxu0
      %v7719 = vpop.f32.mrf.mxu0
      %v7720 = vadd.f32 0.0, %v7719
      %v7721 = vpop.f32.mrf.mxu0
      %7722 = vmatprep.mubr.bf16.mxu0 0
      %7723 = vmatmul.mubr.bf16.gmra.mxu0 %v7568
      %v7724 = vpop.f32.mrf.mxu0
      %v7725 = vadd.f32 0.0, %v7724
      %v7726 = vpop.f32.mrf.mxu0
      %v7727 = vpop.f32.mrf.mxu0
      %v7728 = vadd.f32 0.0, %v7727
      %v7729 = vpop.f32.mrf.mxu0
      %7730 = vmatprep.mubr.bf16.mxu0 0
      %7731 = vmatmul.mubr.bf16.gmra.mxu0 %v7571
      %v7732 = vpop.f32.mrf.mxu0
      %v7733 = vadd.f32 0.0, %v7732
      %v7734 = vpop.f32.mrf.mxu0
      %v7735 = vpop.f32.mrf.mxu0
      %v7736 = vadd.f32 0.0, %v7735
      %v7737 = vpop.f32.mrf.mxu0
      %7738 = vmatprep.mubr.bf16.mxu0 0
      %7739 = vmatmul.mubr.bf16.gmra.mxu0 %v7574
      %v7740 = vpop.f32.mrf.mxu0
      %v7741 = vadd.f32 0.0, %v7740
      %v7742 = vpop.f32.mrf.mxu0
      %v7743 = vpop.f32.mrf.mxu0
      %v7744 = vadd.f32 0.0, %v7743
      %v7745 = vpop.f32.mrf.mxu0
      %7746 = vmatprep.mubr.bf16.mxu0 0
      %7747 = vmatmul.mubr.bf16.gmra.mxu0 %v7577
      %v7748 = vpop.f32.mrf.mxu0
      %v7749 = vadd.f32 0.0, %v7748
      %v7750 = vpop.f32.mrf.mxu0
      %v7751 = vpop.f32.mrf.mxu0
      %v7752 = vadd.f32 0.0, %v7751
      %v7753 = vpop.f32.mrf.mxu0
      %7754 = vmatprep.mubr.bf16.mxu0 0
      %7755 = vmatmul.mubr.bf16.gmra.mxu0 %v7580
      %v7756 = vpop.f32.mrf.mxu0
      %v7757 = vadd.f32 0.0, %v7756
      %v7758 = vpop.f32.mrf.mxu0
      %v7759 = vpop.f32.mrf.mxu0
      %v7760 = vadd.f32 0.0, %v7759
      %v7761 = vpop.f32.mrf.mxu0
      %7762 = vmatprep.mubr.bf16.mxu0 0
      %7763 = vmatmul.mubr.bf16.gmra.mxu0 %v7583
      %v7764 = vpop.f32.mrf.mxu0
      %v7765 = vadd.f32 0.0, %v7764
      %v7766 = vpop.f32.mrf.mxu0
      %v7767 = vpop.f32.mrf.mxu0
      %v7768 = vadd.f32 0.0, %v7767
      %v7769 = vpop.f32.mrf.mxu0
      %7770 = vmatprep.mubr.bf16.mxu0 0
      %7771 = vmatmul.mubr.bf16.gmra.mxu0 %v7586
      %v7772 = vpop.f32.mrf.mxu0
      %v7773 = vadd.f32 0.0, %v7772
      %v7774 = vpop.f32.mrf.mxu0
      %v7775 = vpop.f32.mrf.mxu0
      %v7776 = vadd.f32 0.0, %v7775
      %v7777 = vpop.f32.mrf.mxu0
      %7778 = vmatprep.mubr.bf16.mxu0 0
      %7779 = vmatmul.mubr.bf16.gmra.mxu0 %v7589
      %v7780 = vpop.f32.mrf.mxu0
      %v7781 = vadd.f32 0.0, %v7780
      %v7782 = vpop.f32.mrf.mxu0
      %v7783 = vpop.f32.mrf.mxu0
      %v7784 = vadd.f32 0.0, %v7783
      %v7785 = vpop.f32.mrf.mxu0
      %7786 = vmatprep.mubr.bf16.mxu0 0
      %7787 = vmatmul.mubr.bf16.gmra.mxu0 %v7592
      %v7788 = vpop.f32.mrf.mxu0
      %v7789 = vadd.f32 0.0, %v7788
      %v7790 = vpop.f32.mrf.mxu0
      %v7791 = vpop.f32.mrf.mxu0
      %v7792 = vadd.f32 0.0, %v7791
      %v7793 = vpop.f32.mrf.mxu0
      %7794 = vmatprep.mubr.bf16.mxu0 0
      %7795 = vmatmul.mubr.bf16.gmra.mxu0 %v7595
      %v7796 = vpop.f32.mrf.mxu0
      %v7797 = vadd.f32 0.0, %v7796
      %v7798 = vpop.f32.mrf.mxu0
      %v7799 = vpop.f32.mrf.mxu0
      %v7800 = vadd.f32 0.0, %v7799
      %v7801 = vpop.f32.mrf.mxu0
      %7802 = vmatprep.mubr.bf16.mxu0 0
      %7803 = vmatmul.mubr.bf16.gmra.mxu0 %v7598
      %v7804 = vpop.f32.mrf.mxu0
      %v7805 = vadd.f32 0.0, %v7804
      %v7806 = vpop.f32.mrf.mxu0
      %v7807 = vpop.f32.mrf.mxu0
      %v7808 = vadd.f32 0.0, %v7807
      %v7809 = vpop.f32.mrf.mxu0
      %7810 = vmatprep.mubr.bf16.mxu0 0
      %7811 = vmatmul.mubr.bf16.gmra.mxu0 %v7601
      %v7812 = vpop.f32.mrf.mxu0
      %v7813 = vadd.f32 0.0, %v7812
      %v7814 = vpop.f32.mrf.mxu0
      %v7815 = vpop.f32.mrf.mxu0
      %v7816 = vadd.f32 0.0, %v7815
      %v7817 = vpop.f32.mrf.mxu0
      %7818 = vmatprep.mubr.bf16.mxu0 0
      %7819 = vmatmul.mubr.bf16.gmra.mxu0 %v7604
      %v7820 = vpop.f32.mrf.mxu0
      %v7821 = vadd.f32 0.0, %v7820
      %v7822 = vpop.f32.mrf.mxu0
      %v7823 = vpop.f32.mrf.mxu0
      %v7824 = vadd.f32 0.0, %v7823
      %v7825 = vpop.f32.mrf.mxu0
      %7826 = vmatprep.mubr.bf16.mxu0 0
      %7827 = vmatmul.mubr.bf16.gmra.mxu0 %v7607
      %v7828 = vpop.f32.mrf.mxu0
      %v7829 = vadd.f32 0.0, %v7828
      %v7830 = vpop.f32.mrf.mxu0
      %v7831 = vpop.f32.mrf.mxu0
      %v7832 = vadd.f32 0.0, %v7831
      %v7833 = vpop.f32.mrf.mxu0
      %7834 = vmatprep.mubr.bf16.mxu0 0
      %7835 = vmatmul.mubr.bf16.gmra.mxu0 %v7610
      %v7836 = vpop.f32.mrf.mxu0
      %v7837 = vadd.f32 0.0, %v7836
      %v7838 = vpop.f32.mrf.mxu0
      %v7839 = vpop.f32.mrf.mxu0
      %v7840 = vadd.f32 0.0, %v7839
      %v7841 = vpop.f32.mrf.mxu0
      %7842 = vmatprep.mubr.bf16.mxu0 0
      %7843 = vmatmul.mubr.bf16.gmra.mxu0 %v7613
      %v7844 = vpop.f32.mrf.mxu0
      %v7845 = vadd.f32 0.0, %v7844
      %v7846 = vpop.f32.mrf.mxu0
      %v7847 = vpop.f32.mrf.mxu0
      %v7848 = vadd.f32 0.0, %v7847
      %v7849 = vpop.f32.mrf.mxu0
      %7850 = vmatprep.mubr.bf16.mxu0 0
      %7851 = vmatmul.mubr.bf16.gmra.mxu0 %v7616
      %v7852 = vpop.f32.mrf.mxu0
      %v7853 = vadd.f32 0.0, %v7852
      %v7854 = vpop.f32.mrf.mxu0
      %v7855 = vpop.f32.mrf.mxu0
      %v7856 = vpop.f32.mrf.mxu0
      %7857 = vmatprep.mubr.bf16.mxu0 0
      %7858 = vmatmul.mubr.bf16.gmra.mxu0 %v7619
      %v7859 = vpop.f32.mrf.mxu0
      %v7860 = vpop.f32.mrf.mxu0
      %v7861 = vpop.f32.mrf.mxu0
      %v7862 = vpop.f32.mrf.mxu0
      %7863 = vdwg.mxu0
      %v7864 = vadd.f32 %v7070, %v7664
      %v7865 = vadd.f32 %v7071, %v7669
      %v7866 = vadd.f32 %v7072, %v7672
      %v7867 = vadd.f32 %v7073, %v7677
      %v7868 = vadd.f32 %v7074, %v7680
      %v7869 = vadd.f32 %v7075, %v7685
      %v7870 = vadd.f32 %v7076, %v7688
      %v7871 = vadd.f32 %v7077, %v7693
      %v7872 = vadd.f32 %v7078, %v7696
      %v7873 = vadd.f32 %v7079, %v7701
      %v7874 = vadd.f32 %v7080, %v7704
      %v7875 = vadd.f32 %v7081, %v7709
      %v7876 = vadd.f32 %v7082, %v7712
      %v7877 = vadd.f32 %v7083, %v7717
      %v7878 = vadd.f32 %v7084, %v7720
      %v7879 = vadd.f32 %v7085, %v7725
      %v7880 = vadd.f32 %v7086, %v7728
      %v7881 = vadd.f32 %v7087, %v7733
      %v7882 = vadd.f32 %v7088, %v7736
      %v7883 = vadd.f32 %v7089, %v7741
      %v7884 = vadd.f32 %v7090, %v7744
      %v7885 = vadd.f32 %v7091, %v7749
      %v7886 = vadd.f32 %v7092, %v7752
      %v7887 = vadd.f32 %v7093, %v7757
      %v7888 = vadd.f32 %v7094, %v7760
      %v7889 = vadd.f32 %v7095, %v7765
      %v7890 = vadd.f32 %v7096, %v7768
      %v7891 = vadd.f32 %v7097, %v7773
      %v7892 = vadd.f32 %v7098, %v7776
      %v7893 = vadd.f32 %v7099, %v7781
      %v7894 = vadd.f32 %v7100, %v7784
      %v7895 = vadd.f32 %v7101, %v7789
      %v7896 = vadd.f32 %v7102, %v7792
      %v7897 = vadd.f32 %v7103, %v7797
      %v7898 = vadd.f32 %v7104, %v7800
      %v7899 = vadd.f32 %v7105, %v7805
      %v7900 = vadd.f32 %v7106, %v7808
      %v7901 = vadd.f32 %v7107, %v7813
      %v7902 = vadd.f32 %v7108, %v7816
      %v7903 = vadd.f32 %v7109, %v7821
      %v7904 = vadd.f32 %v7110, %v7824
      %v7905 = vadd.f32 %v7111, %v7829
      %v7906 = vadd.f32 %v7112, %v7832
      %v7907 = vadd.f32 %v7113, %v7837
      %v7908 = vadd.f32 %v7114, %v7840
      %v7909 = vadd.f32 %v7115, %v7845
      %v7910 = vadd.f32 %v7116, %v7848
      %v7911 = vadd.f32 %v7117, %v7853
      %v7912 = vld [vmem:[%s5] sm:$0x1]
      %v7914 = vlaneseq
      %v7915 = vshrl.u32 %v7914, 7
      %v7916 = vsub.s32 0, %v7915
      %v7917 = vrot.slane %v7912, %v7916
      %v7919 = vadd.f32 %v7864, %v7917
      %v7920 = vadd.f32 %v7865, %v7917
      %v7921 = vadd.f32 %v7866, %v7917
      %v7922 = vadd.f32 %v7867, %v7917
      %v7923 = vadd.f32 %v7868, %v7917
      %v7924 = vadd.f32 %v7869, %v7917
      %v7925 = vadd.f32 %v7870, %v7917
      %v7926 = vadd.f32 %v7871, %v7917
      %v7927 = vadd.f32 %v7872, %v7917
      %v7928 = vadd.f32 %v7873, %v7917
      %v7929 = vadd.f32 %v7874, %v7917
      %v7930 = vadd.f32 %v7875, %v7917
      %v7931 = vadd.f32 %v7876, %v7917
      %v7932 = vadd.f32 %v7877, %v7917
      %v7933 = vadd.f32 %v7878, %v7917
      %v7934 = vadd.f32 %v7879, %v7917
      %v7935 = vadd.f32 %v7880, %v7917
      %v7936 = vadd.f32 %v7881, %v7917
      %v7937 = vadd.f32 %v7882, %v7917
      %v7938 = vadd.f32 %v7883, %v7917
      %v7939 = vadd.f32 %v7884, %v7917
      %v7940 = vadd.f32 %v7885, %v7917
      %v7941 = vadd.f32 %v7886, %v7917
      %v7942 = vadd.f32 %v7887, %v7917
      %v7943 = vadd.f32 %v7888, %v7917
      %v7944 = vadd.f32 %v7889, %v7917
      %v7945 = vadd.f32 %v7890, %v7917
      %v7946 = vadd.f32 %v7891, %v7917
      %v7947 = vadd.f32 %v7892, %v7917
      %v7948 = vadd.f32 %v7893, %v7917
      %v7949 = vadd.f32 %v7894, %v7917
      %v7950 = vadd.f32 %v7895, %v7917
      %v7951 = vadd.f32 %v7896, %v7917
      %v7952 = vadd.f32 %v7897, %v7917
      %v7953 = vadd.f32 %v7898, %v7917
      %v7954 = vadd.f32 %v7899, %v7917
      %v7955 = vadd.f32 %v7900, %v7917
      %v7956 = vadd.f32 %v7901, %v7917
      %v7957 = vadd.f32 %v7902, %v7917
      %v7958 = vadd.f32 %v7903, %v7917
      %v7959 = vadd.f32 %v7904, %v7917
      %v7960 = vadd.f32 %v7905, %v7917
      %v7961 = vadd.f32 %v7906, %v7917
      %v7962 = vadd.f32 %v7907, %v7917
      %v7963 = vadd.f32 %v7908, %v7917
      %v7964 = vadd.f32 %v7909, %v7917
      %v7965 = vadd.f32 %v7910, %v7917
      %v7966 = vadd.f32 %v7911, %v7917
      %v7967 = vxor.u32 %v7919, 2147483648
      %v7968 = vxor.u32 %v7920, 2147483648
      %v7969 = vxor.u32 %v7921, 2147483648
      %v7970 = vxor.u32 %v7922, 2147483648
      %v7971 = vxor.u32 %v7923, 2147483648
      %v7972 = vxor.u32 %v7924, 2147483648
      %v7973 = vxor.u32 %v7925, 2147483648
      %v7974 = vxor.u32 %v7926, 2147483648
      %v7975 = vxor.u32 %v7927, 2147483648
      %v7976 = vxor.u32 %v7928, 2147483648
      %v7977 = vxor.u32 %v7929, 2147483648
      %v7978 = vxor.u32 %v7930, 2147483648
      %v7979 = vxor.u32 %v7931, 2147483648
      %v7980 = vxor.u32 %v7932, 2147483648
      %v7981 = vxor.u32 %v7933, 2147483648
      %v7982 = vxor.u32 %v7934, 2147483648
      %v7983 = vxor.u32 %v7935, 2147483648
      %v7984 = vxor.u32 %v7936, 2147483648
      %v7985 = vxor.u32 %v7937, 2147483648
      %v7986 = vxor.u32 %v7938, 2147483648
      %v7987 = vxor.u32 %v7939, 2147483648
      %v7988 = vxor.u32 %v7940, 2147483648
      %v7989 = vxor.u32 %v7941, 2147483648
      %v7990 = vxor.u32 %v7942, 2147483648
      %v7991 = vxor.u32 %v7943, 2147483648
      %v7992 = vxor.u32 %v7944, 2147483648
      %v7993 = vxor.u32 %v7945, 2147483648
      %v7994 = vxor.u32 %v7946, 2147483648
      %v7995 = vxor.u32 %v7947, 2147483648
      %v7996 = vxor.u32 %v7948, 2147483648
      %v7997 = vxor.u32 %v7949, 2147483648
      %v7998 = vxor.u32 %v7950, 2147483648
      %v7999 = vxor.u32 %v7951, 2147483648
      %v8000 = vxor.u32 %v7952, 2147483648
      %v8001 = vxor.u32 %v7953, 2147483648
      %v8002 = vxor.u32 %v7954, 2147483648
      %v8003 = vxor.u32 %v7955, 2147483648
      %v8004 = vxor.u32 %v7956, 2147483648
      %v8005 = vxor.u32 %v7957, 2147483648
      %v8006 = vxor.u32 %v7958, 2147483648
      %v8007 = vxor.u32 %v7959, 2147483648
      %v8008 = vxor.u32 %v7960, 2147483648
      %v8009 = vxor.u32 %v7961, 2147483648
      %v8010 = vxor.u32 %v7962, 2147483648
      %v8011 = vxor.u32 %v7963, 2147483648
      %v8012 = vxor.u32 %v7964, 2147483648
      %v8013 = vxor.u32 %v7965, 2147483648
      %v8014 = vxor.u32 %v7966, 2147483648
      %v8015 = vmul.f32 %v7967, 1.442695
      %v8016 = vpow.pop %v8015
      %v8017 = vmul.f32 %v7968, 1.442695
      %v8018 = vpow.pop %v8017
      %v8019 = vmul.f32 %v7969, 1.442695
      %v8020 = vpow.pop %v8019
      %v8021 = vmul.f32 %v7970, 1.442695
      %v8022 = vpow.pop %v8021
      %v8023 = vmul.f32 %v7971, 1.442695
      %v8024 = vpow.pop %v8023
      %v8025 = vmul.f32 %v7972, 1.442695
      %v8026 = vpow.pop %v8025
      %v8027 = vmul.f32 %v7973, 1.442695
      %v8028 = vpow.pop %v8027
      %v8029 = vmul.f32 %v7974, 1.442695
      %v8030 = vpow.pop %v8029
      %v8031 = vmul.f32 %v7975, 1.442695
      %v8032 = vpow.pop %v8031
      %v8033 = vmul.f32 %v7976, 1.442695
      %v8034 = vpow.pop %v8033
      %v8035 = vmul.f32 %v7977, 1.442695
      %v8036 = vpow.pop %v8035
      %v8037 = vmul.f32 %v7978, 1.442695
      %v8038 = vpow.pop %v8037
      %v8039 = vmul.f32 %v7979, 1.442695
      %v8040 = vpow.pop %v8039
      %v8041 = vmul.f32 %v7980, 1.442695
      %v8042 = vpow.pop %v8041
      %v8043 = vmul.f32 %v7981, 1.442695
      %v8044 = vpow.pop %v8043
      %v8045 = vmul.f32 %v7982, 1.442695
      %v8046 = vpow.pop %v8045
      %v8047 = vmul.f32 %v7983, 1.442695
      %v8048 = vpow.pop %v8047
      %v8049 = vmul.f32 %v7984, 1.442695
      %v8050 = vpow.pop %v8049
      %v8051 = vmul.f32 %v7985, 1.442695
      %v8052 = vpow.pop %v8051
      %v8053 = vmul.f32 %v7986, 1.442695
      %v8054 = vpow.pop %v8053
      %v8055 = vmul.f32 %v7987, 1.442695
      %v8056 = vpow.pop %v8055
      %v8057 = vmul.f32 %v7988, 1.442695
      %v8058 = vpow.pop %v8057
      %v8059 = vmul.f32 %v7989, 1.442695
      %v8060 = vpow.pop %v8059
      %v8061 = vmul.f32 %v7990, 1.442695
      %v8062 = vpow.pop %v8061
      %v8063 = vmul.f32 %v7991, 1.442695
      %v8064 = vpow.pop %v8063
      %v8065 = vmul.f32 %v7992, 1.442695
      %v8066 = vpow.pop %v8065
      %v8067 = vmul.f32 %v7993, 1.442695
      %v8068 = vpow.pop %v8067
      %v8069 = vmul.f32 %v7994, 1.442695
      %v8070 = vpow.pop %v8069
      %v8071 = vmul.f32 %v7995, 1.442695
      %v8072 = vpow.pop %v8071
      %v8073 = vmul.f32 %v7996, 1.442695
      %v8074 = vpow.pop %v8073
      %v8075 = vmul.f32 %v7997, 1.442695
      %v8076 = vpow.pop %v8075
      %v8077 = vmul.f32 %v7998, 1.442695
      %v8078 = vpow.pop %v8077
      %v8079 = vmul.f32 %v7999, 1.442695
      %v8080 = vpow.pop %v8079
      %v8081 = vmul.f32 %v8000, 1.442695
      %v8082 = vpow.pop %v8081
      %v8083 = vmul.f32 %v8001, 1.442695
      %v8084 = vpow.pop %v8083
      %v8085 = vmul.f32 %v8002, 1.442695
      %v8086 = vpow.pop %v8085
      %v8087 = vmul.f32 %v8003, 1.442695
      %v8088 = vpow.pop %v8087
      %v8089 = vmul.f32 %v8004, 1.442695
      %v8090 = vpow.pop %v8089
      %v8091 = vmul.f32 %v8005, 1.442695
      %v8092 = vpow.pop %v8091
      %v8093 = vmul.f32 %v8006, 1.442695
      %v8094 = vpow.pop %v8093
      %v8095 = vmul.f32 %v8007, 1.442695
      %v8096 = vpow.pop %v8095
      %v8097 = vmul.f32 %v8008, 1.442695
      %v8098 = vpow.pop %v8097
      %v8099 = vmul.f32 %v8009, 1.442695
      %v8100 = vpow.pop %v8099
      %v8101 = vmul.f32 %v8010, 1.442695
      %v8102 = vpow.pop %v8101
      %v8103 = vmul.f32 %v8011, 1.442695
      %v8104 = vpow.pop %v8103
      %v8105 = vmul.f32 %v8012, 1.442695
      %v8106 = vpow.pop %v8105
      %v8107 = vmul.f32 %v8013, 1.442695
      %v8108 = vpow.pop %v8107
      %v8109 = vmul.f32 %v8014, 1.442695
      %v8110 = vpow.pop %v8109
      %v8111 = vadd.f32 %v8016, 1.0
      %v8112 = vadd.f32 %v8018, 1.0
      %v8113 = vadd.f32 %v8020, 1.0
      %v8114 = vadd.f32 %v8022, 1.0
      %v8115 = vadd.f32 %v8024, 1.0
      %v8116 = vadd.f32 %v8026, 1.0
      %v8117 = vadd.f32 %v8028, 1.0
      %v8118 = vadd.f32 %v8030, 1.0
      %v8119 = vadd.f32 %v8032, 1.0
      %v8120 = vadd.f32 %v8034, 1.0
      %v8121 = vadd.f32 %v8036, 1.0
      %v8122 = vadd.f32 %v8038, 1.0
      %v8123 = vadd.f32 %v8040, 1.0
      %v8124 = vadd.f32 %v8042, 1.0
      %v8125 = vadd.f32 %v8044, 1.0
      %v8126 = vadd.f32 %v8046, 1.0
      %v8127 = vadd.f32 %v8048, 1.0
      %v8128 = vadd.f32 %v8050, 1.0
      %v8129 = vadd.f32 %v8052, 1.0
      %v8130 = vadd.f32 %v8054, 1.0
      %v8131 = vadd.f32 %v8056, 1.0
      %v8132 = vadd.f32 %v8058, 1.0
      %v8133 = vadd.f32 %v8060, 1.0
      %v8134 = vadd.f32 %v8062, 1.0
      %v8135 = vadd.f32 %v8064, 1.0
      %v8136 = vadd.f32 %v8066, 1.0
      %v8137 = vadd.f32 %v8068, 1.0
      %v8138 = vadd.f32 %v8070, 1.0
      %v8139 = vadd.f32 %v8072, 1.0
      %v8140 = vadd.f32 %v8074, 1.0
      %v8141 = vadd.f32 %v8076, 1.0
      %v8142 = vadd.f32 %v8078, 1.0
      %v8143 = vadd.f32 %v8080, 1.0
      %v8144 = vadd.f32 %v8082, 1.0
      %v8145 = vadd.f32 %v8084, 1.0
      %v8146 = vadd.f32 %v8086, 1.0
      %v8147 = vadd.f32 %v8088, 1.0
      %v8148 = vadd.f32 %v8090, 1.0
      %v8149 = vadd.f32 %v8092, 1.0
      %v8150 = vadd.f32 %v8094, 1.0
      %v8151 = vadd.f32 %v8096, 1.0
      %v8152 = vadd.f32 %v8098, 1.0
      %v8153 = vadd.f32 %v8100, 1.0
      %v8154 = vadd.f32 %v8102, 1.0
      %v8155 = vadd.f32 %v8104, 1.0
      %v8156 = vadd.f32 %v8106, 1.0
      %v8157 = vadd.f32 %v8108, 1.0
      %v8158 = vadd.f32 %v8110, 1.0
      %v8159 = vrcp.pop %v8111
      %v8160 = vmul.f32 1.0, %v8159
      %v8161 = vrcp.pop %v8112
      %v8162 = vmul.f32 1.0, %v8161
      %v8163 = vrcp.pop %v8113
      %v8164 = vmul.f32 1.0, %v8163
      %v8165 = vrcp.pop %v8114
      %v8166 = vmul.f32 1.0, %v8165
      %v8167 = vrcp.pop %v8115
      %v8168 = vmul.f32 1.0, %v8167
      %v8169 = vrcp.pop %v8116
      %v8170 = vmul.f32 1.0, %v8169
      %v8171 = vrcp.pop %v8117
      %v8172 = vmul.f32 1.0, %v8171
      %v8173 = vrcp.pop %v8118
      %v8174 = vmul.f32 1.0, %v8173
      %v8175 = vrcp.pop %v8119
      %v8176 = vmul.f32 1.0, %v8175
      %v8177 = vrcp.pop %v8120
      %v8178 = vmul.f32 1.0, %v8177
      %v8179 = vrcp.pop %v8121
      %v8180 = vmul.f32 1.0, %v8179
      %v8181 = vrcp.pop %v8122
      %v8182 = vmul.f32 1.0, %v8181
      %v8183 = vrcp.pop %v8123
      %v8184 = vmul.f32 1.0, %v8183
      %v8185 = vrcp.pop %v8124
      %v8186 = vmul.f32 1.0, %v8185
      %v8187 = vrcp.pop %v8125
      %v8188 = vmul.f32 1.0, %v8187
      %v8189 = vrcp.pop %v8126
      %v8190 = vmul.f32 1.0, %v8189
      %v8191 = vrcp.pop %v8127
      %v8192 = vmul.f32 1.0, %v8191
      %v8193 = vrcp.pop %v8128
      %v8194 = vmul.f32 1.0, %v8193
      %v8195 = vrcp.pop %v8129
      %v8196 = vmul.f32 1.0, %v8195
      %v8197 = vrcp.pop %v8130
      %v8198 = vmul.f32 1.0, %v8197
      %v8199 = vrcp.pop %v8131
      %v8200 = vmul.f32 1.0, %v8199
      %v8201 = vrcp.pop %v8132
      %v8202 = vmul.f32 1.0, %v8201
      %v8203 = vrcp.pop %v8133
      %v8204 = vmul.f32 1.0, %v8203
      %v8205 = vrcp.pop %v8134
      %v8206 = vmul.f32 1.0, %v8205
      %v8207 = vrcp.pop %v8135
      %v8208 = vmul.f32 1.0, %v8207
      %v8209 = vrcp.pop %v8136
      %v8210 = vmul.f32 1.0, %v8209
      %v8211 = vrcp.pop %v8137
      %v8212 = vmul.f32 1.0, %v8211
      %v8213 = vrcp.pop %v8138
      %v8214 = vmul.f32 1.0, %v8213
      %v8215 = vrcp.pop %v8139
      %v8216 = vmul.f32 1.0, %v8215
      %v8217 = vrcp.pop %v8140
      %v8218 = vmul.f32 1.0, %v8217
      %v8219 = vrcp.pop %v8141
      %v8220 = vmul.f32 1.0, %v8219
      %v8221 = vrcp.pop %v8142
      %v8222 = vmul.f32 1.0, %v8221
      %v8223 = vrcp.pop %v8143
      %v8224 = vmul.f32 1.0, %v8223
      %v8225 = vrcp.pop %v8144
      %v8226 = vmul.f32 1.0, %v8225
      %v8227 = vrcp.pop %v8145
      %v8228 = vmul.f32 1.0, %v8227
      %v8229 = vrcp.pop %v8146
      %v8230 = vmul.f32 1.0, %v8229
      %v8231 = vrcp.pop %v8147
      %v8232 = vmul.f32 1.0, %v8231
      %v8233 = vrcp.pop %v8148
      %v8234 = vmul.f32 1.0, %v8233
      %v8235 = vrcp.pop %v8149
      %v8236 = vmul.f32 1.0, %v8235
      %v8237 = vrcp.pop %v8150
      %v8238 = vmul.f32 1.0, %v8237
      %v8239 = vrcp.pop %v8151
      %v8240 = vmul.f32 1.0, %v8239
      %v8241 = vrcp.pop %v8152
      %v8242 = vmul.f32 1.0, %v8241
      %v8243 = vrcp.pop %v8153
      %v8244 = vmul.f32 1.0, %v8243
      %v8245 = vrcp.pop %v8154
      %v8246 = vmul.f32 1.0, %v8245
      %v8247 = vrcp.pop %v8155
      %v8248 = vmul.f32 1.0, %v8247
      %v8249 = vrcp.pop %v8156
      %v8250 = vmul.f32 1.0, %v8249
      %v8251 = vrcp.pop %v8157
      %v8252 = vmul.f32 1.0, %v8251
      %v8253 = vrcp.pop %v8158
      %v8254 = vmul.f32 1.0, %v8253
      %v8255 = vmul.f32 %v7919, %v8160
      %v8256 = vmul.f32 %v7920, %v8162
      %v8257 = vmul.f32 %v7921, %v8164
      %v8258 = vmul.f32 %v7922, %v8166
      %v8259 = vmul.f32 %v7923, %v8168
      %v8260 = vmul.f32 %v7924, %v8170
      %v8261 = vmul.f32 %v7925, %v8172
      %v8262 = vmul.f32 %v7926, %v8174
      %v8263 = vmul.f32 %v7927, %v8176
      %v8264 = vmul.f32 %v7928, %v8178
      %v8265 = vmul.f32 %v7929, %v8180
      %v8266 = vmul.f32 %v7930, %v8182
      %v8267 = vmul.f32 %v7931, %v8184
      %v8268 = vmul.f32 %v7932, %v8186
      %v8269 = vmul.f32 %v7933, %v8188
      %v8270 = vmul.f32 %v7934, %v8190
      %v8271 = vmul.f32 %v7935, %v8192
      %v8272 = vmul.f32 %v7936, %v8194
      %v8273 = vmul.f32 %v7937, %v8196
      %v8274 = vmul.f32 %v7938, %v8198
      %v8275 = vmul.f32 %v7939, %v8200
      %v8276 = vmul.f32 %v7940, %v8202
      %v8277 = vmul.f32 %v7941, %v8204
      %v8278 = vmul.f32 %v7942, %v8206
      %v8279 = vmul.f32 %v7943, %v8208
      %v8280 = vmul.f32 %v7944, %v8210
      %v8281 = vmul.f32 %v7945, %v8212
      %v8282 = vmul.f32 %v7946, %v8214
      %v8283 = vmul.f32 %v7947, %v8216
      %v8284 = vmul.f32 %v7948, %v8218
      %v8285 = vmul.f32 %v7949, %v8220
      %v8286 = vmul.f32 %v7950, %v8222
      %v8287 = vmul.f32 %v7951, %v8224
      %v8288 = vmul.f32 %v7952, %v8226
      %v8289 = vmul.f32 %v7953, %v8228
      %v8290 = vmul.f32 %v7954, %v8230
      %v8291 = vmul.f32 %v7955, %v8232
      %v8292 = vmul.f32 %v7956, %v8234
      %v8293 = vmul.f32 %v7957, %v8236
      %v8294 = vmul.f32 %v7958, %v8238
      %v8295 = vmul.f32 %v7959, %v8240
      %v8296 = vmul.f32 %v7960, %v8242
      %v8297 = vmul.f32 %v7961, %v8244
      %v8298 = vmul.f32 %v7962, %v8246
      %v8299 = vmul.f32 %v7963, %v8248
      %v8300 = vmul.f32 %v7964, %v8250
      %v8301 = vmul.f32 %v7965, %v8252
      %v8302 = vmul.f32 %v7966, %v8254
      %v8303 = vld [vmem:[#allocation3] sm:$0xff]
      %v8304 = vld [vmem:[#allocation3 + $0x8] sm:$0xff]
      %v8305 = vld [vmem:[#allocation3 + $0x10] sm:$0xff]
      %v8306 = vld [vmem:[#allocation3 + $0x18] sm:$0xff]
      %v8307 = vld [vmem:[#allocation3 + $0x20] sm:$0xff]
      %v8308 = vld [vmem:[#allocation3 + $0x28] sm:$0xff]
      %v8309 = vld [vmem:[#allocation3 + $0x30] sm:$0xff]
      %v8310 = vld [vmem:[#allocation3 + $0x38] sm:$0xff]
      %v8311 = vld [vmem:[#allocation3 + $0x40] sm:$0xff]
      %v8312 = vld [vmem:[#allocation3 + $0x48] sm:$0xff]
      %v8313 = vld [vmem:[#allocation3 + $0x50] sm:$0xff]
      %v8314 = vld [vmem:[#allocation3 + $0x58] sm:$0xff]
      %v8315 = vld [vmem:[#allocation3 + $0x60] sm:$0xff]
      %v8316 = vld [vmem:[#allocation3 + $0x68] sm:$0xff]
      %v8317 = vld [vmem:[#allocation3 + $0x70] sm:$0xff]
      %v8318 = vld [vmem:[#allocation3 + $0x78] sm:$0xff]
      %v8319 = vld [vmem:[#allocation3 + $0x80] sm:$0xff]
      %v8320 = vld [vmem:[#allocation3 + $0x88] sm:$0xff]
      %v8321 = vld [vmem:[#allocation3 + $0x90] sm:$0xff]
      %v8322 = vld [vmem:[#allocation3 + $0x98] sm:$0xff]
      %v8323 = vld [vmem:[#allocation3 + $0xa0] sm:$0xff]
      %v8324 = vld [vmem:[#allocation3 + $0xa8] sm:$0xff]
      %v8325 = vld [vmem:[#allocation3 + $0xb0] sm:$0xff]
      %v8326 = vld [vmem:[#allocation3 + $0xb8] sm:$0xff]
      %v8327 = vld [vmem:[#allocation3 + $0xc0] sm:$0xff]
      %v8328 = vld [vmem:[#allocation3 + $0xc8] sm:$0xff]
      %v8329 = vld [vmem:[#allocation3 + $0xd0] sm:$0xff]
      %v8330 = vld [vmem:[#allocation3 + $0xd8] sm:$0xff]
      %v8331 = vld [vmem:[#allocation3 + $0xe0] sm:$0xff]
      %v8332 = vld [vmem:[#allocation3 + $0xe8] sm:$0xff]
      %v8333 = vld [vmem:[#allocation3 + $0xf0] sm:$0xff]
      %v8334 = vld [vmem:[#allocation3 + $0xf8] sm:$0xff]
      %v8335 = vld [vmem:[#allocation3 + $0x100] sm:$0xff]
      %v8336 = vld [vmem:[#allocation3 + $0x108] sm:$0xff]
      %v8337 = vld [vmem:[#allocation3 + $0x110] sm:$0xff]
      %v8338 = vld [vmem:[#allocation3 + $0x118] sm:$0xff]
      %v8339 = vld [vmem:[#allocation3 + $0x120] sm:$0xff]
      %v8340 = vld [vmem:[#allocation3 + $0x128] sm:$0xff]
      %v8341 = vld [vmem:[#allocation3 + $0x130] sm:$0xff]
      %v8342 = vld [vmem:[#allocation3 + $0x138] sm:$0xff]
      %v8343 = vld [vmem:[#allocation3 + $0x140] sm:$0xff]
      %v8344 = vld [vmem:[#allocation3 + $0x148] sm:$0xff]
      %v8345 = vld [vmem:[#allocation3 + $0x150] sm:$0xff]
      %v8346 = vld [vmem:[#allocation3 + $0x158] sm:$0xff]
      %v8347 = vld [vmem:[#allocation3 + $0x160] sm:$0xff]
      %v8348 = vld [vmem:[#allocation3 + $0x168] sm:$0xff]
      %v8349 = vld [vmem:[#allocation3 + $0x170] sm:$0xff]
      %v8350 = vld [vmem:[#allocation3 + $0x178] sm:$0xff]
      %v8351 = vadd.f32 %v8255, %v8303
      %v8352 = vadd.f32 %v8256, %v8304
      %v8353 = vadd.f32 %v8257, %v8305
      %v8354 = vadd.f32 %v8258, %v8306
      %v8355 = vadd.f32 %v8259, %v8307
      %v8356 = vadd.f32 %v8260, %v8308
      %v8357 = vadd.f32 %v8261, %v8309
      %v8358 = vadd.f32 %v8262, %v8310
      %v8359 = vadd.f32 %v8263, %v8311
      %v8360 = vadd.f32 %v8264, %v8312
      %v8361 = vadd.f32 %v8265, %v8313
      %v8362 = vadd.f32 %v8266, %v8314
      %v8363 = vadd.f32 %v8267, %v8315
      %v8364 = vadd.f32 %v8268, %v8316
      %v8365 = vadd.f32 %v8269, %v8317
      %v8366 = vadd.f32 %v8270, %v8318
      %v8367 = vadd.f32 %v8271, %v8319
      %v8368 = vadd.f32 %v8272, %v8320
      %v8369 = vadd.f32 %v8273, %v8321
      %v8370 = vadd.f32 %v8274, %v8322
      %v8371 = vadd.f32 %v8275, %v8323
      %v8372 = vadd.f32 %v8276, %v8324
      %v8373 = vadd.f32 %v8277, %v8325
      %v8374 = vadd.f32 %v8278, %v8326
      %v8375 = vadd.f32 %v8279, %v8327
      %v8376 = vadd.f32 %v8280, %v8328
      %v8377 = vadd.f32 %v8281, %v8329
      %v8378 = vadd.f32 %v8282, %v8330
      %v8379 = vadd.f32 %v8283, %v8331
      %v8380 = vadd.f32 %v8284, %v8332
      %v8381 = vadd.f32 %v8285, %v8333
      %v8382 = vadd.f32 %v8286, %v8334
      %v8383 = vadd.f32 %v8287, %v8335
      %v8384 = vadd.f32 %v8288, %v8336
      %v8385 = vadd.f32 %v8289, %v8337
      %v8386 = vadd.f32 %v8290, %v8338
      %v8387 = vadd.f32 %v8291, %v8339
      %v8388 = vadd.f32 %v8292, %v8340
      %v8389 = vadd.f32 %v8293, %v8341
      %v8390 = vadd.f32 %v8294, %v8342
      %v8391 = vadd.f32 %v8295, %v8343
      %v8392 = vadd.f32 %v8296, %v8344
      %v8393 = vadd.f32 %v8297, %v8345
      %v8394 = vadd.f32 %v8298, %v8346
      %v8395 = vadd.f32 %v8299, %v8347
      %v8396 = vadd.f32 %v8300, %v8348
      %v8397 = vadd.f32 %v8301, %v8349
      %v8398 = vadd.f32 %v8302, %v8350
      %8399 = vst.msk [vmem:[%s307] sm:$0xff] %vm1598, %v8351
      %8400 = vst.msk [vmem:[%s307 + $0x8] sm:$0xff] %vm1598, %v8352
      %8401 = vst.msk [vmem:[%s307 + $0x10] sm:$0xff] %vm1598, %v8353
      %8402 = vst.msk [vmem:[%s307 + $0x18] sm:$0xff] %vm1598, %v8354
      %8403 = vst.msk [vmem:[%s307 + $0x20] sm:$0xff] %vm1598, %v8355
      %8404 = vst.msk [vmem:[%s307 + $0x28] sm:$0xff] %vm1598, %v8356
      %8405 = vst.msk [vmem:[%s307 + $0x30] sm:$0xff] %vm1598, %v8357
      %8406 = vst.msk [vmem:[%s307 + $0x38] sm:$0xff] %vm1598, %v8358
      %8407 = vst.msk [vmem:[%s307 + $0x40] sm:$0xff] %vm1598, %v8359
      %8408 = vst.msk [vmem:[%s307 + $0x48] sm:$0xff] %vm1598, %v8360
      %8409 = vst.msk [vmem:[%s307 + $0x50] sm:$0xff] %vm1598, %v8361
      %8410 = vst.msk [vmem:[%s307 + $0x58] sm:$0xff] %vm1598, %v8362
      %8411 = vst.msk [vmem:[%s307 + $0x60] sm:$0xff] %vm1598, %v8363
      %8412 = vst.msk [vmem:[%s307 + $0x68] sm:$0xff] %vm1598, %v8364
      %8413 = vst.msk [vmem:[%s307 + $0x70] sm:$0xff] %vm1598, %v8365
      %8414 = vst.msk [vmem:[%s307 + $0x78] sm:$0xff] %vm1598, %v8366
      %8415 = vst.msk [vmem:[%s307 + $0x80] sm:$0xff] %vm1598, %v8367
      %8416 = vst.msk [vmem:[%s307 + $0x88] sm:$0xff] %vm1598, %v8368
      %8417 = vst.msk [vmem:[%s307 + $0x90] sm:$0xff] %vm1598, %v8369
      %8418 = vst.msk [vmem:[%s307 + $0x98] sm:$0xff] %vm1598, %v8370
      %8419 = vst.msk [vmem:[%s307 + $0xa0] sm:$0xff] %vm1598, %v8371
      %8420 = vst.msk [vmem:[%s307 + $0xa8] sm:$0xff] %vm1598, %v8372
      %8421 = vst.msk [vmem:[%s307 + $0xb0] sm:$0xff] %vm1598, %v8373
      %8422 = vst.msk [vmem:[%s307 + $0xb8] sm:$0xff] %vm1598, %v8374
      %8423 = vst.msk [vmem:[%s307 + $0xc0] sm:$0xff] %vm1598, %v8375
      %8424 = vst.msk [vmem:[%s307 + $0xc8] sm:$0xff] %vm1598, %v8376
      %8425 = vst.msk [vmem:[%s307 + $0xd0] sm:$0xff] %vm1598, %v8377
      %8426 = vst.msk [vmem:[%s307 + $0xd8] sm:$0xff] %vm1598, %v8378
      %8427 = vst.msk [vmem:[%s307 + $0xe0] sm:$0xff] %vm1598, %v8379
      %8428 = vst.msk [vmem:[%s307 + $0xe8] sm:$0xff] %vm1598, %v8380
      %8429 = vst.msk [vmem:[%s307 + $0xf0] sm:$0xff] %vm1598, %v8381
      %8430 = vst.msk [vmem:[%s307 + $0xf8] sm:$0xff] %vm1598, %v8382
      %8431 = vst.msk [vmem:[%s307 + $0x100] sm:$0xff] %vm1598, %v8383
      %8432 = vst.msk [vmem:[%s307 + $0x108] sm:$0xff] %vm1598, %v8384
      %8433 = vst.msk [vmem:[%s307 + $0x110] sm:$0xff] %vm1598, %v8385
      %8434 = vst.msk [vmem:[%s307 + $0x118] sm:$0xff] %vm1598, %v8386
      %8435 = vst.msk [vmem:[%s307 + $0x120] sm:$0xff] %vm1598, %v8387
      %8436 = vst.msk [vmem:[%s307 + $0x128] sm:$0xff] %vm1598, %v8388
      %8437 = vst.msk [vmem:[%s307 + $0x130] sm:$0xff] %vm1598, %v8389
      %8438 = vst.msk [vmem:[%s307 + $0x138] sm:$0xff] %vm1598, %v8390
      %8439 = vst.msk [vmem:[%s307 + $0x140] sm:$0xff] %vm1598, %v8391
      %8440 = vst.msk [vmem:[%s307 + $0x148] sm:$0xff] %vm1598, %v8392
      %8441 = vst.msk [vmem:[%s307 + $0x150] sm:$0xff] %vm1598, %v8393
      %8442 = vst.msk [vmem:[%s307 + $0x158] sm:$0xff] %vm1598, %v8394
      %8443 = vst.msk [vmem:[%s307 + $0x160] sm:$0xff] %vm1598, %v8395
      %8444 = vst.msk [vmem:[%s307 + $0x168] sm:$0xff] %vm1598, %v8396
      %8445 = vst.msk [vmem:[%s307 + $0x170] sm:$0xff] %vm1598, %v8397
      %8446 = vst.msk [vmem:[%s307 + $0x178] sm:$0xff] %vm1598, %v8398
      %s8447 = smul.u32 48, %s22
      %p8448 = scmp.lt.s32.totalorder %s21, 1
      %s8449 = scalar_select %p8448, %s21, 1
      %p8450 = scmp.lt.s32.totalorder %s8447, 47
      %s8451 = scalar_select %p8450, %s8447, 47
      %s8452 = smul.addr %s8449, 48
      %s8453 = sadd.s32 %s8451, %s8452
      %s8454 = smul.addr %s8453, 8
      %s8455 = scalar_lea.vmem %s6, %s8454
      // Predicated region
      $region45: #{c1_forward.1} parent=43 // pred_check
        %p8456 = pneg %p187
      $region46: #{c1_forward.1} parent=43 // pred_check_branch
        %8458 = sbr.rel (%p8456) target = $region48
      $region47: #{c1_forward.1} parent=43 // pred_region
        %s8459 = smul.u32 48, %s22
      $region48: #{c1_forward.1} parent=43 // pred_fallthru
        _
    $region44: #{c1_forward.1} parent=5 // pred_fallthru
      _
    %p8460 = scmp.le.s32.totalorder 2, %s12
    // Predicated region
    $region49: #{c1_forward.1} parent=5 // pred_check
      %p8461 = pneg %p8460
    $region50: #{c1_forward.1} parent=5 // pred_check_branch
      %8463 = sbr.rel (%p8461) target = $region52
    $region51: #{c1_forward.1} parent=5 // pred_region
      %s8464 = ssub.s32 %s12, 2
      // Predicated region
      $region53: #{c1_forward.1} parent=51 // pred_check
        %p8465 = pneg %p193
      $region54: #{c1_forward.1} parent=51 // pred_check_branch
        %8467 = sbr.rel (%p8465) target = $region56
      $region55: #{c1_forward.1} parent=51 // pred_region
        %s8468 = smul.u32 48, %s24
        %p8469 = scmp.lt.s32.totalorder %s23, 1
        %s8470 = scalar_select %p8469, %s23, 1
        %p8471 = scmp.lt.s32.totalorder %s8468, 47
        %s8472 = scalar_select %p8471, %s8468, 47
        %s8473 = smul.addr %s8470, 48
        %s8474 = sadd.s32 %s8472, %s8473
        %s8475 = smul.addr %s8474, 8
        %s8476 = scalar_lea.vmem %s6, %s8475
      $region56: #{c1_forward.1} parent=51 // pred_fallthru
        _
    $region52: #{c1_forward.1} parent=5 // pred_fallthru
      _
  $region6: #{c1_forward.1} parent=0 // loop_footer
    %s16 = sadd.s32 1, %s12
  $region7: #{c1_forward.1} parent=0 // loop_footer_branch
    %11 = sbr.rel target = $region3
  $region8: #{c1_forward.1} parent=0 // loop_exit
    _

</llo_original>
